<compile_context>
chip_gen: v6e
topology: v6e:2x2x1
jax: 0.10.0
libtpu: 0.0.40
codegen_flags: <defaults>
</compile_context>

<pallas_src>
import jax
import jax.numpy as jnp
from jax.experimental import pallas as pl
from jax.experimental.pallas import tpu as pltpu


def _round_up(x, m):
    return (x + m - 1) // m * m


def _mlp_kernel(x_ref,
                w1_ref, b1_ref,
                w2_ref, b2_ref,
                w3_ref, b3_ref,
                w4_ref, b4_ref,
                o_ref):
    # x block: (TB, n_in) f32.  w1..w3: bf16 (in, out).  b1..b3: f32 (1, out).
    # w4: f32 (1, H) pre-transposed.  b4: f32 (1, 1) scalar in SMEM.
    x = x_ref[...].astype(jnp.bfloat16)

    h = jnp.dot(x, w1_ref[...], preferred_element_type=jnp.float32) + b1_ref[...]
    h = jnp.maximum(h, 0.1 * h)                      # leaky_relu(0.1): mul + max

    h = jnp.dot(h.astype(jnp.bfloat16), w2_ref[...],
                preferred_element_type=jnp.float32) + b2_ref[...]
    h = jnp.maximum(h, 0.1 * h)

    h = jnp.dot(h.astype(jnp.bfloat16), w3_ref[...],
                preferred_element_type=jnp.float32) + b3_ref[...]
    h = jnp.maximum(h, 0.1 * h)

    # Final layer has N=1: an MXU matmul would use a single systolic column and
    # need a lane-padded (H, 1) weight block.  Do it on the VPU/XLU instead
    # (multiply by the (1, H) f32 weight, reduce along lanes); the MXU is idle
    # here anyway.
    out = jnp.sum(h * w4_ref[...], axis=-1, keepdims=True) + b4_ref[0, 0]
    o_ref[...] = out.astype(o_ref.dtype)             # (TB, 1) store (hidden)


def discriminator_forward(x, params, *, tb=512):
    """x: (B, n_in) float32; params: dict of f32 weights (in,out) / biases (1,out)."""
    B, n_in = x.shape
    H = params["w1"].shape[1]
    assert params["w1"].shape == (n_in, H)

    # ---- pack weights: bf16 halves the dominant HBM weight traffic ---------
    w1 = params["w1"].astype(jnp.bfloat16)
    w2 = params["w2"].astype(jnp.bfloat16)
    w3 = params["w3"].astype(jnp.bfloat16)
    w4t = params["w4"].reshape(1, H).astype(jnp.float32)     # (1, H), f32, VPU path
    b1 = params["b1"].astype(jnp.float32)
    b2 = params["b2"].astype(jnp.float32)
    b3 = params["b3"].astype(jnp.float32)
    b4 = params["b4"].reshape(1, 1).astype(jnp.float32)      # SMEM scalar

    # ---- VMEM budgeting (generation-aware) ----------------------------------
    weight_bytes = 2 * (n_in * H + 2 * H * H) + 4 * H        # bf16 w1..w3, f32 w4
    bias_bytes = 4 * (3 * H + 1)
    fixed_bytes = weight_bytes + bias_bytes                  # single-buffered weights

    def _footprint(tb_c):
        blocks = 2 * (tb_c * n_in * 4 + tb_c * 4)            # dbl-buffered x + out
        acts = tb_c * H * (4 + 4 + 2)                        # 2 live f32 h + bf16 copy
        return fixed_bytes + blocks + acts

    try:
        vmem_capacity = int(pltpu.get_tpu_info().vmem_capacity_bytes)
    except Exception:
        vmem_capacity = 64 << 20                             # conservative: v7x per-TC
    budget = vmem_capacity * 3 // 4                          # headroom for Mosaic scratch

    if _footprint(8) > budget:
        # TODO(synk): add a K/N-tiled path (tile the H axis of w2/w3 with a VMEM
        # activation scratch + pl.when init/finalize) for large `dimension`
        # where the HxH weights no longer fit whole in VMEM (hits v7x first).
        raise NotImplementedError(
            f"weights + minimal tile footprint {_footprint(8) / 2**20:.1f} MiB "
            f"exceeds VMEM budget {budget >> 20} MiB; K/N-tiled path needed")

    # ---- batch tiling: weights stay VMEM-resident across grid steps --------
    TB = _round_up(min(tb, _round_up(B, 8)), 8)              # tiny batch -> 1 step
    while TB > 8 and _footprint(TB) > budget:
        TB = _round_up(max(8, TB // 2), 8)
    B_pad = _round_up(B, TB)
    grid_steps = B_pad // TB
    if B_pad != B:
        x = jnp.pad(x, ((0, B_pad - B), (0, 0)))

    vmem_limit = int(min(vmem_capacity * 9 // 10,
                         max(32 << 20, _footprint(TB) + (16 << 20))))

    # Megacore split only pays when there are >=2 grid steps; otherwise it just
    # duplicates the resident weight DMA into both TCs' VMEM (v7x).
    dims = ("parallel",) if grid_steps >= 2 else ("arbitrary",)

    # ---- advisory cost estimate so XLA overlaps this call -------------------
    flops = 2 * B_pad * (n_in * H + 2 * H * H + H)
    bytes_accessed = 4 * B_pad * n_in + weight_bytes + bias_bytes + 4 * B_pad
    cost = pl.CostEstimate(flops=flops, transcendentals=0,
                           bytes_accessed=bytes_accessed)

    def _resident(shape, single_buffer):
        # Constant index_map: block never changes across the grid, so a single
        # VMEM buffer suffices (halves resident weight VMEM vs the default 2).
        if single_buffer:
            return pl.BlockSpec(shape, lambda i: (0,) * len(shape),
                                pipeline_mode=pl.Buffered(1))
        return pl.BlockSpec(shape, lambda i: (0,) * len(shape))

    def _call(single_buffer_weights):
        in_specs = [
            pl.BlockSpec((TB, n_in), lambda i: (i, 0)),       # x: tiled over batch
            _resident((n_in, H), single_buffer_weights),      # layer 1
            _resident((1, H), single_buffer_weights),
            _resident((H, H), single_buffer_weights),         # layer 2
            _resident((1, H), single_buffer_weights),
            _resident((H, H), single_buffer_weights),         # layer 3
            _resident((1, H), single_buffer_weights),
            _resident((1, H), single_buffer_weights),         # layer 4 weight (VPU)
            pl.BlockSpec(memory_space=pltpu.MemorySpace.SMEM),  # b4 scalar
        ]
        return pl.pallas_call(
            _mlp_kernel,
            out_shape=jax.ShapeDtypeStruct((B_pad, 1), jnp.float32),
            grid=(grid_steps,),
            in_specs=in_specs,
            out_specs=pl.BlockSpec((TB, 1), lambda i: (i, 0)),
            compiler_params=pltpu.CompilerParams(
                dimension_semantics=dims,
                vmem_limit_bytes=vmem_limit,
            ),
            cost_estimate=cost,
        )(x, w1, b1, w2, b2, w3, b3, w4t, b4)

    try:
        out_padded = _call(single_buffer_weights=True)
    except Exception:
        # Fallback for jax versions where pl.Buffered(1) on an input BlockSpec
        # is rejected: default double-buffered weight specs (costs VMEM only).
        out_padded = _call(single_buffer_weights=False)

    return out_padded[:B]


def init_params(key, dimension):
    """Deterministic init mimicking nn.Linear's U(-1/sqrt(fan_in), 1/sqrt(fan_in))."""
    n_in = dimension * 2 * 6
    H = n_in * 8
    shapes = {
        "w1": (n_in, H), "b1": (1, H),
        "w2": (H, H),    "b2": (1, H),
        "w3": (H, H),    "b3": (1, H),
        "w4": (H, 1),    "b4": (1, 1),
    }
    fan_in = {"1": n_in, "2": H, "3": H, "4": H}
    params = {}
    keys = jax.random.split(key, len(shapes))
    for (name, shape), k in zip(shapes.items(), keys):
        bound = 1.0 / jnp.sqrt(jnp.float32(fan_in[name[-1]]))
        params[name] = jax.random.uniform(
            k, shape, dtype=jnp.float32, minval=-bound, maxval=bound)
    return params


def _leaky(x):
    return jnp.maximum(x, 0.1 * x)


def reference_forward_kernel_precision(x, p):
    """Pure-JAX reference using the kernel's bf16-weight / f32-accumulate scheme."""
    def mm(a, w):
        return jnp.dot(a.astype(jnp.bfloat16), w.astype(jnp.bfloat16),
                       preferred_element_type=jnp.float32)
    h = _leaky(mm(x, p["w1"]) + p["b1"])
    h = _leaky(mm(h, p["w2"]) + p["b2"])
    h = _leaky(mm(h, p["w3"]) + p["b3"])
    w4 = p["w4"].reshape(1, -1).astype(jnp.float32)
    return jnp.sum(h * w4, axis=-1, keepdims=True) + p["b4"]


def reference_forward_f32(x, p):
    """Pure-f32 reference matching the PyTorch module's semantics."""
    hp = jax.lax.Precision.HIGHEST
    h = _leaky(jnp.dot(x, p["w1"], precision=hp) + p["b1"])
    h = _leaky(jnp.dot(h, p["w2"], precision=hp) + p["b2"])
    h = _leaky(jnp.dot(h, p["w3"], precision=hp) + p["b3"])
    return jnp.dot(h, p["w4"], precision=hp) + p["b4"]


if __name__ == "__main__":
    dimension = 8     # n_in = 96, hidden = 768
    batch = 20        # non-multiple of 8: exercises padding

    key = jax.random.PRNGKey(0)
    kx, kp = jax.random.split(key)

    n_in = dimension * 2 * 6
    x = jax.random.normal(kx, (batch, n_in), dtype=jnp.float32)
    params = init_params(kp, dimension)

    ref_kp = reference_forward_kernel_precision(x, params)
    ref_f32 = reference_forward_f32(x, params)

    # Default tile: tiny batch collapses to a single grid step (TB = 24).
    out_single = jax.block_until_ready(discriminator_forward(x, params))
    # Small tile: exercises the multi-step, weight-resident grid path.
    out_multi = jax.block_until_ready(discriminator_forward(x, params, tb=8))

    for out in (out_single, out_multi):
        assert out.shape == (batch, 1)
        assert jnp.allclose(out, ref_kp, atol=2e-3, rtol=2e-3), (
            "mismatch vs kernel-precision reference, max abs diff = "
            f"{jnp.max(jnp.abs(out - ref_kp)):.3e}")
        assert jnp.allclose(out, ref_f32, atol=3e-2, rtol=3e-2), (
            "mismatch vs f32 reference, max abs diff = "
            f"{jnp.max(jnp.abs(out - ref_f32)):.3e}")

    print("KERNEL_OK")
</pallas_src>

<mosaic_0001>
module attributes {stable_mosaic.version = 11 : i64} {
  func.func @_mlp_kernel(%arg0: i32, %arg1: memref<24x96xf32, #tpu.memory_space<vmem>>, %arg2: memref<96x768xbf16, #tpu.memory_space<vmem>>, %arg3: memref<1x768xf32, #tpu.memory_space<vmem>>, %arg4: memref<768x768xbf16, #tpu.memory_space<vmem>>, %arg5: memref<1x768xf32, #tpu.memory_space<vmem>>, %arg6: memref<768x768xbf16, #tpu.memory_space<vmem>>, %arg7: memref<1x768xf32, #tpu.memory_space<vmem>>, %arg8: memref<1x768xf32, #tpu.memory_space<vmem>>, %arg9: memref<1x1xf32, #tpu.memory_space<smem>>, %arg10: memref<24x1xf32, #tpu.memory_space<vmem>>) attributes {dimension_semantics = [#tpu.dimension_semantics<arbitrary>], iteration_bounds = array<i64: 1>, scalar_prefetch = 0 : i64, scratch_operands = 0 : i64, tpu.core_type = #tpu.core_type<tc>, window_params = [{transform_indices = @transform_0, window_bounds = array<i64: 24, 96>}, {pipeline_mode = #tpu.pipeline_mode<synchronous>, transform_indices = @transform_1, window_bounds = array<i64: 96, 768>}, {pipeline_mode = #tpu.pipeline_mode<synchronous>, transform_indices = @transform_2, window_bounds = array<i64: 1, 768>}, {pipeline_mode = #tpu.pipeline_mode<synchronous>, transform_indices = @transform_3, window_bounds = array<i64: 768, 768>}, {pipeline_mode = #tpu.pipeline_mode<synchronous>, transform_indices = @transform_4, window_bounds = array<i64: 1, 768>}, {pipeline_mode = #tpu.pipeline_mode<synchronous>, transform_indices = @transform_5, window_bounds = array<i64: 768, 768>}, {pipeline_mode = #tpu.pipeline_mode<synchronous>, transform_indices = @transform_6, window_bounds = array<i64: 1, 768>}, {pipeline_mode = #tpu.pipeline_mode<synchronous>, transform_indices = @transform_7, window_bounds = array<i64: 1, 768>}, {transform_indices = @transform_8, window_bounds = array<i64: 1, 1>}, {transform_indices = @transform_9, window_bounds = array<i64: 24, 1>}]} {
    %c0 = arith.constant 0 : index
    %c0_0 = arith.constant 0 : index
    %0 = vector.load %arg1[%c0, %c0_0] : memref<24x96xf32, #tpu.memory_space<vmem>>, vector<24x96xf32>
    %1 = arith.truncf %0 : vector<24x96xf32> to vector<24x96xbf16>
    %c0_1 = arith.constant 0 : index
    %c0_2 = arith.constant 0 : index
    %2 = vector.load %arg2[%c0_1, %c0_2] : memref<96x768xbf16, #tpu.memory_space<vmem>>, vector<96x768xbf16>
    %cst = arith.constant dense<0.000000e+00> : vector<24x768xf32>
    %3 = tpu.matmul %1, %2, %cst {dimension_numbers = #tpu.dot_dimension_numbers<[1], [0], [0], [1], [0, 0, 1, 1], [], []>} : vector<24x96xbf16>, vector<96x768xbf16>, vector<24x768xf32> -> vector<24x768xf32>
    %c0_3 = arith.constant 0 : index
    %c0_4 = arith.constant 0 : index
    %4 = vector.load %arg3[%c0_3, %c0_4] : memref<1x768xf32, #tpu.memory_space<vmem>>, vector<1x768xf32>
    %5 = vector.broadcast %4 : vector<1x768xf32> to vector<24x768xf32>
    %6 = arith.addf %3, %5 : vector<24x768xf32>
    %cst_5 = arith.constant 1.000000e-01 : f32
    %7 = vector.broadcast %cst_5 : f32 to vector<24x768xf32>
    %8 = arith.mulf %7, %6 : vector<24x768xf32>
    %9 = arith.maximumf %6, %8 : vector<24x768xf32>
    %10 = arith.truncf %9 : vector<24x768xf32> to vector<24x768xbf16>
    %c0_6 = arith.constant 0 : index
    %c0_7 = arith.constant 0 : index
    %11 = vector.load %arg4[%c0_6, %c0_7] : memref<768x768xbf16, #tpu.memory_space<vmem>>, vector<768x768xbf16>
    %cst_8 = arith.constant dense<0.000000e+00> : vector<24x768xf32>
    %12 = tpu.matmul %10, %11, %cst_8 {dimension_numbers = #tpu.dot_dimension_numbers<[1], [0], [0], [1], [0, 0, 1, 1], [], []>} : vector<24x768xbf16>, vector<768x768xbf16>, vector<24x768xf32> -> vector<24x768xf32>
    %c0_9 = arith.constant 0 : index
    %c0_10 = arith.constant 0 : index
    %13 = vector.load %arg5[%c0_9, %c0_10] : memref<1x768xf32, #tpu.memory_space<vmem>>, vector<1x768xf32>
    %14 = vector.broadcast %13 : vector<1x768xf32> to vector<24x768xf32>
    %15 = arith.addf %12, %14 : vector<24x768xf32>
    %cst_11 = arith.constant 1.000000e-01 : f32
    %16 = vector.broadcast %cst_11 : f32 to vector<24x768xf32>
    %17 = arith.mulf %16, %15 : vector<24x768xf32>
    %18 = arith.maximumf %15, %17 : vector<24x768xf32>
    %19 = arith.truncf %18 : vector<24x768xf32> to vector<24x768xbf16>
    %c0_12 = arith.constant 0 : index
    %c0_13 = arith.constant 0 : index
    %20 = vector.load %arg6[%c0_12, %c0_13] : memref<768x768xbf16, #tpu.memory_space<vmem>>, vector<768x768xbf16>
    %cst_14 = arith.constant dense<0.000000e+00> : vector<24x768xf32>
    %21 = tpu.matmul %19, %20, %cst_14 {dimension_numbers = #tpu.dot_dimension_numbers<[1], [0], [0], [1], [0, 0, 1, 1], [], []>} : vector<24x768xbf16>, vector<768x768xbf16>, vector<24x768xf32> -> vector<24x768xf32>
    %c0_15 = arith.constant 0 : index
    %c0_16 = arith.constant 0 : index
    %22 = vector.load %arg7[%c0_15, %c0_16] : memref<1x768xf32, #tpu.memory_space<vmem>>, vector<1x768xf32>
    %23 = vector.broadcast %22 : vector<1x768xf32> to vector<24x768xf32>
    %24 = arith.addf %21, %23 : vector<24x768xf32>
    %cst_17 = arith.constant 1.000000e-01 : f32
    %25 = vector.broadcast %cst_17 : f32 to vector<24x768xf32>
    %26 = arith.mulf %25, %24 : vector<24x768xf32>
    %27 = arith.maximumf %24, %26 : vector<24x768xf32>
    %c0_18 = arith.constant 0 : index
    %c0_19 = arith.constant 0 : index
    %28 = vector.load %arg8[%c0_18, %c0_19] : memref<1x768xf32, #tpu.memory_space<vmem>>, vector<1x768xf32>
    %29 = vector.broadcast %28 : vector<1x768xf32> to vector<24x768xf32>
    %30 = arith.mulf %27, %29 : vector<24x768xf32>
    %cst_20 = arith.constant dense<0.000000e+00> : vector<24xf32>
    %31 = vector.multi_reduction <add>, %30, %cst_20 [1] : vector<24x768xf32> to vector<24xf32>
    %32 = vector.shape_cast %31 : vector<24xf32> to vector<24x1xf32>
    %c0_21 = arith.constant 0 : index
    %c0_22 = arith.constant 0 : index
    %33 = memref.load %arg9[%c0_21, %c0_22] : memref<1x1xf32, #tpu.memory_space<smem>>
    %34 = vector.broadcast %33 : f32 to vector<24x1xf32>
    %35 = arith.addf %32, %34 : vector<24x1xf32>
    %c0_23 = arith.constant 0 : index
    %c0_24 = arith.constant 0 : index
    %36 = vector.load %arg10[%c0_23, %c0_24] : memref<24x1xf32, #tpu.memory_space<vmem>>, vector<24x1xf32>
    tpu.vector_store %arg10[%c0_23, %c0_24], %35 {strides = array<i32>} : memref<24x1xf32, #tpu.memory_space<vmem>>, vector<24x1xf32>,
    return
  }
  func.func @transform_0(%arg0: i32) -> (i32, i32) {
    %c0_i32 = arith.constant 0 : i32
    %c0_i32_0 = arith.constant 0 : i32
    return %arg0, %c0_i32 : i32, i32
  }
  func.func @transform_1(%arg0: i32) -> (i32, i32) {
    %c0_i32 = arith.constant 0 : i32
    %c0_i32_0 = arith.constant 0 : i32
    %c0_i32_1 = arith.constant 0 : i32
    return %c0_i32, %c0_i32_0 : i32, i32
  }
  func.func @transform_2(%arg0: i32) -> (i32, i32) {
    %c0_i32 = arith.constant 0 : i32
    %c0_i32_0 = arith.constant 0 : i32
    %c0_i32_1 = arith.constant 0 : i32
    return %c0_i32, %c0_i32_0 : i32, i32
  }
  func.func @transform_3(%arg0: i32) -> (i32, i32) {
    %c0_i32 = arith.constant 0 : i32
    %c0_i32_0 = arith.constant 0 : i32
    %c0_i32_1 = arith.constant 0 : i32
    return %c0_i32, %c0_i32_0 : i32, i32
  }
  func.func @transform_4(%arg0: i32) -> (i32, i32) {
    %c0_i32 = arith.constant 0 : i32
    %c0_i32_0 = arith.constant 0 : i32
    %c0_i32_1 = arith.constant 0 : i32
    return %c0_i32, %c0_i32_0 : i32, i32
  }
  func.func @transform_5(%arg0: i32) -> (i32, i32) {
    %c0_i32 = arith.constant 0 : i32
    %c0_i32_0 = arith.constant 0 : i32
    %c0_i32_1 = arith.constant 0 : i32
    return %c0_i32, %c0_i32_0 : i32, i32
  }
  func.func @transform_6(%arg0: i32) -> (i32, i32) {
    %c0_i32 = arith.constant 0 : i32
    %c0_i32_0 = arith.constant 0 : i32
    %c0_i32_1 = arith.constant 0 : i32
    return %c0_i32, %c0_i32_0 : i32, i32
  }
  func.func @transform_7(%arg0: i32) -> (i32, i32) {
    %c0_i32 = arith.constant 0 : i32
    %c0_i32_0 = arith.constant 0 : i32
    %c0_i32_1 = arith.constant 0 : i32
    return %c0_i32, %c0_i32_0 : i32, i32
  }
  func.func @transform_8(%arg0: i32) -> (i32, i32) {
    %c0_i32 = arith.constant 0 : i32
    %c0_i32_0 = arith.constant 0 : i32
    %c0_i32_1 = arith.constant 0 : i32
    return %c0_i32, %c0_i32_0 : i32, i32
  }
  func.func @transform_9(%arg0: i32) -> (i32, i32) {
    %c0_i32 = arith.constant 0 : i32
    %c0_i32_0 = arith.constant 0 : i32
    return %arg0, %c0_i32 : i32, i32
  }
}

module attributes {stable_mosaic.version = 11 : i64} {
  func.func @_mlp_kernel(%arg0: i32, %arg1: memref<24x96xf32, #tpu.memory_space<vmem>>, %arg2: memref<96x768xbf16, #tpu.memory_space<vmem>>, %arg3: memref<1x768xf32, #tpu.memory_space<vmem>>, %arg4: memref<768x768xbf16, #tpu.memory_space<vmem>>, %arg5: memref<1x768xf32, #tpu.memory_space<vmem>>, %arg6: memref<768x768xbf16, #tpu.memory_space<vmem>>, %arg7: memref<1x768xf32, #tpu.memory_space<vmem>>, %arg8: memref<1x768xf32, #tpu.memory_space<vmem>>, %arg9: memref<1x1xf32, #tpu.memory_space<smem>>, %arg10: memref<24x1xf32, #tpu.memory_space<vmem>>) attributes {dimension_semantics = [#tpu.dimension_semantics<arbitrary>], iteration_bounds = array<i64: 1>, scalar_prefetch = 0 : i64, scratch_operands = 0 : i64, tpu.core_type = #tpu.core_type<tc>, window_params = [{transform_indices = @transform_0, window_bounds = array<i64: 24, 96>}, {pipeline_mode = #tpu.pipeline_mode<synchronous>, transform_indices = @transform_1, window_bounds = array<i64: 96, 768>}, {pipeline_mode = #tpu.pipeline_mode<synchronous>, transform_indices = @transform_2, window_bounds = array<i64: 1, 768>}, {pipeline_mode = #tpu.pipeline_mode<synchronous>, transform_indices = @transform_3, window_bounds = array<i64: 768, 768>}, {pipeline_mode = #tpu.pipeline_mode<synchronous>, transform_indices = @transform_4, window_bounds = array<i64: 1, 768>}, {pipeline_mode = #tpu.pipeline_mode<synchronous>, transform_indices = @transform_5, window_bounds = array<i64: 768, 768>}, {pipeline_mode = #tpu.pipeline_mode<synchronous>, transform_indices = @transform_6, window_bounds = array<i64: 1, 768>}, {pipeline_mode = #tpu.pipeline_mode<synchronous>, transform_indices = @transform_7, window_bounds = array<i64: 1, 768>}, {transform_indices = @transform_8, window_bounds = array<i64: 1, 1>}, {transform_indices = @transform_9, window_bounds = array<i64: 24, 1>}]} {
    %c0 = arith.constant 0 : index
    %c0_0 = arith.constant 0 : index
    %0 = vector.load %arg1[%c0, %c0_0] : memref<24x96xf32, #tpu.memory_space<vmem>>, vector<24x96xf32>
    %1 = arith.truncf %0 : vector<24x96xf32> to vector<24x96xbf16>
    %c0_1 = arith.constant 0 : index
    %c0_2 = arith.constant 0 : index
    %2 = vector.load %arg2[%c0_1, %c0_2] : memref<96x768xbf16, #tpu.memory_space<vmem>>, vector<96x768xbf16>
    %cst = arith.constant dense<0.000000e+00> : vector<24x768xf32>
    %3 = tpu.matmul %1, %2, %cst {dimension_numbers = #tpu.dot_dimension_numbers<[1], [0], [0], [1], [0, 0, 1, 1], [], []>} : vector<24x96xbf16>, vector<96x768xbf16>, vector<24x768xf32> -> vector<24x768xf32>
    %c0_3 = arith.constant 0 : index
    %c0_4 = arith.constant 0 : index
    %4 = vector.load %arg3[%c0_3, %c0_4] : memref<1x768xf32, #tpu.memory_space<vmem>>, vector<1x768xf32>
    %5 = vector.broadcast %4 : vector<1x768xf32> to vector<24x768xf32>
    %6 = arith.addf %3, %5 : vector<24x768xf32>
    %cst_5 = arith.constant 1.000000e-01 : f32
    %7 = vector.broadcast %cst_5 : f32 to vector<24x768xf32>
    %8 = arith.mulf %7, %6 : vector<24x768xf32>
    %9 = arith.maximumf %6, %8 : vector<24x768xf32>
    %10 = arith.truncf %9 : vector<24x768xf32> to vector<24x768xbf16>
    %c0_6 = arith.constant 0 : index
    %c0_7 = arith.constant 0 : index
    %11 = vector.load %arg4[%c0_6, %c0_7] : memref<768x768xbf16, #tpu.memory_space<vmem>>, vector<768x768xbf16>
    %cst_8 = arith.constant dense<0.000000e+00> : vector<24x768xf32>
    %12 = tpu.matmul %10, %11, %cst_8 {dimension_numbers = #tpu.dot_dimension_numbers<[1], [0], [0], [1], [0, 0, 1, 1], [], []>} : vector<24x768xbf16>, vector<768x768xbf16>, vector<24x768xf32> -> vector<24x768xf32>
    %c0_9 = arith.constant 0 : index
    %c0_10 = arith.constant 0 : index
    %13 = vector.load %arg5[%c0_9, %c0_10] : memref<1x768xf32, #tpu.memory_space<vmem>>, vector<1x768xf32>
    %14 = vector.broadcast %13 : vector<1x768xf32> to vector<24x768xf32>
    %15 = arith.addf %12, %14 : vector<24x768xf32>
    %cst_11 = arith.constant 1.000000e-01 : f32
    %16 = vector.broadcast %cst_11 : f32 to vector<24x768xf32>
    %17 = arith.mulf %16, %15 : vector<24x768xf32>
    %18 = arith.maximumf %15, %17 : vector<24x768xf32>
    %19 = arith.truncf %18 : vector<24x768xf32> to vector<24x768xbf16>
    %c0_12 = arith.constant 0 : index
    %c0_13 = arith.constant 0 : index
    %20 = vector.load %arg6[%c0_12, %c0_13] : memref<768x768xbf16, #tpu.memory_space<vmem>>, vector<768x768xbf16>
    %cst_14 = arith.constant dense<0.000000e+00> : vector<24x768xf32>
    %21 = tpu.matmul %19, %20, %cst_14 {dimension_numbers = #tpu.dot_dimension_numbers<[1], [0], [0], [1], [0, 0, 1, 1], [], []>} : vector<24x768xbf16>, vector<768x768xbf16>, vector<24x768xf32> -> vector<24x768xf32>
    %c0_15 = arith.constant 0 : index
    %c0_16 = arith.constant 0 : index
    %22 = vector.load %arg7[%c0_15, %c0_16] : memref<1x768xf32, #tpu.memory_space<vmem>>, vector<1x768xf32>
    %23 = vector.broadcast %22 : vector<1x768xf32> to vector<24x768xf32>
    %24 = arith.addf %21, %23 : vector<24x768xf32>
    %cst_17 = arith.constant 1.000000e-01 : f32
    %25 = vector.broadcast %cst_17 : f32 to vector<24x768xf32>
    %26 = arith.mulf %25, %24 : vector<24x768xf32>
    %27 = arith.maximumf %24, %26 : vector<24x768xf32>
    %c0_18 = arith.constant 0 : index
    %c0_19 = arith.constant 0 : index
    %28 = vector.load %arg8[%c0_18, %c0_19] : memref<1x768xf32, #tpu.memory_space<vmem>>, vector<1x768xf32>
    %29 = vector.broadcast %28 : vector<1x768xf32> to vector<24x768xf32>
    %30 = arith.mulf %27, %29 : vector<24x768xf32>
    %cst_20 = arith.constant dense<0.000000e+00> : vector<24xf32>
    %31 = vector.multi_reduction <add>, %30, %cst_20 [1] : vector<24x768xf32> to vector<24xf32>
    %32 = vector.shape_cast %31 : vector<24xf32> to vector<24x1xf32>
    %c0_21 = arith.constant 0 : index
    %c0_22 = arith.constant 0 : index
    %33 = memref.load %arg9[%c0_21, %c0_22] : memref<1x1xf32, #tpu.memory_space<smem>>
    %34 = vector.broadcast %33 : f32 to vector<24x1xf32>
    %35 = arith.addf %32, %34 : vector<24x1xf32>
    %c0_23 = arith.constant 0 : index
    %c0_24 = arith.constant 0 : index
    %36 = vector.load %arg10[%c0_23, %c0_24] : memref<24x1xf32, #tpu.memory_space<vmem>>, vector<24x1xf32>
    tpu.vector_store %arg10[%c0_23, %c0_24], %35 {strides = array<i32>} : memref<24x1xf32, #tpu.memory_space<vmem>>, vector<24x1xf32>,
    return
  }
  func.func @transform_0(%arg0: i32) -> (i32, i32) {
    %c0_i32 = arith.constant 0 : i32
    %c0_i32_0 = arith.constant 0 : i32
    return %arg0, %c0_i32 : i32, i32
  }
  func.func @transform_1(%arg0: i32) -> (i32, i32) {
    %c0_i32 = arith.constant 0 : i32
    %c0_i32_0 = arith.constant 0 : i32
    %c0_i32_1 = arith.constant 0 : i32
    return %c0_i32, %c0_i32_0 : i32, i32
  }
  func.func @transform_2(%arg0: i32) -> (i32, i32) {
    %c0_i32 = arith.constant 0 : i32
    %c0_i32_0 = arith.constant 0 : i32
    %c0_i32_1 = arith.constant 0 : i32
    return %c0_i32, %c0_i32_0 : i32, i32
  }
  func.func @transform_3(%arg0: i32) -> (i32, i32) {
    %c0_i32 = arith.constant 0 : i32
    %c0_i32_0 = arith.constant 0 : i32
    %c0_i32_1 = arith.constant 0 : i32
    return %c0_i32, %c0_i32_0 : i32, i32
  }
  func.func @transform_4(%arg0: i32) -> (i32, i32) {
    %c0_i32 = arith.constant 0 : i32
    %c0_i32_0 = arith.constant 0 : i32
    %c0_i32_1 = arith.constant 0 : i32
    return %c0_i32, %c0_i32_0 : i32, i32
  }
  func.func @transform_5(%arg0: i32) -> (i32, i32) {
    %c0_i32 = arith.constant 0 : i32
    %c0_i32_0 = arith.constant 0 : i32
    %c0_i32_1 = arith.constant 0 : i32
    return %c0_i32, %c0_i32_0 : i32, i32
  }
  func.func @transform_6(%arg0: i32) -> (i32, i32) {
    %c0_i32 = arith.constant 0 : i32
    %c0_i32_0 = arith.constant 0 : i32
    %c0_i32_1 = arith.constant 0 : i32
    return %c0_i32, %c0_i32_0 : i32, i32
  }
  func.func @transform_7(%arg0: i32) -> (i32, i32) {
    %c0_i32 = arith.constant 0 : i32
    %c0_i32_0 = arith.constant 0 : i32
    %c0_i32_1 = arith.constant 0 : i32
    return %c0_i32, %c0_i32_0 : i32, i32
  }
  func.func @transform_8(%arg0: i32) -> (i32, i32) {
    %c0_i32 = arith.constant 0 : i32
    %c0_i32_0 = arith.constant 0 : i32
    %c0_i32_1 = arith.constant 0 : i32
    return %c0_i32, %c0_i32_0 : i32, i32
  }
  func.func @transform_9(%arg0: i32) -> (i32, i32) {
    %c0_i32 = arith.constant 0 : i32
    %c0_i32_0 = arith.constant 0 : i32
    return %arg0, %c0_i32 : i32, i32
  }
}

</mosaic_0001>

<llo_original>
// kernel: tpu_custom_call.1
$region0: #{tpu_custom_call.1}
  #allocation0 [shape = 'u32[]', space=smem, size = 0x4, offset = 0x4, fixed_abs, tag = 'smem constant byte address 0x4 - core index']
  #allocation1 [shape = 'u32[144,128]{1,0:T(1,128)}', space=vmem, size = 0x12000, scoped, tag = 'internal scratch']
  #allocation2 [shape = 'f32[1,1]{1,0:T(1,128)S(6)}', space=smem, size = 0x200, scoped, tag = 'scoped memory for tpu_custom_call.1']
  %s0 = inlined_call_operand.hbm [shape: f32[24,96], index: 0, kind: input, shape index: {}]
  %s1 = inlined_call_operand.hbm [shape: bf16[96,768], index: 1, kind: input, shape index: {}]
  %s2 = inlined_call_operand.hbm [shape: f32[1,768], index: 2, kind: input, shape index: {}]
  %s3 = inlined_call_operand.hbm [shape: bf16[768,768], index: 3, kind: input, shape index: {}]
  %s4 = inlined_call_operand.hbm [shape: f32[1,768], index: 4, kind: input, shape index: {}]
  %s5 = inlined_call_operand.hbm [shape: bf16[768,768], index: 5, kind: input, shape index: {}]
  %s6 = inlined_call_operand.hbm [shape: f32[1,768], index: 6, kind: input, shape index: {}]
  %s7 = inlined_call_operand.hbm [shape: f32[1,768], index: 7, kind: input, shape index: {}]
  %s8 = inlined_call_operand.<no memory space> [shape: f32[1,1], index: 8, kind: input, shape index: {}]
  %s9 = inlined_call_operand.vmem [shape: f32[24,1], index: 9, kind: output, shape index: {}]
  %s10 = sld [smem:[#allocation0]]
  $region78: #{tpu_custom_call.1} parent=0
    _
  %s12 = ssub.s32 1, %s10
  %s13 = scalar_select 0, %s12, %s10
  %14 = sst [smem:[#allocation2]] %s8
  $region1: #{tpu_custom_call.1} parent=0
    #allocation3 [shape = 'u8[12288]{0}', space=vmem, size = 0x3000, scoped, tag = 'input window, operand 0, single buffered']
    #allocation4 [shape = 's32[1]{0}', space=sflag, size = 0x4, scoped, tag = 'scoped memory for tpu_custom_call.1']
    #allocation5 [shape = 'u8[147456]{0}', space=vmem, size = 0x24000, scoped, tag = 'input window, operand 1, single buffered']
    #allocation6 [shape = 's32[1]{0}', space=sflag, size = 0x4, scoped, tag = 'scoped memory for tpu_custom_call.1']
    #allocation7 [shape = 'u8[3072]{0}', space=vmem, size = 0xc00, scoped, tag = 'input window, operand 2, single buffered']
    #allocation8 [shape = 'u8[1179648]{0}', space=vmem, size = 0x120000, scoped, tag = 'input window, operand 3, single buffered']
    #allocation9 [shape = 's32[1]{0}', space=sflag, size = 0x4, scoped, tag = 'scoped memory for tpu_custom_call.1']
    #allocation10 [shape = 'u8[3072]{0}', space=vmem, size = 0xc00, scoped, tag = 'input window, operand 4, single buffered']
    #allocation11 [shape = 'u8[1179648]{0}', space=vmem, size = 0x120000, scoped, tag = 'input window, operand 5, single buffered']
    #allocation12 [shape = 's32[1]{0}', space=sflag, size = 0x4, scoped, tag = 'scoped memory for tpu_custom_call.1']
    #allocation13 [shape = 'u8[3072]{0}', space=vmem, size = 0xc00, scoped, tag = 'input window, operand 6, single buffered']
    #allocation14 [shape = 'u8[3072]{0}', space=vmem, size = 0xc00, scoped, tag = 'input window, operand 7, single buffered']
    #allocation15 [shape = 's32[1]{0}', space=sflag, size = 0x4, scoped, tag = 'scoped memory for tpu_custom_call.1']
    %15 = vsyncpa [#allocation4], 0
    %16 = vsyncpa [#allocation6], 0
    %17 = vsyncpa [#allocation9], 0
    %18 = vsyncpa [#allocation12], 0
    %19 = vsyncpa [#allocation15], 0
    // Predicated region
    $region2: #{tpu_custom_call.1} parent=1 // pred_check
      _
    $region3: #{tpu_custom_call.1} parent=1 // pred_check_branch
      %21 = sbr.rel (0) target = $region5
    $region4: #{tpu_custom_call.1} parent=1 // pred_region
      %s23 = ssub.s32 384, 384
      %24 = vsyncadd [#allocation4], %s23
      %s25 = sshll.u32 [#allocation3], 4
      %s26 = int_to_ptr.vmem [resolvable:$true] %s25
      %31 = dma.hbm_to_vmem [thread:$0]  %s0, 384, %s26, [#allocation4], 128, 128, 8
    $region5: #{tpu_custom_call.1} parent=1 // pred_fallthru
      _
    // Predicated region
    $region6: #{tpu_custom_call.1} parent=1 // pred_check
      _
    $region7: #{tpu_custom_call.1} parent=1 // pred_check_branch
      %33 = sbr.rel (0) target = $region9
    $region8: #{tpu_custom_call.1} parent=1 // pred_region
      %s35 = ssub.s32 4608, 4608
      %36 = vsyncadd [#allocation6], %s35
      %s37 = sshll.u32 [#allocation5], 4
      %s38 = int_to_ptr.vmem [resolvable:$true] %s37
      %43 = dma.hbm_to_vmem [thread:$0]  %s1, 4608, %s38, [#allocation6], 384, 384, 24
    $region9: #{tpu_custom_call.1} parent=1 // pred_fallthru
      _
    // Predicated region
    $region10: #{tpu_custom_call.1} parent=1 // pred_check
      _
    $region11: #{tpu_custom_call.1} parent=1 // pred_check_branch
      %45 = sbr.rel (0) target = $region13
    $region12: #{tpu_custom_call.1} parent=1 // pred_region
      %s47 = ssub.s32 96, 96
      %48 = vsyncadd [#allocation6], %s47
      %s50 = sshll.u32 [#allocation7], 4
      %s51 = int_to_ptr.vmem [resolvable:$true] %s50
      %53 = dma.hbm_to_vmem [thread:$0]  %s2, 96, %s51, [#allocation6]
    $region13: #{tpu_custom_call.1} parent=1 // pred_fallthru
      _
    // Predicated region
    $region14: #{tpu_custom_call.1} parent=1 // pred_check
      _
    $region15: #{tpu_custom_call.1} parent=1 // pred_check_branch
      %55 = sbr.rel (0) target = $region17
    $region16: #{tpu_custom_call.1} parent=1 // pred_region
      %s57 = ssub.s32 36864, 36864
      %58 = vsyncadd [#allocation9], %s57
      %s59 = sshll.u32 [#allocation8], 4
      %s60 = int_to_ptr.vmem [resolvable:$true] %s59
      %65 = dma.hbm_to_vmem [thread:$0]  %s3, 36864, %s60, [#allocation9], 384, 384, 24
    $region17: #{tpu_custom_call.1} parent=1 // pred_fallthru
      _
    // Predicated region
    $region18: #{tpu_custom_call.1} parent=1 // pred_check
      _
    $region19: #{tpu_custom_call.1} parent=1 // pred_check_branch
      %67 = sbr.rel (0) target = $region21
    $region20: #{tpu_custom_call.1} parent=1 // pred_region
      %s69 = ssub.s32 96, 96
      %70 = vsyncadd [#allocation9], %s69
      %s72 = sshll.u32 [#allocation10], 4
      %s73 = int_to_ptr.vmem [resolvable:$true] %s72
      %75 = dma.hbm_to_vmem [thread:$0]  %s4, 96, %s73, [#allocation9]
    $region21: #{tpu_custom_call.1} parent=1 // pred_fallthru
      _
    // Predicated region
    $region22: #{tpu_custom_call.1} parent=1 // pred_check
      _
    $region23: #{tpu_custom_call.1} parent=1 // pred_check_branch
      %77 = sbr.rel (0) target = $region25
    $region24: #{tpu_custom_call.1} parent=1 // pred_region
      %s79 = ssub.s32 36864, 36864
      %80 = vsyncadd [#allocation12], %s79
      %s81 = sshll.u32 [#allocation11], 4
      %s82 = int_to_ptr.vmem [resolvable:$true] %s81
      %87 = dma.hbm_to_vmem [thread:$0]  %s5, 36864, %s82, [#allocation12], 384, 384, 24
    $region25: #{tpu_custom_call.1} parent=1 // pred_fallthru
      _
    // Predicated region
    $region26: #{tpu_custom_call.1} parent=1 // pred_check
      _
    $region27: #{tpu_custom_call.1} parent=1 // pred_check_branch
      %89 = sbr.rel (0) target = $region29
    $region28: #{tpu_custom_call.1} parent=1 // pred_region
      %s91 = ssub.s32 96, 96
      %92 = vsyncadd [#allocation12], %s91
      %s94 = sshll.u32 [#allocation13], 4
      %s95 = int_to_ptr.vmem [resolvable:$true] %s94
      %97 = dma.hbm_to_vmem [thread:$0]  %s6, 96, %s95, [#allocation12]
    $region29: #{tpu_custom_call.1} parent=1 // pred_fallthru
      _
    // Predicated region
    $region30: #{tpu_custom_call.1} parent=1 // pred_check
      _
    $region31: #{tpu_custom_call.1} parent=1 // pred_check_branch
      %99 = sbr.rel (0) target = $region33
    $region32: #{tpu_custom_call.1} parent=1 // pred_region
      %s101 = ssub.s32 96, 96
      %102 = vsyncadd [#allocation15], %s101
      %s104 = sshll.u32 [#allocation14], 4
      %s105 = int_to_ptr.vmem [resolvable:$true] %s104
      %107 = dma.hbm_to_vmem [thread:$0]  %s7, 96, %s105, [#allocation15]
    $region33: #{tpu_custom_call.1} parent=1 // pred_fallthru
      _
    // Predicated region
    $region34: #{tpu_custom_call.1} parent=1 // pred_check
      _
    $region35: #{tpu_custom_call.1} parent=1 // pred_check_branch
      %109 = sbr.rel (0) target = $region37
    $region36: #{tpu_custom_call.1} parent=1 // pred_region
      _
    $region37: #{tpu_custom_call.1} parent=1 // pred_fallthru
      _
    // Predicated region
    $region38: #{tpu_custom_call.1} parent=1 // pred_check
      _
    $region39: #{tpu_custom_call.1} parent=1 // pred_check_branch
      %111 = sbr.rel (0) target = $region41
    $region40: #{tpu_custom_call.1} parent=1 // pred_region
      %112 = dma.done [#allocation4], 384
    $region41: #{tpu_custom_call.1} parent=1 // pred_fallthru
      _
    // Predicated region
    $region42: #{tpu_custom_call.1} parent=1 // pred_check
      _
    $region43: #{tpu_custom_call.1} parent=1 // pred_check_branch
      %114 = sbr.rel (0) target = $region45
    $region44: #{tpu_custom_call.1} parent=1 // pred_region
      %115 = dma.done [#allocation6], 4608
    $region45: #{tpu_custom_call.1} parent=1 // pred_fallthru
      _
    // Predicated region
    $region46: #{tpu_custom_call.1} parent=1 // pred_check
      _
    $region47: #{tpu_custom_call.1} parent=1 // pred_check_branch
      %117 = sbr.rel (0) target = $region49
    $region48: #{tpu_custom_call.1} parent=1 // pred_region
      %118 = dma.done [#allocation6], 96
    $region49: #{tpu_custom_call.1} parent=1 // pred_fallthru
      _
    // Predicated region
    $region50: #{tpu_custom_call.1} parent=1 // pred_check
      _
    $region51: #{tpu_custom_call.1} parent=1 // pred_check_branch
      %120 = sbr.rel (0) target = $region53
    $region52: #{tpu_custom_call.1} parent=1 // pred_region
      %121 = dma.done [#allocation9], 36864
    $region53: #{tpu_custom_call.1} parent=1 // pred_fallthru
      _
    // Predicated region
    $region54: #{tpu_custom_call.1} parent=1 // pred_check
      _
    $region55: #{tpu_custom_call.1} parent=1 // pred_check_branch
      %123 = sbr.rel (0) target = $region57
    $region56: #{tpu_custom_call.1} parent=1 // pred_region
      %124 = dma.done [#allocation9], 96
    $region57: #{tpu_custom_call.1} parent=1 // pred_fallthru
      _
    // Predicated region
    $region58: #{tpu_custom_call.1} parent=1 // pred_check
      _
    $region59: #{tpu_custom_call.1} parent=1 // pred_check_branch
      %126 = sbr.rel (0) target = $region61
    $region60: #{tpu_custom_call.1} parent=1 // pred_region
      %127 = dma.done [#allocation12], 36864
    $region61: #{tpu_custom_call.1} parent=1 // pred_fallthru
      _
    // Predicated region
    $region62: #{tpu_custom_call.1} parent=1 // pred_check
      _
    $region63: #{tpu_custom_call.1} parent=1 // pred_check_branch
      %129 = sbr.rel (0) target = $region65
    $region64: #{tpu_custom_call.1} parent=1 // pred_region
      %130 = dma.done [#allocation12], 96
    $region65: #{tpu_custom_call.1} parent=1 // pred_fallthru
      _
    // Predicated region
    $region66: #{tpu_custom_call.1} parent=1 // pred_check
      _
    $region67: #{tpu_custom_call.1} parent=1 // pred_check_branch
      %132 = sbr.rel (0) target = $region69
    $region68: #{tpu_custom_call.1} parent=1 // pred_region
      %133 = dma.done [#allocation15], 96
    $region69: #{tpu_custom_call.1} parent=1 // pred_fallthru
      _
    %v135 = vld [vmem:[#allocation3] sm:$0xff]
    %v136 = vld [vmem:[#allocation3 + $0x8] sm:$0xff]
    %v137 = vld [vmem:[#allocation3 + $0x10] sm:$0xff]
    %v138 = vpack.c.bf16 %v136, %v135
    %v139 = vpack.c.bf16 %v137, %v137
    %v140 = vld [vmem:[#allocation5] sm:$0xff]
    %v141 = vld [vmem:[#allocation5 + $0x8] sm:$0xff]
    %v142 = vld [vmem:[#allocation5 + $0x10] sm:$0xff]
    %v143 = vld [vmem:[#allocation5 + $0x18] sm:$0xff]
    %v144 = vld [vmem:[#allocation5 + $0x20] sm:$0xff]
    %v145 = vld [vmem:[#allocation5 + $0x28] sm:$0xff]
    %v146 = vld [vmem:[#allocation5 + $0x30] sm:$0xff]
    %v147 = vld [vmem:[#allocation5 + $0x38] sm:$0xff]
    %v148 = vld [vmem:[#allocation5 + $0x40] sm:$0xff]
    %v149 = vld [vmem:[#allocation5 + $0x48] sm:$0xff]
    %v150 = vld [vmem:[#allocation5 + $0x50] sm:$0xff]
    %v151 = vld [vmem:[#allocation5 + $0x58] sm:$0xff]
    %v152 = vld [vmem:[#allocation5 + $0x60] sm:$0xff]
    %v153 = vld [vmem:[#allocation5 + $0x68] sm:$0xff]
    %v154 = vld [vmem:[#allocation5 + $0x70] sm:$0xff]
    %v155 = vld [vmem:[#allocation5 + $0x78] sm:$0xff]
    %v156 = vld [vmem:[#allocation5 + $0x80] sm:$0xff]
    %v157 = vld [vmem:[#allocation5 + $0x88] sm:$0xff]
    %v158 = vld [vmem:[#allocation5 + $0x90] sm:$0xff]
    %v159 = vld [vmem:[#allocation5 + $0x98] sm:$0xff]
    %v160 = vld [vmem:[#allocation5 + $0xa0] sm:$0xff]
    %v161 = vld [vmem:[#allocation5 + $0xa8] sm:$0xff]
    %v162 = vld [vmem:[#allocation5 + $0xb0] sm:$0xff]
    %v163 = vld [vmem:[#allocation5 + $0xb8] sm:$0xff]
    %v164 = vld [vmem:[#allocation5 + $0xc0] sm:$0xff]
    %v165 = vld [vmem:[#allocation5 + $0xc8] sm:$0xff]
    %v166 = vld [vmem:[#allocation5 + $0xd0] sm:$0xff]
    %v167 = vld [vmem:[#allocation5 + $0xd8] sm:$0xff]
    %v168 = vld [vmem:[#allocation5 + $0xe0] sm:$0xff]
    %v169 = vld [vmem:[#allocation5 + $0xe8] sm:$0xff]
    %v170 = vld [vmem:[#allocation5 + $0xf0] sm:$0xff]
    %v171 = vld [vmem:[#allocation5 + $0xf8] sm:$0xff]
    %v172 = vld [vmem:[#allocation5 + $0x100] sm:$0xff]
    %v173 = vld [vmem:[#allocation5 + $0x108] sm:$0xff]
    %v174 = vld [vmem:[#allocation5 + $0x110] sm:$0xff]
    %v175 = vld [vmem:[#allocation5 + $0x118] sm:$0xff]
    %v176 = vld [vmem:[#allocation7] sm:$0x3f]
    %v178 = vlaneseq
    %v179 = vshrl.u32 %v178, 7
    %v180 = vsub.s32 0, %v179
    %v181 = vrot.slane %v176, %v180
    %v182 = vlaneseq
    %v183 = vshrl.u32 %v182, 7
    %v184 = vsub.s32 1, %v183
    %v185 = vrot.slane %v176, %v184
    %v186 = vlaneseq
    %v187 = vshrl.u32 %v186, 7
    %v188 = vsub.s32 2, %v187
    %v189 = vrot.slane %v176, %v188
    %v190 = vlaneseq
    %v191 = vshrl.u32 %v190, 7
    %v192 = vsub.s32 3, %v191
    %v193 = vrot.slane %v176, %v192
    %v194 = vlaneseq
    %v195 = vshrl.u32 %v194, 7
    %v196 = vsub.s32 4, %v195
    %v197 = vrot.slane %v176, %v196
    %v198 = vlaneseq
    %v199 = vshrl.u32 %v198, 7
    %v200 = vsub.s32 5, %v199
    %v201 = vrot.slane %v176, %v200
    %v244 = vunpack.c.l.b16 %v140
    %v245 = vunpack.c.h.b16 %v140
    %v246 = vunpack.c.l.b16 %v141
    %v247 = vunpack.c.h.b16 %v141
    %v248 = vunpack.c.l.b16 %v142
    %v249 = vunpack.c.h.b16 %v142
    %v250 = vunpack.c.l.b16 %v143
    %v251 = vunpack.c.h.b16 %v143
    %v252 = vunpack.c.l.b16 %v144
    %v253 = vunpack.c.h.b16 %v144
    %v254 = vunpack.c.l.b16 %v145
    %v255 = vunpack.c.h.b16 %v145
    %v256 = vunpack.c.l.b16 %v146
    %v257 = vunpack.c.h.b16 %v146
    %v258 = vunpack.c.l.b16 %v147
    %v259 = vunpack.c.h.b16 %v147
    %v260 = vunpack.c.l.b16 %v148
    %v261 = vunpack.c.h.b16 %v148
    %v262 = vunpack.c.l.b16 %v149
    %v263 = vunpack.c.h.b16 %v149
    %v264 = vunpack.c.l.b16 %v150
    %v265 = vunpack.c.h.b16 %v150
    %v266 = vunpack.c.l.b16 %v151
    %v267 = vunpack.c.h.b16 %v151
    %v268 = vunpack.c.l.b16 %v152
    %v269 = vunpack.c.h.b16 %v152
    %v270 = vunpack.c.l.b16 %v153
    %v271 = vunpack.c.h.b16 %v153
    %v272 = vunpack.c.l.b16 %v154
    %v273 = vunpack.c.h.b16 %v154
    %v274 = vunpack.c.l.b16 %v155
    %v275 = vunpack.c.h.b16 %v155
    %v276 = vunpack.c.l.b16 %v156
    %v277 = vunpack.c.h.b16 %v156
    %v278 = vunpack.c.l.b16 %v157
    %v279 = vunpack.c.h.b16 %v157
    %v280 = vunpack.c.l.b16 %v158
    %v281 = vunpack.c.h.b16 %v158
    %v282 = vunpack.c.l.b16 %v159
    %v283 = vunpack.c.h.b16 %v159
    %v284 = vunpack.c.l.b16 %v160
    %v285 = vunpack.c.h.b16 %v160
    %v286 = vunpack.c.l.b16 %v161
    %v287 = vunpack.c.h.b16 %v161
    %v288 = vunpack.c.l.b16 %v162
    %v289 = vunpack.c.h.b16 %v162
    %v290 = vunpack.c.l.b16 %v163
    %v291 = vunpack.c.h.b16 %v163
    %v292 = vunpack.c.l.b16 %v164
    %v293 = vunpack.c.h.b16 %v164
    %v294 = vunpack.c.l.b16 %v165
    %v295 = vunpack.c.h.b16 %v165
    %v296 = vunpack.c.l.b16 %v166
    %v297 = vunpack.c.h.b16 %v166
    %v298 = vunpack.c.l.b16 %v167
    %v299 = vunpack.c.h.b16 %v167
    %v300 = vunpack.c.l.b16 %v168
    %v301 = vunpack.c.h.b16 %v168
    %v302 = vunpack.c.l.b16 %v169
    %v303 = vunpack.c.h.b16 %v169
    %v304 = vunpack.c.l.b16 %v170
    %v305 = vunpack.c.h.b16 %v170
    %v306 = vunpack.c.l.b16 %v171
    %v307 = vunpack.c.h.b16 %v171
    %v308 = vunpack.c.l.b16 %v172
    %v309 = vunpack.c.h.b16 %v172
    %v310 = vunpack.c.l.b16 %v173
    %v311 = vunpack.c.h.b16 %v173
    %v312 = vunpack.c.l.b16 %v174
    %v313 = vunpack.c.h.b16 %v174
    %v314 = vunpack.c.l.b16 %v175
    %v315 = vunpack.c.h.b16 %v175
    %v316 = vpack.c.b16 %v250, %v244
    %v317 = vpack.c.b16 %v251, %v245
    %v318 = vpack.c.b16 %v252, %v246
    %v319 = vpack.c.b16 %v253, %v247
    %v320 = vpack.c.b16 %v254, %v248
    %v321 = vpack.c.b16 %v255, %v249
    %v322 = vpack.c.b16 %v262, %v256
    %v323 = vpack.c.b16 %v263, %v257
    %v324 = vpack.c.b16 %v264, %v258
    %v325 = vpack.c.b16 %v265, %v259
    %v326 = vpack.c.b16 %v266, %v260
    %v327 = vpack.c.b16 %v267, %v261
    %v328 = vpack.c.b16 %v274, %v268
    %v329 = vpack.c.b16 %v275, %v269
    %v330 = vpack.c.b16 %v276, %v270
    %v331 = vpack.c.b16 %v277, %v271
    %v332 = vpack.c.b16 %v278, %v272
    %v333 = vpack.c.b16 %v279, %v273
    %v334 = vpack.c.b16 %v286, %v280
    %v335 = vpack.c.b16 %v287, %v281
    %v336 = vpack.c.b16 %v288, %v282
    %v337 = vpack.c.b16 %v289, %v283
    %v338 = vpack.c.b16 %v290, %v284
    %v339 = vpack.c.b16 %v291, %v285
    %v340 = vpack.c.b16 %v298, %v292
    %v341 = vpack.c.b16 %v299, %v293
    %v342 = vpack.c.b16 %v300, %v294
    %v343 = vpack.c.b16 %v301, %v295
    %v344 = vpack.c.b16 %v302, %v296
    %v345 = vpack.c.b16 %v303, %v297
    %v346 = vpack.c.b16 %v310, %v304
    %v347 = vpack.c.b16 %v311, %v305
    %v348 = vpack.c.b16 %v312, %v306
    %v349 = vpack.c.b16 %v313, %v307
    %v350 = vpack.c.b16 %v314, %v308
    %v351 = vpack.c.b16 %v315, %v309
    %vm388 = vcmask 785408
    %v390 = vsel %vm388, %v138, 0
    %v393 = vsel %vm388, %v139, 0
    %395 = vmatprep.subr.bf16.mxu0 0
    %396 = vmatpush1.bf16.msra.mxu0 0
    %397 = vmatprep.subr.bf16.mxu0 0
    %398 = vmatpush1.bf16.msra.mxu0 0
    %399 = vmatprep.subr.bf16.mxu0 %v347
    %400 = vmatpush1.bf16.msra.mxu0 %v346
    %401 = vmatprep.subr.bf16.mxu0 %v341
    %402 = vmatpush1.bf16.msra.mxu0 %v340
    %403 = vmatprep.subr.bf16.mxu0 %v335
    %404 = vmatpush1.bf16.msra.mxu0 %v334
    %405 = vmatprep.subr.bf16.mxu0 %v329
    %406 = vmatpush1.bf16.msra.mxu0 %v328
    %407 = vmatprep.subr.bf16.mxu0 %v323
    %408 = vmatpush1.bf16.msra.mxu0 %v322
    %409 = vmatprep.subr.bf16.mxu0 %v317
    %410 = vmatpush1.bf16.msra.mxu0 %v316
    %411 = vmatprep.subr.bf16.mxu0 0
    %412 = vmatpush2.bf16.msra.mxu0 0
    %413 = vmatprep.subr.bf16.mxu0 0
    %414 = vmatpush2.bf16.msra.mxu0 0
    %415 = vmatprep.subr.bf16.mxu0 0
    %416 = vmatpush2.bf16.msra.mxu0 0
    %417 = vmatprep.subr.bf16.mxu0 0
    %418 = vmatpush2.bf16.msra.mxu0 0
    %419 = vmatprep.subr.bf16.mxu0 0
    %420 = vmatpush2.bf16.msra.mxu0 0
    %421 = vmatprep.subr.bf16.mxu0 0
    %422 = vmatpush2.bf16.msra.mxu0 0
    %423 = vmatprep.subr.bf16.mxu0 0
    %424 = vmatpush2.bf16.msra.mxu0 0
    %425 = vmatprep.subr.bf16.mxu0 0
    %426 = vmatpush2.bf16.msra.mxu0 0
    %427 = vmatprep.mubr.bf16.mxu0 0
    %428 = vmatmul.mubr.bf16.gmra.mxu0 %v390
    %v429 = vpop.f32.mrf.mxu0
    %v430 = vadd.f32 %v181, %v429
    %v431 = vpop.f32.mrf.mxu0
    %v432 = vadd.f32 %v185, %v431
    %v433 = vpop.f32.mrf.mxu0
    %v434 = vadd.f32 %v181, %v433
    %v435 = vpop.f32.mrf.mxu0
    %v436 = vadd.f32 %v185, %v435
    %437 = vmatprep.mubr.bf16.mxu0 0
    %438 = vmatmul.mubr.bf16.gmra.mxu0 %v393
    %v439 = vpop.f32.mrf.mxu0
    %v440 = vadd.f32 %v181, %v439
    %v441 = vpop.f32.mrf.mxu0
    %v442 = vadd.f32 %v185, %v441
    %v443 = vpop.f32.mrf.mxu0
    %v444 = vpop.f32.mrf.mxu0
    %445 = vdwg.mxu0
    %446 = vmatprep.subr.bf16.mxu0 0
    %447 = vmatpush1.bf16.msra.mxu0 0
    %448 = vmatprep.subr.bf16.mxu0 0
    %449 = vmatpush1.bf16.msra.mxu0 0
    %450 = vmatprep.subr.bf16.mxu0 %v349
    %451 = vmatpush1.bf16.msra.mxu0 %v348
    %452 = vmatprep.subr.bf16.mxu0 %v343
    %453 = vmatpush1.bf16.msra.mxu0 %v342
    %454 = vmatprep.subr.bf16.mxu0 %v337
    %455 = vmatpush1.bf16.msra.mxu0 %v336
    %456 = vmatprep.subr.bf16.mxu0 %v331
    %457 = vmatpush1.bf16.msra.mxu0 %v330
    %458 = vmatprep.subr.bf16.mxu0 %v325
    %459 = vmatpush1.bf16.msra.mxu0 %v324
    %460 = vmatprep.subr.bf16.mxu0 %v319
    %461 = vmatpush1.bf16.msra.mxu0 %v318
    %462 = vmatprep.subr.bf16.mxu0 0
    %463 = vmatpush2.bf16.msra.mxu0 0
    %464 = vmatprep.subr.bf16.mxu0 0
    %465 = vmatpush2.bf16.msra.mxu0 0
    %466 = vmatprep.subr.bf16.mxu0 0
    %467 = vmatpush2.bf16.msra.mxu0 0
    %468 = vmatprep.subr.bf16.mxu0 0
    %469 = vmatpush2.bf16.msra.mxu0 0
    %470 = vmatprep.subr.bf16.mxu0 0
    %471 = vmatpush2.bf16.msra.mxu0 0
    %472 = vmatprep.subr.bf16.mxu0 0
    %473 = vmatpush2.bf16.msra.mxu0 0
    %474 = vmatprep.subr.bf16.mxu0 0
    %475 = vmatpush2.bf16.msra.mxu0 0
    %476 = vmatprep.subr.bf16.mxu0 0
    %477 = vmatpush2.bf16.msra.mxu0 0
    %478 = vmatprep.mubr.bf16.mxu0 0
    %479 = vmatmul.mubr.bf16.gmra.mxu0 %v390
    %v480 = vpop.f32.mrf.mxu0
    %v481 = vadd.f32 %v189, %v480
    %v482 = vpop.f32.mrf.mxu0
    %v483 = vadd.f32 %v193, %v482
    %v484 = vpop.f32.mrf.mxu0
    %v485 = vadd.f32 %v189, %v484
    %v486 = vpop.f32.mrf.mxu0
    %v487 = vadd.f32 %v193, %v486
    %488 = vmatprep.mubr.bf16.mxu0 0
    %489 = vmatmul.mubr.bf16.gmra.mxu0 %v393
    %v490 = vpop.f32.mrf.mxu0
    %v491 = vadd.f32 %v189, %v490
    %v492 = vpop.f32.mrf.mxu0
    %v493 = vadd.f32 %v193, %v492
    %v494 = vpop.f32.mrf.mxu0
    %v495 = vpop.f32.mrf.mxu0
    %496 = vdwg.mxu0
    %497 = vmatprep.subr.bf16.mxu0 0
    %498 = vmatpush1.bf16.msra.mxu0 0
    %499 = vmatprep.subr.bf16.mxu0 0
    %500 = vmatpush1.bf16.msra.mxu0 0
    %501 = vmatprep.subr.bf16.mxu0 %v351
    %502 = vmatpush1.bf16.msra.mxu0 %v350
    %503 = vmatprep.subr.bf16.mxu0 %v345
    %504 = vmatpush1.bf16.msra.mxu0 %v344
    %505 = vmatprep.subr.bf16.mxu0 %v339
    %506 = vmatpush1.bf16.msra.mxu0 %v338
    %507 = vmatprep.subr.bf16.mxu0 %v333
    %508 = vmatpush1.bf16.msra.mxu0 %v332
    %509 = vmatprep.subr.bf16.mxu0 %v327
    %510 = vmatpush1.bf16.msra.mxu0 %v326
    %511 = vmatprep.subr.bf16.mxu0 %v321
    %512 = vmatpush1.bf16.msra.mxu0 %v320
    %513 = vmatprep.subr.bf16.mxu0 0
    %514 = vmatpush2.bf16.msra.mxu0 0
    %515 = vmatprep.subr.bf16.mxu0 0
    %516 = vmatpush2.bf16.msra.mxu0 0
    %517 = vmatprep.subr.bf16.mxu0 0
    %518 = vmatpush2.bf16.msra.mxu0 0
    %519 = vmatprep.subr.bf16.mxu0 0
    %520 = vmatpush2.bf16.msra.mxu0 0
    %521 = vmatprep.subr.bf16.mxu0 0
    %522 = vmatpush2.bf16.msra.mxu0 0
    %523 = vmatprep.subr.bf16.mxu0 0
    %524 = vmatpush2.bf16.msra.mxu0 0
    %525 = vmatprep.subr.bf16.mxu0 0
    %526 = vmatpush2.bf16.msra.mxu0 0
    %527 = vmatprep.subr.bf16.mxu0 0
    %528 = vmatpush2.bf16.msra.mxu0 0
    %529 = vmatprep.mubr.bf16.mxu0 0
    %530 = vmatmul.mubr.bf16.gmra.mxu0 %v390
    %v531 = vpop.f32.mrf.mxu0
    %v532 = vadd.f32 %v197, %v531
    %v533 = vpop.f32.mrf.mxu0
    %v534 = vadd.f32 %v201, %v533
    %v535 = vpop.f32.mrf.mxu0
    %v536 = vadd.f32 %v197, %v535
    %v537 = vpop.f32.mrf.mxu0
    %v538 = vadd.f32 %v201, %v537
    %539 = vmatprep.mubr.bf16.mxu0 0
    %540 = vmatmul.mubr.bf16.gmra.mxu0 %v393
    %v541 = vpop.f32.mrf.mxu0
    %v542 = vadd.f32 %v197, %v541
    %v543 = vpop.f32.mrf.mxu0
    %v544 = vadd.f32 %v201, %v543
    %v545 = vpop.f32.mrf.mxu0
    %v546 = vpop.f32.mrf.mxu0
    %547 = vdwg.mxu0
    %v548 = vmul.f32 %v430, 0.1
    %v549 = vmul.f32 %v432, 0.1
    %v550 = vmul.f32 %v481, 0.1
    %v551 = vmul.f32 %v483, 0.1
    %v552 = vmul.f32 %v532, 0.1
    %v553 = vmul.f32 %v534, 0.1
    %v554 = vmul.f32 %v434, 0.1
    %v555 = vmul.f32 %v436, 0.1
    %v556 = vmul.f32 %v485, 0.1
    %v557 = vmul.f32 %v487, 0.1
    %v558 = vmul.f32 %v536, 0.1
    %v559 = vmul.f32 %v538, 0.1
    %v560 = vmul.f32 %v440, 0.1
    %v561 = vmul.f32 %v442, 0.1
    %v562 = vmul.f32 %v491, 0.1
    %v563 = vmul.f32 %v493, 0.1
    %v564 = vmul.f32 %v542, 0.1
    %v565 = vmul.f32 %v544, 0.1
    %v566 = vmax.f32 %v430, %v548
    %v567 = vmax.f32 %v432, %v549
    %v568 = vmax.f32 %v481, %v550
    %v569 = vmax.f32 %v483, %v551
    %v570 = vmax.f32 %v532, %v552
    %v571 = vmax.f32 %v534, %v553
    %v572 = vmax.f32 %v434, %v554
    %v573 = vmax.f32 %v436, %v555
    %v574 = vmax.f32 %v485, %v556
    %v575 = vmax.f32 %v487, %v557
    %v576 = vmax.f32 %v536, %v558
    %v577 = vmax.f32 %v538, %v559
    %v578 = vmax.f32 %v440, %v560
    %v579 = vmax.f32 %v442, %v561
    %v580 = vmax.f32 %v491, %v562
    %v581 = vmax.f32 %v493, %v563
    %v582 = vmax.f32 %v542, %v564
    %v583 = vmax.f32 %v544, %v565
    %v584 = vpack.c.bf16 %v572, %v566
    %v585 = vpack.c.bf16 %v573, %v567
    %v586 = vpack.c.bf16 %v574, %v568
    %v587 = vpack.c.bf16 %v575, %v569
    %v588 = vpack.c.bf16 %v576, %v570
    %v589 = vpack.c.bf16 %v577, %v571
    %v590 = vpack.c.bf16 %v578, %v578
    %v591 = vpack.c.bf16 %v579, %v579
    %v592 = vpack.c.bf16 %v580, %v580
    %v593 = vpack.c.bf16 %v581, %v581
    %v594 = vpack.c.bf16 %v582, %v582
    %v595 = vpack.c.bf16 %v583, %v583
    %v596 = vld [vmem:[#allocation8] sm:$0xff]
    %v597 = vld [vmem:[#allocation8 + $0x8] sm:$0xff]
    %v598 = vld [vmem:[#allocation8 + $0x10] sm:$0xff]
    %v599 = vld [vmem:[#allocation8 + $0x18] sm:$0xff]
    %v600 = vld [vmem:[#allocation8 + $0x20] sm:$0xff]
    %v601 = vld [vmem:[#allocation8 + $0x28] sm:$0xff]
    %v602 = vld [vmem:[#allocation8 + $0x30] sm:$0xff]
    %v603 = vld [vmem:[#allocation8 + $0x38] sm:$0xff]
    %v604 = vld [vmem:[#allocation8 + $0x40] sm:$0xff]
    %v605 = vld [vmem:[#allocation8 + $0x48] sm:$0xff]
    %v606 = vld [vmem:[#allocation8 + $0x50] sm:$0xff]
    %v607 = vld [vmem:[#allocation8 + $0x58] sm:$0xff]
    %v608 = vld [vmem:[#allocation8 + $0x60] sm:$0xff]
    %v609 = vld [vmem:[#allocation8 + $0x68] sm:$0xff]
    %v610 = vld [vmem:[#allocation8 + $0x70] sm:$0xff]
    %v611 = vld [vmem:[#allocation8 + $0x78] sm:$0xff]
    %v612 = vld [vmem:[#allocation8 + $0x80] sm:$0xff]
    %v613 = vld [vmem:[#allocation8 + $0x88] sm:$0xff]
    %v614 = vld [vmem:[#allocation8 + $0x90] sm:$0xff]
    %v615 = vld [vmem:[#allocation8 + $0x98] sm:$0xff]
    %v616 = vld [vmem:[#allocation8 + $0xa0] sm:$0xff]
    %v617 = vld [vmem:[#allocation8 + $0xa8] sm:$0xff]
    %v618 = vld [vmem:[#allocation8 + $0xb0] sm:$0xff]
    %v619 = vld [vmem:[#allocation8 + $0xb8] sm:$0xff]
    %v620 = vld [vmem:[#allocation8 + $0xc0] sm:$0xff]
    %v621 = vld [vmem:[#allocation8 + $0xc8] sm:$0xff]
    %v622 = vld [vmem:[#allocation8 + $0xd0] sm:$0xff]
    %v623 = vld [vmem:[#allocation8 + $0xd8] sm:$0xff]
    %v624 = vld [vmem:[#allocation8 + $0xe0] sm:$0xff]
    %v625 = vld [vmem:[#allocation8 + $0xe8] sm:$0xff]
    %v626 = vld [vmem:[#allocation8 + $0xf0] sm:$0xff]
    %v627 = vld [vmem:[#allocation8 + $0xf8] sm:$0xff]
    %v628 = vld [vmem:[#allocation8 + $0x100] sm:$0xff]
    %v629 = vld [vmem:[#allocation8 + $0x108] sm:$0xff]
    %v630 = vld [vmem:[#allocation8 + $0x110] sm:$0xff]
    %v631 = vld [vmem:[#allocation8 + $0x118] sm:$0xff]
    %v632 = vld [vmem:[#allocation8 + $0x120] sm:$0xff]
    %v633 = vld [vmem:[#allocation8 + $0x128] sm:$0xff]
    %v634 = vld [vmem:[#allocation8 + $0x130] sm:$0xff]
    %v635 = vld [vmem:[#allocation8 + $0x138] sm:$0xff]
    %v636 = vld [vmem:[#allocation8 + $0x140] sm:$0xff]
    %v637 = vld [vmem:[#allocation8 + $0x148] sm:$0xff]
    %v638 = vld [vmem:[#allocation8 + $0x150] sm:$0xff]
    %v639 = vld [vmem:[#allocation8 + $0x158] sm:$0xff]
    %v640 = vld [vmem:[#allocation8 + $0x160] sm:$0xff]
    %v641 = vld [vmem:[#allocation8 + $0x168] sm:$0xff]
    %v642 = vld [vmem:[#allocation8 + $0x170] sm:$0xff]
    %v643 = vld [vmem:[#allocation8 + $0x178] sm:$0xff]
    %v644 = vld [vmem:[#allocation8 + $0x180] sm:$0xff]
    %v645 = vld [vmem:[#allocation8 + $0x188] sm:$0xff]
    %v646 = vld [vmem:[#allocation8 + $0x190] sm:$0xff]
    %v647 = vld [vmem:[#allocation8 + $0x198] sm:$0xff]
    %v648 = vld [vmem:[#allocation8 + $0x1a0] sm:$0xff]
    %v649 = vld [vmem:[#allocation8 + $0x1a8] sm:$0xff]
    %v650 = vld [vmem:[#allocation8 + $0x1b0] sm:$0xff]
    %v651 = vld [vmem:[#allocation8 + $0x1b8] sm:$0xff]
    %v652 = vld [vmem:[#allocation8 + $0x1c0] sm:$0xff]
    %v653 = vld [vmem:[#allocation8 + $0x1c8] sm:$0xff]
    %v654 = vld [vmem:[#allocation8 + $0x1d0] sm:$0xff]
    %v655 = vld [vmem:[#allocation8 + $0x1d8] sm:$0xff]
    %v656 = vld [vmem:[#allocation8 + $0x1e0] sm:$0xff]
    %v657 = vld [vmem:[#allocation8 + $0x1e8] sm:$0xff]
    %v658 = vld [vmem:[#allocation8 + $0x1f0] sm:$0xff]
    %v659 = vld [vmem:[#allocation8 + $0x1f8] sm:$0xff]
    %v660 = vld [vmem:[#allocation8 + $0x200] sm:$0xff]
    %v661 = vld [vmem:[#allocation8 + $0x208] sm:$0xff]
    %v662 = vld [vmem:[#allocation8 + $0x210] sm:$0xff]
    %v663 = vld [vmem:[#allocation8 + $0x218] sm:$0xff]
    %v664 = vld [vmem:[#allocation8 + $0x220] sm:$0xff]
    %v665 = vld [vmem:[#allocation8 + $0x228] sm:$0xff]
    %v666 = vld [vmem:[#allocation8 + $0x230] sm:$0xff]
    %v667 = vld [vmem:[#allocation8 + $0x238] sm:$0xff]
    %v668 = vld [vmem:[#allocation8 + $0x240] sm:$0xff]
    %v669 = vld [vmem:[#allocation8 + $0x248] sm:$0xff]
    %v670 = vld [vmem:[#allocation8 + $0x250] sm:$0xff]
    %v671 = vld [vmem:[#allocation8 + $0x258] sm:$0xff]
    %v672 = vld [vmem:[#allocation8 + $0x260] sm:$0xff]
    %v673 = vld [vmem:[#allocation8 + $0x268] sm:$0xff]
    %v674 = vld [vmem:[#allocation8 + $0x270] sm:$0xff]
    %v675 = vld [vmem:[#allocation8 + $0x278] sm:$0xff]
    %v676 = vld [vmem:[#allocation8 + $0x280] sm:$0xff]
    %v677 = vld [vmem:[#allocation8 + $0x288] sm:$0xff]
    %v678 = vld [vmem:[#allocation8 + $0x290] sm:$0xff]
    %v679 = vld [vmem:[#allocation8 + $0x298] sm:$0xff]
    %v680 = vld [vmem:[#allocation8 + $0x2a0] sm:$0xff]
    %v681 = vld [vmem:[#allocation8 + $0x2a8] sm:$0xff]
    %v682 = vld [vmem:[#allocation8 + $0x2b0] sm:$0xff]
    %v683 = vld [vmem:[#allocation8 + $0x2b8] sm:$0xff]
    %v684 = vld [vmem:[#allocation8 + $0x2c0] sm:$0xff]
    %v685 = vld [vmem:[#allocation8 + $0x2c8] sm:$0xff]
    %v686 = vld [vmem:[#allocation8 + $0x2d0] sm:$0xff]
    %v687 = vld [vmem:[#allocation8 + $0x2d8] sm:$0xff]
    %v688 = vld [vmem:[#allocation8 + $0x2e0] sm:$0xff]
    %v689 = vld [vmem:[#allocation8 + $0x2e8] sm:$0xff]
    %v690 = vld [vmem:[#allocation8 + $0x2f0] sm:$0xff]
    %v691 = vld [vmem:[#allocation8 + $0x2f8] sm:$0xff]
    %v692 = vld [vmem:[#allocation8 + $0x300] sm:$0xff]
    %v693 = vld [vmem:[#allocation8 + $0x308] sm:$0xff]
    %v694 = vld [vmem:[#allocation8 + $0x310] sm:$0xff]
    %v695 = vld [vmem:[#allocation8 + $0x318] sm:$0xff]
    %v696 = vld [vmem:[#allocation8 + $0x320] sm:$0xff]
    %v697 = vld [vmem:[#allocation8 + $0x328] sm:$0xff]
    %v698 = vld [vmem:[#allocation8 + $0x330] sm:$0xff]
    %v699 = vld [vmem:[#allocation8 + $0x338] sm:$0xff]
    %v700 = vld [vmem:[#allocation8 + $0x340] sm:$0xff]
    %v701 = vld [vmem:[#allocation8 + $0x348] sm:$0xff]
    %v702 = vld [vmem:[#allocation8 + $0x350] sm:$0xff]
    %v703 = vld [vmem:[#allocation8 + $0x358] sm:$0xff]
    %v704 = vld [vmem:[#allocation8 + $0x360] sm:$0xff]
    %v705 = vld [vmem:[#allocation8 + $0x368] sm:$0xff]
    %v706 = vld [vmem:[#allocation8 + $0x370] sm:$0xff]
    %v707 = vld [vmem:[#allocation8 + $0x378] sm:$0xff]
    %v708 = vld [vmem:[#allocation8 + $0x380] sm:$0xff]
    %v709 = vld [vmem:[#allocation8 + $0x388] sm:$0xff]
    %v710 = vld [vmem:[#allocation8 + $0x390] sm:$0xff]
    %v711 = vld [vmem:[#allocation8 + $0x398] sm:$0xff]
    %v712 = vld [vmem:[#allocation8 + $0x3a0] sm:$0xff]
    %v713 = vld [vmem:[#allocation8 + $0x3a8] sm:$0xff]
    %v714 = vld [vmem:[#allocation8 + $0x3b0] sm:$0xff]
    %v715 = vld [vmem:[#allocation8 + $0x3b8] sm:$0xff]
    %v716 = vld [vmem:[#allocation8 + $0x3c0] sm:$0xff]
    %v717 = vld [vmem:[#allocation8 + $0x3c8] sm:$0xff]
    %v718 = vld [vmem:[#allocation8 + $0x3d0] sm:$0xff]
    %v719 = vld [vmem:[#allocation8 + $0x3d8] sm:$0xff]
    %v720 = vld [vmem:[#allocation8 + $0x3e0] sm:$0xff]
    %v721 = vld [vmem:[#allocation8 + $0x3e8] sm:$0xff]
    %v722 = vld [vmem:[#allocation8 + $0x3f0] sm:$0xff]
    %v723 = vld [vmem:[#allocation8 + $0x3f8] sm:$0xff]
    %v724 = vld [vmem:[#allocation8 + $0x400] sm:$0xff]
    %v725 = vld [vmem:[#allocation8 + $0x408] sm:$0xff]
    %v726 = vld [vmem:[#allocation8 + $0x410] sm:$0xff]
    %v727 = vld [vmem:[#allocation8 + $0x418] sm:$0xff]
    %v728 = vld [vmem:[#allocation8 + $0x420] sm:$0xff]
    %v729 = vld [vmem:[#allocation8 + $0x428] sm:$0xff]
    %v730 = vld [vmem:[#allocation8 + $0x430] sm:$0xff]
    %v731 = vld [vmem:[#allocation8 + $0x438] sm:$0xff]
    %v732 = vld [vmem:[#allocation8 + $0x440] sm:$0xff]
    %v733 = vld [vmem:[#allocation8 + $0x448] sm:$0xff]
    %v734 = vld [vmem:[#allocation8 + $0x450] sm:$0xff]
    %v735 = vld [vmem:[#allocation8 + $0x458] sm:$0xff]
    %v736 = vld [vmem:[#allocation8 + $0x460] sm:$0xff]
    %v737 = vld [vmem:[#allocation8 + $0x468] sm:$0xff]
    %v738 = vld [vmem:[#allocation8 + $0x470] sm:$0xff]
    %v739 = vld [vmem:[#allocation8 + $0x478] sm:$0xff]
    %v740 = vld [vmem:[#allocation8 + $0x480] sm:$0xff]
    %v741 = vld [vmem:[#allocation8 + $0x488] sm:$0xff]
    %v742 = vld [vmem:[#allocation8 + $0x490] sm:$0xff]
    %v743 = vld [vmem:[#allocation8 + $0x498] sm:$0xff]
    %v744 = vld [vmem:[#allocation8 + $0x4a0] sm:$0xff]
    %v745 = vld [vmem:[#allocation8 + $0x4a8] sm:$0xff]
    %v746 = vld [vmem:[#allocation8 + $0x4b0] sm:$0xff]
    %v747 = vld [vmem:[#allocation8 + $0x4b8] sm:$0xff]
    %v748 = vld [vmem:[#allocation8 + $0x4c0] sm:$0xff]
    %v749 = vld [vmem:[#allocation8 + $0x4c8] sm:$0xff]
    %v750 = vld [vmem:[#allocation8 + $0x4d0] sm:$0xff]
    %v751 = vld [vmem:[#allocation8 + $0x4d8] sm:$0xff]
    %v752 = vld [vmem:[#allocation8 + $0x4e0] sm:$0xff]
    %v753 = vld [vmem:[#allocation8 + $0x4e8] sm:$0xff]
    %v754 = vld [vmem:[#allocation8 + $0x4f0] sm:$0xff]
    %v755 = vld [vmem:[#allocation8 + $0x4f8] sm:$0xff]
    %v756 = vld [vmem:[#allocation8 + $0x500] sm:$0xff]
    %v757 = vld [vmem:[#allocation8 + $0x508] sm:$0xff]
    %v758 = vld [vmem:[#allocation8 + $0x510] sm:$0xff]
    %v759 = vld [vmem:[#allocation8 + $0x518] sm:$0xff]
    %v760 = vld [vmem:[#allocation8 + $0x520] sm:$0xff]
    %v761 = vld [vmem:[#allocation8 + $0x528] sm:$0xff]
    %v762 = vld [vmem:[#allocation8 + $0x530] sm:$0xff]
    %v763 = vld [vmem:[#allocation8 + $0x538] sm:$0xff]
    %v764 = vld [vmem:[#allocation8 + $0x540] sm:$0xff]
    %v765 = vld [vmem:[#allocation8 + $0x548] sm:$0xff]
    %v766 = vld [vmem:[#allocation8 + $0x550] sm:$0xff]
    %v767 = vld [vmem:[#allocation8 + $0x558] sm:$0xff]
    %v768 = vld [vmem:[#allocation8 + $0x560] sm:$0xff]
    %v769 = vld [vmem:[#allocation8 + $0x568] sm:$0xff]
    %v770 = vld [vmem:[#allocation8 + $0x570] sm:$0xff]
    %v771 = vld [vmem:[#allocation8 + $0x578] sm:$0xff]
    %v772 = vld [vmem:[#allocation8 + $0x580] sm:$0xff]
    %v773 = vld [vmem:[#allocation8 + $0x588] sm:$0xff]
    %v774 = vld [vmem:[#allocation8 + $0x590] sm:$0xff]
    %v775 = vld [vmem:[#allocation8 + $0x598] sm:$0xff]
    %v776 = vld [vmem:[#allocation8 + $0x5a0] sm:$0xff]
    %v777 = vld [vmem:[#allocation8 + $0x5a8] sm:$0xff]
    %v778 = vld [vmem:[#allocation8 + $0x5b0] sm:$0xff]
    %v779 = vld [vmem:[#allocation8 + $0x5b8] sm:$0xff]
    %v780 = vld [vmem:[#allocation8 + $0x5c0] sm:$0xff]
    %v781 = vld [vmem:[#allocation8 + $0x5c8] sm:$0xff]
    %v782 = vld [vmem:[#allocation8 + $0x5d0] sm:$0xff]
    %v783 = vld [vmem:[#allocation8 + $0x5d8] sm:$0xff]
    %v784 = vld [vmem:[#allocation8 + $0x5e0] sm:$0xff]
    %v785 = vld [vmem:[#allocation8 + $0x5e8] sm:$0xff]
    %v786 = vld [vmem:[#allocation8 + $0x5f0] sm:$0xff]
    %v787 = vld [vmem:[#allocation8 + $0x5f8] sm:$0xff]
    %v788 = vld [vmem:[#allocation8 + $0x600] sm:$0xff]
    %v789 = vld [vmem:[#allocation8 + $0x608] sm:$0xff]
    %v790 = vld [vmem:[#allocation8 + $0x610] sm:$0xff]
    %v791 = vld [vmem:[#allocation8 + $0x618] sm:$0xff]
    %v792 = vld [vmem:[#allocation8 + $0x620] sm:$0xff]
    %v793 = vld [vmem:[#allocation8 + $0x628] sm:$0xff]
    %v794 = vld [vmem:[#allocation8 + $0x630] sm:$0xff]
    %v795 = vld [vmem:[#allocation8 + $0x638] sm:$0xff]
    %v796 = vld [vmem:[#allocation8 + $0x640] sm:$0xff]
    %v797 = vld [vmem:[#allocation8 + $0x648] sm:$0xff]
    %v798 = vld [vmem:[#allocation8 + $0x650] sm:$0xff]
    %v799 = vld [vmem:[#allocation8 + $0x658] sm:$0xff]
    %v800 = vld [vmem:[#allocation8 + $0x660] sm:$0xff]
    %v801 = vld [vmem:[#allocation8 + $0x668] sm:$0xff]
    %v802 = vld [vmem:[#allocation8 + $0x670] sm:$0xff]
    %v803 = vld [vmem:[#allocation8 + $0x678] sm:$0xff]
    %v804 = vld [vmem:[#allocation8 + $0x680] sm:$0xff]
    %v805 = vld [vmem:[#allocation8 + $0x688] sm:$0xff]
    %v806 = vld [vmem:[#allocation8 + $0x690] sm:$0xff]
    %v807 = vld [vmem:[#allocation8 + $0x698] sm:$0xff]
    %v808 = vld [vmem:[#allocation8 + $0x6a0] sm:$0xff]
    %v809 = vld [vmem:[#allocation8 + $0x6a8] sm:$0xff]
    %v810 = vld [vmem:[#allocation8 + $0x6b0] sm:$0xff]
    %v811 = vld [vmem:[#allocation8 + $0x6b8] sm:$0xff]
    %v812 = vld [vmem:[#allocation8 + $0x6c0] sm:$0xff]
    %v813 = vld [vmem:[#allocation8 + $0x6c8] sm:$0xff]
    %v814 = vld [vmem:[#allocation8 + $0x6d0] sm:$0xff]
    %v815 = vld [vmem:[#allocation8 + $0x6d8] sm:$0xff]
    %v816 = vld [vmem:[#allocation8 + $0x6e0] sm:$0xff]
    %v817 = vld [vmem:[#allocation8 + $0x6e8] sm:$0xff]
    %v818 = vld [vmem:[#allocation8 + $0x6f0] sm:$0xff]
    %v819 = vld [vmem:[#allocation8 + $0x6f8] sm:$0xff]
    %v820 = vld [vmem:[#allocation8 + $0x700] sm:$0xff]
    %v821 = vld [vmem:[#allocation8 + $0x708] sm:$0xff]
    %v822 = vld [vmem:[#allocation8 + $0x710] sm:$0xff]
    %v823 = vld [vmem:[#allocation8 + $0x718] sm:$0xff]
    %v824 = vld [vmem:[#allocation8 + $0x720] sm:$0xff]
    %v825 = vld [vmem:[#allocation8 + $0x728] sm:$0xff]
    %v826 = vld [vmem:[#allocation8 + $0x730] sm:$0xff]
    %v827 = vld [vmem:[#allocation8 + $0x738] sm:$0xff]
    %v828 = vld [vmem:[#allocation8 + $0x740] sm:$0xff]
    %v829 = vld [vmem:[#allocation8 + $0x748] sm:$0xff]
    %v830 = vld [vmem:[#allocation8 + $0x750] sm:$0xff]
    %v831 = vld [vmem:[#allocation8 + $0x758] sm:$0xff]
    %v832 = vld [vmem:[#allocation8 + $0x760] sm:$0xff]
    %v833 = vld [vmem:[#allocation8 + $0x768] sm:$0xff]
    %v834 = vld [vmem:[#allocation8 + $0x770] sm:$0xff]
    %v835 = vld [vmem:[#allocation8 + $0x778] sm:$0xff]
    %v836 = vld [vmem:[#allocation8 + $0x780] sm:$0xff]
    %v837 = vld [vmem:[#allocation8 + $0x788] sm:$0xff]
    %v838 = vld [vmem:[#allocation8 + $0x790] sm:$0xff]
    %v839 = vld [vmem:[#allocation8 + $0x798] sm:$0xff]
    %v840 = vld [vmem:[#allocation8 + $0x7a0] sm:$0xff]
    %v841 = vld [vmem:[#allocation8 + $0x7a8] sm:$0xff]
    %v842 = vld [vmem:[#allocation8 + $0x7b0] sm:$0xff]
    %v843 = vld [vmem:[#allocation8 + $0x7b8] sm:$0xff]
    %v844 = vld [vmem:[#allocation8 + $0x7c0] sm:$0xff]
    %v845 = vld [vmem:[#allocation8 + $0x7c8] sm:$0xff]
    %v846 = vld [vmem:[#allocation8 + $0x7d0] sm:$0xff]
    %v847 = vld [vmem:[#allocation8 + $0x7d8] sm:$0xff]
    %v848 = vld [vmem:[#allocation8 + $0x7e0] sm:$0xff]
    %v849 = vld [vmem:[#allocation8 + $0x7e8] sm:$0xff]
    %v850 = vld [vmem:[#allocation8 + $0x7f0] sm:$0xff]
    %v851 = vld [vmem:[#allocation8 + $0x7f8] sm:$0xff]
    %v852 = vld [vmem:[#allocation8 + $0x800] sm:$0xff]
    %v853 = vld [vmem:[#allocation8 + $0x808] sm:$0xff]
    %v854 = vld [vmem:[#allocation8 + $0x810] sm:$0xff]
    %v855 = vld [vmem:[#allocation8 + $0x818] sm:$0xff]
    %v856 = vld [vmem:[#allocation8 + $0x820] sm:$0xff]
    %v857 = vld [vmem:[#allocation8 + $0x828] sm:$0xff]
    %v858 = vld [vmem:[#allocation8 + $0x830] sm:$0xff]
    %v859 = vld [vmem:[#allocation8 + $0x838] sm:$0xff]
    %v860 = vld [vmem:[#allocation8 + $0x840] sm:$0xff]
    %v861 = vld [vmem:[#allocation8 + $0x848] sm:$0xff]
    %v862 = vld [vmem:[#allocation8 + $0x850] sm:$0xff]
    %v863 = vld [vmem:[#allocation8 + $0x858] sm:$0xff]
    %v864 = vld [vmem:[#allocation8 + $0x860] sm:$0xff]
    %v865 = vld [vmem:[#allocation8 + $0x868] sm:$0xff]
    %v866 = vld [vmem:[#allocation8 + $0x870] sm:$0xff]
    %v867 = vld [vmem:[#allocation8 + $0x878] sm:$0xff]
    %v868 = vld [vmem:[#allocation8 + $0x880] sm:$0xff]
    %v869 = vld [vmem:[#allocation8 + $0x888] sm:$0xff]
    %v870 = vld [vmem:[#allocation8 + $0x890] sm:$0xff]
    %v871 = vld [vmem:[#allocation8 + $0x898] sm:$0xff]
    %v872 = vld [vmem:[#allocation8 + $0x8a0] sm:$0xff]
    %v873 = vld [vmem:[#allocation8 + $0x8a8] sm:$0xff]
    %v874 = vld [vmem:[#allocation8 + $0x8b0] sm:$0xff]
    %v875 = vld [vmem:[#allocation8 + $0x8b8] sm:$0xff]
    %v876 = vld [vmem:[#allocation8 + $0x8c0] sm:$0xff]
    %v877 = vld [vmem:[#allocation8 + $0x8c8] sm:$0xff]
    %v878 = vld [vmem:[#allocation8 + $0x8d0] sm:$0xff]
    %v879 = vld [vmem:[#allocation8 + $0x8d8] sm:$0xff]
    %v880 = vld [vmem:[#allocation8 + $0x8e0] sm:$0xff]
    %v881 = vld [vmem:[#allocation8 + $0x8e8] sm:$0xff]
    %v882 = vld [vmem:[#allocation8 + $0x8f0] sm:$0xff]
    %v883 = vld [vmem:[#allocation8 + $0x8f8] sm:$0xff]
    %v884 = vld [vmem:[#allocation10] sm:$0x3f]
    %v886 = vlaneseq
    %v887 = vshrl.u32 %v886, 7
    %v888 = vsub.s32 0, %v887
    %v889 = vrot.slane %v884, %v888
    %v890 = vlaneseq
    %v891 = vshrl.u32 %v890, 7
    %v892 = vsub.s32 1, %v891
    %v893 = vrot.slane %v884, %v892
    %v894 = vlaneseq
    %v895 = vshrl.u32 %v894, 7
    %v896 = vsub.s32 2, %v895
    %v897 = vrot.slane %v884, %v896
    %v898 = vlaneseq
    %v899 = vshrl.u32 %v898, 7
    %v900 = vsub.s32 3, %v899
    %v901 = vrot.slane %v884, %v900
    %v902 = vlaneseq
    %v903 = vshrl.u32 %v902, 7
    %v904 = vsub.s32 4, %v903
    %v905 = vrot.slane %v884, %v904
    %v906 = vlaneseq
    %v907 = vshrl.u32 %v906, 7
    %v908 = vsub.s32 5, %v907
    %v909 = vrot.slane %v884, %v908
    %v1204 = vunpack.c.l.b16 %v596
    %v1205 = vunpack.c.h.b16 %v596
    %v1206 = vunpack.c.l.b16 %v597
    %v1207 = vunpack.c.h.b16 %v597
    %v1208 = vunpack.c.l.b16 %v598
    %v1209 = vunpack.c.h.b16 %v598
    %v1210 = vunpack.c.l.b16 %v599
    %v1211 = vunpack.c.h.b16 %v599
    %v1212 = vunpack.c.l.b16 %v600
    %v1213 = vunpack.c.h.b16 %v600
    %v1214 = vunpack.c.l.b16 %v601
    %v1215 = vunpack.c.h.b16 %v601
    %v1216 = vunpack.c.l.b16 %v602
    %v1217 = vunpack.c.h.b16 %v602
    %v1218 = vunpack.c.l.b16 %v603
    %v1219 = vunpack.c.h.b16 %v603
    %v1220 = vunpack.c.l.b16 %v604
    %v1221 = vunpack.c.h.b16 %v604
    %v1222 = vunpack.c.l.b16 %v605
    %v1223 = vunpack.c.h.b16 %v605
    %v1224 = vunpack.c.l.b16 %v606
    %v1225 = vunpack.c.h.b16 %v606
    %v1226 = vunpack.c.l.b16 %v607
    %v1227 = vunpack.c.h.b16 %v607
    %v1228 = vunpack.c.l.b16 %v608
    %v1229 = vunpack.c.h.b16 %v608
    %v1230 = vunpack.c.l.b16 %v609
    %v1231 = vunpack.c.h.b16 %v609
    %v1232 = vunpack.c.l.b16 %v610
    %v1233 = vunpack.c.h.b16 %v610
    %v1234 = vunpack.c.l.b16 %v611
    %v1235 = vunpack.c.h.b16 %v611
    %v1236 = vunpack.c.l.b16 %v612
    %v1237 = vunpack.c.h.b16 %v612
    %v1238 = vunpack.c.l.b16 %v613
    %v1239 = vunpack.c.h.b16 %v613
    %v1240 = vunpack.c.l.b16 %v614
    %v1241 = vunpack.c.h.b16 %v614
    %v1242 = vunpack.c.l.b16 %v615
    %v1243 = vunpack.c.h.b16 %v615
    %v1244 = vunpack.c.l.b16 %v616
    %v1245 = vunpack.c.h.b16 %v616
    %v1246 = vunpack.c.l.b16 %v617
    %v1247 = vunpack.c.h.b16 %v617
    %v1248 = vunpack.c.l.b16 %v618
    %v1249 = vunpack.c.h.b16 %v618
    %v1250 = vunpack.c.l.b16 %v619
    %v1251 = vunpack.c.h.b16 %v619
    %v1252 = vunpack.c.l.b16 %v620
    %v1253 = vunpack.c.h.b16 %v620
    %v1254 = vunpack.c.l.b16 %v621
    %v1255 = vunpack.c.h.b16 %v621
    %v1256 = vunpack.c.l.b16 %v622
    %v1257 = vunpack.c.h.b16 %v622
    %v1258 = vunpack.c.l.b16 %v623
    %v1259 = vunpack.c.h.b16 %v623
    %v1260 = vunpack.c.l.b16 %v624
    %v1261 = vunpack.c.h.b16 %v624
    %v1262 = vunpack.c.l.b16 %v625
    %v1263 = vunpack.c.h.b16 %v625
    %v1264 = vunpack.c.l.b16 %v626
    %v1265 = vunpack.c.h.b16 %v626
    %v1266 = vunpack.c.l.b16 %v627
    %v1267 = vunpack.c.h.b16 %v627
    %v1268 = vunpack.c.l.b16 %v628
    %v1269 = vunpack.c.h.b16 %v628
    %v1270 = vunpack.c.l.b16 %v629
    %v1271 = vunpack.c.h.b16 %v629
    %v1272 = vunpack.c.l.b16 %v630
    %v1273 = vunpack.c.h.b16 %v630
    %v1274 = vunpack.c.l.b16 %v631
    %v1275 = vunpack.c.h.b16 %v631
    %v1276 = vunpack.c.l.b16 %v632
    %v1277 = vunpack.c.h.b16 %v632
    %v1278 = vunpack.c.l.b16 %v633
    %v1279 = vunpack.c.h.b16 %v633
    %v1280 = vunpack.c.l.b16 %v634
    %v1281 = vunpack.c.h.b16 %v634
    %v1282 = vunpack.c.l.b16 %v635
    %v1283 = vunpack.c.h.b16 %v635
    %v1284 = vunpack.c.l.b16 %v636
    %v1285 = vunpack.c.h.b16 %v636
    %v1286 = vunpack.c.l.b16 %v637
    %v1287 = vunpack.c.h.b16 %v637
    %v1288 = vunpack.c.l.b16 %v638
    %v1289 = vunpack.c.h.b16 %v638
    %v1290 = vunpack.c.l.b16 %v639
    %v1291 = vunpack.c.h.b16 %v639
    %v1292 = vunpack.c.l.b16 %v640
    %v1293 = vunpack.c.h.b16 %v640
    %v1294 = vunpack.c.l.b16 %v641
    %v1295 = vunpack.c.h.b16 %v641
    %v1296 = vunpack.c.l.b16 %v642
    %v1297 = vunpack.c.h.b16 %v642
    %v1298 = vunpack.c.l.b16 %v643
    %v1299 = vunpack.c.h.b16 %v643
    %v1300 = vunpack.c.l.b16 %v644
    %v1301 = vunpack.c.h.b16 %v644
    %v1302 = vunpack.c.l.b16 %v645
    %v1303 = vunpack.c.h.b16 %v645
    %v1304 = vunpack.c.l.b16 %v646
    %v1305 = vunpack.c.h.b16 %v646
    %v1306 = vunpack.c.l.b16 %v647
    %v1307 = vunpack.c.h.b16 %v647
    %v1308 = vunpack.c.l.b16 %v648
    %v1309 = vunpack.c.h.b16 %v648
    %v1310 = vunpack.c.l.b16 %v649
    %v1311 = vunpack.c.h.b16 %v649
    %v1312 = vunpack.c.l.b16 %v650
    %v1313 = vunpack.c.h.b16 %v650
    %v1314 = vunpack.c.l.b16 %v651
    %v1315 = vunpack.c.h.b16 %v651
    %v1316 = vunpack.c.l.b16 %v652
    %v1317 = vunpack.c.h.b16 %v652
    %v1318 = vunpack.c.l.b16 %v653
    %v1319 = vunpack.c.h.b16 %v653
    %v1320 = vunpack.c.l.b16 %v654
    %v1321 = vunpack.c.h.b16 %v654
    %v1322 = vunpack.c.l.b16 %v655
    %v1323 = vunpack.c.h.b16 %v655
    %v1324 = vunpack.c.l.b16 %v656
    %v1325 = vunpack.c.h.b16 %v656
    %v1326 = vunpack.c.l.b16 %v657
    %v1327 = vunpack.c.h.b16 %v657
    %v1328 = vunpack.c.l.b16 %v658
    %v1329 = vunpack.c.h.b16 %v658
    %v1330 = vunpack.c.l.b16 %v659
    %v1331 = vunpack.c.h.b16 %v659
    %v1332 = vunpack.c.l.b16 %v660
    %v1333 = vunpack.c.h.b16 %v660
    %v1334 = vunpack.c.l.b16 %v661
    %v1335 = vunpack.c.h.b16 %v661
    %v1336 = vunpack.c.l.b16 %v662
    %v1337 = vunpack.c.h.b16 %v662
    %v1338 = vunpack.c.l.b16 %v663
    %v1339 = vunpack.c.h.b16 %v663
    %v1340 = vunpack.c.l.b16 %v664
    %v1341 = vunpack.c.h.b16 %v664
    %v1342 = vunpack.c.l.b16 %v665
    %v1343 = vunpack.c.h.b16 %v665
    %v1344 = vunpack.c.l.b16 %v666
    %v1345 = vunpack.c.h.b16 %v666
    %v1346 = vunpack.c.l.b16 %v667
    %v1347 = vunpack.c.h.b16 %v667
    %v1348 = vunpack.c.l.b16 %v668
    %v1349 = vunpack.c.h.b16 %v668
    %v1350 = vunpack.c.l.b16 %v669
    %v1351 = vunpack.c.h.b16 %v669
    %v1352 = vunpack.c.l.b16 %v670
    %v1353 = vunpack.c.h.b16 %v670
    %v1354 = vunpack.c.l.b16 %v671
    %v1355 = vunpack.c.h.b16 %v671
    %v1356 = vunpack.c.l.b16 %v672
    %v1357 = vunpack.c.h.b16 %v672
    %v1358 = vunpack.c.l.b16 %v673
    %v1359 = vunpack.c.h.b16 %v673
    %v1360 = vunpack.c.l.b16 %v674
    %v1361 = vunpack.c.h.b16 %v674
    %v1362 = vunpack.c.l.b16 %v675
    %v1363 = vunpack.c.h.b16 %v675
    %v1364 = vunpack.c.l.b16 %v676
    %v1365 = vunpack.c.h.b16 %v676
    %v1366 = vunpack.c.l.b16 %v677
    %v1367 = vunpack.c.h.b16 %v677
    %v1368 = vunpack.c.l.b16 %v678
    %v1369 = vunpack.c.h.b16 %v678
    %v1370 = vunpack.c.l.b16 %v679
    %v1371 = vunpack.c.h.b16 %v679
    %v1372 = vunpack.c.l.b16 %v680
    %v1373 = vunpack.c.h.b16 %v680
    %v1374 = vunpack.c.l.b16 %v681
    %v1375 = vunpack.c.h.b16 %v681
    %v1376 = vunpack.c.l.b16 %v682
    %v1377 = vunpack.c.h.b16 %v682
    %v1378 = vunpack.c.l.b16 %v683
    %v1379 = vunpack.c.h.b16 %v683
    %v1380 = vunpack.c.l.b16 %v684
    %v1381 = vunpack.c.h.b16 %v684
    %v1382 = vunpack.c.l.b16 %v685
    %v1383 = vunpack.c.h.b16 %v685
    %v1384 = vunpack.c.l.b16 %v686
    %v1385 = vunpack.c.h.b16 %v686
    %v1386 = vunpack.c.l.b16 %v687
    %v1387 = vunpack.c.h.b16 %v687
    %v1388 = vunpack.c.l.b16 %v688
    %v1389 = vunpack.c.h.b16 %v688
    %v1390 = vunpack.c.l.b16 %v689
    %v1391 = vunpack.c.h.b16 %v689
    %v1392 = vunpack.c.l.b16 %v690
    %v1393 = vunpack.c.h.b16 %v690
    %v1394 = vunpack.c.l.b16 %v691
    %v1395 = vunpack.c.h.b16 %v691
    %v1396 = vunpack.c.l.b16 %v692
    %v1397 = vunpack.c.h.b16 %v692
    %v1398 = vunpack.c.l.b16 %v693
    %v1399 = vunpack.c.h.b16 %v693
    %v1400 = vunpack.c.l.b16 %v694
    %v1401 = vunpack.c.h.b16 %v694
    %v1402 = vunpack.c.l.b16 %v695
    %v1403 = vunpack.c.h.b16 %v695
    %v1404 = vunpack.c.l.b16 %v696
    %v1405 = vunpack.c.h.b16 %v696
    %v1406 = vunpack.c.l.b16 %v697
    %v1407 = vunpack.c.h.b16 %v697
    %v1408 = vunpack.c.l.b16 %v698
    %v1409 = vunpack.c.h.b16 %v698
    %v1410 = vunpack.c.l.b16 %v699
    %v1411 = vunpack.c.h.b16 %v699
    %v1412 = vunpack.c.l.b16 %v700
    %v1413 = vunpack.c.h.b16 %v700
    %v1414 = vunpack.c.l.b16 %v701
    %v1415 = vunpack.c.h.b16 %v701
    %v1416 = vunpack.c.l.b16 %v702
    %v1417 = vunpack.c.h.b16 %v702
    %v1418 = vunpack.c.l.b16 %v703
    %v1419 = vunpack.c.h.b16 %v703
    %v1420 = vunpack.c.l.b16 %v704
    %v1421 = vunpack.c.h.b16 %v704
    %v1422 = vunpack.c.l.b16 %v705
    %v1423 = vunpack.c.h.b16 %v705
    %v1424 = vunpack.c.l.b16 %v706
    %v1425 = vunpack.c.h.b16 %v706
    %v1426 = vunpack.c.l.b16 %v707
    %v1427 = vunpack.c.h.b16 %v707
    %v1428 = vunpack.c.l.b16 %v708
    %v1429 = vunpack.c.h.b16 %v708
    %v1430 = vunpack.c.l.b16 %v709
    %v1431 = vunpack.c.h.b16 %v709
    %v1432 = vunpack.c.l.b16 %v710
    %v1433 = vunpack.c.h.b16 %v710
    %v1434 = vunpack.c.l.b16 %v711
    %v1435 = vunpack.c.h.b16 %v711
    %v1436 = vunpack.c.l.b16 %v712
    %v1437 = vunpack.c.h.b16 %v712
    %v1438 = vunpack.c.l.b16 %v713
    %v1439 = vunpack.c.h.b16 %v713
    %v1440 = vunpack.c.l.b16 %v714
    %v1441 = vunpack.c.h.b16 %v714
    %v1442 = vunpack.c.l.b16 %v715
    %v1443 = vunpack.c.h.b16 %v715
    %v1444 = vunpack.c.l.b16 %v716
    %v1445 = vunpack.c.h.b16 %v716
    %v1446 = vunpack.c.l.b16 %v717
    %v1447 = vunpack.c.h.b16 %v717
    %v1448 = vunpack.c.l.b16 %v718
    %v1449 = vunpack.c.h.b16 %v718
    %v1450 = vunpack.c.l.b16 %v719
    %v1451 = vunpack.c.h.b16 %v719
    %v1452 = vunpack.c.l.b16 %v720
    %v1453 = vunpack.c.h.b16 %v720
    %v1454 = vunpack.c.l.b16 %v721
    %v1455 = vunpack.c.h.b16 %v721
    %v1456 = vunpack.c.l.b16 %v722
    %v1457 = vunpack.c.h.b16 %v722
    %v1458 = vunpack.c.l.b16 %v723
    %v1459 = vunpack.c.h.b16 %v723
    %v1460 = vunpack.c.l.b16 %v724
    %v1461 = vunpack.c.h.b16 %v724
    %v1462 = vunpack.c.l.b16 %v725
    %v1463 = vunpack.c.h.b16 %v725
    %v1464 = vunpack.c.l.b16 %v726
    %v1465 = vunpack.c.h.b16 %v726
    %v1466 = vunpack.c.l.b16 %v727
    %v1467 = vunpack.c.h.b16 %v727
    %v1468 = vunpack.c.l.b16 %v728
    %v1469 = vunpack.c.h.b16 %v728
    %v1470 = vunpack.c.l.b16 %v729
    %v1471 = vunpack.c.h.b16 %v729
    %v1472 = vunpack.c.l.b16 %v730
    %v1473 = vunpack.c.h.b16 %v730
    %v1474 = vunpack.c.l.b16 %v731
    %v1475 = vunpack.c.h.b16 %v731
    %v1476 = vunpack.c.l.b16 %v732
    %v1477 = vunpack.c.h.b16 %v732
    %v1478 = vunpack.c.l.b16 %v733
    %v1479 = vunpack.c.h.b16 %v733
    %v1480 = vunpack.c.l.b16 %v734
    %v1481 = vunpack.c.h.b16 %v734
    %v1482 = vunpack.c.l.b16 %v735
    %v1483 = vunpack.c.h.b16 %v735
    %v1484 = vunpack.c.l.b16 %v736
    %v1485 = vunpack.c.h.b16 %v736
    %v1486 = vunpack.c.l.b16 %v737
    %v1487 = vunpack.c.h.b16 %v737
    %v1488 = vunpack.c.l.b16 %v738
    %v1489 = vunpack.c.h.b16 %v738
    %v1490 = vunpack.c.l.b16 %v739
    %v1491 = vunpack.c.h.b16 %v739
    %v1492 = vunpack.c.l.b16 %v740
    %v1493 = vunpack.c.h.b16 %v740
    %v1494 = vunpack.c.l.b16 %v741
    %v1495 = vunpack.c.h.b16 %v741
    %v1496 = vunpack.c.l.b16 %v742
    %v1497 = vunpack.c.h.b16 %v742
    %v1498 = vunpack.c.l.b16 %v743
    %v1499 = vunpack.c.h.b16 %v743
    %v1500 = vunpack.c.l.b16 %v744
    %v1501 = vunpack.c.h.b16 %v744
    %v1502 = vunpack.c.l.b16 %v745
    %v1503 = vunpack.c.h.b16 %v745
    %v1504 = vunpack.c.l.b16 %v746
    %v1505 = vunpack.c.h.b16 %v746
    %v1506 = vunpack.c.l.b16 %v747
    %v1507 = vunpack.c.h.b16 %v747
    %v1508 = vunpack.c.l.b16 %v748
    %v1509 = vunpack.c.h.b16 %v748
    %v1510 = vunpack.c.l.b16 %v749
    %v1511 = vunpack.c.h.b16 %v749
    %v1512 = vunpack.c.l.b16 %v750
    %v1513 = vunpack.c.h.b16 %v750
    %v1514 = vunpack.c.l.b16 %v751
    %v1515 = vunpack.c.h.b16 %v751
    %v1516 = vunpack.c.l.b16 %v752
    %v1517 = vunpack.c.h.b16 %v752
    %v1518 = vunpack.c.l.b16 %v753
    %v1519 = vunpack.c.h.b16 %v753
    %v1520 = vunpack.c.l.b16 %v754
    %v1521 = vunpack.c.h.b16 %v754
    %v1522 = vunpack.c.l.b16 %v755
    %v1523 = vunpack.c.h.b16 %v755
    %v1524 = vunpack.c.l.b16 %v756
    %v1525 = vunpack.c.h.b16 %v756
    %v1526 = vunpack.c.l.b16 %v757
    %v1527 = vunpack.c.h.b16 %v757
    %v1528 = vunpack.c.l.b16 %v758
    %v1529 = vunpack.c.h.b16 %v758
    %v1530 = vunpack.c.l.b16 %v759
    %v1531 = vunpack.c.h.b16 %v759
    %v1532 = vunpack.c.l.b16 %v760
    %v1533 = vunpack.c.h.b16 %v760
    %v1534 = vunpack.c.l.b16 %v761
    %v1535 = vunpack.c.h.b16 %v761
    %v1536 = vunpack.c.l.b16 %v762
    %v1537 = vunpack.c.h.b16 %v762
    %v1538 = vunpack.c.l.b16 %v763
    %v1539 = vunpack.c.h.b16 %v763
    %v1540 = vunpack.c.l.b16 %v764
    %v1541 = vunpack.c.h.b16 %v764
    %v1542 = vunpack.c.l.b16 %v765
    %v1543 = vunpack.c.h.b16 %v765
    %v1544 = vunpack.c.l.b16 %v766
    %v1545 = vunpack.c.h.b16 %v766
    %v1546 = vunpack.c.l.b16 %v767
    %v1547 = vunpack.c.h.b16 %v767
    %v1548 = vunpack.c.l.b16 %v768
    %v1549 = vunpack.c.h.b16 %v768
    %v1550 = vunpack.c.l.b16 %v769
    %v1551 = vunpack.c.h.b16 %v769
    %v1552 = vunpack.c.l.b16 %v770
    %v1553 = vunpack.c.h.b16 %v770
    %v1554 = vunpack.c.l.b16 %v771
    %v1555 = vunpack.c.h.b16 %v771
    %v1556 = vunpack.c.l.b16 %v772
    %v1557 = vunpack.c.h.b16 %v772
    %v1558 = vunpack.c.l.b16 %v773
    %v1559 = vunpack.c.h.b16 %v773
    %v1560 = vunpack.c.l.b16 %v774
    %v1561 = vunpack.c.h.b16 %v774
    %v1562 = vunpack.c.l.b16 %v775
    %v1563 = vunpack.c.h.b16 %v775
    %v1564 = vunpack.c.l.b16 %v776
    %v1565 = vunpack.c.h.b16 %v776
    %v1566 = vunpack.c.l.b16 %v777
    %v1567 = vunpack.c.h.b16 %v777
    %v1568 = vunpack.c.l.b16 %v778
    %v1569 = vunpack.c.h.b16 %v778
    %v1570 = vunpack.c.l.b16 %v779
    %v1571 = vunpack.c.h.b16 %v779
    %v1572 = vunpack.c.l.b16 %v780
    %v1573 = vunpack.c.h.b16 %v780
    %v1574 = vunpack.c.l.b16 %v781
    %v1575 = vunpack.c.h.b16 %v781
    %v1576 = vunpack.c.l.b16 %v782
    %v1577 = vunpack.c.h.b16 %v782
    %v1578 = vunpack.c.l.b16 %v783
    %v1579 = vunpack.c.h.b16 %v783
    %v1580 = vunpack.c.l.b16 %v784
    %v1581 = vunpack.c.h.b16 %v784
    %v1582 = vunpack.c.l.b16 %v785
    %v1583 = vunpack.c.h.b16 %v785
    %v1584 = vunpack.c.l.b16 %v786
    %v1585 = vunpack.c.h.b16 %v786
    %v1586 = vunpack.c.l.b16 %v787
    %v1587 = vunpack.c.h.b16 %v787
    %v1588 = vunpack.c.l.b16 %v788
    %v1589 = vunpack.c.h.b16 %v788
    %v1590 = vunpack.c.l.b16 %v789
    %v1591 = vunpack.c.h.b16 %v789
    %v1592 = vunpack.c.l.b16 %v790
    %v1593 = vunpack.c.h.b16 %v790
    %v1594 = vunpack.c.l.b16 %v791
    %v1595 = vunpack.c.h.b16 %v791
    %v1596 = vunpack.c.l.b16 %v792
    %v1597 = vunpack.c.h.b16 %v792
    %v1598 = vunpack.c.l.b16 %v793
    %v1599 = vunpack.c.h.b16 %v793
    %v1600 = vunpack.c.l.b16 %v794
    %v1601 = vunpack.c.h.b16 %v794
    %v1602 = vunpack.c.l.b16 %v795
    %v1603 = vunpack.c.h.b16 %v795
    %v1604 = vunpack.c.l.b16 %v796
    %v1605 = vunpack.c.h.b16 %v796
    %v1606 = vunpack.c.l.b16 %v797
    %v1607 = vunpack.c.h.b16 %v797
    %v1608 = vunpack.c.l.b16 %v798
    %v1609 = vunpack.c.h.b16 %v798
    %v1610 = vunpack.c.l.b16 %v799
    %v1611 = vunpack.c.h.b16 %v799
    %v1612 = vunpack.c.l.b16 %v800
    %v1613 = vunpack.c.h.b16 %v800
    %v1614 = vunpack.c.l.b16 %v801
    %v1615 = vunpack.c.h.b16 %v801
    %v1616 = vunpack.c.l.b16 %v802
    %v1617 = vunpack.c.h.b16 %v802
    %v1618 = vunpack.c.l.b16 %v803
    %v1619 = vunpack.c.h.b16 %v803
    %v1620 = vunpack.c.l.b16 %v804
    %v1621 = vunpack.c.h.b16 %v804
    %v1622 = vunpack.c.l.b16 %v805
    %v1623 = vunpack.c.h.b16 %v805
    %v1624 = vunpack.c.l.b16 %v806
    %v1625 = vunpack.c.h.b16 %v806
    %v1626 = vunpack.c.l.b16 %v807
    %v1627 = vunpack.c.h.b16 %v807
    %v1628 = vunpack.c.l.b16 %v808
    %v1629 = vunpack.c.h.b16 %v808
    %v1630 = vunpack.c.l.b16 %v809
    %v1631 = vunpack.c.h.b16 %v809
    %v1632 = vunpack.c.l.b16 %v810
    %v1633 = vunpack.c.h.b16 %v810
    %v1634 = vunpack.c.l.b16 %v811
    %v1635 = vunpack.c.h.b16 %v811
    %v1636 = vunpack.c.l.b16 %v812
    %v1637 = vunpack.c.h.b16 %v812
    %v1638 = vunpack.c.l.b16 %v813
    %v1639 = vunpack.c.h.b16 %v813
    %v1640 = vunpack.c.l.b16 %v814
    %v1641 = vunpack.c.h.b16 %v814
    %v1642 = vunpack.c.l.b16 %v815
    %v1643 = vunpack.c.h.b16 %v815
    %v1644 = vunpack.c.l.b16 %v816
    %v1645 = vunpack.c.h.b16 %v816
    %v1646 = vunpack.c.l.b16 %v817
    %v1647 = vunpack.c.h.b16 %v817
    %v1648 = vunpack.c.l.b16 %v818
    %v1649 = vunpack.c.h.b16 %v818
    %v1650 = vunpack.c.l.b16 %v819
    %v1651 = vunpack.c.h.b16 %v819
    %v1652 = vunpack.c.l.b16 %v820
    %v1653 = vunpack.c.h.b16 %v820
    %v1654 = vunpack.c.l.b16 %v821
    %v1655 = vunpack.c.h.b16 %v821
    %v1656 = vunpack.c.l.b16 %v822
    %v1657 = vunpack.c.h.b16 %v822
    %v1658 = vunpack.c.l.b16 %v823
    %v1659 = vunpack.c.h.b16 %v823
    %v1660 = vunpack.c.l.b16 %v824
    %v1661 = vunpack.c.h.b16 %v824
    %v1662 = vunpack.c.l.b16 %v825
    %v1663 = vunpack.c.h.b16 %v825
    %v1664 = vunpack.c.l.b16 %v826
    %v1665 = vunpack.c.h.b16 %v826
    %v1666 = vunpack.c.l.b16 %v827
    %v1667 = vunpack.c.h.b16 %v827
    %v1668 = vunpack.c.l.b16 %v828
    %v1669 = vunpack.c.h.b16 %v828
    %v1670 = vunpack.c.l.b16 %v829
    %v1671 = vunpack.c.h.b16 %v829
    %v1672 = vunpack.c.l.b16 %v830
    %v1673 = vunpack.c.h.b16 %v830
    %v1674 = vunpack.c.l.b16 %v831
    %v1675 = vunpack.c.h.b16 %v831
    %v1676 = vunpack.c.l.b16 %v832
    %v1677 = vunpack.c.h.b16 %v832
    %v1678 = vunpack.c.l.b16 %v833
    %v1679 = vunpack.c.h.b16 %v833
    %v1680 = vunpack.c.l.b16 %v834
    %v1681 = vunpack.c.h.b16 %v834
    %v1682 = vunpack.c.l.b16 %v835
    %v1683 = vunpack.c.h.b16 %v835
    %v1684 = vunpack.c.l.b16 %v836
    %v1685 = vunpack.c.h.b16 %v836
    %v1686 = vunpack.c.l.b16 %v837
    %v1687 = vunpack.c.h.b16 %v837
    %v1688 = vunpack.c.l.b16 %v838
    %v1689 = vunpack.c.h.b16 %v838
    %v1690 = vunpack.c.l.b16 %v839
    %v1691 = vunpack.c.h.b16 %v839
    %v1692 = vunpack.c.l.b16 %v840
    %v1693 = vunpack.c.h.b16 %v840
    %v1694 = vunpack.c.l.b16 %v841
    %v1695 = vunpack.c.h.b16 %v841
    %v1696 = vunpack.c.l.b16 %v842
    %v1697 = vunpack.c.h.b16 %v842
    %v1698 = vunpack.c.l.b16 %v843
    %v1699 = vunpack.c.h.b16 %v843
    %v1700 = vunpack.c.l.b16 %v844
    %v1701 = vunpack.c.h.b16 %v844
    %v1702 = vunpack.c.l.b16 %v845
    %v1703 = vunpack.c.h.b16 %v845
    %v1704 = vunpack.c.l.b16 %v846
    %v1705 = vunpack.c.h.b16 %v846
    %v1706 = vunpack.c.l.b16 %v847
    %v1707 = vunpack.c.h.b16 %v847
    %v1708 = vunpack.c.l.b16 %v848
    %v1709 = vunpack.c.h.b16 %v848
    %v1710 = vunpack.c.l.b16 %v849
    %v1711 = vunpack.c.h.b16 %v849
    %v1712 = vunpack.c.l.b16 %v850
    %v1713 = vunpack.c.h.b16 %v850
    %v1714 = vunpack.c.l.b16 %v851
    %v1715 = vunpack.c.h.b16 %v851
    %v1716 = vunpack.c.l.b16 %v852
    %v1717 = vunpack.c.h.b16 %v852
    %v1718 = vunpack.c.l.b16 %v853
    %v1719 = vunpack.c.h.b16 %v853
    %v1720 = vunpack.c.l.b16 %v854
    %v1721 = vunpack.c.h.b16 %v854
    %v1722 = vunpack.c.l.b16 %v855
    %v1723 = vunpack.c.h.b16 %v855
    %v1724 = vunpack.c.l.b16 %v856
    %v1725 = vunpack.c.h.b16 %v856
    %v1726 = vunpack.c.l.b16 %v857
    %v1727 = vunpack.c.h.b16 %v857
    %v1728 = vunpack.c.l.b16 %v858
    %v1729 = vunpack.c.h.b16 %v858
    %v1730 = vunpack.c.l.b16 %v859
    %v1731 = vunpack.c.h.b16 %v859
    %v1732 = vunpack.c.l.b16 %v860
    %v1733 = vunpack.c.h.b16 %v860
    %v1734 = vunpack.c.l.b16 %v861
    %v1735 = vunpack.c.h.b16 %v861
    %v1736 = vunpack.c.l.b16 %v862
    %v1737 = vunpack.c.h.b16 %v862
    %v1738 = vunpack.c.l.b16 %v863
    %v1739 = vunpack.c.h.b16 %v863
    %v1740 = vunpack.c.l.b16 %v864
    %v1741 = vunpack.c.h.b16 %v864
    %v1742 = vunpack.c.l.b16 %v865
    %v1743 = vunpack.c.h.b16 %v865
    %v1744 = vunpack.c.l.b16 %v866
    %v1745 = vunpack.c.h.b16 %v866
    %v1746 = vunpack.c.l.b16 %v867
    %v1747 = vunpack.c.h.b16 %v867
    %v1748 = vunpack.c.l.b16 %v868
    %v1749 = vunpack.c.h.b16 %v868
    %v1750 = vunpack.c.l.b16 %v869
    %v1751 = vunpack.c.h.b16 %v869
    %v1752 = vunpack.c.l.b16 %v870
    %v1753 = vunpack.c.h.b16 %v870
    %v1754 = vunpack.c.l.b16 %v871
    %v1755 = vunpack.c.h.b16 %v871
    %v1756 = vunpack.c.l.b16 %v872
    %v1757 = vunpack.c.h.b16 %v872
    %v1758 = vunpack.c.l.b16 %v873
    %v1759 = vunpack.c.h.b16 %v873
    %v1760 = vunpack.c.l.b16 %v874
    %v1761 = vunpack.c.h.b16 %v874
    %v1762 = vunpack.c.l.b16 %v875
    %v1763 = vunpack.c.h.b16 %v875
    %v1764 = vunpack.c.l.b16 %v876
    %v1765 = vunpack.c.h.b16 %v876
    %v1766 = vunpack.c.l.b16 %v877
    %v1767 = vunpack.c.h.b16 %v877
    %v1768 = vunpack.c.l.b16 %v878
    %v1769 = vunpack.c.h.b16 %v878
    %v1770 = vunpack.c.l.b16 %v879
    %v1771 = vunpack.c.h.b16 %v879
    %v1772 = vunpack.c.l.b16 %v880
    %v1773 = vunpack.c.h.b16 %v880
    %v1774 = vunpack.c.l.b16 %v881
    %v1775 = vunpack.c.h.b16 %v881
    %v1776 = vunpack.c.l.b16 %v882
    %v1777 = vunpack.c.h.b16 %v882
    %v1778 = vunpack.c.l.b16 %v883
    %v1779 = vunpack.c.h.b16 %v883
    %v1780 = vpack.c.b16 %v1210, %v1204
    %v1781 = vpack.c.b16 %v1211, %v1205
    %v1782 = vpack.c.b16 %v1212, %v1206
    %v1783 = vpack.c.b16 %v1213, %v1207
    %v1784 = vpack.c.b16 %v1214, %v1208
    %v1785 = vpack.c.b16 %v1215, %v1209
    %v1786 = vpack.c.b16 %v1222, %v1216
    %v1787 = vpack.c.b16 %v1223, %v1217
    %v1788 = vpack.c.b16 %v1224, %v1218
    %v1789 = vpack.c.b16 %v1225, %v1219
    %v1790 = vpack.c.b16 %v1226, %v1220
    %v1791 = vpack.c.b16 %v1227, %v1221
    %v1792 = vpack.c.b16 %v1234, %v1228
    %v1793 = vpack.c.b16 %v1235, %v1229
    %v1794 = vpack.c.b16 %v1236, %v1230
    %v1795 = vpack.c.b16 %v1237, %v1231
    %v1796 = vpack.c.b16 %v1238, %v1232
    %v1797 = vpack.c.b16 %v1239, %v1233
    %v1798 = vpack.c.b16 %v1246, %v1240
    %v1799 = vpack.c.b16 %v1247, %v1241
    %v1800 = vpack.c.b16 %v1248, %v1242
    %v1801 = vpack.c.b16 %v1249, %v1243
    %v1802 = vpack.c.b16 %v1250, %v1244
    %v1803 = vpack.c.b16 %v1251, %v1245
    %v1804 = vpack.c.b16 %v1258, %v1252
    %v1805 = vpack.c.b16 %v1259, %v1253
    %v1806 = vpack.c.b16 %v1260, %v1254
    %v1807 = vpack.c.b16 %v1261, %v1255
    %v1808 = vpack.c.b16 %v1262, %v1256
    %v1809 = vpack.c.b16 %v1263, %v1257
    %v1810 = vpack.c.b16 %v1270, %v1264
    %v1811 = vpack.c.b16 %v1271, %v1265
    %v1812 = vpack.c.b16 %v1272, %v1266
    %v1813 = vpack.c.b16 %v1273, %v1267
    %v1814 = vpack.c.b16 %v1274, %v1268
    %v1815 = vpack.c.b16 %v1275, %v1269
    %v1816 = vpack.c.b16 %v1282, %v1276
    %v1817 = vpack.c.b16 %v1283, %v1277
    %v1818 = vpack.c.b16 %v1284, %v1278
    %v1819 = vpack.c.b16 %v1285, %v1279
    %v1820 = vpack.c.b16 %v1286, %v1280
    %v1821 = vpack.c.b16 %v1287, %v1281
    %v1822 = vpack.c.b16 %v1294, %v1288
    %v1823 = vpack.c.b16 %v1295, %v1289
    %v1824 = vpack.c.b16 %v1296, %v1290
    %v1825 = vpack.c.b16 %v1297, %v1291
    %v1826 = vpack.c.b16 %v1298, %v1292
    %v1827 = vpack.c.b16 %v1299, %v1293
    %v1828 = vpack.c.b16 %v1306, %v1300
    %v1829 = vpack.c.b16 %v1307, %v1301
    %v1830 = vpack.c.b16 %v1308, %v1302
    %v1831 = vpack.c.b16 %v1309, %v1303
    %v1832 = vpack.c.b16 %v1310, %v1304
    %v1833 = vpack.c.b16 %v1311, %v1305
    %v1834 = vpack.c.b16 %v1318, %v1312
    %v1835 = vpack.c.b16 %v1319, %v1313
    %v1836 = vpack.c.b16 %v1320, %v1314
    %v1837 = vpack.c.b16 %v1321, %v1315
    %v1838 = vpack.c.b16 %v1322, %v1316
    %v1839 = vpack.c.b16 %v1323, %v1317
    %v1840 = vpack.c.b16 %v1330, %v1324
    %v1841 = vpack.c.b16 %v1331, %v1325
    %v1842 = vpack.c.b16 %v1332, %v1326
    %v1843 = vpack.c.b16 %v1333, %v1327
    %v1844 = vpack.c.b16 %v1334, %v1328
    %v1845 = vpack.c.b16 %v1335, %v1329
    %v1846 = vpack.c.b16 %v1342, %v1336
    %v1847 = vpack.c.b16 %v1343, %v1337
    %v1848 = vpack.c.b16 %v1344, %v1338
    %v1849 = vpack.c.b16 %v1345, %v1339
    %v1850 = vpack.c.b16 %v1346, %v1340
    %v1851 = vpack.c.b16 %v1347, %v1341
    %v1852 = vpack.c.b16 %v1354, %v1348
    %v1853 = vpack.c.b16 %v1355, %v1349
    %v1854 = vpack.c.b16 %v1356, %v1350
    %v1855 = vpack.c.b16 %v1357, %v1351
    %v1856 = vpack.c.b16 %v1358, %v1352
    %v1857 = vpack.c.b16 %v1359, %v1353
    %v1858 = vpack.c.b16 %v1366, %v1360
    %v1859 = vpack.c.b16 %v1367, %v1361
    %v1860 = vpack.c.b16 %v1368, %v1362
    %v1861 = vpack.c.b16 %v1369, %v1363
    %v1862 = vpack.c.b16 %v1370, %v1364
    %v1863 = vpack.c.b16 %v1371, %v1365
    %v1864 = vpack.c.b16 %v1378, %v1372
    %v1865 = vpack.c.b16 %v1379, %v1373
    %v1866 = vpack.c.b16 %v1380, %v1374
    %v1867 = vpack.c.b16 %v1381, %v1375
    %v1868 = vpack.c.b16 %v1382, %v1376
    %v1869 = vpack.c.b16 %v1383, %v1377
    %v1870 = vpack.c.b16 %v1390, %v1384
    %v1871 = vpack.c.b16 %v1391, %v1385
    %v1872 = vpack.c.b16 %v1392, %v1386
    %v1873 = vpack.c.b16 %v1393, %v1387
    %v1874 = vpack.c.b16 %v1394, %v1388
    %v1875 = vpack.c.b16 %v1395, %v1389
    %v1876 = vpack.c.b16 %v1402, %v1396
    %v1877 = vpack.c.b16 %v1403, %v1397
    %v1878 = vpack.c.b16 %v1404, %v1398
    %v1879 = vpack.c.b16 %v1405, %v1399
    %v1880 = vpack.c.b16 %v1406, %v1400
    %v1881 = vpack.c.b16 %v1407, %v1401
    %v1882 = vpack.c.b16 %v1414, %v1408
    %v1883 = vpack.c.b16 %v1415, %v1409
    %v1884 = vpack.c.b16 %v1416, %v1410
    %v1885 = vpack.c.b16 %v1417, %v1411
    %v1886 = vpack.c.b16 %v1418, %v1412
    %v1887 = vpack.c.b16 %v1419, %v1413
    %v1888 = vpack.c.b16 %v1426, %v1420
    %v1889 = vpack.c.b16 %v1427, %v1421
    %v1890 = vpack.c.b16 %v1428, %v1422
    %v1891 = vpack.c.b16 %v1429, %v1423
    %v1892 = vpack.c.b16 %v1430, %v1424
    %v1893 = vpack.c.b16 %v1431, %v1425
    %v1894 = vpack.c.b16 %v1438, %v1432
    %v1895 = vpack.c.b16 %v1439, %v1433
    %v1896 = vpack.c.b16 %v1440, %v1434
    %v1897 = vpack.c.b16 %v1441, %v1435
    %v1898 = vpack.c.b16 %v1442, %v1436
    %v1899 = vpack.c.b16 %v1443, %v1437
    %v1900 = vpack.c.b16 %v1450, %v1444
    %v1901 = vpack.c.b16 %v1451, %v1445
    %v1902 = vpack.c.b16 %v1452, %v1446
    %v1903 = vpack.c.b16 %v1453, %v1447
    %v1904 = vpack.c.b16 %v1454, %v1448
    %v1905 = vpack.c.b16 %v1455, %v1449
    %v1906 = vpack.c.b16 %v1462, %v1456
    %v1907 = vpack.c.b16 %v1463, %v1457
    %v1908 = vpack.c.b16 %v1464, %v1458
    %v1909 = vpack.c.b16 %v1465, %v1459
    %v1910 = vpack.c.b16 %v1466, %v1460
    %v1911 = vpack.c.b16 %v1467, %v1461
    %v1912 = vpack.c.b16 %v1474, %v1468
    %v1913 = vpack.c.b16 %v1475, %v1469
    %v1914 = vpack.c.b16 %v1476, %v1470
    %v1915 = vpack.c.b16 %v1477, %v1471
    %v1916 = vpack.c.b16 %v1478, %v1472
    %v1917 = vpack.c.b16 %v1479, %v1473
    %v1918 = vpack.c.b16 %v1486, %v1480
    %v1919 = vpack.c.b16 %v1487, %v1481
    %v1920 = vpack.c.b16 %v1488, %v1482
    %v1921 = vpack.c.b16 %v1489, %v1483
    %v1922 = vpack.c.b16 %v1490, %v1484
    %v1923 = vpack.c.b16 %v1491, %v1485
    %v1924 = vpack.c.b16 %v1498, %v1492
    %v1925 = vpack.c.b16 %v1499, %v1493
    %v1926 = vpack.c.b16 %v1500, %v1494
    %v1927 = vpack.c.b16 %v1501, %v1495
    %v1928 = vpack.c.b16 %v1502, %v1496
    %v1929 = vpack.c.b16 %v1503, %v1497
    %v1930 = vpack.c.b16 %v1510, %v1504
    %v1931 = vpack.c.b16 %v1511, %v1505
    %v1932 = vpack.c.b16 %v1512, %v1506
    %v1933 = vpack.c.b16 %v1513, %v1507
    %v1934 = vpack.c.b16 %v1514, %v1508
    %v1935 = vpack.c.b16 %v1515, %v1509
    %v1936 = vpack.c.b16 %v1522, %v1516
    %v1937 = vpack.c.b16 %v1523, %v1517
    %v1938 = vpack.c.b16 %v1524, %v1518
    %v1939 = vpack.c.b16 %v1525, %v1519
    %v1940 = vpack.c.b16 %v1526, %v1520
    %v1941 = vpack.c.b16 %v1527, %v1521
    %v1942 = vpack.c.b16 %v1534, %v1528
    %v1943 = vpack.c.b16 %v1535, %v1529
    %v1944 = vpack.c.b16 %v1536, %v1530
    %v1945 = vpack.c.b16 %v1537, %v1531
    %v1946 = vpack.c.b16 %v1538, %v1532
    %v1947 = vpack.c.b16 %v1539, %v1533
    %v1948 = vpack.c.b16 %v1546, %v1540
    %v1949 = vpack.c.b16 %v1547, %v1541
    %v1950 = vpack.c.b16 %v1548, %v1542
    %v1951 = vpack.c.b16 %v1549, %v1543
    %v1952 = vpack.c.b16 %v1550, %v1544
    %v1953 = vpack.c.b16 %v1551, %v1545
    %v1954 = vpack.c.b16 %v1558, %v1552
    %v1955 = vpack.c.b16 %v1559, %v1553
    %v1956 = vpack.c.b16 %v1560, %v1554
    %v1957 = vpack.c.b16 %v1561, %v1555
    %v1958 = vpack.c.b16 %v1562, %v1556
    %v1959 = vpack.c.b16 %v1563, %v1557
    %v1960 = vpack.c.b16 %v1570, %v1564
    %v1961 = vpack.c.b16 %v1571, %v1565
    %v1962 = vpack.c.b16 %v1572, %v1566
    %v1963 = vpack.c.b16 %v1573, %v1567
    %v1964 = vpack.c.b16 %v1574, %v1568
    %v1965 = vpack.c.b16 %v1575, %v1569
    %v1966 = vpack.c.b16 %v1582, %v1576
    %v1967 = vpack.c.b16 %v1583, %v1577
    %v1968 = vpack.c.b16 %v1584, %v1578
    %v1969 = vpack.c.b16 %v1585, %v1579
    %v1970 = vpack.c.b16 %v1586, %v1580
    %v1971 = vpack.c.b16 %v1587, %v1581
    %v1972 = vpack.c.b16 %v1594, %v1588
    %v1973 = vpack.c.b16 %v1595, %v1589
    %v1974 = vpack.c.b16 %v1596, %v1590
    %v1975 = vpack.c.b16 %v1597, %v1591
    %v1976 = vpack.c.b16 %v1598, %v1592
    %v1977 = vpack.c.b16 %v1599, %v1593
    %v1978 = vpack.c.b16 %v1606, %v1600
    %v1979 = vpack.c.b16 %v1607, %v1601
    %v1980 = vpack.c.b16 %v1608, %v1602
    %v1981 = vpack.c.b16 %v1609, %v1603
    %v1982 = vpack.c.b16 %v1610, %v1604
    %v1983 = vpack.c.b16 %v1611, %v1605
    %v1984 = vpack.c.b16 %v1618, %v1612
    %v1985 = vpack.c.b16 %v1619, %v1613
    %v1986 = vpack.c.b16 %v1620, %v1614
    %v1987 = vpack.c.b16 %v1621, %v1615
    %v1988 = vpack.c.b16 %v1622, %v1616
    %v1989 = vpack.c.b16 %v1623, %v1617
    %v1990 = vpack.c.b16 %v1630, %v1624
    %v1991 = vpack.c.b16 %v1631, %v1625
    %v1992 = vpack.c.b16 %v1632, %v1626
    %v1993 = vpack.c.b16 %v1633, %v1627
    %v1994 = vpack.c.b16 %v1634, %v1628
    %v1995 = vpack.c.b16 %v1635, %v1629
    %v1996 = vpack.c.b16 %v1642, %v1636
    %v1997 = vpack.c.b16 %v1643, %v1637
    %v1998 = vpack.c.b16 %v1644, %v1638
    %v1999 = vpack.c.b16 %v1645, %v1639
    %v2000 = vpack.c.b16 %v1646, %v1640
    %v2001 = vpack.c.b16 %v1647, %v1641
    %v2002 = vpack.c.b16 %v1654, %v1648
    %v2003 = vpack.c.b16 %v1655, %v1649
    %v2004 = vpack.c.b16 %v1656, %v1650
    %v2005 = vpack.c.b16 %v1657, %v1651
    %v2006 = vpack.c.b16 %v1658, %v1652
    %v2007 = vpack.c.b16 %v1659, %v1653
    %v2008 = vpack.c.b16 %v1666, %v1660
    %v2009 = vpack.c.b16 %v1667, %v1661
    %v2010 = vpack.c.b16 %v1668, %v1662
    %v2011 = vpack.c.b16 %v1669, %v1663
    %v2012 = vpack.c.b16 %v1670, %v1664
    %v2013 = vpack.c.b16 %v1671, %v1665
    %v2014 = vpack.c.b16 %v1678, %v1672
    %v2015 = vpack.c.b16 %v1679, %v1673
    %v2016 = vpack.c.b16 %v1680, %v1674
    %v2017 = vpack.c.b16 %v1681, %v1675
    %v2018 = vpack.c.b16 %v1682, %v1676
    %v2019 = vpack.c.b16 %v1683, %v1677
    %v2020 = vpack.c.b16 %v1690, %v1684
    %v2021 = vpack.c.b16 %v1691, %v1685
    %v2022 = vpack.c.b16 %v1692, %v1686
    %v2023 = vpack.c.b16 %v1693, %v1687
    %v2024 = vpack.c.b16 %v1694, %v1688
    %v2025 = vpack.c.b16 %v1695, %v1689
    %v2026 = vpack.c.b16 %v1702, %v1696
    %v2027 = vpack.c.b16 %v1703, %v1697
    %v2028 = vpack.c.b16 %v1704, %v1698
    %v2029 = vpack.c.b16 %v1705, %v1699
    %v2030 = vpack.c.b16 %v1706, %v1700
    %v2031 = vpack.c.b16 %v1707, %v1701
    %v2032 = vpack.c.b16 %v1714, %v1708
    %v2033 = vpack.c.b16 %v1715, %v1709
    %v2034 = vpack.c.b16 %v1716, %v1710
    %v2035 = vpack.c.b16 %v1717, %v1711
    %v2036 = vpack.c.b16 %v1718, %v1712
    %v2037 = vpack.c.b16 %v1719, %v1713
    %v2038 = vpack.c.b16 %v1726, %v1720
    %v2039 = vpack.c.b16 %v1727, %v1721
    %v2040 = vpack.c.b16 %v1728, %v1722
    %v2041 = vpack.c.b16 %v1729, %v1723
    %v2042 = vpack.c.b16 %v1730, %v1724
    %v2043 = vpack.c.b16 %v1731, %v1725
    %v2044 = vpack.c.b16 %v1738, %v1732
    %v2045 = vpack.c.b16 %v1739, %v1733
    %v2046 = vpack.c.b16 %v1740, %v1734
    %v2047 = vpack.c.b16 %v1741, %v1735
    %v2048 = vpack.c.b16 %v1742, %v1736
    %v2049 = vpack.c.b16 %v1743, %v1737
    %v2050 = vpack.c.b16 %v1750, %v1744
    %v2051 = vpack.c.b16 %v1751, %v1745
    %v2052 = vpack.c.b16 %v1752, %v1746
    %v2053 = vpack.c.b16 %v1753, %v1747
    %v2054 = vpack.c.b16 %v1754, %v1748
    %v2055 = vpack.c.b16 %v1755, %v1749
    %v2056 = vpack.c.b16 %v1762, %v1756
    %v2057 = vpack.c.b16 %v1763, %v1757
    %v2058 = vpack.c.b16 %v1764, %v1758
    %v2059 = vpack.c.b16 %v1765, %v1759
    %v2060 = vpack.c.b16 %v1766, %v1760
    %v2061 = vpack.c.b16 %v1767, %v1761
    %v2062 = vpack.c.b16 %v1774, %v1768
    %v2063 = vpack.c.b16 %v1775, %v1769
    %v2064 = vpack.c.b16 %v1776, %v1770
    %v2065 = vpack.c.b16 %v1777, %v1771
    %v2066 = vpack.c.b16 %v1778, %v1772
    %v2067 = vpack.c.b16 %v1779, %v1773
    %2356 = vmatprep.subr.bf16.mxu0 %v1823
    %2357 = vmatpush1.bf16.msra.mxu0 %v1822
    %2358 = vmatprep.subr.bf16.mxu0 %v1817
    %2359 = vmatpush1.bf16.msra.mxu0 %v1816
    %2360 = vmatprep.subr.bf16.mxu0 %v1811
    %2361 = vmatpush1.bf16.msra.mxu0 %v1810
    %2362 = vmatprep.subr.bf16.mxu0 %v1805
    %2363 = vmatpush1.bf16.msra.mxu0 %v1804
    %2364 = vmatprep.subr.bf16.mxu0 %v1799
    %2365 = vmatpush1.bf16.msra.mxu0 %v1798
    %2366 = vmatprep.subr.bf16.mxu0 %v1793
    %2367 = vmatpush1.bf16.msra.mxu0 %v1792
    %2368 = vmatprep.subr.bf16.mxu0 %v1787
    %2369 = vmatpush1.bf16.msra.mxu0 %v1786
    %2370 = vmatprep.subr.bf16.mxu0 %v1781
    %2371 = vmatpush1.bf16.msra.mxu0 %v1780
    %2372 = vmatprep.subr.bf16.mxu0 %v1871
    %2373 = vmatpush2.bf16.msra.mxu0 %v1870
    %2374 = vmatprep.subr.bf16.mxu0 %v1865
    %2375 = vmatpush2.bf16.msra.mxu0 %v1864
    %2376 = vmatprep.subr.bf16.mxu0 %v1859
    %2377 = vmatpush2.bf16.msra.mxu0 %v1858
    %2378 = vmatprep.subr.bf16.mxu0 %v1853
    %2379 = vmatpush2.bf16.msra.mxu0 %v1852
    %2380 = vmatprep.subr.bf16.mxu0 %v1847
    %2381 = vmatpush2.bf16.msra.mxu0 %v1846
    %2382 = vmatprep.subr.bf16.mxu0 %v1841
    %2383 = vmatpush2.bf16.msra.mxu0 %v1840
    %2384 = vmatprep.subr.bf16.mxu0 %v1835
    %2385 = vmatpush2.bf16.msra.mxu0 %v1834
    %2386 = vmatprep.subr.bf16.mxu0 %v1829
    %2387 = vmatpush2.bf16.msra.mxu0 %v1828
    %2388 = vmatprep.mubr.bf16.mxu0 %v585
    %2389 = vmatmul.mubr.bf16.gmra.mxu0 %v584
    %v2390 = vpop.f32.mrf.mxu0
    %v2391 = vadd.f32 %v889, %v2390
    %v2392 = vpop.f32.mrf.mxu0
    %v2393 = vadd.f32 %v893, %v2392
    %v2394 = vpop.f32.mrf.mxu0
    %v2395 = vadd.f32 %v889, %v2394
    %v2396 = vpop.f32.mrf.mxu0
    %v2397 = vadd.f32 %v893, %v2396
    %2398 = vmatprep.mubr.bf16.mxu0 %v591
    %2399 = vmatmul.mubr.bf16.gmra.mxu0 %v590
    %v2400 = vpop.f32.mrf.mxu0
    %v2401 = vadd.f32 %v889, %v2400
    %v2402 = vpop.f32.mrf.mxu0
    %v2403 = vadd.f32 %v893, %v2402
    %v2404 = vpop.f32.mrf.mxu0
    %v2405 = vpop.f32.mrf.mxu0
    %2406 = vdwg.mxu0
    %2407 = vmatprep.subr.bf16.mxu0 %v1919
    %2408 = vmatpush1.bf16.msra.mxu0 %v1918
    %2409 = vmatprep.subr.bf16.mxu0 %v1913
    %2410 = vmatpush1.bf16.msra.mxu0 %v1912
    %2411 = vmatprep.subr.bf16.mxu0 %v1907
    %2412 = vmatpush1.bf16.msra.mxu0 %v1906
    %2413 = vmatprep.subr.bf16.mxu0 %v1901
    %2414 = vmatpush1.bf16.msra.mxu0 %v1900
    %2415 = vmatprep.subr.bf16.mxu0 %v1895
    %2416 = vmatpush1.bf16.msra.mxu0 %v1894
    %2417 = vmatprep.subr.bf16.mxu0 %v1889
    %2418 = vmatpush1.bf16.msra.mxu0 %v1888
    %2419 = vmatprep.subr.bf16.mxu0 %v1883
    %2420 = vmatpush1.bf16.msra.mxu0 %v1882
    %2421 = vmatprep.subr.bf16.mxu0 %v1877
    %2422 = vmatpush1.bf16.msra.mxu0 %v1876
    %2423 = vmatprep.subr.bf16.mxu0 %v1967
    %2424 = vmatpush2.bf16.msra.mxu0 %v1966
    %2425 = vmatprep.subr.bf16.mxu0 %v1961
    %2426 = vmatpush2.bf16.msra.mxu0 %v1960
    %2427 = vmatprep.subr.bf16.mxu0 %v1955
    %2428 = vmatpush2.bf16.msra.mxu0 %v1954
    %2429 = vmatprep.subr.bf16.mxu0 %v1949
    %2430 = vmatpush2.bf16.msra.mxu0 %v1948
    %2431 = vmatprep.subr.bf16.mxu0 %v1943
    %2432 = vmatpush2.bf16.msra.mxu0 %v1942
    %2433 = vmatprep.subr.bf16.mxu0 %v1937
    %2434 = vmatpush2.bf16.msra.mxu0 %v1936
    %2435 = vmatprep.subr.bf16.mxu0 %v1931
    %2436 = vmatpush2.bf16.msra.mxu0 %v1930
    %2437 = vmatprep.subr.bf16.mxu0 %v1925
    %2438 = vmatpush2.bf16.msra.mxu0 %v1924
    %2439 = vmatprep.mubr.bf16.mxu0 %v587
    %2440 = vmatmul.mubr.bf16.gmra.mxu0 %v586
    %v2441 = vpop.f32.mrf.mxu0
    %v2442 = vadd.f32 %v2391, %v2441
    %v2443 = vpop.f32.mrf.mxu0
    %v2444 = vadd.f32 %v2393, %v2443
    %v2445 = vpop.f32.mrf.mxu0
    %v2446 = vadd.f32 %v2395, %v2445
    %v2447 = vpop.f32.mrf.mxu0
    %v2448 = vadd.f32 %v2397, %v2447
    %2449 = vmatprep.mubr.bf16.mxu0 %v593
    %2450 = vmatmul.mubr.bf16.gmra.mxu0 %v592
    %v2451 = vpop.f32.mrf.mxu0
    %v2452 = vadd.f32 %v2401, %v2451
    %v2453 = vpop.f32.mrf.mxu0
    %v2454 = vadd.f32 %v2403, %v2453
    %v2455 = vpop.f32.mrf.mxu0
    %v2456 = vpop.f32.mrf.mxu0
    %2457 = vdwg.mxu0
    %2458 = vmatprep.subr.bf16.mxu0 %v2015
    %2459 = vmatpush1.bf16.msra.mxu0 %v2014
    %2460 = vmatprep.subr.bf16.mxu0 %v2009
    %2461 = vmatpush1.bf16.msra.mxu0 %v2008
    %2462 = vmatprep.subr.bf16.mxu0 %v2003
    %2463 = vmatpush1.bf16.msra.mxu0 %v2002
    %2464 = vmatprep.subr.bf16.mxu0 %v1997
    %2465 = vmatpush1.bf16.msra.mxu0 %v1996
    %2466 = vmatprep.subr.bf16.mxu0 %v1991
    %2467 = vmatpush1.bf16.msra.mxu0 %v1990
    %2468 = vmatprep.subr.bf16.mxu0 %v1985
    %2469 = vmatpush1.bf16.msra.mxu0 %v1984
    %2470 = vmatprep.subr.bf16.mxu0 %v1979
    %2471 = vmatpush1.bf16.msra.mxu0 %v1978
    %2472 = vmatprep.subr.bf16.mxu0 %v1973
    %2473 = vmatpush1.bf16.msra.mxu0 %v1972
    %2474 = vmatprep.subr.bf16.mxu0 %v2063
    %2475 = vmatpush2.bf16.msra.mxu0 %v2062
    %2476 = vmatprep.subr.bf16.mxu0 %v2057
    %2477 = vmatpush2.bf16.msra.mxu0 %v2056
    %2478 = vmatprep.subr.bf16.mxu0 %v2051
    %2479 = vmatpush2.bf16.msra.mxu0 %v2050
    %2480 = vmatprep.subr.bf16.mxu0 %v2045
    %2481 = vmatpush2.bf16.msra.mxu0 %v2044
    %2482 = vmatprep.subr.bf16.mxu0 %v2039
    %2483 = vmatpush2.bf16.msra.mxu0 %v2038
    %2484 = vmatprep.subr.bf16.mxu0 %v2033
    %2485 = vmatpush2.bf16.msra.mxu0 %v2032
    %2486 = vmatprep.subr.bf16.mxu0 %v2027
    %2487 = vmatpush2.bf16.msra.mxu0 %v2026
    %2488 = vmatprep.subr.bf16.mxu0 %v2021
    %2489 = vmatpush2.bf16.msra.mxu0 %v2020
    %2490 = vmatprep.mubr.bf16.mxu0 %v589
    %2491 = vmatmul.mubr.bf16.gmra.mxu0 %v588
    %v2492 = vpop.f32.mrf.mxu0
    %v2493 = vadd.f32 %v2442, %v2492
    %v2494 = vpop.f32.mrf.mxu0
    %v2495 = vadd.f32 %v2444, %v2494
    %v2496 = vpop.f32.mrf.mxu0
    %v2497 = vadd.f32 %v2446, %v2496
    %v2498 = vpop.f32.mrf.mxu0
    %v2499 = vadd.f32 %v2448, %v2498
    %2500 = vmatprep.mubr.bf16.mxu0 %v595
    %2501 = vmatmul.mubr.bf16.gmra.mxu0 %v594
    %v2502 = vpop.f32.mrf.mxu0
    %v2503 = vadd.f32 %v2452, %v2502
    %v2504 = vpop.f32.mrf.mxu0
    %v2505 = vadd.f32 %v2454, %v2504
    %v2506 = vpop.f32.mrf.mxu0
    %v2507 = vpop.f32.mrf.mxu0
    %2508 = vdwg.mxu0
    %2509 = vmatprep.subr.bf16.mxu0 %v1825
    %2510 = vmatpush1.bf16.msra.mxu0 %v1824
    %2511 = vmatprep.subr.bf16.mxu0 %v1819
    %2512 = vmatpush1.bf16.msra.mxu0 %v1818
    %2513 = vmatprep.subr.bf16.mxu0 %v1813
    %2514 = vmatpush1.bf16.msra.mxu0 %v1812
    %2515 = vmatprep.subr.bf16.mxu0 %v1807
    %2516 = vmatpush1.bf16.msra.mxu0 %v1806
    %2517 = vmatprep.subr.bf16.mxu0 %v1801
    %2518 = vmatpush1.bf16.msra.mxu0 %v1800
    %2519 = vmatprep.subr.bf16.mxu0 %v1795
    %2520 = vmatpush1.bf16.msra.mxu0 %v1794
    %2521 = vmatprep.subr.bf16.mxu0 %v1789
    %2522 = vmatpush1.bf16.msra.mxu0 %v1788
    %2523 = vmatprep.subr.bf16.mxu0 %v1783
    %2524 = vmatpush1.bf16.msra.mxu0 %v1782
    %2525 = vmatprep.subr.bf16.mxu0 %v1873
    %2526 = vmatpush2.bf16.msra.mxu0 %v1872
    %2527 = vmatprep.subr.bf16.mxu0 %v1867
    %2528 = vmatpush2.bf16.msra.mxu0 %v1866
    %2529 = vmatprep.subr.bf16.mxu0 %v1861
    %2530 = vmatpush2.bf16.msra.mxu0 %v1860
    %2531 = vmatprep.subr.bf16.mxu0 %v1855
    %2532 = vmatpush2.bf16.msra.mxu0 %v1854
    %2533 = vmatprep.subr.bf16.mxu0 %v1849
    %2534 = vmatpush2.bf16.msra.mxu0 %v1848
    %2535 = vmatprep.subr.bf16.mxu0 %v1843
    %2536 = vmatpush2.bf16.msra.mxu0 %v1842
    %2537 = vmatprep.subr.bf16.mxu0 %v1837
    %2538 = vmatpush2.bf16.msra.mxu0 %v1836
    %2539 = vmatprep.subr.bf16.mxu0 %v1831
    %2540 = vmatpush2.bf16.msra.mxu0 %v1830
    %2541 = vmatprep.mubr.bf16.mxu0 %v585
    %2542 = vmatmul.mubr.bf16.gmra.mxu0 %v584
    %v2543 = vpop.f32.mrf.mxu0
    %v2544 = vadd.f32 %v897, %v2543
    %v2545 = vpop.f32.mrf.mxu0
    %v2546 = vadd.f32 %v901, %v2545
    %v2547 = vpop.f32.mrf.mxu0
    %v2548 = vadd.f32 %v897, %v2547
    %v2549 = vpop.f32.mrf.mxu0
    %v2550 = vadd.f32 %v901, %v2549
    %2551 = vmatprep.mubr.bf16.mxu0 %v591
    %2552 = vmatmul.mubr.bf16.gmra.mxu0 %v590
    %v2553 = vpop.f32.mrf.mxu0
    %v2554 = vadd.f32 %v897, %v2553
    %v2555 = vpop.f32.mrf.mxu0
    %v2556 = vadd.f32 %v901, %v2555
    %v2557 = vpop.f32.mrf.mxu0
    %v2558 = vpop.f32.mrf.mxu0
    %2559 = vdwg.mxu0
    %2560 = vmatprep.subr.bf16.mxu0 %v1921
    %2561 = vmatpush1.bf16.msra.mxu0 %v1920
    %2562 = vmatprep.subr.bf16.mxu0 %v1915
    %2563 = vmatpush1.bf16.msra.mxu0 %v1914
    %2564 = vmatprep.subr.bf16.mxu0 %v1909
    %2565 = vmatpush1.bf16.msra.mxu0 %v1908
    %2566 = vmatprep.subr.bf16.mxu0 %v1903
    %2567 = vmatpush1.bf16.msra.mxu0 %v1902
    %2568 = vmatprep.subr.bf16.mxu0 %v1897
    %2569 = vmatpush1.bf16.msra.mxu0 %v1896
    %2570 = vmatprep.subr.bf16.mxu0 %v1891
    %2571 = vmatpush1.bf16.msra.mxu0 %v1890
    %2572 = vmatprep.subr.bf16.mxu0 %v1885
    %2573 = vmatpush1.bf16.msra.mxu0 %v1884
    %2574 = vmatprep.subr.bf16.mxu0 %v1879
    %2575 = vmatpush1.bf16.msra.mxu0 %v1878
    %2576 = vmatprep.subr.bf16.mxu0 %v1969
    %2577 = vmatpush2.bf16.msra.mxu0 %v1968
    %2578 = vmatprep.subr.bf16.mxu0 %v1963
    %2579 = vmatpush2.bf16.msra.mxu0 %v1962
    %2580 = vmatprep.subr.bf16.mxu0 %v1957
    %2581 = vmatpush2.bf16.msra.mxu0 %v1956
    %2582 = vmatprep.subr.bf16.mxu0 %v1951
    %2583 = vmatpush2.bf16.msra.mxu0 %v1950
    %2584 = vmatprep.subr.bf16.mxu0 %v1945
    %2585 = vmatpush2.bf16.msra.mxu0 %v1944
    %2586 = vmatprep.subr.bf16.mxu0 %v1939
    %2587 = vmatpush2.bf16.msra.mxu0 %v1938
    %2588 = vmatprep.subr.bf16.mxu0 %v1933
    %2589 = vmatpush2.bf16.msra.mxu0 %v1932
    %2590 = vmatprep.subr.bf16.mxu0 %v1927
    %2591 = vmatpush2.bf16.msra.mxu0 %v1926
    %2592 = vmatprep.mubr.bf16.mxu0 %v587
    %2593 = vmatmul.mubr.bf16.gmra.mxu0 %v586
    %v2594 = vpop.f32.mrf.mxu0
    %v2595 = vadd.f32 %v2544, %v2594
    %v2596 = vpop.f32.mrf.mxu0
    %v2597 = vadd.f32 %v2546, %v2596
    %v2598 = vpop.f32.mrf.mxu0
    %v2599 = vadd.f32 %v2548, %v2598
    %v2600 = vpop.f32.mrf.mxu0
    %v2601 = vadd.f32 %v2550, %v2600
    %2602 = vmatprep.mubr.bf16.mxu0 %v593
    %2603 = vmatmul.mubr.bf16.gmra.mxu0 %v592
    %v2604 = vpop.f32.mrf.mxu0
    %v2605 = vadd.f32 %v2554, %v2604
    %v2606 = vpop.f32.mrf.mxu0
    %v2607 = vadd.f32 %v2556, %v2606
    %v2608 = vpop.f32.mrf.mxu0
    %v2609 = vpop.f32.mrf.mxu0
    %2610 = vdwg.mxu0
    %2611 = vmatprep.subr.bf16.mxu0 %v2017
    %2612 = vmatpush1.bf16.msra.mxu0 %v2016
    %2613 = vmatprep.subr.bf16.mxu0 %v2011
    %2614 = vmatpush1.bf16.msra.mxu0 %v2010
    %2615 = vmatprep.subr.bf16.mxu0 %v2005
    %2616 = vmatpush1.bf16.msra.mxu0 %v2004
    %2617 = vmatprep.subr.bf16.mxu0 %v1999
    %2618 = vmatpush1.bf16.msra.mxu0 %v1998
    %2619 = vmatprep.subr.bf16.mxu0 %v1993
    %2620 = vmatpush1.bf16.msra.mxu0 %v1992
    %2621 = vmatprep.subr.bf16.mxu0 %v1987
    %2622 = vmatpush1.bf16.msra.mxu0 %v1986
    %2623 = vmatprep.subr.bf16.mxu0 %v1981
    %2624 = vmatpush1.bf16.msra.mxu0 %v1980
    %2625 = vmatprep.subr.bf16.mxu0 %v1975
    %2626 = vmatpush1.bf16.msra.mxu0 %v1974
    %2627 = vmatprep.subr.bf16.mxu0 %v2065
    %2628 = vmatpush2.bf16.msra.mxu0 %v2064
    %2629 = vmatprep.subr.bf16.mxu0 %v2059
    %2630 = vmatpush2.bf16.msra.mxu0 %v2058
    %2631 = vmatprep.subr.bf16.mxu0 %v2053
    %2632 = vmatpush2.bf16.msra.mxu0 %v2052
    %2633 = vmatprep.subr.bf16.mxu0 %v2047
    %2634 = vmatpush2.bf16.msra.mxu0 %v2046
    %2635 = vmatprep.subr.bf16.mxu0 %v2041
    %2636 = vmatpush2.bf16.msra.mxu0 %v2040
    %2637 = vmatprep.subr.bf16.mxu0 %v2035
    %2638 = vmatpush2.bf16.msra.mxu0 %v2034
    %2639 = vmatprep.subr.bf16.mxu0 %v2029
    %2640 = vmatpush2.bf16.msra.mxu0 %v2028
    %2641 = vmatprep.subr.bf16.mxu0 %v2023
    %2642 = vmatpush2.bf16.msra.mxu0 %v2022
    %2643 = vmatprep.mubr.bf16.mxu0 %v589
    %2644 = vmatmul.mubr.bf16.gmra.mxu0 %v588
    %v2645 = vpop.f32.mrf.mxu0
    %v2646 = vadd.f32 %v2595, %v2645
    %v2647 = vpop.f32.mrf.mxu0
    %v2648 = vadd.f32 %v2597, %v2647
    %v2649 = vpop.f32.mrf.mxu0
    %v2650 = vadd.f32 %v2599, %v2649
    %v2651 = vpop.f32.mrf.mxu0
    %v2652 = vadd.f32 %v2601, %v2651
    %2653 = vmatprep.mubr.bf16.mxu0 %v595
    %2654 = vmatmul.mubr.bf16.gmra.mxu0 %v594
    %v2655 = vpop.f32.mrf.mxu0
    %v2656 = vadd.f32 %v2605, %v2655
    %v2657 = vpop.f32.mrf.mxu0
    %v2658 = vadd.f32 %v2607, %v2657
    %v2659 = vpop.f32.mrf.mxu0
    %v2660 = vpop.f32.mrf.mxu0
    %2661 = vdwg.mxu0
    %2662 = vmatprep.subr.bf16.mxu0 %v1827
    %2663 = vmatpush1.bf16.msra.mxu0 %v1826
    %2664 = vmatprep.subr.bf16.mxu0 %v1821
    %2665 = vmatpush1.bf16.msra.mxu0 %v1820
    %2666 = vmatprep.subr.bf16.mxu0 %v1815
    %2667 = vmatpush1.bf16.msra.mxu0 %v1814
    %2668 = vmatprep.subr.bf16.mxu0 %v1809
    %2669 = vmatpush1.bf16.msra.mxu0 %v1808
    %2670 = vmatprep.subr.bf16.mxu0 %v1803
    %2671 = vmatpush1.bf16.msra.mxu0 %v1802
    %2672 = vmatprep.subr.bf16.mxu0 %v1797
    %2673 = vmatpush1.bf16.msra.mxu0 %v1796
    %2674 = vmatprep.subr.bf16.mxu0 %v1791
    %2675 = vmatpush1.bf16.msra.mxu0 %v1790
    %2676 = vmatprep.subr.bf16.mxu0 %v1785
    %2677 = vmatpush1.bf16.msra.mxu0 %v1784
    %2678 = vmatprep.subr.bf16.mxu0 %v1875
    %2679 = vmatpush2.bf16.msra.mxu0 %v1874
    %2680 = vmatprep.subr.bf16.mxu0 %v1869
    %2681 = vmatpush2.bf16.msra.mxu0 %v1868
    %2682 = vmatprep.subr.bf16.mxu0 %v1863
    %2683 = vmatpush2.bf16.msra.mxu0 %v1862
    %2684 = vmatprep.subr.bf16.mxu0 %v1857
    %2685 = vmatpush2.bf16.msra.mxu0 %v1856
    %2686 = vmatprep.subr.bf16.mxu0 %v1851
    %2687 = vmatpush2.bf16.msra.mxu0 %v1850
    %2688 = vmatprep.subr.bf16.mxu0 %v1845
    %2689 = vmatpush2.bf16.msra.mxu0 %v1844
    %2690 = vmatprep.subr.bf16.mxu0 %v1839
    %2691 = vmatpush2.bf16.msra.mxu0 %v1838
    %2692 = vmatprep.subr.bf16.mxu0 %v1833
    %2693 = vmatpush2.bf16.msra.mxu0 %v1832
    %2694 = vmatprep.mubr.bf16.mxu0 %v585
    %2695 = vmatmul.mubr.bf16.gmra.mxu0 %v584
    %v2696 = vpop.f32.mrf.mxu0
    %v2697 = vadd.f32 %v905, %v2696
    %v2698 = vpop.f32.mrf.mxu0
    %v2699 = vadd.f32 %v909, %v2698
    %v2700 = vpop.f32.mrf.mxu0
    %v2701 = vadd.f32 %v905, %v2700
    %v2702 = vpop.f32.mrf.mxu0
    %v2703 = vadd.f32 %v909, %v2702
    %2704 = vmatprep.mubr.bf16.mxu0 %v591
    %2705 = vmatmul.mubr.bf16.gmra.mxu0 %v590
    %v2706 = vpop.f32.mrf.mxu0
    %v2707 = vadd.f32 %v905, %v2706
    %v2708 = vpop.f32.mrf.mxu0
    %v2709 = vadd.f32 %v909, %v2708
    %v2710 = vpop.f32.mrf.mxu0
    %v2711 = vpop.f32.mrf.mxu0
    %2712 = vdwg.mxu0
    %2713 = vmatprep.subr.bf16.mxu0 %v1923
    %2714 = vmatpush1.bf16.msra.mxu0 %v1922
    %2715 = vmatprep.subr.bf16.mxu0 %v1917
    %2716 = vmatpush1.bf16.msra.mxu0 %v1916
    %2717 = vmatprep.subr.bf16.mxu0 %v1911
    %2718 = vmatpush1.bf16.msra.mxu0 %v1910
    %2719 = vmatprep.subr.bf16.mxu0 %v1905
    %2720 = vmatpush1.bf16.msra.mxu0 %v1904
    %2721 = vmatprep.subr.bf16.mxu0 %v1899
    %2722 = vmatpush1.bf16.msra.mxu0 %v1898
    %2723 = vmatprep.subr.bf16.mxu0 %v1893
    %2724 = vmatpush1.bf16.msra.mxu0 %v1892
    %2725 = vmatprep.subr.bf16.mxu0 %v1887
    %2726 = vmatpush1.bf16.msra.mxu0 %v1886
    %2727 = vmatprep.subr.bf16.mxu0 %v1881
    %2728 = vmatpush1.bf16.msra.mxu0 %v1880
    %2729 = vmatprep.subr.bf16.mxu0 %v1971
    %2730 = vmatpush2.bf16.msra.mxu0 %v1970
    %2731 = vmatprep.subr.bf16.mxu0 %v1965
    %2732 = vmatpush2.bf16.msra.mxu0 %v1964
    %2733 = vmatprep.subr.bf16.mxu0 %v1959
    %2734 = vmatpush2.bf16.msra.mxu0 %v1958
    %2735 = vmatprep.subr.bf16.mxu0 %v1953
    %2736 = vmatpush2.bf16.msra.mxu0 %v1952
    %2737 = vmatprep.subr.bf16.mxu0 %v1947
    %2738 = vmatpush2.bf16.msra.mxu0 %v1946
    %2739 = vmatprep.subr.bf16.mxu0 %v1941
    %2740 = vmatpush2.bf16.msra.mxu0 %v1940
    %2741 = vmatprep.subr.bf16.mxu0 %v1935
    %2742 = vmatpush2.bf16.msra.mxu0 %v1934
    %2743 = vmatprep.subr.bf16.mxu0 %v1929
    %2744 = vmatpush2.bf16.msra.mxu0 %v1928
    %2745 = vmatprep.mubr.bf16.mxu0 %v587
    %2746 = vmatmul.mubr.bf16.gmra.mxu0 %v586
    %v2747 = vpop.f32.mrf.mxu0
    %v2748 = vadd.f32 %v2697, %v2747
    %v2749 = vpop.f32.mrf.mxu0
    %v2750 = vadd.f32 %v2699, %v2749
    %v2751 = vpop.f32.mrf.mxu0
    %v2752 = vadd.f32 %v2701, %v2751
    %v2753 = vpop.f32.mrf.mxu0
    %v2754 = vadd.f32 %v2703, %v2753
    %2755 = vmatprep.mubr.bf16.mxu0 %v593
    %2756 = vmatmul.mubr.bf16.gmra.mxu0 %v592
    %v2757 = vpop.f32.mrf.mxu0
    %v2758 = vadd.f32 %v2707, %v2757
    %v2759 = vpop.f32.mrf.mxu0
    %v2760 = vadd.f32 %v2709, %v2759
    %v2761 = vpop.f32.mrf.mxu0
    %v2762 = vpop.f32.mrf.mxu0
    %2763 = vdwg.mxu0
    %2764 = vmatprep.subr.bf16.mxu0 %v2019
    %2765 = vmatpush1.bf16.msra.mxu0 %v2018
    %2766 = vmatprep.subr.bf16.mxu0 %v2013
    %2767 = vmatpush1.bf16.msra.mxu0 %v2012
    %2768 = vmatprep.subr.bf16.mxu0 %v2007
    %2769 = vmatpush1.bf16.msra.mxu0 %v2006
    %2770 = vmatprep.subr.bf16.mxu0 %v2001
    %2771 = vmatpush1.bf16.msra.mxu0 %v2000
    %2772 = vmatprep.subr.bf16.mxu0 %v1995
    %2773 = vmatpush1.bf16.msra.mxu0 %v1994
    %2774 = vmatprep.subr.bf16.mxu0 %v1989
    %2775 = vmatpush1.bf16.msra.mxu0 %v1988
    %2776 = vmatprep.subr.bf16.mxu0 %v1983
    %2777 = vmatpush1.bf16.msra.mxu0 %v1982
    %2778 = vmatprep.subr.bf16.mxu0 %v1977
    %2779 = vmatpush1.bf16.msra.mxu0 %v1976
    %2780 = vmatprep.subr.bf16.mxu0 %v2067
    %2781 = vmatpush2.bf16.msra.mxu0 %v2066
    %2782 = vmatprep.subr.bf16.mxu0 %v2061
    %2783 = vmatpush2.bf16.msra.mxu0 %v2060
    %2784 = vmatprep.subr.bf16.mxu0 %v2055
    %2785 = vmatpush2.bf16.msra.mxu0 %v2054
    %2786 = vmatprep.subr.bf16.mxu0 %v2049
    %2787 = vmatpush2.bf16.msra.mxu0 %v2048
    %2788 = vmatprep.subr.bf16.mxu0 %v2043
    %2789 = vmatpush2.bf16.msra.mxu0 %v2042
    %2790 = vmatprep.subr.bf16.mxu0 %v2037
    %2791 = vmatpush2.bf16.msra.mxu0 %v2036
    %2792 = vmatprep.subr.bf16.mxu0 %v2031
    %2793 = vmatpush2.bf16.msra.mxu0 %v2030
    %2794 = vmatprep.subr.bf16.mxu0 %v2025
    %2795 = vmatpush2.bf16.msra.mxu0 %v2024
    %2796 = vmatprep.mubr.bf16.mxu0 %v589
    %2797 = vmatmul.mubr.bf16.gmra.mxu0 %v588
    %v2798 = vpop.f32.mrf.mxu0
    %v2799 = vadd.f32 %v2748, %v2798
    %v2800 = vpop.f32.mrf.mxu0
    %v2801 = vadd.f32 %v2750, %v2800
    %v2802 = vpop.f32.mrf.mxu0
    %v2803 = vadd.f32 %v2752, %v2802
    %v2804 = vpop.f32.mrf.mxu0
    %v2805 = vadd.f32 %v2754, %v2804
    %2806 = vmatprep.mubr.bf16.mxu0 %v595
    %2807 = vmatmul.mubr.bf16.gmra.mxu0 %v594
    %v2808 = vpop.f32.mrf.mxu0
    %v2809 = vadd.f32 %v2758, %v2808
    %v2810 = vpop.f32.mrf.mxu0
    %v2811 = vadd.f32 %v2760, %v2810
    %v2812 = vpop.f32.mrf.mxu0
    %v2813 = vpop.f32.mrf.mxu0
    %2814 = vdwg.mxu0
    %v2815 = vmul.f32 %v2493, 0.1
    %v2816 = vmul.f32 %v2495, 0.1
    %v2817 = vmul.f32 %v2646, 0.1
    %v2818 = vmul.f32 %v2648, 0.1
    %v2819 = vmul.f32 %v2799, 0.1
    %v2820 = vmul.f32 %v2801, 0.1
    %v2821 = vmul.f32 %v2497, 0.1
    %v2822 = vmul.f32 %v2499, 0.1
    %v2823 = vmul.f32 %v2650, 0.1
    %v2824 = vmul.f32 %v2652, 0.1
    %v2825 = vmul.f32 %v2803, 0.1
    %v2826 = vmul.f32 %v2805, 0.1
    %v2827 = vmul.f32 %v2503, 0.1
    %v2828 = vmul.f32 %v2505, 0.1
    %v2829 = vmul.f32 %v2656, 0.1
    %v2830 = vmul.f32 %v2658, 0.1
    %v2831 = vmul.f32 %v2809, 0.1
    %v2832 = vmul.f32 %v2811, 0.1
    %v2833 = vmax.f32 %v2493, %v2815
    %v2834 = vmax.f32 %v2495, %v2816
    %v2835 = vmax.f32 %v2646, %v2817
    %v2836 = vmax.f32 %v2648, %v2818
    %v2837 = vmax.f32 %v2799, %v2819
    %v2838 = vmax.f32 %v2801, %v2820
    %v2839 = vmax.f32 %v2497, %v2821
    %v2840 = vmax.f32 %v2499, %v2822
    %v2841 = vmax.f32 %v2650, %v2823
    %v2842 = vmax.f32 %v2652, %v2824
    %v2843 = vmax.f32 %v2803, %v2825
    %v2844 = vmax.f32 %v2805, %v2826
    %v2845 = vmax.f32 %v2503, %v2827
    %v2846 = vmax.f32 %v2505, %v2828
    %v2847 = vmax.f32 %v2656, %v2829
    %v2848 = vmax.f32 %v2658, %v2830
    %v2849 = vmax.f32 %v2809, %v2831
    %v2850 = vmax.f32 %v2811, %v2832
    %v2851 = vpack.c.bf16 %v2839, %v2833
    %v2852 = vpack.c.bf16 %v2840, %v2834
    %v2853 = vpack.c.bf16 %v2841, %v2835
    %v2854 = vpack.c.bf16 %v2842, %v2836
    %v2855 = vpack.c.bf16 %v2843, %v2837
    %v2856 = vpack.c.bf16 %v2844, %v2838
    %v2857 = vpack.c.bf16 %v2845, %v2845
    %v2858 = vpack.c.bf16 %v2846, %v2846
    %v2859 = vpack.c.bf16 %v2847, %v2847
    %v2860 = vpack.c.bf16 %v2848, %v2848
    %v2861 = vpack.c.bf16 %v2849, %v2849
    %v2862 = vpack.c.bf16 %v2850, %v2850
    %v2863 = vld [vmem:[#allocation11] sm:$0xff]
    %v2864 = vld [vmem:[#allocation11 + $0x8] sm:$0xff]
    %v2865 = vld [vmem:[#allocation11 + $0x10] sm:$0xff]
    %v2866 = vld [vmem:[#allocation11 + $0x18] sm:$0xff]
    %v2867 = vld [vmem:[#allocation11 + $0x20] sm:$0xff]
    %v2868 = vld [vmem:[#allocation11 + $0x28] sm:$0xff]
    %v2869 = vld [vmem:[#allocation11 + $0x30] sm:$0xff]
    %v2870 = vld [vmem:[#allocation11 + $0x38] sm:$0xff]
    %v2871 = vld [vmem:[#allocation11 + $0x40] sm:$0xff]
    %v2872 = vld [vmem:[#allocation11 + $0x48] sm:$0xff]
    %v2873 = vld [vmem:[#allocation11 + $0x50] sm:$0xff]
    %v2874 = vld [vmem:[#allocation11 + $0x58] sm:$0xff]
    %v2875 = vld [vmem:[#allocation11 + $0x60] sm:$0xff]
    %v2876 = vld [vmem:[#allocation11 + $0x68] sm:$0xff]
    %v2877 = vld [vmem:[#allocation11 + $0x70] sm:$0xff]
    %v2878 = vld [vmem:[#allocation11 + $0x78] sm:$0xff]
    %v2879 = vld [vmem:[#allocation11 + $0x80] sm:$0xff]
    %v2880 = vld [vmem:[#allocation11 + $0x88] sm:$0xff]
    %v2881 = vld [vmem:[#allocation11 + $0x90] sm:$0xff]
    %v2882 = vld [vmem:[#allocation11 + $0x98] sm:$0xff]
    %v2883 = vld [vmem:[#allocation11 + $0xa0] sm:$0xff]
    %v2884 = vld [vmem:[#allocation11 + $0xa8] sm:$0xff]
    %v2885 = vld [vmem:[#allocation11 + $0xb0] sm:$0xff]
    %v2886 = vld [vmem:[#allocation11 + $0xb8] sm:$0xff]
    %v2887 = vld [vmem:[#allocation11 + $0xc0] sm:$0xff]
    %v2888 = vld [vmem:[#allocation11 + $0xc8] sm:$0xff]
    %v2889 = vld [vmem:[#allocation11 + $0xd0] sm:$0xff]
    %v2890 = vld [vmem:[#allocation11 + $0xd8] sm:$0xff]
    %v2891 = vld [vmem:[#allocation11 + $0xe0] sm:$0xff]
    %v2892 = vld [vmem:[#allocation11 + $0xe8] sm:$0xff]
    %v2893 = vld [vmem:[#allocation11 + $0xf0] sm:$0xff]
    %v2894 = vld [vmem:[#allocation11 + $0xf8] sm:$0xff]
    %v2895 = vld [vmem:[#allocation11 + $0x100] sm:$0xff]
    %v2896 = vld [vmem:[#allocation11 + $0x108] sm:$0xff]
    %v2897 = vld [vmem:[#allocation11 + $0x110] sm:$0xff]
    %v2898 = vld [vmem:[#allocation11 + $0x118] sm:$0xff]
    %v2899 = vld [vmem:[#allocation11 + $0x120] sm:$0xff]
    %v2900 = vld [vmem:[#allocation11 + $0x128] sm:$0xff]
    %v2901 = vld [vmem:[#allocation11 + $0x130] sm:$0xff]
    %v2902 = vld [vmem:[#allocation11 + $0x138] sm:$0xff]
    %v2903 = vld [vmem:[#allocation11 + $0x140] sm:$0xff]
    %v2904 = vld [vmem:[#allocation11 + $0x148] sm:$0xff]
    %v2905 = vld [vmem:[#allocation11 + $0x150] sm:$0xff]
    %v2906 = vld [vmem:[#allocation11 + $0x158] sm:$0xff]
    %v2907 = vld [vmem:[#allocation11 + $0x160] sm:$0xff]
    %v2908 = vld [vmem:[#allocation11 + $0x168] sm:$0xff]
    %v2909 = vld [vmem:[#allocation11 + $0x170] sm:$0xff]
    %v2910 = vld [vmem:[#allocation11 + $0x178] sm:$0xff]
    %v2911 = vld [vmem:[#allocation11 + $0x180] sm:$0xff]
    %v2912 = vld [vmem:[#allocation11 + $0x188] sm:$0xff]
    %v2913 = vld [vmem:[#allocation11 + $0x190] sm:$0xff]
    %v2914 = vld [vmem:[#allocation11 + $0x198] sm:$0xff]
    %v2915 = vld [vmem:[#allocation11 + $0x1a0] sm:$0xff]
    %v2916 = vld [vmem:[#allocation11 + $0x1a8] sm:$0xff]
    %v2917 = vld [vmem:[#allocation11 + $0x1b0] sm:$0xff]
    %v2918 = vld [vmem:[#allocation11 + $0x1b8] sm:$0xff]
    %v2919 = vld [vmem:[#allocation11 + $0x1c0] sm:$0xff]
    %v2920 = vld [vmem:[#allocation11 + $0x1c8] sm:$0xff]
    %v2921 = vld [vmem:[#allocation11 + $0x1d0] sm:$0xff]
    %v2922 = vld [vmem:[#allocation11 + $0x1d8] sm:$0xff]
    %v2923 = vld [vmem:[#allocation11 + $0x1e0] sm:$0xff]
    %v2924 = vld [vmem:[#allocation11 + $0x1e8] sm:$0xff]
    %v2925 = vld [vmem:[#allocation11 + $0x1f0] sm:$0xff]
    %v2926 = vld [vmem:[#allocation11 + $0x1f8] sm:$0xff]
    %v2927 = vld [vmem:[#allocation11 + $0x200] sm:$0xff]
    %v2928 = vld [vmem:[#allocation11 + $0x208] sm:$0xff]
    %v2929 = vld [vmem:[#allocation11 + $0x210] sm:$0xff]
    %v2930 = vld [vmem:[#allocation11 + $0x218] sm:$0xff]
    %v2931 = vld [vmem:[#allocation11 + $0x220] sm:$0xff]
    %v2932 = vld [vmem:[#allocation11 + $0x228] sm:$0xff]
    %v2933 = vld [vmem:[#allocation11 + $0x230] sm:$0xff]
    %v2934 = vld [vmem:[#allocation11 + $0x238] sm:$0xff]
    %v2935 = vld [vmem:[#allocation11 + $0x240] sm:$0xff]
    %v2936 = vld [vmem:[#allocation11 + $0x248] sm:$0xff]
    %v2937 = vld [vmem:[#allocation11 + $0x250] sm:$0xff]
    %v2938 = vld [vmem:[#allocation11 + $0x258] sm:$0xff]
    %v2939 = vld [vmem:[#allocation11 + $0x260] sm:$0xff]
    %v2940 = vld [vmem:[#allocation11 + $0x268] sm:$0xff]
    %v2941 = vld [vmem:[#allocation11 + $0x270] sm:$0xff]
    %v2942 = vld [vmem:[#allocation11 + $0x278] sm:$0xff]
    %v2943 = vld [vmem:[#allocation11 + $0x280] sm:$0xff]
    %v2944 = vld [vmem:[#allocation11 + $0x288] sm:$0xff]
    %v2945 = vld [vmem:[#allocation11 + $0x290] sm:$0xff]
    %v2946 = vld [vmem:[#allocation11 + $0x298] sm:$0xff]
    %v2947 = vld [vmem:[#allocation11 + $0x2a0] sm:$0xff]
    %v2948 = vld [vmem:[#allocation11 + $0x2a8] sm:$0xff]
    %v2949 = vld [vmem:[#allocation11 + $0x2b0] sm:$0xff]
    %v2950 = vld [vmem:[#allocation11 + $0x2b8] sm:$0xff]
    %v2951 = vld [vmem:[#allocation11 + $0x2c0] sm:$0xff]
    %v2952 = vld [vmem:[#allocation11 + $0x2c8] sm:$0xff]
    %v2953 = vld [vmem:[#allocation11 + $0x2d0] sm:$0xff]
    %v2954 = vld [vmem:[#allocation11 + $0x2d8] sm:$0xff]
    %v2955 = vld [vmem:[#allocation11 + $0x2e0] sm:$0xff]
    %v2956 = vld [vmem:[#allocation11 + $0x2e8] sm:$0xff]
    %v2957 = vld [vmem:[#allocation11 + $0x2f0] sm:$0xff]
    %v2958 = vld [vmem:[#allocation11 + $0x2f8] sm:$0xff]
    %v2959 = vld [vmem:[#allocation11 + $0x300] sm:$0xff]
    %v2960 = vld [vmem:[#allocation11 + $0x308] sm:$0xff]
    %v2961 = vld [vmem:[#allocation11 + $0x310] sm:$0xff]
    %v2962 = vld [vmem:[#allocation11 + $0x318] sm:$0xff]
    %v2963 = vld [vmem:[#allocation11 + $0x320] sm:$0xff]
    %v2964 = vld [vmem:[#allocation11 + $0x328] sm:$0xff]
    %v2965 = vld [vmem:[#allocation11 + $0x330] sm:$0xff]
    %v2966 = vld [vmem:[#allocation11 + $0x338] sm:$0xff]
    %v2967 = vld [vmem:[#allocation11 + $0x340] sm:$0xff]
    %v2968 = vld [vmem:[#allocation11 + $0x348] sm:$0xff]
    %v2969 = vld [vmem:[#allocation11 + $0x350] sm:$0xff]
    %v2970 = vld [vmem:[#allocation11 + $0x358] sm:$0xff]
    %v2971 = vld [vmem:[#allocation11 + $0x360] sm:$0xff]
    %v2972 = vld [vmem:[#allocation11 + $0x368] sm:$0xff]
    %v2973 = vld [vmem:[#allocation11 + $0x370] sm:$0xff]
    %v2974 = vld [vmem:[#allocation11 + $0x378] sm:$0xff]
    %v2975 = vld [vmem:[#allocation11 + $0x380] sm:$0xff]
    %v2976 = vld [vmem:[#allocation11 + $0x388] sm:$0xff]
    %v2977 = vld [vmem:[#allocation11 + $0x390] sm:$0xff]
    %v2978 = vld [vmem:[#allocation11 + $0x398] sm:$0xff]
    %v2979 = vld [vmem:[#allocation11 + $0x3a0] sm:$0xff]
    %v2980 = vld [vmem:[#allocation11 + $0x3a8] sm:$0xff]
    %v2981 = vld [vmem:[#allocation11 + $0x3b0] sm:$0xff]
    %v2982 = vld [vmem:[#allocation11 + $0x3b8] sm:$0xff]
    %v2983 = vld [vmem:[#allocation11 + $0x3c0] sm:$0xff]
    %v2984 = vld [vmem:[#allocation11 + $0x3c8] sm:$0xff]
    %v2985 = vld [vmem:[#allocation11 + $0x3d0] sm:$0xff]
    %v2986 = vld [vmem:[#allocation11 + $0x3d8] sm:$0xff]
    %v2987 = vld [vmem:[#allocation11 + $0x3e0] sm:$0xff]
    %v2988 = vld [vmem:[#allocation11 + $0x3e8] sm:$0xff]
    %v2989 = vld [vmem:[#allocation11 + $0x3f0] sm:$0xff]
    %v2990 = vld [vmem:[#allocation11 + $0x3f8] sm:$0xff]
    %v2991 = vld [vmem:[#allocation11 + $0x400] sm:$0xff]
    %v2992 = vld [vmem:[#allocation11 + $0x408] sm:$0xff]
    %v2993 = vld [vmem:[#allocation11 + $0x410] sm:$0xff]
    %v2994 = vld [vmem:[#allocation11 + $0x418] sm:$0xff]
    %v2995 = vld [vmem:[#allocation11 + $0x420] sm:$0xff]
    %v2996 = vld [vmem:[#allocation11 + $0x428] sm:$0xff]
    %v2997 = vld [vmem:[#allocation11 + $0x430] sm:$0xff]
    %v2998 = vld [vmem:[#allocation11 + $0x438] sm:$0xff]
    %v2999 = vld [vmem:[#allocation11 + $0x440] sm:$0xff]
    %v3000 = vld [vmem:[#allocation11 + $0x448] sm:$0xff]
    %v3001 = vld [vmem:[#allocation11 + $0x450] sm:$0xff]
    %v3002 = vld [vmem:[#allocation11 + $0x458] sm:$0xff]
    %v3003 = vld [vmem:[#allocation11 + $0x460] sm:$0xff]
    %v3004 = vld [vmem:[#allocation11 + $0x468] sm:$0xff]
    %v3005 = vld [vmem:[#allocation11 + $0x470] sm:$0xff]
    %v3006 = vld [vmem:[#allocation11 + $0x478] sm:$0xff]
    %v3007 = vld [vmem:[#allocation11 + $0x480] sm:$0xff]
    %v3008 = vld [vmem:[#allocation11 + $0x488] sm:$0xff]
    %v3009 = vld [vmem:[#allocation11 + $0x490] sm:$0xff]
    %v3010 = vld [vmem:[#allocation11 + $0x498] sm:$0xff]
    %v3011 = vld [vmem:[#allocation11 + $0x4a0] sm:$0xff]
    %v3012 = vld [vmem:[#allocation11 + $0x4a8] sm:$0xff]
    %v3013 = vld [vmem:[#allocation11 + $0x4b0] sm:$0xff]
    %v3014 = vld [vmem:[#allocation11 + $0x4b8] sm:$0xff]
    %v3015 = vld [vmem:[#allocation11 + $0x4c0] sm:$0xff]
    %v3016 = vld [vmem:[#allocation11 + $0x4c8] sm:$0xff]
    %v3017 = vld [vmem:[#allocation11 + $0x4d0] sm:$0xff]
    %v3018 = vld [vmem:[#allocation11 + $0x4d8] sm:$0xff]
    %v3019 = vld [vmem:[#allocation11 + $0x4e0] sm:$0xff]
    %v3020 = vld [vmem:[#allocation11 + $0x4e8] sm:$0xff]
    %v3021 = vld [vmem:[#allocation11 + $0x4f0] sm:$0xff]
    %v3022 = vld [vmem:[#allocation11 + $0x4f8] sm:$0xff]
    %v3023 = vld [vmem:[#allocation11 + $0x500] sm:$0xff]
    %v3024 = vld [vmem:[#allocation11 + $0x508] sm:$0xff]
    %v3025 = vld [vmem:[#allocation11 + $0x510] sm:$0xff]
    %v3026 = vld [vmem:[#allocation11 + $0x518] sm:$0xff]
    %v3027 = vld [vmem:[#allocation11 + $0x520] sm:$0xff]
    %v3028 = vld [vmem:[#allocation11 + $0x528] sm:$0xff]
    %v3029 = vld [vmem:[#allocation11 + $0x530] sm:$0xff]
    %v3030 = vld [vmem:[#allocation11 + $0x538] sm:$0xff]
    %v3031 = vld [vmem:[#allocation11 + $0x540] sm:$0xff]
    %v3032 = vld [vmem:[#allocation11 + $0x548] sm:$0xff]
    %v3033 = vld [vmem:[#allocation11 + $0x550] sm:$0xff]
    %v3034 = vld [vmem:[#allocation11 + $0x558] sm:$0xff]
    %v3035 = vld [vmem:[#allocation11 + $0x560] sm:$0xff]
    %v3036 = vld [vmem:[#allocation11 + $0x568] sm:$0xff]
    %v3037 = vld [vmem:[#allocation11 + $0x570] sm:$0xff]
    %v3038 = vld [vmem:[#allocation11 + $0x578] sm:$0xff]
    %v3039 = vld [vmem:[#allocation11 + $0x580] sm:$0xff]
    %v3040 = vld [vmem:[#allocation11 + $0x588] sm:$0xff]
    %v3041 = vld [vmem:[#allocation11 + $0x590] sm:$0xff]
    %v3042 = vld [vmem:[#allocation11 + $0x598] sm:$0xff]
    %v3043 = vld [vmem:[#allocation11 + $0x5a0] sm:$0xff]
    %v3044 = vld [vmem:[#allocation11 + $0x5a8] sm:$0xff]
    %v3045 = vld [vmem:[#allocation11 + $0x5b0] sm:$0xff]
    %v3046 = vld [vmem:[#allocation11 + $0x5b8] sm:$0xff]
    %v3047 = vld [vmem:[#allocation11 + $0x5c0] sm:$0xff]
    %v3048 = vld [vmem:[#allocation11 + $0x5c8] sm:$0xff]
    %v3049 = vld [vmem:[#allocation11 + $0x5d0] sm:$0xff]
    %v3050 = vld [vmem:[#allocation11 + $0x5d8] sm:$0xff]
    %v3051 = vld [vmem:[#allocation11 + $0x5e0] sm:$0xff]
    %v3052 = vld [vmem:[#allocation11 + $0x5e8] sm:$0xff]
    %v3053 = vld [vmem:[#allocation11 + $0x5f0] sm:$0xff]
    %v3054 = vld [vmem:[#allocation11 + $0x5f8] sm:$0xff]
    %v3055 = vld [vmem:[#allocation11 + $0x600] sm:$0xff]
    %v3056 = vld [vmem:[#allocation11 + $0x608] sm:$0xff]
    %v3057 = vld [vmem:[#allocation11 + $0x610] sm:$0xff]
    %v3058 = vld [vmem:[#allocation11 + $0x618] sm:$0xff]
    %v3059 = vld [vmem:[#allocation11 + $0x620] sm:$0xff]
    %v3060 = vld [vmem:[#allocation11 + $0x628] sm:$0xff]
    %v3061 = vld [vmem:[#allocation11 + $0x630] sm:$0xff]
    %v3062 = vld [vmem:[#allocation11 + $0x638] sm:$0xff]
    %v3063 = vld [vmem:[#allocation11 + $0x640] sm:$0xff]
    %v3064 = vld [vmem:[#allocation11 + $0x648] sm:$0xff]
    %v3065 = vld [vmem:[#allocation11 + $0x650] sm:$0xff]
    %v3066 = vld [vmem:[#allocation11 + $0x658] sm:$0xff]
    %v3067 = vld [vmem:[#allocation11 + $0x660] sm:$0xff]
    %v3068 = vld [vmem:[#allocation11 + $0x668] sm:$0xff]
    %v3069 = vld [vmem:[#allocation11 + $0x670] sm:$0xff]
    %v3070 = vld [vmem:[#allocation11 + $0x678] sm:$0xff]
    %v3071 = vld [vmem:[#allocation11 + $0x680] sm:$0xff]
    %v3072 = vld [vmem:[#allocation11 + $0x688] sm:$0xff]
    %v3073 = vld [vmem:[#allocation11 + $0x690] sm:$0xff]
    %v3074 = vld [vmem:[#allocation11 + $0x698] sm:$0xff]
    %v3075 = vld [vmem:[#allocation11 + $0x6a0] sm:$0xff]
    %v3076 = vld [vmem:[#allocation11 + $0x6a8] sm:$0xff]
    %v3077 = vld [vmem:[#allocation11 + $0x6b0] sm:$0xff]
    %v3078 = vld [vmem:[#allocation11 + $0x6b8] sm:$0xff]
    %v3079 = vld [vmem:[#allocation11 + $0x6c0] sm:$0xff]
    %v3080 = vld [vmem:[#allocation11 + $0x6c8] sm:$0xff]
    %v3081 = vld [vmem:[#allocation11 + $0x6d0] sm:$0xff]
    %v3082 = vld [vmem:[#allocation11 + $0x6d8] sm:$0xff]
    %v3083 = vld [vmem:[#allocation11 + $0x6e0] sm:$0xff]
    %v3084 = vld [vmem:[#allocation11 + $0x6e8] sm:$0xff]
    %v3085 = vld [vmem:[#allocation11 + $0x6f0] sm:$0xff]
    %v3086 = vld [vmem:[#allocation11 + $0x6f8] sm:$0xff]
    %v3087 = vld [vmem:[#allocation11 + $0x700] sm:$0xff]
    %v3088 = vld [vmem:[#allocation11 + $0x708] sm:$0xff]
    %v3089 = vld [vmem:[#allocation11 + $0x710] sm:$0xff]
    %v3090 = vld [vmem:[#allocation11 + $0x718] sm:$0xff]
    %v3091 = vld [vmem:[#allocation11 + $0x720] sm:$0xff]
    %v3092 = vld [vmem:[#allocation11 + $0x728] sm:$0xff]
    %v3093 = vld [vmem:[#allocation11 + $0x730] sm:$0xff]
    %v3094 = vld [vmem:[#allocation11 + $0x738] sm:$0xff]
    %v3095 = vld [vmem:[#allocation11 + $0x740] sm:$0xff]
    %v3096 = vld [vmem:[#allocation11 + $0x748] sm:$0xff]
    %v3097 = vld [vmem:[#allocation11 + $0x750] sm:$0xff]
    %v3098 = vld [vmem:[#allocation11 + $0x758] sm:$0xff]
    %v3099 = vld [vmem:[#allocation11 + $0x760] sm:$0xff]
    %v3100 = vld [vmem:[#allocation11 + $0x768] sm:$0xff]
    %v3101 = vld [vmem:[#allocation11 + $0x770] sm:$0xff]
    %v3102 = vld [vmem:[#allocation11 + $0x778] sm:$0xff]
    %v3103 = vld [vmem:[#allocation11 + $0x780] sm:$0xff]
    %v3104 = vld [vmem:[#allocation11 + $0x788] sm:$0xff]
    %v3105 = vld [vmem:[#allocation11 + $0x790] sm:$0xff]
    %v3106 = vld [vmem:[#allocation11 + $0x798] sm:$0xff]
    %v3107 = vld [vmem:[#allocation11 + $0x7a0] sm:$0xff]
    %v3108 = vld [vmem:[#allocation11 + $0x7a8] sm:$0xff]
    %v3109 = vld [vmem:[#allocation11 + $0x7b0] sm:$0xff]
    %v3110 = vld [vmem:[#allocation11 + $0x7b8] sm:$0xff]
    %v3111 = vld [vmem:[#allocation11 + $0x7c0] sm:$0xff]
    %v3112 = vld [vmem:[#allocation11 + $0x7c8] sm:$0xff]
    %v3113 = vld [vmem:[#allocation11 + $0x7d0] sm:$0xff]
    %v3114 = vld [vmem:[#allocation11 + $0x7d8] sm:$0xff]
    %v3115 = vld [vmem:[#allocation11 + $0x7e0] sm:$0xff]
    %v3116 = vld [vmem:[#allocation11 + $0x7e8] sm:$0xff]
    %v3117 = vld [vmem:[#allocation11 + $0x7f0] sm:$0xff]
    %v3118 = vld [vmem:[#allocation11 + $0x7f8] sm:$0xff]
    %v3119 = vld [vmem:[#allocation11 + $0x800] sm:$0xff]
    %v3120 = vld [vmem:[#allocation11 + $0x808] sm:$0xff]
    %v3121 = vld [vmem:[#allocation11 + $0x810] sm:$0xff]
    %v3122 = vld [vmem:[#allocation11 + $0x818] sm:$0xff]
    %v3123 = vld [vmem:[#allocation11 + $0x820] sm:$0xff]
    %v3124 = vld [vmem:[#allocation11 + $0x828] sm:$0xff]
    %v3125 = vld [vmem:[#allocation11 + $0x830] sm:$0xff]
    %v3126 = vld [vmem:[#allocation11 + $0x838] sm:$0xff]
    %v3127 = vld [vmem:[#allocation11 + $0x840] sm:$0xff]
    %v3128 = vld [vmem:[#allocation11 + $0x848] sm:$0xff]
    %v3129 = vld [vmem:[#allocation11 + $0x850] sm:$0xff]
    %v3130 = vld [vmem:[#allocation11 + $0x858] sm:$0xff]
    %v3131 = vld [vmem:[#allocation11 + $0x860] sm:$0xff]
    %v3132 = vld [vmem:[#allocation11 + $0x868] sm:$0xff]
    %v3133 = vld [vmem:[#allocation11 + $0x870] sm:$0xff]
    %v3134 = vld [vmem:[#allocation11 + $0x878] sm:$0xff]
    %v3135 = vld [vmem:[#allocation11 + $0x880] sm:$0xff]
    %v3136 = vld [vmem:[#allocation11 + $0x888] sm:$0xff]
    %v3137 = vld [vmem:[#allocation11 + $0x890] sm:$0xff]
    %v3138 = vld [vmem:[#allocation11 + $0x898] sm:$0xff]
    %v3139 = vld [vmem:[#allocation11 + $0x8a0] sm:$0xff]
    %v3140 = vld [vmem:[#allocation11 + $0x8a8] sm:$0xff]
    %v3141 = vld [vmem:[#allocation11 + $0x8b0] sm:$0xff]
    %v3142 = vld [vmem:[#allocation11 + $0x8b8] sm:$0xff]
    %v3143 = vld [vmem:[#allocation11 + $0x8c0] sm:$0xff]
    %v3144 = vld [vmem:[#allocation11 + $0x8c8] sm:$0xff]
    %v3145 = vld [vmem:[#allocation11 + $0x8d0] sm:$0xff]
    %v3146 = vld [vmem:[#allocation11 + $0x8d8] sm:$0xff]
    %v3147 = vld [vmem:[#allocation11 + $0x8e0] sm:$0xff]
    %v3148 = vld [vmem:[#allocation11 + $0x8e8] sm:$0xff]
    %v3149 = vld [vmem:[#allocation11 + $0x8f0] sm:$0xff]
    %v3150 = vld [vmem:[#allocation11 + $0x8f8] sm:$0xff]
    %v3151 = vld [vmem:[#allocation13] sm:$0x3f]
    %v3153 = vlaneseq
    %v3154 = vshrl.u32 %v3153, 7
    %v3155 = vsub.s32 0, %v3154
    %v3156 = vrot.slane %v3151, %v3155
    %v3157 = vlaneseq
    %v3158 = vshrl.u32 %v3157, 7
    %v3159 = vsub.s32 1, %v3158
    %v3160 = vrot.slane %v3151, %v3159
    %v3161 = vlaneseq
    %v3162 = vshrl.u32 %v3161, 7
    %v3163 = vsub.s32 2, %v3162
    %v3164 = vrot.slane %v3151, %v3163
    %v3165 = vlaneseq
    %v3166 = vshrl.u32 %v3165, 7
    %v3167 = vsub.s32 3, %v3166
    %v3168 = vrot.slane %v3151, %v3167
    %v3169 = vlaneseq
    %v3170 = vshrl.u32 %v3169, 7
    %v3171 = vsub.s32 4, %v3170
    %v3172 = vrot.slane %v3151, %v3171
    %v3173 = vlaneseq
    %v3174 = vshrl.u32 %v3173, 7
    %v3175 = vsub.s32 5, %v3174
    %v3176 = vrot.slane %v3151, %v3175
    %v3471 = vunpack.c.l.b16 %v2863
    %v3472 = vunpack.c.h.b16 %v2863
    %v3473 = vunpack.c.l.b16 %v2864
    %v3474 = vunpack.c.h.b16 %v2864
    %v3475 = vunpack.c.l.b16 %v2865
    %v3476 = vunpack.c.h.b16 %v2865
    %v3477 = vunpack.c.l.b16 %v2866
    %v3478 = vunpack.c.h.b16 %v2866
    %v3479 = vunpack.c.l.b16 %v2867
    %v3480 = vunpack.c.h.b16 %v2867
    %v3481 = vunpack.c.l.b16 %v2868
    %v3482 = vunpack.c.h.b16 %v2868
    %v3483 = vunpack.c.l.b16 %v2869
    %v3484 = vunpack.c.h.b16 %v2869
    %v3485 = vunpack.c.l.b16 %v2870
    %v3486 = vunpack.c.h.b16 %v2870
    %v3487 = vunpack.c.l.b16 %v2871
    %v3488 = vunpack.c.h.b16 %v2871
    %v3489 = vunpack.c.l.b16 %v2872
    %v3490 = vunpack.c.h.b16 %v2872
    %v3491 = vunpack.c.l.b16 %v2873
    %v3492 = vunpack.c.h.b16 %v2873
    %v3493 = vunpack.c.l.b16 %v2874
    %v3494 = vunpack.c.h.b16 %v2874
    %v3495 = vunpack.c.l.b16 %v2875
    %v3496 = vunpack.c.h.b16 %v2875
    %v3497 = vunpack.c.l.b16 %v2876
    %v3498 = vunpack.c.h.b16 %v2876
    %v3499 = vunpack.c.l.b16 %v2877
    %v3500 = vunpack.c.h.b16 %v2877
    %v3501 = vunpack.c.l.b16 %v2878
    %v3502 = vunpack.c.h.b16 %v2878
    %v3503 = vunpack.c.l.b16 %v2879
    %v3504 = vunpack.c.h.b16 %v2879
    %v3505 = vunpack.c.l.b16 %v2880
    %v3506 = vunpack.c.h.b16 %v2880
    %v3507 = vunpack.c.l.b16 %v2881
    %v3508 = vunpack.c.h.b16 %v2881
    %v3509 = vunpack.c.l.b16 %v2882
    %v3510 = vunpack.c.h.b16 %v2882
    %v3511 = vunpack.c.l.b16 %v2883
    %v3512 = vunpack.c.h.b16 %v2883
    %v3513 = vunpack.c.l.b16 %v2884
    %v3514 = vunpack.c.h.b16 %v2884
    %v3515 = vunpack.c.l.b16 %v2885
    %v3516 = vunpack.c.h.b16 %v2885
    %v3517 = vunpack.c.l.b16 %v2886
    %v3518 = vunpack.c.h.b16 %v2886
    %v3519 = vunpack.c.l.b16 %v2887
    %v3520 = vunpack.c.h.b16 %v2887
    %v3521 = vunpack.c.l.b16 %v2888
    %v3522 = vunpack.c.h.b16 %v2888
    %v3523 = vunpack.c.l.b16 %v2889
    %v3524 = vunpack.c.h.b16 %v2889
    %v3525 = vunpack.c.l.b16 %v2890
    %v3526 = vunpack.c.h.b16 %v2890
    %v3527 = vunpack.c.l.b16 %v2891
    %v3528 = vunpack.c.h.b16 %v2891
    %v3529 = vunpack.c.l.b16 %v2892
    %v3530 = vunpack.c.h.b16 %v2892
    %v3531 = vunpack.c.l.b16 %v2893
    %v3532 = vunpack.c.h.b16 %v2893
    %v3533 = vunpack.c.l.b16 %v2894
    %v3534 = vunpack.c.h.b16 %v2894
    %v3535 = vunpack.c.l.b16 %v2895
    %v3536 = vunpack.c.h.b16 %v2895
    %v3537 = vunpack.c.l.b16 %v2896
    %v3538 = vunpack.c.h.b16 %v2896
    %v3539 = vunpack.c.l.b16 %v2897
    %v3540 = vunpack.c.h.b16 %v2897
    %v3541 = vunpack.c.l.b16 %v2898
    %v3542 = vunpack.c.h.b16 %v2898
    %v3543 = vunpack.c.l.b16 %v2899
    %v3544 = vunpack.c.h.b16 %v2899
    %v3545 = vunpack.c.l.b16 %v2900
    %v3546 = vunpack.c.h.b16 %v2900
    %v3547 = vunpack.c.l.b16 %v2901
    %v3548 = vunpack.c.h.b16 %v2901
    %v3549 = vunpack.c.l.b16 %v2902
    %v3550 = vunpack.c.h.b16 %v2902
    %v3551 = vunpack.c.l.b16 %v2903
    %v3552 = vunpack.c.h.b16 %v2903
    %v3553 = vunpack.c.l.b16 %v2904
    %v3554 = vunpack.c.h.b16 %v2904
    %v3555 = vunpack.c.l.b16 %v2905
    %v3556 = vunpack.c.h.b16 %v2905
    %v3557 = vunpack.c.l.b16 %v2906
    %v3558 = vunpack.c.h.b16 %v2906
    %v3559 = vunpack.c.l.b16 %v2907
    %v3560 = vunpack.c.h.b16 %v2907
    %v3561 = vunpack.c.l.b16 %v2908
    %v3562 = vunpack.c.h.b16 %v2908
    %v3563 = vunpack.c.l.b16 %v2909
    %v3564 = vunpack.c.h.b16 %v2909
    %v3565 = vunpack.c.l.b16 %v2910
    %v3566 = vunpack.c.h.b16 %v2910
    %v3567 = vunpack.c.l.b16 %v2911
    %v3568 = vunpack.c.h.b16 %v2911
    %v3569 = vunpack.c.l.b16 %v2912
    %v3570 = vunpack.c.h.b16 %v2912
    %v3571 = vunpack.c.l.b16 %v2913
    %v3572 = vunpack.c.h.b16 %v2913
    %v3573 = vunpack.c.l.b16 %v2914
    %v3574 = vunpack.c.h.b16 %v2914
    %v3575 = vunpack.c.l.b16 %v2915
    %v3576 = vunpack.c.h.b16 %v2915
    %v3577 = vunpack.c.l.b16 %v2916
    %v3578 = vunpack.c.h.b16 %v2916
    %v3579 = vunpack.c.l.b16 %v2917
    %v3580 = vunpack.c.h.b16 %v2917
    %v3581 = vunpack.c.l.b16 %v2918
    %v3582 = vunpack.c.h.b16 %v2918
    %v3583 = vunpack.c.l.b16 %v2919
    %v3584 = vunpack.c.h.b16 %v2919
    %v3585 = vunpack.c.l.b16 %v2920
    %v3586 = vunpack.c.h.b16 %v2920
    %v3587 = vunpack.c.l.b16 %v2921
    %v3588 = vunpack.c.h.b16 %v2921
    %v3589 = vunpack.c.l.b16 %v2922
    %v3590 = vunpack.c.h.b16 %v2922
    %v3591 = vunpack.c.l.b16 %v2923
    %v3592 = vunpack.c.h.b16 %v2923
    %v3593 = vunpack.c.l.b16 %v2924
    %v3594 = vunpack.c.h.b16 %v2924
    %v3595 = vunpack.c.l.b16 %v2925
    %v3596 = vunpack.c.h.b16 %v2925
    %v3597 = vunpack.c.l.b16 %v2926
    %v3598 = vunpack.c.h.b16 %v2926
    %v3599 = vunpack.c.l.b16 %v2927
    %v3600 = vunpack.c.h.b16 %v2927
    %v3601 = vunpack.c.l.b16 %v2928
    %v3602 = vunpack.c.h.b16 %v2928
    %v3603 = vunpack.c.l.b16 %v2929
    %v3604 = vunpack.c.h.b16 %v2929
    %v3605 = vunpack.c.l.b16 %v2930
    %v3606 = vunpack.c.h.b16 %v2930
    %v3607 = vunpack.c.l.b16 %v2931
    %v3608 = vunpack.c.h.b16 %v2931
    %v3609 = vunpack.c.l.b16 %v2932
    %v3610 = vunpack.c.h.b16 %v2932
    %v3611 = vunpack.c.l.b16 %v2933
    %v3612 = vunpack.c.h.b16 %v2933
    %v3613 = vunpack.c.l.b16 %v2934
    %v3614 = vunpack.c.h.b16 %v2934
    %v3615 = vunpack.c.l.b16 %v2935
    %v3616 = vunpack.c.h.b16 %v2935
    %v3617 = vunpack.c.l.b16 %v2936
    %v3618 = vunpack.c.h.b16 %v2936
    %v3619 = vunpack.c.l.b16 %v2937
    %v3620 = vunpack.c.h.b16 %v2937
    %v3621 = vunpack.c.l.b16 %v2938
    %v3622 = vunpack.c.h.b16 %v2938
    %v3623 = vunpack.c.l.b16 %v2939
    %v3624 = vunpack.c.h.b16 %v2939
    %v3625 = vunpack.c.l.b16 %v2940
    %v3626 = vunpack.c.h.b16 %v2940
    %v3627 = vunpack.c.l.b16 %v2941
    %v3628 = vunpack.c.h.b16 %v2941
    %v3629 = vunpack.c.l.b16 %v2942
    %v3630 = vunpack.c.h.b16 %v2942
    %v3631 = vunpack.c.l.b16 %v2943
    %v3632 = vunpack.c.h.b16 %v2943
    %v3633 = vunpack.c.l.b16 %v2944
    %v3634 = vunpack.c.h.b16 %v2944
    %v3635 = vunpack.c.l.b16 %v2945
    %v3636 = vunpack.c.h.b16 %v2945
    %v3637 = vunpack.c.l.b16 %v2946
    %v3638 = vunpack.c.h.b16 %v2946
    %v3639 = vunpack.c.l.b16 %v2947
    %v3640 = vunpack.c.h.b16 %v2947
    %v3641 = vunpack.c.l.b16 %v2948
    %v3642 = vunpack.c.h.b16 %v2948
    %v3643 = vunpack.c.l.b16 %v2949
    %v3644 = vunpack.c.h.b16 %v2949
    %v3645 = vunpack.c.l.b16 %v2950
    %v3646 = vunpack.c.h.b16 %v2950
    %v3647 = vunpack.c.l.b16 %v2951
    %v3648 = vunpack.c.h.b16 %v2951
    %v3649 = vunpack.c.l.b16 %v2952
    %v3650 = vunpack.c.h.b16 %v2952
    %v3651 = vunpack.c.l.b16 %v2953
    %v3652 = vunpack.c.h.b16 %v2953
    %v3653 = vunpack.c.l.b16 %v2954
    %v3654 = vunpack.c.h.b16 %v2954
    %v3655 = vunpack.c.l.b16 %v2955
    %v3656 = vunpack.c.h.b16 %v2955
    %v3657 = vunpack.c.l.b16 %v2956
    %v3658 = vunpack.c.h.b16 %v2956
    %v3659 = vunpack.c.l.b16 %v2957
    %v3660 = vunpack.c.h.b16 %v2957
    %v3661 = vunpack.c.l.b16 %v2958
    %v3662 = vunpack.c.h.b16 %v2958
    %v3663 = vunpack.c.l.b16 %v2959
    %v3664 = vunpack.c.h.b16 %v2959
    %v3665 = vunpack.c.l.b16 %v2960
    %v3666 = vunpack.c.h.b16 %v2960
    %v3667 = vunpack.c.l.b16 %v2961
    %v3668 = vunpack.c.h.b16 %v2961
    %v3669 = vunpack.c.l.b16 %v2962
    %v3670 = vunpack.c.h.b16 %v2962
    %v3671 = vunpack.c.l.b16 %v2963
    %v3672 = vunpack.c.h.b16 %v2963
    %v3673 = vunpack.c.l.b16 %v2964
    %v3674 = vunpack.c.h.b16 %v2964
    %v3675 = vunpack.c.l.b16 %v2965
    %v3676 = vunpack.c.h.b16 %v2965
    %v3677 = vunpack.c.l.b16 %v2966
    %v3678 = vunpack.c.h.b16 %v2966
    %v3679 = vunpack.c.l.b16 %v2967
    %v3680 = vunpack.c.h.b16 %v2967
    %v3681 = vunpack.c.l.b16 %v2968
    %v3682 = vunpack.c.h.b16 %v2968
    %v3683 = vunpack.c.l.b16 %v2969
    %v3684 = vunpack.c.h.b16 %v2969
    %v3685 = vunpack.c.l.b16 %v2970
    %v3686 = vunpack.c.h.b16 %v2970
    %v3687 = vunpack.c.l.b16 %v2971
    %v3688 = vunpack.c.h.b16 %v2971
    %v3689 = vunpack.c.l.b16 %v2972
    %v3690 = vunpack.c.h.b16 %v2972
    %v3691 = vunpack.c.l.b16 %v2973
    %v3692 = vunpack.c.h.b16 %v2973
    %v3693 = vunpack.c.l.b16 %v2974
    %v3694 = vunpack.c.h.b16 %v2974
    %v3695 = vunpack.c.l.b16 %v2975
    %v3696 = vunpack.c.h.b16 %v2975
    %v3697 = vunpack.c.l.b16 %v2976
    %v3698 = vunpack.c.h.b16 %v2976
    %v3699 = vunpack.c.l.b16 %v2977
    %v3700 = vunpack.c.h.b16 %v2977
    %v3701 = vunpack.c.l.b16 %v2978
    %v3702 = vunpack.c.h.b16 %v2978
    %v3703 = vunpack.c.l.b16 %v2979
    %v3704 = vunpack.c.h.b16 %v2979
    %v3705 = vunpack.c.l.b16 %v2980
    %v3706 = vunpack.c.h.b16 %v2980
    %v3707 = vunpack.c.l.b16 %v2981
    %v3708 = vunpack.c.h.b16 %v2981
    %v3709 = vunpack.c.l.b16 %v2982
    %v3710 = vunpack.c.h.b16 %v2982
    %v3711 = vunpack.c.l.b16 %v2983
    %v3712 = vunpack.c.h.b16 %v2983
    %v3713 = vunpack.c.l.b16 %v2984
    %v3714 = vunpack.c.h.b16 %v2984
    %v3715 = vunpack.c.l.b16 %v2985
    %v3716 = vunpack.c.h.b16 %v2985
    %v3717 = vunpack.c.l.b16 %v2986
    %v3718 = vunpack.c.h.b16 %v2986
    %v3719 = vunpack.c.l.b16 %v2987
    %v3720 = vunpack.c.h.b16 %v2987
    %v3721 = vunpack.c.l.b16 %v2988
    %v3722 = vunpack.c.h.b16 %v2988
    %v3723 = vunpack.c.l.b16 %v2989
    %v3724 = vunpack.c.h.b16 %v2989
    %v3725 = vunpack.c.l.b16 %v2990
    %v3726 = vunpack.c.h.b16 %v2990
    %v3727 = vunpack.c.l.b16 %v2991
    %v3728 = vunpack.c.h.b16 %v2991
    %v3729 = vunpack.c.l.b16 %v2992
    %v3730 = vunpack.c.h.b16 %v2992
    %v3731 = vunpack.c.l.b16 %v2993
    %v3732 = vunpack.c.h.b16 %v2993
    %v3733 = vunpack.c.l.b16 %v2994
    %v3734 = vunpack.c.h.b16 %v2994
    %v3735 = vunpack.c.l.b16 %v2995
    %v3736 = vunpack.c.h.b16 %v2995
    %v3737 = vunpack.c.l.b16 %v2996
    %v3738 = vunpack.c.h.b16 %v2996
    %v3739 = vunpack.c.l.b16 %v2997
    %v3740 = vunpack.c.h.b16 %v2997
    %v3741 = vunpack.c.l.b16 %v2998
    %v3742 = vunpack.c.h.b16 %v2998
    %v3743 = vunpack.c.l.b16 %v2999
    %v3744 = vunpack.c.h.b16 %v2999
    %v3745 = vunpack.c.l.b16 %v3000
    %v3746 = vunpack.c.h.b16 %v3000
    %v3747 = vunpack.c.l.b16 %v3001
    %v3748 = vunpack.c.h.b16 %v3001
    %v3749 = vunpack.c.l.b16 %v3002
    %v3750 = vunpack.c.h.b16 %v3002
    %v3751 = vunpack.c.l.b16 %v3003
    %v3752 = vunpack.c.h.b16 %v3003
    %v3753 = vunpack.c.l.b16 %v3004
    %v3754 = vunpack.c.h.b16 %v3004
    %v3755 = vunpack.c.l.b16 %v3005
    %v3756 = vunpack.c.h.b16 %v3005
    %v3757 = vunpack.c.l.b16 %v3006
    %v3758 = vunpack.c.h.b16 %v3006
    %v3759 = vunpack.c.l.b16 %v3007
    %v3760 = vunpack.c.h.b16 %v3007
    %v3761 = vunpack.c.l.b16 %v3008
    %v3762 = vunpack.c.h.b16 %v3008
    %v3763 = vunpack.c.l.b16 %v3009
    %v3764 = vunpack.c.h.b16 %v3009
    %v3765 = vunpack.c.l.b16 %v3010
    %v3766 = vunpack.c.h.b16 %v3010
    %v3767 = vunpack.c.l.b16 %v3011
    %v3768 = vunpack.c.h.b16 %v3011
    %v3769 = vunpack.c.l.b16 %v3012
    %v3770 = vunpack.c.h.b16 %v3012
    %v3771 = vunpack.c.l.b16 %v3013
    %v3772 = vunpack.c.h.b16 %v3013
    %v3773 = vunpack.c.l.b16 %v3014
    %v3774 = vunpack.c.h.b16 %v3014
    %v3775 = vunpack.c.l.b16 %v3015
    %v3776 = vunpack.c.h.b16 %v3015
    %v3777 = vunpack.c.l.b16 %v3016
    %v3778 = vunpack.c.h.b16 %v3016
    %v3779 = vunpack.c.l.b16 %v3017
    %v3780 = vunpack.c.h.b16 %v3017
    %v3781 = vunpack.c.l.b16 %v3018
    %v3782 = vunpack.c.h.b16 %v3018
    %v3783 = vunpack.c.l.b16 %v3019
    %v3784 = vunpack.c.h.b16 %v3019
    %v3785 = vunpack.c.l.b16 %v3020
    %v3786 = vunpack.c.h.b16 %v3020
    %v3787 = vunpack.c.l.b16 %v3021
    %v3788 = vunpack.c.h.b16 %v3021
    %v3789 = vunpack.c.l.b16 %v3022
    %v3790 = vunpack.c.h.b16 %v3022
    %v3791 = vunpack.c.l.b16 %v3023
    %v3792 = vunpack.c.h.b16 %v3023
    %v3793 = vunpack.c.l.b16 %v3024
    %v3794 = vunpack.c.h.b16 %v3024
    %v3795 = vunpack.c.l.b16 %v3025
    %v3796 = vunpack.c.h.b16 %v3025
    %v3797 = vunpack.c.l.b16 %v3026
    %v3798 = vunpack.c.h.b16 %v3026
    %v3799 = vunpack.c.l.b16 %v3027
    %v3800 = vunpack.c.h.b16 %v3027
    %v3801 = vunpack.c.l.b16 %v3028
    %v3802 = vunpack.c.h.b16 %v3028
    %v3803 = vunpack.c.l.b16 %v3029
    %v3804 = vunpack.c.h.b16 %v3029
    %v3805 = vunpack.c.l.b16 %v3030
    %v3806 = vunpack.c.h.b16 %v3030
    %v3807 = vunpack.c.l.b16 %v3031
    %v3808 = vunpack.c.h.b16 %v3031
    %v3809 = vunpack.c.l.b16 %v3032
    %v3810 = vunpack.c.h.b16 %v3032
    %v3811 = vunpack.c.l.b16 %v3033
    %v3812 = vunpack.c.h.b16 %v3033
    %v3813 = vunpack.c.l.b16 %v3034
    %v3814 = vunpack.c.h.b16 %v3034
    %v3815 = vunpack.c.l.b16 %v3035
    %v3816 = vunpack.c.h.b16 %v3035
    %v3817 = vunpack.c.l.b16 %v3036
    %v3818 = vunpack.c.h.b16 %v3036
    %v3819 = vunpack.c.l.b16 %v3037
    %v3820 = vunpack.c.h.b16 %v3037
    %v3821 = vunpack.c.l.b16 %v3038
    %v3822 = vunpack.c.h.b16 %v3038
    %v3823 = vunpack.c.l.b16 %v3039
    %v3824 = vunpack.c.h.b16 %v3039
    %v3825 = vunpack.c.l.b16 %v3040
    %v3826 = vunpack.c.h.b16 %v3040
    %v3827 = vunpack.c.l.b16 %v3041
    %v3828 = vunpack.c.h.b16 %v3041
    %v3829 = vunpack.c.l.b16 %v3042
    %v3830 = vunpack.c.h.b16 %v3042
    %v3831 = vunpack.c.l.b16 %v3043
    %v3832 = vunpack.c.h.b16 %v3043
    %v3833 = vunpack.c.l.b16 %v3044
    %v3834 = vunpack.c.h.b16 %v3044
    %v3835 = vunpack.c.l.b16 %v3045
    %v3836 = vunpack.c.h.b16 %v3045
    %v3837 = vunpack.c.l.b16 %v3046
    %v3838 = vunpack.c.h.b16 %v3046
    %v3839 = vunpack.c.l.b16 %v3047
    %v3840 = vunpack.c.h.b16 %v3047
    %v3841 = vunpack.c.l.b16 %v3048
    %v3842 = vunpack.c.h.b16 %v3048
    %v3843 = vunpack.c.l.b16 %v3049
    %v3844 = vunpack.c.h.b16 %v3049
    %v3845 = vunpack.c.l.b16 %v3050
    %v3846 = vunpack.c.h.b16 %v3050
    %v3847 = vunpack.c.l.b16 %v3051
    %v3848 = vunpack.c.h.b16 %v3051
    %v3849 = vunpack.c.l.b16 %v3052
    %v3850 = vunpack.c.h.b16 %v3052
    %v3851 = vunpack.c.l.b16 %v3053
    %v3852 = vunpack.c.h.b16 %v3053
    %v3853 = vunpack.c.l.b16 %v3054
    %v3854 = vunpack.c.h.b16 %v3054
    %v3855 = vunpack.c.l.b16 %v3055
    %v3856 = vunpack.c.h.b16 %v3055
    %v3857 = vunpack.c.l.b16 %v3056
    %v3858 = vunpack.c.h.b16 %v3056
    %v3859 = vunpack.c.l.b16 %v3057
    %v3860 = vunpack.c.h.b16 %v3057
    %v3861 = vunpack.c.l.b16 %v3058
    %v3862 = vunpack.c.h.b16 %v3058
    %v3863 = vunpack.c.l.b16 %v3059
    %v3864 = vunpack.c.h.b16 %v3059
    %v3865 = vunpack.c.l.b16 %v3060
    %v3866 = vunpack.c.h.b16 %v3060
    %v3867 = vunpack.c.l.b16 %v3061
    %v3868 = vunpack.c.h.b16 %v3061
    %v3869 = vunpack.c.l.b16 %v3062
    %v3870 = vunpack.c.h.b16 %v3062
    %v3871 = vunpack.c.l.b16 %v3063
    %v3872 = vunpack.c.h.b16 %v3063
    %v3873 = vunpack.c.l.b16 %v3064
    %v3874 = vunpack.c.h.b16 %v3064
    %v3875 = vunpack.c.l.b16 %v3065
    %v3876 = vunpack.c.h.b16 %v3065
    %v3877 = vunpack.c.l.b16 %v3066
    %v3878 = vunpack.c.h.b16 %v3066
    %v3879 = vunpack.c.l.b16 %v3067
    %v3880 = vunpack.c.h.b16 %v3067
    %v3881 = vunpack.c.l.b16 %v3068
    %v3882 = vunpack.c.h.b16 %v3068
    %v3883 = vunpack.c.l.b16 %v3069
    %v3884 = vunpack.c.h.b16 %v3069
    %v3885 = vunpack.c.l.b16 %v3070
    %v3886 = vunpack.c.h.b16 %v3070
    %v3887 = vunpack.c.l.b16 %v3071
    %v3888 = vunpack.c.h.b16 %v3071
    %v3889 = vunpack.c.l.b16 %v3072
    %v3890 = vunpack.c.h.b16 %v3072
    %v3891 = vunpack.c.l.b16 %v3073
    %v3892 = vunpack.c.h.b16 %v3073
    %v3893 = vunpack.c.l.b16 %v3074
    %v3894 = vunpack.c.h.b16 %v3074
    %v3895 = vunpack.c.l.b16 %v3075
    %v3896 = vunpack.c.h.b16 %v3075
    %v3897 = vunpack.c.l.b16 %v3076
    %v3898 = vunpack.c.h.b16 %v3076
    %v3899 = vunpack.c.l.b16 %v3077
    %v3900 = vunpack.c.h.b16 %v3077
    %v3901 = vunpack.c.l.b16 %v3078
    %v3902 = vunpack.c.h.b16 %v3078
    %v3903 = vunpack.c.l.b16 %v3079
    %v3904 = vunpack.c.h.b16 %v3079
    %v3905 = vunpack.c.l.b16 %v3080
    %v3906 = vunpack.c.h.b16 %v3080
    %v3907 = vunpack.c.l.b16 %v3081
    %v3908 = vunpack.c.h.b16 %v3081
    %v3909 = vunpack.c.l.b16 %v3082
    %v3910 = vunpack.c.h.b16 %v3082
    %v3911 = vunpack.c.l.b16 %v3083
    %v3912 = vunpack.c.h.b16 %v3083
    %v3913 = vunpack.c.l.b16 %v3084
    %v3914 = vunpack.c.h.b16 %v3084
    %v3915 = vunpack.c.l.b16 %v3085
    %v3916 = vunpack.c.h.b16 %v3085
    %v3917 = vunpack.c.l.b16 %v3086
    %v3918 = vunpack.c.h.b16 %v3086
    %v3919 = vunpack.c.l.b16 %v3087
    %v3920 = vunpack.c.h.b16 %v3087
    %v3921 = vunpack.c.l.b16 %v3088
    %v3922 = vunpack.c.h.b16 %v3088
    %v3923 = vunpack.c.l.b16 %v3089
    %v3924 = vunpack.c.h.b16 %v3089
    %v3925 = vunpack.c.l.b16 %v3090
    %v3926 = vunpack.c.h.b16 %v3090
    %v3927 = vunpack.c.l.b16 %v3091
    %v3928 = vunpack.c.h.b16 %v3091
    %v3929 = vunpack.c.l.b16 %v3092
    %v3930 = vunpack.c.h.b16 %v3092
    %v3931 = vunpack.c.l.b16 %v3093
    %v3932 = vunpack.c.h.b16 %v3093
    %v3933 = vunpack.c.l.b16 %v3094
    %v3934 = vunpack.c.h.b16 %v3094
    %v3935 = vunpack.c.l.b16 %v3095
    %v3936 = vunpack.c.h.b16 %v3095
    %v3937 = vunpack.c.l.b16 %v3096
    %v3938 = vunpack.c.h.b16 %v3096
    %v3939 = vunpack.c.l.b16 %v3097
    %v3940 = vunpack.c.h.b16 %v3097
    %v3941 = vunpack.c.l.b16 %v3098
    %v3942 = vunpack.c.h.b16 %v3098
    %v3943 = vunpack.c.l.b16 %v3099
    %v3944 = vunpack.c.h.b16 %v3099
    %v3945 = vunpack.c.l.b16 %v3100
    %v3946 = vunpack.c.h.b16 %v3100
    %v3947 = vunpack.c.l.b16 %v3101
    %v3948 = vunpack.c.h.b16 %v3101
    %v3949 = vunpack.c.l.b16 %v3102
    %v3950 = vunpack.c.h.b16 %v3102
    %v3951 = vunpack.c.l.b16 %v3103
    %v3952 = vunpack.c.h.b16 %v3103
    %v3953 = vunpack.c.l.b16 %v3104
    %v3954 = vunpack.c.h.b16 %v3104
    %v3955 = vunpack.c.l.b16 %v3105
    %v3956 = vunpack.c.h.b16 %v3105
    %v3957 = vunpack.c.l.b16 %v3106
    %v3958 = vunpack.c.h.b16 %v3106
    %v3959 = vunpack.c.l.b16 %v3107
    %v3960 = vunpack.c.h.b16 %v3107
    %v3961 = vunpack.c.l.b16 %v3108
    %v3962 = vunpack.c.h.b16 %v3108
    %v3963 = vunpack.c.l.b16 %v3109
    %v3964 = vunpack.c.h.b16 %v3109
    %v3965 = vunpack.c.l.b16 %v3110
    %v3966 = vunpack.c.h.b16 %v3110
    %v3967 = vunpack.c.l.b16 %v3111
    %v3968 = vunpack.c.h.b16 %v3111
    %v3969 = vunpack.c.l.b16 %v3112
    %v3970 = vunpack.c.h.b16 %v3112
    %v3971 = vunpack.c.l.b16 %v3113
    %v3972 = vunpack.c.h.b16 %v3113
    %v3973 = vunpack.c.l.b16 %v3114
    %v3974 = vunpack.c.h.b16 %v3114
    %v3975 = vunpack.c.l.b16 %v3115
    %v3976 = vunpack.c.h.b16 %v3115
    %v3977 = vunpack.c.l.b16 %v3116
    %v3978 = vunpack.c.h.b16 %v3116
    %v3979 = vunpack.c.l.b16 %v3117
    %v3980 = vunpack.c.h.b16 %v3117
    %v3981 = vunpack.c.l.b16 %v3118
    %v3982 = vunpack.c.h.b16 %v3118
    %v3983 = vunpack.c.l.b16 %v3119
    %v3984 = vunpack.c.h.b16 %v3119
    %v3985 = vunpack.c.l.b16 %v3120
    %v3986 = vunpack.c.h.b16 %v3120
    %v3987 = vunpack.c.l.b16 %v3121
    %v3988 = vunpack.c.h.b16 %v3121
    %v3989 = vunpack.c.l.b16 %v3122
    %v3990 = vunpack.c.h.b16 %v3122
    %v3991 = vunpack.c.l.b16 %v3123
    %v3992 = vunpack.c.h.b16 %v3123
    %v3993 = vunpack.c.l.b16 %v3124
    %v3994 = vunpack.c.h.b16 %v3124
    %v3995 = vunpack.c.l.b16 %v3125
    %v3996 = vunpack.c.h.b16 %v3125
    %v3997 = vunpack.c.l.b16 %v3126
    %v3998 = vunpack.c.h.b16 %v3126
    %v3999 = vunpack.c.l.b16 %v3127
    %v4000 = vunpack.c.h.b16 %v3127
    %v4001 = vunpack.c.l.b16 %v3128
    %v4002 = vunpack.c.h.b16 %v3128
    %v4003 = vunpack.c.l.b16 %v3129
    %v4004 = vunpack.c.h.b16 %v3129
    %v4005 = vunpack.c.l.b16 %v3130
    %v4006 = vunpack.c.h.b16 %v3130
    %v4007 = vunpack.c.l.b16 %v3131
    %v4008 = vunpack.c.h.b16 %v3131
    %v4009 = vunpack.c.l.b16 %v3132
    %v4010 = vunpack.c.h.b16 %v3132
    %v4011 = vunpack.c.l.b16 %v3133
    %v4012 = vunpack.c.h.b16 %v3133
    %v4013 = vunpack.c.l.b16 %v3134
    %v4014 = vunpack.c.h.b16 %v3134
    %v4015 = vunpack.c.l.b16 %v3135
    %v4016 = vunpack.c.h.b16 %v3135
    %v4017 = vunpack.c.l.b16 %v3136
    %v4018 = vunpack.c.h.b16 %v3136
    %v4019 = vunpack.c.l.b16 %v3137
    %v4020 = vunpack.c.h.b16 %v3137
    %v4021 = vunpack.c.l.b16 %v3138
    %v4022 = vunpack.c.h.b16 %v3138
    %v4023 = vunpack.c.l.b16 %v3139
    %v4024 = vunpack.c.h.b16 %v3139
    %v4025 = vunpack.c.l.b16 %v3140
    %v4026 = vunpack.c.h.b16 %v3140
    %v4027 = vunpack.c.l.b16 %v3141
    %v4028 = vunpack.c.h.b16 %v3141
    %v4029 = vunpack.c.l.b16 %v3142
    %v4030 = vunpack.c.h.b16 %v3142
    %v4031 = vunpack.c.l.b16 %v3143
    %v4032 = vunpack.c.h.b16 %v3143
    %v4033 = vunpack.c.l.b16 %v3144
    %v4034 = vunpack.c.h.b16 %v3144
    %v4035 = vunpack.c.l.b16 %v3145
    %v4036 = vunpack.c.h.b16 %v3145
    %v4037 = vunpack.c.l.b16 %v3146
    %v4038 = vunpack.c.h.b16 %v3146
    %v4039 = vunpack.c.l.b16 %v3147
    %v4040 = vunpack.c.h.b16 %v3147
    %v4041 = vunpack.c.l.b16 %v3148
    %v4042 = vunpack.c.h.b16 %v3148
    %v4043 = vunpack.c.l.b16 %v3149
    %v4044 = vunpack.c.h.b16 %v3149
    %v4045 = vunpack.c.l.b16 %v3150
    %v4046 = vunpack.c.h.b16 %v3150
    %v4047 = vpack.c.b16 %v3477, %v3471
    %v4048 = vpack.c.b16 %v3478, %v3472
    %v4049 = vpack.c.b16 %v3479, %v3473
    %v4050 = vpack.c.b16 %v3480, %v3474
    %v4051 = vpack.c.b16 %v3481, %v3475
    %v4052 = vpack.c.b16 %v3482, %v3476
    %v4053 = vpack.c.b16 %v3489, %v3483
    %v4054 = vpack.c.b16 %v3490, %v3484
    %v4055 = vpack.c.b16 %v3491, %v3485
    %v4056 = vpack.c.b16 %v3492, %v3486
    %v4057 = vpack.c.b16 %v3493, %v3487
    %v4058 = vpack.c.b16 %v3494, %v3488
    %v4059 = vpack.c.b16 %v3501, %v3495
    %v4060 = vpack.c.b16 %v3502, %v3496
    %v4061 = vpack.c.b16 %v3503, %v3497
    %v4062 = vpack.c.b16 %v3504, %v3498
    %v4063 = vpack.c.b16 %v3505, %v3499
    %v4064 = vpack.c.b16 %v3506, %v3500
    %v4065 = vpack.c.b16 %v3513, %v3507
    %v4066 = vpack.c.b16 %v3514, %v3508
    %v4067 = vpack.c.b16 %v3515, %v3509
    %v4068 = vpack.c.b16 %v3516, %v3510
    %v4069 = vpack.c.b16 %v3517, %v3511
    %v4070 = vpack.c.b16 %v3518, %v3512
    %v4071 = vpack.c.b16 %v3525, %v3519
    %v4072 = vpack.c.b16 %v3526, %v3520
    %v4073 = vpack.c.b16 %v3527, %v3521
    %v4074 = vpack.c.b16 %v3528, %v3522
    %v4075 = vpack.c.b16 %v3529, %v3523
    %v4076 = vpack.c.b16 %v3530, %v3524
    %v4077 = vpack.c.b16 %v3537, %v3531
    %v4078 = vpack.c.b16 %v3538, %v3532
    %v4079 = vpack.c.b16 %v3539, %v3533
    %v4080 = vpack.c.b16 %v3540, %v3534
    %v4081 = vpack.c.b16 %v3541, %v3535
    %v4082 = vpack.c.b16 %v3542, %v3536
    %v4083 = vpack.c.b16 %v3549, %v3543
    %v4084 = vpack.c.b16 %v3550, %v3544
    %v4085 = vpack.c.b16 %v3551, %v3545
    %v4086 = vpack.c.b16 %v3552, %v3546
    %v4087 = vpack.c.b16 %v3553, %v3547
    %v4088 = vpack.c.b16 %v3554, %v3548
    %v4089 = vpack.c.b16 %v3561, %v3555
    %v4090 = vpack.c.b16 %v3562, %v3556
    %v4091 = vpack.c.b16 %v3563, %v3557
    %v4092 = vpack.c.b16 %v3564, %v3558
    %v4093 = vpack.c.b16 %v3565, %v3559
    %v4094 = vpack.c.b16 %v3566, %v3560
    %v4095 = vpack.c.b16 %v3573, %v3567
    %v4096 = vpack.c.b16 %v3574, %v3568
    %v4097 = vpack.c.b16 %v3575, %v3569
    %v4098 = vpack.c.b16 %v3576, %v3570
    %v4099 = vpack.c.b16 %v3577, %v3571
    %v4100 = vpack.c.b16 %v3578, %v3572
    %v4101 = vpack.c.b16 %v3585, %v3579
    %v4102 = vpack.c.b16 %v3586, %v3580
    %v4103 = vpack.c.b16 %v3587, %v3581
    %v4104 = vpack.c.b16 %v3588, %v3582
    %v4105 = vpack.c.b16 %v3589, %v3583
    %v4106 = vpack.c.b16 %v3590, %v3584
    %v4107 = vpack.c.b16 %v3597, %v3591
    %v4108 = vpack.c.b16 %v3598, %v3592
    %v4109 = vpack.c.b16 %v3599, %v3593
    %v4110 = vpack.c.b16 %v3600, %v3594
    %v4111 = vpack.c.b16 %v3601, %v3595
    %v4112 = vpack.c.b16 %v3602, %v3596
    %v4113 = vpack.c.b16 %v3609, %v3603
    %v4114 = vpack.c.b16 %v3610, %v3604
    %v4115 = vpack.c.b16 %v3611, %v3605
    %v4116 = vpack.c.b16 %v3612, %v3606
    %v4117 = vpack.c.b16 %v3613, %v3607
    %v4118 = vpack.c.b16 %v3614, %v3608
    %v4119 = vpack.c.b16 %v3621, %v3615
    %v4120 = vpack.c.b16 %v3622, %v3616
    %v4121 = vpack.c.b16 %v3623, %v3617
    %v4122 = vpack.c.b16 %v3624, %v3618
    %v4123 = vpack.c.b16 %v3625, %v3619
    %v4124 = vpack.c.b16 %v3626, %v3620
    %v4125 = vpack.c.b16 %v3633, %v3627
    %v4126 = vpack.c.b16 %v3634, %v3628
    %v4127 = vpack.c.b16 %v3635, %v3629
    %v4128 = vpack.c.b16 %v3636, %v3630
    %v4129 = vpack.c.b16 %v3637, %v3631
    %v4130 = vpack.c.b16 %v3638, %v3632
    %v4131 = vpack.c.b16 %v3645, %v3639
    %v4132 = vpack.c.b16 %v3646, %v3640
    %v4133 = vpack.c.b16 %v3647, %v3641
    %v4134 = vpack.c.b16 %v3648, %v3642
    %v4135 = vpack.c.b16 %v3649, %v3643
    %v4136 = vpack.c.b16 %v3650, %v3644
    %v4137 = vpack.c.b16 %v3657, %v3651
    %v4138 = vpack.c.b16 %v3658, %v3652
    %v4139 = vpack.c.b16 %v3659, %v3653
    %v4140 = vpack.c.b16 %v3660, %v3654
    %v4141 = vpack.c.b16 %v3661, %v3655
    %v4142 = vpack.c.b16 %v3662, %v3656
    %v4143 = vpack.c.b16 %v3669, %v3663
    %v4144 = vpack.c.b16 %v3670, %v3664
    %v4145 = vpack.c.b16 %v3671, %v3665
    %v4146 = vpack.c.b16 %v3672, %v3666
    %v4147 = vpack.c.b16 %v3673, %v3667
    %v4148 = vpack.c.b16 %v3674, %v3668
    %v4149 = vpack.c.b16 %v3681, %v3675
    %v4150 = vpack.c.b16 %v3682, %v3676
    %v4151 = vpack.c.b16 %v3683, %v3677
    %v4152 = vpack.c.b16 %v3684, %v3678
    %v4153 = vpack.c.b16 %v3685, %v3679
    %v4154 = vpack.c.b16 %v3686, %v3680
    %v4155 = vpack.c.b16 %v3693, %v3687
    %v4156 = vpack.c.b16 %v3694, %v3688
    %v4157 = vpack.c.b16 %v3695, %v3689
    %v4158 = vpack.c.b16 %v3696, %v3690
    %v4159 = vpack.c.b16 %v3697, %v3691
    %v4160 = vpack.c.b16 %v3698, %v3692
    %v4161 = vpack.c.b16 %v3705, %v3699
    %v4162 = vpack.c.b16 %v3706, %v3700
    %v4163 = vpack.c.b16 %v3707, %v3701
    %v4164 = vpack.c.b16 %v3708, %v3702
    %v4165 = vpack.c.b16 %v3709, %v3703
    %v4166 = vpack.c.b16 %v3710, %v3704
    %v4167 = vpack.c.b16 %v3717, %v3711
    %v4168 = vpack.c.b16 %v3718, %v3712
    %v4169 = vpack.c.b16 %v3719, %v3713
    %v4170 = vpack.c.b16 %v3720, %v3714
    %v4171 = vpack.c.b16 %v3721, %v3715
    %v4172 = vpack.c.b16 %v3722, %v3716
    %v4173 = vpack.c.b16 %v3729, %v3723
    %v4174 = vpack.c.b16 %v3730, %v3724
    %v4175 = vpack.c.b16 %v3731, %v3725
    %v4176 = vpack.c.b16 %v3732, %v3726
    %v4177 = vpack.c.b16 %v3733, %v3727
    %v4178 = vpack.c.b16 %v3734, %v3728
    %v4179 = vpack.c.b16 %v3741, %v3735
    %v4180 = vpack.c.b16 %v3742, %v3736
    %v4181 = vpack.c.b16 %v3743, %v3737
    %v4182 = vpack.c.b16 %v3744, %v3738
    %v4183 = vpack.c.b16 %v3745, %v3739
    %v4184 = vpack.c.b16 %v3746, %v3740
    %v4185 = vpack.c.b16 %v3753, %v3747
    %v4186 = vpack.c.b16 %v3754, %v3748
    %v4187 = vpack.c.b16 %v3755, %v3749
    %v4188 = vpack.c.b16 %v3756, %v3750
    %v4189 = vpack.c.b16 %v3757, %v3751
    %v4190 = vpack.c.b16 %v3758, %v3752
    %v4191 = vpack.c.b16 %v3765, %v3759
    %v4192 = vpack.c.b16 %v3766, %v3760
    %v4193 = vpack.c.b16 %v3767, %v3761
    %v4194 = vpack.c.b16 %v3768, %v3762
    %v4195 = vpack.c.b16 %v3769, %v3763
    %v4196 = vpack.c.b16 %v3770, %v3764
    %v4197 = vpack.c.b16 %v3777, %v3771
    %v4198 = vpack.c.b16 %v3778, %v3772
    %v4199 = vpack.c.b16 %v3779, %v3773
    %v4200 = vpack.c.b16 %v3780, %v3774
    %v4201 = vpack.c.b16 %v3781, %v3775
    %v4202 = vpack.c.b16 %v3782, %v3776
    %v4203 = vpack.c.b16 %v3789, %v3783
    %v4204 = vpack.c.b16 %v3790, %v3784
    %v4205 = vpack.c.b16 %v3791, %v3785
    %v4206 = vpack.c.b16 %v3792, %v3786
    %v4207 = vpack.c.b16 %v3793, %v3787
    %v4208 = vpack.c.b16 %v3794, %v3788
    %v4209 = vpack.c.b16 %v3801, %v3795
    %v4210 = vpack.c.b16 %v3802, %v3796
    %v4211 = vpack.c.b16 %v3803, %v3797
    %v4212 = vpack.c.b16 %v3804, %v3798
    %v4213 = vpack.c.b16 %v3805, %v3799
    %v4214 = vpack.c.b16 %v3806, %v3800
    %v4215 = vpack.c.b16 %v3813, %v3807
    %v4216 = vpack.c.b16 %v3814, %v3808
    %v4217 = vpack.c.b16 %v3815, %v3809
    %v4218 = vpack.c.b16 %v3816, %v3810
    %v4219 = vpack.c.b16 %v3817, %v3811
    %v4220 = vpack.c.b16 %v3818, %v3812
    %v4221 = vpack.c.b16 %v3825, %v3819
    %v4222 = vpack.c.b16 %v3826, %v3820
    %v4223 = vpack.c.b16 %v3827, %v3821
    %v4224 = vpack.c.b16 %v3828, %v3822
    %v4225 = vpack.c.b16 %v3829, %v3823
    %v4226 = vpack.c.b16 %v3830, %v3824
    %v4227 = vpack.c.b16 %v3837, %v3831
    %v4228 = vpack.c.b16 %v3838, %v3832
    %v4229 = vpack.c.b16 %v3839, %v3833
    %v4230 = vpack.c.b16 %v3840, %v3834
    %v4231 = vpack.c.b16 %v3841, %v3835
    %v4232 = vpack.c.b16 %v3842, %v3836
    %v4233 = vpack.c.b16 %v3849, %v3843
    %v4234 = vpack.c.b16 %v3850, %v3844
    %v4235 = vpack.c.b16 %v3851, %v3845
    %v4236 = vpack.c.b16 %v3852, %v3846
    %v4237 = vpack.c.b16 %v3853, %v3847
    %v4238 = vpack.c.b16 %v3854, %v3848
    %v4239 = vpack.c.b16 %v3861, %v3855
    %v4240 = vpack.c.b16 %v3862, %v3856
    %v4241 = vpack.c.b16 %v3863, %v3857
    %v4242 = vpack.c.b16 %v3864, %v3858
    %v4243 = vpack.c.b16 %v3865, %v3859
    %v4244 = vpack.c.b16 %v3866, %v3860
    %v4245 = vpack.c.b16 %v3873, %v3867
    %v4246 = vpack.c.b16 %v3874, %v3868
    %v4247 = vpack.c.b16 %v3875, %v3869
    %v4248 = vpack.c.b16 %v3876, %v3870
    %v4249 = vpack.c.b16 %v3877, %v3871
    %v4250 = vpack.c.b16 %v3878, %v3872
    %v4251 = vpack.c.b16 %v3885, %v3879
    %v4252 = vpack.c.b16 %v3886, %v3880
    %v4253 = vpack.c.b16 %v3887, %v3881
    %v4254 = vpack.c.b16 %v3888, %v3882
    %v4255 = vpack.c.b16 %v3889, %v3883
    %v4256 = vpack.c.b16 %v3890, %v3884
    %v4257 = vpack.c.b16 %v3897, %v3891
    %v4258 = vpack.c.b16 %v3898, %v3892
    %v4259 = vpack.c.b16 %v3899, %v3893
    %v4260 = vpack.c.b16 %v3900, %v3894
    %v4261 = vpack.c.b16 %v3901, %v3895
    %v4262 = vpack.c.b16 %v3902, %v3896
    %v4263 = vpack.c.b16 %v3909, %v3903
    %v4264 = vpack.c.b16 %v3910, %v3904
    %v4265 = vpack.c.b16 %v3911, %v3905
    %v4266 = vpack.c.b16 %v3912, %v3906
    %v4267 = vpack.c.b16 %v3913, %v3907
    %v4268 = vpack.c.b16 %v3914, %v3908
    %v4269 = vpack.c.b16 %v3921, %v3915
    %v4270 = vpack.c.b16 %v3922, %v3916
    %v4271 = vpack.c.b16 %v3923, %v3917
    %v4272 = vpack.c.b16 %v3924, %v3918
    %v4273 = vpack.c.b16 %v3925, %v3919
    %v4274 = vpack.c.b16 %v3926, %v3920
    %v4275 = vpack.c.b16 %v3933, %v3927
    %v4276 = vpack.c.b16 %v3934, %v3928
    %v4277 = vpack.c.b16 %v3935, %v3929
    %v4278 = vpack.c.b16 %v3936, %v3930
    %v4279 = vpack.c.b16 %v3937, %v3931
    %v4280 = vpack.c.b16 %v3938, %v3932
    %v4281 = vpack.c.b16 %v3945, %v3939
    %v4282 = vpack.c.b16 %v3946, %v3940
    %v4283 = vpack.c.b16 %v3947, %v3941
    %v4284 = vpack.c.b16 %v3948, %v3942
    %v4285 = vpack.c.b16 %v3949, %v3943
    %v4286 = vpack.c.b16 %v3950, %v3944
    %v4287 = vpack.c.b16 %v3957, %v3951
    %v4288 = vpack.c.b16 %v3958, %v3952
    %v4289 = vpack.c.b16 %v3959, %v3953
    %v4290 = vpack.c.b16 %v3960, %v3954
    %v4291 = vpack.c.b16 %v3961, %v3955
    %v4292 = vpack.c.b16 %v3962, %v3956
    %v4293 = vpack.c.b16 %v3969, %v3963
    %v4294 = vpack.c.b16 %v3970, %v3964
    %v4295 = vpack.c.b16 %v3971, %v3965
    %v4296 = vpack.c.b16 %v3972, %v3966
    %v4297 = vpack.c.b16 %v3973, %v3967
    %v4298 = vpack.c.b16 %v3974, %v3968
    %v4299 = vpack.c.b16 %v3981, %v3975
    %v4300 = vpack.c.b16 %v3982, %v3976
    %v4301 = vpack.c.b16 %v3983, %v3977
    %v4302 = vpack.c.b16 %v3984, %v3978
    %v4303 = vpack.c.b16 %v3985, %v3979
    %v4304 = vpack.c.b16 %v3986, %v3980
    %v4305 = vpack.c.b16 %v3993, %v3987
    %v4306 = vpack.c.b16 %v3994, %v3988
    %v4307 = vpack.c.b16 %v3995, %v3989
    %v4308 = vpack.c.b16 %v3996, %v3990
    %v4309 = vpack.c.b16 %v3997, %v3991
    %v4310 = vpack.c.b16 %v3998, %v3992
    %v4311 = vpack.c.b16 %v4005, %v3999
    %v4312 = vpack.c.b16 %v4006, %v4000
    %v4313 = vpack.c.b16 %v4007, %v4001
    %v4314 = vpack.c.b16 %v4008, %v4002
    %v4315 = vpack.c.b16 %v4009, %v4003
    %v4316 = vpack.c.b16 %v4010, %v4004
    %v4317 = vpack.c.b16 %v4017, %v4011
    %v4318 = vpack.c.b16 %v4018, %v4012
    %v4319 = vpack.c.b16 %v4019, %v4013
    %v4320 = vpack.c.b16 %v4020, %v4014
    %v4321 = vpack.c.b16 %v4021, %v4015
    %v4322 = vpack.c.b16 %v4022, %v4016
    %v4323 = vpack.c.b16 %v4029, %v4023
    %v4324 = vpack.c.b16 %v4030, %v4024
    %v4325 = vpack.c.b16 %v4031, %v4025
    %v4326 = vpack.c.b16 %v4032, %v4026
    %v4327 = vpack.c.b16 %v4033, %v4027
    %v4328 = vpack.c.b16 %v4034, %v4028
    %v4329 = vpack.c.b16 %v4041, %v4035
    %v4330 = vpack.c.b16 %v4042, %v4036
    %v4331 = vpack.c.b16 %v4043, %v4037
    %v4332 = vpack.c.b16 %v4044, %v4038
    %v4333 = vpack.c.b16 %v4045, %v4039
    %v4334 = vpack.c.b16 %v4046, %v4040
    %4623 = vmatprep.subr.bf16.mxu0 %v4090
    %4624 = vmatpush1.bf16.msra.mxu0 %v4089
    %4625 = vmatprep.subr.bf16.mxu0 %v4084
    %4626 = vmatpush1.bf16.msra.mxu0 %v4083
    %4627 = vmatprep.subr.bf16.mxu0 %v4078
    %4628 = vmatpush1.bf16.msra.mxu0 %v4077
    %4629 = vmatprep.subr.bf16.mxu0 %v4072
    %4630 = vmatpush1.bf16.msra.mxu0 %v4071
    %4631 = vmatprep.subr.bf16.mxu0 %v4066
    %4632 = vmatpush1.bf16.msra.mxu0 %v4065
    %4633 = vmatprep.subr.bf16.mxu0 %v4060
    %4634 = vmatpush1.bf16.msra.mxu0 %v4059
    %4635 = vmatprep.subr.bf16.mxu0 %v4054
    %4636 = vmatpush1.bf16.msra.mxu0 %v4053
    %4637 = vmatprep.subr.bf16.mxu0 %v4048
    %4638 = vmatpush1.bf16.msra.mxu0 %v4047
    %4639 = vmatprep.subr.bf16.mxu0 %v4138
    %4640 = vmatpush2.bf16.msra.mxu0 %v4137
    %4641 = vmatprep.subr.bf16.mxu0 %v4132
    %4642 = vmatpush2.bf16.msra.mxu0 %v4131
    %4643 = vmatprep.subr.bf16.mxu0 %v4126
    %4644 = vmatpush2.bf16.msra.mxu0 %v4125
    %4645 = vmatprep.subr.bf16.mxu0 %v4120
    %4646 = vmatpush2.bf16.msra.mxu0 %v4119
    %4647 = vmatprep.subr.bf16.mxu0 %v4114
    %4648 = vmatpush2.bf16.msra.mxu0 %v4113
    %4649 = vmatprep.subr.bf16.mxu0 %v4108
    %4650 = vmatpush2.bf16.msra.mxu0 %v4107
    %4651 = vmatprep.subr.bf16.mxu0 %v4102
    %4652 = vmatpush2.bf16.msra.mxu0 %v4101
    %4653 = vmatprep.subr.bf16.mxu0 %v4096
    %4654 = vmatpush2.bf16.msra.mxu0 %v4095
    %4655 = vmatprep.mubr.bf16.mxu0 %v2852
    %4656 = vmatmul.mubr.bf16.gmra.mxu0 %v2851
    %v4657 = vpop.f32.mrf.mxu0
    %v4658 = vadd.f32 %v3156, %v4657
    %v4659 = vpop.f32.mrf.mxu0
    %v4660 = vadd.f32 %v3160, %v4659
    %v4661 = vpop.f32.mrf.mxu0
    %v4662 = vadd.f32 %v3156, %v4661
    %v4663 = vpop.f32.mrf.mxu0
    %v4664 = vadd.f32 %v3160, %v4663
    %4665 = vmatprep.mubr.bf16.mxu0 %v2858
    %4666 = vmatmul.mubr.bf16.gmra.mxu0 %v2857
    %v4667 = vpop.f32.mrf.mxu0
    %v4668 = vadd.f32 %v3156, %v4667
    %v4669 = vpop.f32.mrf.mxu0
    %v4670 = vadd.f32 %v3160, %v4669
    %v4671 = vpop.f32.mrf.mxu0
    %v4672 = vpop.f32.mrf.mxu0
    %4673 = vdwg.mxu0
    %4674 = vmatprep.subr.bf16.mxu0 %v4186
    %4675 = vmatpush1.bf16.msra.mxu0 %v4185
    %4676 = vmatprep.subr.bf16.mxu0 %v4180
    %4677 = vmatpush1.bf16.msra.mxu0 %v4179
    %4678 = vmatprep.subr.bf16.mxu0 %v4174
    %4679 = vmatpush1.bf16.msra.mxu0 %v4173
    %4680 = vmatprep.subr.bf16.mxu0 %v4168
    %4681 = vmatpush1.bf16.msra.mxu0 %v4167
    %4682 = vmatprep.subr.bf16.mxu0 %v4162
    %4683 = vmatpush1.bf16.msra.mxu0 %v4161
    %4684 = vmatprep.subr.bf16.mxu0 %v4156
    %4685 = vmatpush1.bf16.msra.mxu0 %v4155
    %4686 = vmatprep.subr.bf16.mxu0 %v4150
    %4687 = vmatpush1.bf16.msra.mxu0 %v4149
    %4688 = vmatprep.subr.bf16.mxu0 %v4144
    %4689 = vmatpush1.bf16.msra.mxu0 %v4143
    %4690 = vmatprep.subr.bf16.mxu0 %v4234
    %4691 = vmatpush2.bf16.msra.mxu0 %v4233
    %4692 = vmatprep.subr.bf16.mxu0 %v4228
    %4693 = vmatpush2.bf16.msra.mxu0 %v4227
    %4694 = vmatprep.subr.bf16.mxu0 %v4222
    %4695 = vmatpush2.bf16.msra.mxu0 %v4221
    %4696 = vmatprep.subr.bf16.mxu0 %v4216
    %4697 = vmatpush2.bf16.msra.mxu0 %v4215
    %4698 = vmatprep.subr.bf16.mxu0 %v4210
    %4699 = vmatpush2.bf16.msra.mxu0 %v4209
    %4700 = vmatprep.subr.bf16.mxu0 %v4204
    %4701 = vmatpush2.bf16.msra.mxu0 %v4203
    %4702 = vmatprep.subr.bf16.mxu0 %v4198
    %4703 = vmatpush2.bf16.msra.mxu0 %v4197
    %4704 = vmatprep.subr.bf16.mxu0 %v4192
    %4705 = vmatpush2.bf16.msra.mxu0 %v4191
    %4706 = vmatprep.mubr.bf16.mxu0 %v2854
    %4707 = vmatmul.mubr.bf16.gmra.mxu0 %v2853
    %v4708 = vpop.f32.mrf.mxu0
    %v4709 = vadd.f32 %v4658, %v4708
    %v4710 = vpop.f32.mrf.mxu0
    %v4711 = vadd.f32 %v4660, %v4710
    %v4712 = vpop.f32.mrf.mxu0
    %v4713 = vadd.f32 %v4662, %v4712
    %v4714 = vpop.f32.mrf.mxu0
    %v4715 = vadd.f32 %v4664, %v4714
    %4716 = vmatprep.mubr.bf16.mxu0 %v2860
    %4717 = vmatmul.mubr.bf16.gmra.mxu0 %v2859
    %v4718 = vpop.f32.mrf.mxu0
    %v4719 = vadd.f32 %v4668, %v4718
    %v4720 = vpop.f32.mrf.mxu0
    %v4721 = vadd.f32 %v4670, %v4720
    %v4722 = vpop.f32.mrf.mxu0
    %v4723 = vpop.f32.mrf.mxu0
    %4724 = vdwg.mxu0
    %4725 = vmatprep.subr.bf16.mxu0 %v4282
    %4726 = vmatpush1.bf16.msra.mxu0 %v4281
    %4727 = vmatprep.subr.bf16.mxu0 %v4276
    %4728 = vmatpush1.bf16.msra.mxu0 %v4275
    %4729 = vmatprep.subr.bf16.mxu0 %v4270
    %4730 = vmatpush1.bf16.msra.mxu0 %v4269
    %4731 = vmatprep.subr.bf16.mxu0 %v4264
    %4732 = vmatpush1.bf16.msra.mxu0 %v4263
    %4733 = vmatprep.subr.bf16.mxu0 %v4258
    %4734 = vmatpush1.bf16.msra.mxu0 %v4257
    %4735 = vmatprep.subr.bf16.mxu0 %v4252
    %4736 = vmatpush1.bf16.msra.mxu0 %v4251
    %4737 = vmatprep.subr.bf16.mxu0 %v4246
    %4738 = vmatpush1.bf16.msra.mxu0 %v4245
    %4739 = vmatprep.subr.bf16.mxu0 %v4240
    %4740 = vmatpush1.bf16.msra.mxu0 %v4239
    %4741 = vmatprep.subr.bf16.mxu0 %v4330
    %4742 = vmatpush2.bf16.msra.mxu0 %v4329
    %4743 = vmatprep.subr.bf16.mxu0 %v4324
    %4744 = vmatpush2.bf16.msra.mxu0 %v4323
    %4745 = vmatprep.subr.bf16.mxu0 %v4318
    %4746 = vmatpush2.bf16.msra.mxu0 %v4317
    %4747 = vmatprep.subr.bf16.mxu0 %v4312
    %4748 = vmatpush2.bf16.msra.mxu0 %v4311
    %4749 = vmatprep.subr.bf16.mxu0 %v4306
    %4750 = vmatpush2.bf16.msra.mxu0 %v4305
    %4751 = vmatprep.subr.bf16.mxu0 %v4300
    %4752 = vmatpush2.bf16.msra.mxu0 %v4299
    %4753 = vmatprep.subr.bf16.mxu0 %v4294
    %4754 = vmatpush2.bf16.msra.mxu0 %v4293
    %4755 = vmatprep.subr.bf16.mxu0 %v4288
    %4756 = vmatpush2.bf16.msra.mxu0 %v4287
    %4757 = vmatprep.mubr.bf16.mxu0 %v2856
    %4758 = vmatmul.mubr.bf16.gmra.mxu0 %v2855
    %v4759 = vpop.f32.mrf.mxu0
    %v4760 = vadd.f32 %v4709, %v4759
    %v4761 = vpop.f32.mrf.mxu0
    %v4762 = vadd.f32 %v4711, %v4761
    %v4763 = vpop.f32.mrf.mxu0
    %v4764 = vadd.f32 %v4713, %v4763
    %v4765 = vpop.f32.mrf.mxu0
    %v4766 = vadd.f32 %v4715, %v4765
    %4767 = vmatprep.mubr.bf16.mxu0 %v2862
    %4768 = vmatmul.mubr.bf16.gmra.mxu0 %v2861
    %v4769 = vpop.f32.mrf.mxu0
    %v4770 = vadd.f32 %v4719, %v4769
    %v4771 = vpop.f32.mrf.mxu0
    %v4772 = vadd.f32 %v4721, %v4771
    %v4773 = vpop.f32.mrf.mxu0
    %v4774 = vpop.f32.mrf.mxu0
    %4775 = vdwg.mxu0
    %4776 = vmatprep.subr.bf16.mxu0 %v4092
    %4777 = vmatpush1.bf16.msra.mxu0 %v4091
    %4778 = vmatprep.subr.bf16.mxu0 %v4086
    %4779 = vmatpush1.bf16.msra.mxu0 %v4085
    %4780 = vmatprep.subr.bf16.mxu0 %v4080
    %4781 = vmatpush1.bf16.msra.mxu0 %v4079
    %4782 = vmatprep.subr.bf16.mxu0 %v4074
    %4783 = vmatpush1.bf16.msra.mxu0 %v4073
    %4784 = vmatprep.subr.bf16.mxu0 %v4068
    %4785 = vmatpush1.bf16.msra.mxu0 %v4067
    %4786 = vmatprep.subr.bf16.mxu0 %v4062
    %4787 = vmatpush1.bf16.msra.mxu0 %v4061
    %4788 = vmatprep.subr.bf16.mxu0 %v4056
    %4789 = vmatpush1.bf16.msra.mxu0 %v4055
    %4790 = vmatprep.subr.bf16.mxu0 %v4050
    %4791 = vmatpush1.bf16.msra.mxu0 %v4049
    %4792 = vmatprep.subr.bf16.mxu0 %v4140
    %4793 = vmatpush2.bf16.msra.mxu0 %v4139
    %4794 = vmatprep.subr.bf16.mxu0 %v4134
    %4795 = vmatpush2.bf16.msra.mxu0 %v4133
    %4796 = vmatprep.subr.bf16.mxu0 %v4128
    %4797 = vmatpush2.bf16.msra.mxu0 %v4127
    %4798 = vmatprep.subr.bf16.mxu0 %v4122
    %4799 = vmatpush2.bf16.msra.mxu0 %v4121
    %4800 = vmatprep.subr.bf16.mxu0 %v4116
    %4801 = vmatpush2.bf16.msra.mxu0 %v4115
    %4802 = vmatprep.subr.bf16.mxu0 %v4110
    %4803 = vmatpush2.bf16.msra.mxu0 %v4109
    %4804 = vmatprep.subr.bf16.mxu0 %v4104
    %4805 = vmatpush2.bf16.msra.mxu0 %v4103
    %4806 = vmatprep.subr.bf16.mxu0 %v4098
    %4807 = vmatpush2.bf16.msra.mxu0 %v4097
    %4808 = vmatprep.mubr.bf16.mxu0 %v2852
    %4809 = vmatmul.mubr.bf16.gmra.mxu0 %v2851
    %v4810 = vpop.f32.mrf.mxu0
    %v4811 = vadd.f32 %v3164, %v4810
    %v4812 = vpop.f32.mrf.mxu0
    %v4813 = vadd.f32 %v3168, %v4812
    %v4814 = vpop.f32.mrf.mxu0
    %v4815 = vadd.f32 %v3164, %v4814
    %v4816 = vpop.f32.mrf.mxu0
    %v4817 = vadd.f32 %v3168, %v4816
    %4818 = vmatprep.mubr.bf16.mxu0 %v2858
    %4819 = vmatmul.mubr.bf16.gmra.mxu0 %v2857
    %v4820 = vpop.f32.mrf.mxu0
    %v4821 = vadd.f32 %v3164, %v4820
    %v4822 = vpop.f32.mrf.mxu0
    %v4823 = vadd.f32 %v3168, %v4822
    %v4824 = vpop.f32.mrf.mxu0
    %v4825 = vpop.f32.mrf.mxu0
    %4826 = vdwg.mxu0
    %4827 = vmatprep.subr.bf16.mxu0 %v4188
    %4828 = vmatpush1.bf16.msra.mxu0 %v4187
    %4829 = vmatprep.subr.bf16.mxu0 %v4182
    %4830 = vmatpush1.bf16.msra.mxu0 %v4181
    %4831 = vmatprep.subr.bf16.mxu0 %v4176
    %4832 = vmatpush1.bf16.msra.mxu0 %v4175
    %4833 = vmatprep.subr.bf16.mxu0 %v4170
    %4834 = vmatpush1.bf16.msra.mxu0 %v4169
    %4835 = vmatprep.subr.bf16.mxu0 %v4164
    %4836 = vmatpush1.bf16.msra.mxu0 %v4163
    %4837 = vmatprep.subr.bf16.mxu0 %v4158
    %4838 = vmatpush1.bf16.msra.mxu0 %v4157
    %4839 = vmatprep.subr.bf16.mxu0 %v4152
    %4840 = vmatpush1.bf16.msra.mxu0 %v4151
    %4841 = vmatprep.subr.bf16.mxu0 %v4146
    %4842 = vmatpush1.bf16.msra.mxu0 %v4145
    %4843 = vmatprep.subr.bf16.mxu0 %v4236
    %4844 = vmatpush2.bf16.msra.mxu0 %v4235
    %4845 = vmatprep.subr.bf16.mxu0 %v4230
    %4846 = vmatpush2.bf16.msra.mxu0 %v4229
    %4847 = vmatprep.subr.bf16.mxu0 %v4224
    %4848 = vmatpush2.bf16.msra.mxu0 %v4223
    %4849 = vmatprep.subr.bf16.mxu0 %v4218
    %4850 = vmatpush2.bf16.msra.mxu0 %v4217
    %4851 = vmatprep.subr.bf16.mxu0 %v4212
    %4852 = vmatpush2.bf16.msra.mxu0 %v4211
    %4853 = vmatprep.subr.bf16.mxu0 %v4206
    %4854 = vmatpush2.bf16.msra.mxu0 %v4205
    %4855 = vmatprep.subr.bf16.mxu0 %v4200
    %4856 = vmatpush2.bf16.msra.mxu0 %v4199
    %4857 = vmatprep.subr.bf16.mxu0 %v4194
    %4858 = vmatpush2.bf16.msra.mxu0 %v4193
    %4859 = vmatprep.mubr.bf16.mxu0 %v2854
    %4860 = vmatmul.mubr.bf16.gmra.mxu0 %v2853
    %v4861 = vpop.f32.mrf.mxu0
    %v4862 = vadd.f32 %v4811, %v4861
    %v4863 = vpop.f32.mrf.mxu0
    %v4864 = vadd.f32 %v4813, %v4863
    %v4865 = vpop.f32.mrf.mxu0
    %v4866 = vadd.f32 %v4815, %v4865
    %v4867 = vpop.f32.mrf.mxu0
    %v4868 = vadd.f32 %v4817, %v4867
    %4869 = vmatprep.mubr.bf16.mxu0 %v2860
    %4870 = vmatmul.mubr.bf16.gmra.mxu0 %v2859
    %v4871 = vpop.f32.mrf.mxu0
    %v4872 = vadd.f32 %v4821, %v4871
    %v4873 = vpop.f32.mrf.mxu0
    %v4874 = vadd.f32 %v4823, %v4873
    %v4875 = vpop.f32.mrf.mxu0
    %v4876 = vpop.f32.mrf.mxu0
    %4877 = vdwg.mxu0
    %4878 = vmatprep.subr.bf16.mxu0 %v4284
    %4879 = vmatpush1.bf16.msra.mxu0 %v4283
    %4880 = vmatprep.subr.bf16.mxu0 %v4278
    %4881 = vmatpush1.bf16.msra.mxu0 %v4277
    %4882 = vmatprep.subr.bf16.mxu0 %v4272
    %4883 = vmatpush1.bf16.msra.mxu0 %v4271
    %4884 = vmatprep.subr.bf16.mxu0 %v4266
    %4885 = vmatpush1.bf16.msra.mxu0 %v4265
    %4886 = vmatprep.subr.bf16.mxu0 %v4260
    %4887 = vmatpush1.bf16.msra.mxu0 %v4259
    %4888 = vmatprep.subr.bf16.mxu0 %v4254
    %4889 = vmatpush1.bf16.msra.mxu0 %v4253
    %4890 = vmatprep.subr.bf16.mxu0 %v4248
    %4891 = vmatpush1.bf16.msra.mxu0 %v4247
    %4892 = vmatprep.subr.bf16.mxu0 %v4242
    %4893 = vmatpush1.bf16.msra.mxu0 %v4241
    %4894 = vmatprep.subr.bf16.mxu0 %v4332
    %4895 = vmatpush2.bf16.msra.mxu0 %v4331
    %4896 = vmatprep.subr.bf16.mxu0 %v4326
    %4897 = vmatpush2.bf16.msra.mxu0 %v4325
    %4898 = vmatprep.subr.bf16.mxu0 %v4320
    %4899 = vmatpush2.bf16.msra.mxu0 %v4319
    %4900 = vmatprep.subr.bf16.mxu0 %v4314
    %4901 = vmatpush2.bf16.msra.mxu0 %v4313
    %4902 = vmatprep.subr.bf16.mxu0 %v4308
    %4903 = vmatpush2.bf16.msra.mxu0 %v4307
    %4904 = vmatprep.subr.bf16.mxu0 %v4302
    %4905 = vmatpush2.bf16.msra.mxu0 %v4301
    %4906 = vmatprep.subr.bf16.mxu0 %v4296
    %4907 = vmatpush2.bf16.msra.mxu0 %v4295
    %4908 = vmatprep.subr.bf16.mxu0 %v4290
    %4909 = vmatpush2.bf16.msra.mxu0 %v4289
    %4910 = vmatprep.mubr.bf16.mxu0 %v2856
    %4911 = vmatmul.mubr.bf16.gmra.mxu0 %v2855
    %v4912 = vpop.f32.mrf.mxu0
    %v4913 = vadd.f32 %v4862, %v4912
    %v4914 = vpop.f32.mrf.mxu0
    %v4915 = vadd.f32 %v4864, %v4914
    %v4916 = vpop.f32.mrf.mxu0
    %v4917 = vadd.f32 %v4866, %v4916
    %v4918 = vpop.f32.mrf.mxu0
    %v4919 = vadd.f32 %v4868, %v4918
    %4920 = vmatprep.mubr.bf16.mxu0 %v2862
    %4921 = vmatmul.mubr.bf16.gmra.mxu0 %v2861
    %v4922 = vpop.f32.mrf.mxu0
    %v4923 = vadd.f32 %v4872, %v4922
    %v4924 = vpop.f32.mrf.mxu0
    %v4925 = vadd.f32 %v4874, %v4924
    %v4926 = vpop.f32.mrf.mxu0
    %v4927 = vpop.f32.mrf.mxu0
    %4928 = vdwg.mxu0
    %4929 = vmatprep.subr.bf16.mxu0 %v4094
    %4930 = vmatpush1.bf16.msra.mxu0 %v4093
    %4931 = vmatprep.subr.bf16.mxu0 %v4088
    %4932 = vmatpush1.bf16.msra.mxu0 %v4087
    %4933 = vmatprep.subr.bf16.mxu0 %v4082
    %4934 = vmatpush1.bf16.msra.mxu0 %v4081
    %4935 = vmatprep.subr.bf16.mxu0 %v4076
    %4936 = vmatpush1.bf16.msra.mxu0 %v4075
    %4937 = vmatprep.subr.bf16.mxu0 %v4070
    %4938 = vmatpush1.bf16.msra.mxu0 %v4069
    %4939 = vmatprep.subr.bf16.mxu0 %v4064
    %4940 = vmatpush1.bf16.msra.mxu0 %v4063
    %4941 = vmatprep.subr.bf16.mxu0 %v4058
    %4942 = vmatpush1.bf16.msra.mxu0 %v4057
    %4943 = vmatprep.subr.bf16.mxu0 %v4052
    %4944 = vmatpush1.bf16.msra.mxu0 %v4051
    %4945 = vmatprep.subr.bf16.mxu0 %v4142
    %4946 = vmatpush2.bf16.msra.mxu0 %v4141
    %4947 = vmatprep.subr.bf16.mxu0 %v4136
    %4948 = vmatpush2.bf16.msra.mxu0 %v4135
    %4949 = vmatprep.subr.bf16.mxu0 %v4130
    %4950 = vmatpush2.bf16.msra.mxu0 %v4129
    %4951 = vmatprep.subr.bf16.mxu0 %v4124
    %4952 = vmatpush2.bf16.msra.mxu0 %v4123
    %4953 = vmatprep.subr.bf16.mxu0 %v4118
    %4954 = vmatpush2.bf16.msra.mxu0 %v4117
    %4955 = vmatprep.subr.bf16.mxu0 %v4112
    %4956 = vmatpush2.bf16.msra.mxu0 %v4111
    %4957 = vmatprep.subr.bf16.mxu0 %v4106
    %4958 = vmatpush2.bf16.msra.mxu0 %v4105
    %4959 = vmatprep.subr.bf16.mxu0 %v4100
    %4960 = vmatpush2.bf16.msra.mxu0 %v4099
    %4961 = vmatprep.mubr.bf16.mxu0 %v2852
    %4962 = vmatmul.mubr.bf16.gmra.mxu0 %v2851
    %v4963 = vpop.f32.mrf.mxu0
    %v4964 = vadd.f32 %v3172, %v4963
    %v4965 = vpop.f32.mrf.mxu0
    %v4966 = vadd.f32 %v3176, %v4965
    %v4967 = vpop.f32.mrf.mxu0
    %v4968 = vadd.f32 %v3172, %v4967
    %v4969 = vpop.f32.mrf.mxu0
    %v4970 = vadd.f32 %v3176, %v4969
    %4971 = vmatprep.mubr.bf16.mxu0 %v2858
    %4972 = vmatmul.mubr.bf16.gmra.mxu0 %v2857
    %v4973 = vpop.f32.mrf.mxu0
    %v4974 = vadd.f32 %v3172, %v4973
    %v4975 = vpop.f32.mrf.mxu0
    %v4976 = vadd.f32 %v3176, %v4975
    %v4977 = vpop.f32.mrf.mxu0
    %v4978 = vpop.f32.mrf.mxu0
    %4979 = vdwg.mxu0
    %4980 = vmatprep.subr.bf16.mxu0 %v4190
    %4981 = vmatpush1.bf16.msra.mxu0 %v4189
    %4982 = vmatprep.subr.bf16.mxu0 %v4184
    %4983 = vmatpush1.bf16.msra.mxu0 %v4183
    %4984 = vmatprep.subr.bf16.mxu0 %v4178
    %4985 = vmatpush1.bf16.msra.mxu0 %v4177
    %4986 = vmatprep.subr.bf16.mxu0 %v4172
    %4987 = vmatpush1.bf16.msra.mxu0 %v4171
    %4988 = vmatprep.subr.bf16.mxu0 %v4166
    %4989 = vmatpush1.bf16.msra.mxu0 %v4165
    %4990 = vmatprep.subr.bf16.mxu0 %v4160
    %4991 = vmatpush1.bf16.msra.mxu0 %v4159
    %4992 = vmatprep.subr.bf16.mxu0 %v4154
    %4993 = vmatpush1.bf16.msra.mxu0 %v4153
    %4994 = vmatprep.subr.bf16.mxu0 %v4148
    %4995 = vmatpush1.bf16.msra.mxu0 %v4147
    %4996 = vmatprep.subr.bf16.mxu0 %v4238
    %4997 = vmatpush2.bf16.msra.mxu0 %v4237
    %4998 = vmatprep.subr.bf16.mxu0 %v4232
    %4999 = vmatpush2.bf16.msra.mxu0 %v4231
    %5000 = vmatprep.subr.bf16.mxu0 %v4226
    %5001 = vmatpush2.bf16.msra.mxu0 %v4225
    %5002 = vmatprep.subr.bf16.mxu0 %v4220
    %5003 = vmatpush2.bf16.msra.mxu0 %v4219
    %5004 = vmatprep.subr.bf16.mxu0 %v4214
    %5005 = vmatpush2.bf16.msra.mxu0 %v4213
    %5006 = vmatprep.subr.bf16.mxu0 %v4208
    %5007 = vmatpush2.bf16.msra.mxu0 %v4207
    %5008 = vmatprep.subr.bf16.mxu0 %v4202
    %5009 = vmatpush2.bf16.msra.mxu0 %v4201
    %5010 = vmatprep.subr.bf16.mxu0 %v4196
    %5011 = vmatpush2.bf16.msra.mxu0 %v4195
    %5012 = vmatprep.mubr.bf16.mxu0 %v2854
    %5013 = vmatmul.mubr.bf16.gmra.mxu0 %v2853
    %v5014 = vpop.f32.mrf.mxu0
    %v5015 = vadd.f32 %v4964, %v5014
    %v5016 = vpop.f32.mrf.mxu0
    %v5017 = vadd.f32 %v4966, %v5016
    %v5018 = vpop.f32.mrf.mxu0
    %v5019 = vadd.f32 %v4968, %v5018
    %v5020 = vpop.f32.mrf.mxu0
    %v5021 = vadd.f32 %v4970, %v5020
    %5022 = vmatprep.mubr.bf16.mxu0 %v2860
    %5023 = vmatmul.mubr.bf16.gmra.mxu0 %v2859
    %v5024 = vpop.f32.mrf.mxu0
    %v5025 = vadd.f32 %v4974, %v5024
    %v5026 = vpop.f32.mrf.mxu0
    %v5027 = vadd.f32 %v4976, %v5026
    %v5028 = vpop.f32.mrf.mxu0
    %v5029 = vpop.f32.mrf.mxu0
    %5030 = vdwg.mxu0
    %5031 = vmatprep.subr.bf16.mxu0 %v4286
    %5032 = vmatpush1.bf16.msra.mxu0 %v4285
    %5033 = vmatprep.subr.bf16.mxu0 %v4280
    %5034 = vmatpush1.bf16.msra.mxu0 %v4279
    %5035 = vmatprep.subr.bf16.mxu0 %v4274
    %5036 = vmatpush1.bf16.msra.mxu0 %v4273
    %5037 = vmatprep.subr.bf16.mxu0 %v4268
    %5038 = vmatpush1.bf16.msra.mxu0 %v4267
    %5039 = vmatprep.subr.bf16.mxu0 %v4262
    %5040 = vmatpush1.bf16.msra.mxu0 %v4261
    %5041 = vmatprep.subr.bf16.mxu0 %v4256
    %5042 = vmatpush1.bf16.msra.mxu0 %v4255
    %5043 = vmatprep.subr.bf16.mxu0 %v4250
    %5044 = vmatpush1.bf16.msra.mxu0 %v4249
    %5045 = vmatprep.subr.bf16.mxu0 %v4244
    %5046 = vmatpush1.bf16.msra.mxu0 %v4243
    %5047 = vmatprep.subr.bf16.mxu0 %v4334
    %5048 = vmatpush2.bf16.msra.mxu0 %v4333
    %5049 = vmatprep.subr.bf16.mxu0 %v4328
    %5050 = vmatpush2.bf16.msra.mxu0 %v4327
    %5051 = vmatprep.subr.bf16.mxu0 %v4322
    %5052 = vmatpush2.bf16.msra.mxu0 %v4321
    %5053 = vmatprep.subr.bf16.mxu0 %v4316
    %5054 = vmatpush2.bf16.msra.mxu0 %v4315
    %5055 = vmatprep.subr.bf16.mxu0 %v4310
    %5056 = vmatpush2.bf16.msra.mxu0 %v4309
    %5057 = vmatprep.subr.bf16.mxu0 %v4304
    %5058 = vmatpush2.bf16.msra.mxu0 %v4303
    %5059 = vmatprep.subr.bf16.mxu0 %v4298
    %5060 = vmatpush2.bf16.msra.mxu0 %v4297
    %5061 = vmatprep.subr.bf16.mxu0 %v4292
    %5062 = vmatpush2.bf16.msra.mxu0 %v4291
    %5063 = vmatprep.mubr.bf16.mxu0 %v2856
    %5064 = vmatmul.mubr.bf16.gmra.mxu0 %v2855
    %v5065 = vpop.f32.mrf.mxu0
    %v5066 = vadd.f32 %v5015, %v5065
    %v5067 = vpop.f32.mrf.mxu0
    %v5068 = vadd.f32 %v5017, %v5067
    %v5069 = vpop.f32.mrf.mxu0
    %v5070 = vadd.f32 %v5019, %v5069
    %v5071 = vpop.f32.mrf.mxu0
    %v5072 = vadd.f32 %v5021, %v5071
    %5073 = vmatprep.mubr.bf16.mxu0 %v2862
    %5074 = vmatmul.mubr.bf16.gmra.mxu0 %v2861
    %v5075 = vpop.f32.mrf.mxu0
    %v5076 = vadd.f32 %v5025, %v5075
    %v5077 = vpop.f32.mrf.mxu0
    %v5078 = vadd.f32 %v5027, %v5077
    %v5079 = vpop.f32.mrf.mxu0
    %v5080 = vpop.f32.mrf.mxu0
    %5081 = vdwg.mxu0
    %v5082 = vmul.f32 %v4760, 0.1
    %v5083 = vmul.f32 %v4762, 0.1
    %v5084 = vmul.f32 %v4913, 0.1
    %v5085 = vmul.f32 %v4915, 0.1
    %v5086 = vmul.f32 %v5066, 0.1
    %v5087 = vmul.f32 %v5068, 0.1
    %v5088 = vmul.f32 %v4764, 0.1
    %v5089 = vmul.f32 %v4766, 0.1
    %v5090 = vmul.f32 %v4917, 0.1
    %v5091 = vmul.f32 %v4919, 0.1
    %v5092 = vmul.f32 %v5070, 0.1
    %v5093 = vmul.f32 %v5072, 0.1
    %v5094 = vmul.f32 %v4770, 0.1
    %v5095 = vmul.f32 %v4772, 0.1
    %v5096 = vmul.f32 %v4923, 0.1
    %v5097 = vmul.f32 %v4925, 0.1
    %v5098 = vmul.f32 %v5076, 0.1
    %v5099 = vmul.f32 %v5078, 0.1
    %v5100 = vmax.f32 %v4760, %v5082
    %v5101 = vmax.f32 %v4762, %v5083
    %v5102 = vmax.f32 %v4913, %v5084
    %v5103 = vmax.f32 %v4915, %v5085
    %v5104 = vmax.f32 %v5066, %v5086
    %v5105 = vmax.f32 %v5068, %v5087
    %v5106 = vmax.f32 %v4764, %v5088
    %v5107 = vmax.f32 %v4766, %v5089
    %v5108 = vmax.f32 %v4917, %v5090
    %v5109 = vmax.f32 %v4919, %v5091
    %v5110 = vmax.f32 %v5070, %v5092
    %v5111 = vmax.f32 %v5072, %v5093
    %v5112 = vmax.f32 %v4770, %v5094
    %v5113 = vmax.f32 %v4772, %v5095
    %v5114 = vmax.f32 %v4923, %v5096
    %v5115 = vmax.f32 %v4925, %v5097
    %v5116 = vmax.f32 %v5076, %v5098
    %v5117 = vmax.f32 %v5078, %v5099
    %v5118 = vld [vmem:[#allocation14] sm:$0x3f]
    %v5120 = vlaneseq
    %v5121 = vshrl.u32 %v5120, 7
    %v5122 = vsub.s32 0, %v5121
    %v5123 = vrot.slane %v5118, %v5122
    %v5124 = vlaneseq
    %v5125 = vshrl.u32 %v5124, 7
    %v5126 = vsub.s32 1, %v5125
    %v5127 = vrot.slane %v5118, %v5126
    %v5128 = vlaneseq
    %v5129 = vshrl.u32 %v5128, 7
    %v5130 = vsub.s32 2, %v5129
    %v5131 = vrot.slane %v5118, %v5130
    %v5132 = vlaneseq
    %v5133 = vshrl.u32 %v5132, 7
    %v5134 = vsub.s32 3, %v5133
    %v5135 = vrot.slane %v5118, %v5134
    %v5136 = vlaneseq
    %v5137 = vshrl.u32 %v5136, 7
    %v5138 = vsub.s32 4, %v5137
    %v5139 = vrot.slane %v5118, %v5138
    %v5140 = vlaneseq
    %v5141 = vshrl.u32 %v5140, 7
    %v5142 = vsub.s32 5, %v5141
    %v5143 = vrot.slane %v5118, %v5142
    %v5150 = vmul.f32 %v5100, %v5123
    %v5151 = vmul.f32 %v5101, %v5127
    %v5152 = vmul.f32 %v5102, %v5131
    %v5153 = vmul.f32 %v5103, %v5135
    %v5154 = vmul.f32 %v5104, %v5139
    %v5155 = vmul.f32 %v5105, %v5143
    %v5156 = vmul.f32 %v5106, %v5123
    %v5157 = vmul.f32 %v5107, %v5127
    %v5158 = vmul.f32 %v5108, %v5131
    %v5159 = vmul.f32 %v5109, %v5135
    %v5160 = vmul.f32 %v5110, %v5139
    %v5161 = vmul.f32 %v5111, %v5143
    %v5162 = vmul.f32 %v5112, %v5123
    %v5163 = vmul.f32 %v5113, %v5127
    %v5164 = vmul.f32 %v5114, %v5131
    %v5165 = vmul.f32 %v5115, %v5135
    %v5166 = vmul.f32 %v5116, %v5139
    %v5167 = vmul.f32 %v5117, %v5143
    %v5168 = vadd.f32 %v5150, %v5151
    %v5169 = vadd.f32 %v5168, %v5152
    %v5170 = vadd.f32 %v5169, %v5153
    %v5171 = vadd.f32 %v5170, %v5154
    %v5172 = vadd.f32 %v5171, %v5155
    %5173 = vadd.xlane.f32.xlu0 %v5172
    %v5174 = vpop.xlane.xlu0 %5173
    %v5175 = vadd.f32 %v5156, %v5157
    %v5176 = vadd.f32 %v5175, %v5158
    %v5177 = vadd.f32 %v5176, %v5159
    %v5178 = vadd.f32 %v5177, %v5160
    %v5179 = vadd.f32 %v5178, %v5161
    %5180 = vadd.xlane.f32.xlu0 %v5179
    %v5181 = vpop.xlane.xlu0 %5180
    %v5182 = vadd.f32 %v5162, %v5163
    %v5183 = vadd.f32 %v5182, %v5164
    %v5184 = vadd.f32 %v5183, %v5165
    %v5185 = vadd.f32 %v5184, %v5166
    %v5186 = vadd.f32 %v5185, %v5167
    %5187 = vadd.xlane.f32.xlu0 %v5186
    %v5188 = vpop.xlane.xlu0 %5187
    %s5189 = sld [smem:[#allocation2]]
    %v5190 = vstv %s5189
    %v5191 = vadd.f32 %v5174, %v5190
    %v5192 = vadd.f32 %v5181, %v5190
    %v5193 = vadd.f32 %v5188, %v5190
    %vm5194 = vcmask 7168
    %5195 = vst.msk [vmem:[%s9] sm:$0xff] %vm5194, %v5191
    %5196 = vst.msk [vmem:[%s9 + $0x8] sm:$0xff] %vm5194, %v5192
    %5197 = vst.msk [vmem:[%s9 + $0x10] sm:$0xff] %vm5194, %v5193
    // Predicated region
    $region70: #{tpu_custom_call.1} parent=1 // pred_check
      _
    $region71: #{tpu_custom_call.1} parent=1 // pred_check_branch
      %5199 = sbr.rel (0) target = $region73
    $region72: #{tpu_custom_call.1} parent=1 // pred_region
      _
    $region73: #{tpu_custom_call.1} parent=1 // pred_fallthru
      _
    // Predicated region
    $region74: #{tpu_custom_call.1} parent=1 // pred_check
      _
    $region75: #{tpu_custom_call.1} parent=1 // pred_check_branch
      %5201 = sbr.rel (0) target = $region77
    $region76: #{tpu_custom_call.1} parent=1 // pred_region
      _
    $region77: #{tpu_custom_call.1} parent=1 // pred_fallthru
      _
    %5202 = vsyncpa [#allocation4], 1
    %5203 = vsyncpa [#allocation6], 1
    %5204 = vsyncpa [#allocation9], 1
    %5205 = vsyncpa [#allocation12], 1
    %5206 = vsyncpa [#allocation15], 1

// kernel: tpu_custom_call.1
$region0: #{tpu_custom_call.1}
  #allocation0 [shape = 'u32[]', space=smem, size = 0x4, offset = 0x4, fixed_abs, tag = 'smem constant byte address 0x4 - core index']
  #allocation1 [shape = 'u32[144,128]{1,0:T(1,128)}', space=vmem, size = 0x12000, scoped, tag = 'internal scratch']
  #allocation2 [shape = 'f32[1,1]{1,0:T(1,128)S(6)}', space=smem, size = 0x200, scoped, tag = 'scoped memory for tpu_custom_call.1']
  %s0 = inlined_call_operand.hbm [shape: f32[24,96], index: 0, kind: input, shape index: {}]
  %s1 = inlined_call_operand.hbm [shape: bf16[96,768], index: 1, kind: input, shape index: {}]
  %s2 = inlined_call_operand.hbm [shape: f32[1,768], index: 2, kind: input, shape index: {}]
  %s3 = inlined_call_operand.hbm [shape: bf16[768,768], index: 3, kind: input, shape index: {}]
  %s4 = inlined_call_operand.hbm [shape: f32[1,768], index: 4, kind: input, shape index: {}]
  %s5 = inlined_call_operand.hbm [shape: bf16[768,768], index: 5, kind: input, shape index: {}]
  %s6 = inlined_call_operand.hbm [shape: f32[1,768], index: 6, kind: input, shape index: {}]
  %s7 = inlined_call_operand.hbm [shape: f32[1,768], index: 7, kind: input, shape index: {}]
  %s8 = inlined_call_operand.<no memory space> [shape: f32[1,1], index: 8, kind: input, shape index: {}]
  %s9 = inlined_call_operand.vmem [shape: f32[24,1], index: 9, kind: output, shape index: {}]
  %s10 = sld [smem:[#allocation0]]
  $region78: #{tpu_custom_call.1} parent=0
    _
  %s12 = ssub.s32 1, %s10
  %s13 = scalar_select 0, %s12, %s10
  %14 = sst [smem:[#allocation2]] %s8
  $region1: #{tpu_custom_call.1} parent=0
    #allocation3 [shape = 'u8[12288]{0}', space=vmem, size = 0x3000, scoped, tag = 'input window, operand 0, single buffered']
    #allocation4 [shape = 's32[1]{0}', space=sflag, size = 0x4, scoped, tag = 'scoped memory for tpu_custom_call.1']
    #allocation5 [shape = 'u8[147456]{0}', space=vmem, size = 0x24000, scoped, tag = 'input window, operand 1, single buffered']
    #allocation6 [shape = 's32[1]{0}', space=sflag, size = 0x4, scoped, tag = 'scoped memory for tpu_custom_call.1']
    #allocation7 [shape = 'u8[3072]{0}', space=vmem, size = 0xc00, scoped, tag = 'input window, operand 2, single buffered']
    #allocation8 [shape = 'u8[1179648]{0}', space=vmem, size = 0x120000, scoped, tag = 'input window, operand 3, single buffered']
    #allocation9 [shape = 's32[1]{0}', space=sflag, size = 0x4, scoped, tag = 'scoped memory for tpu_custom_call.1']
    #allocation10 [shape = 'u8[3072]{0}', space=vmem, size = 0xc00, scoped, tag = 'input window, operand 4, single buffered']
    #allocation11 [shape = 'u8[1179648]{0}', space=vmem, size = 0x120000, scoped, tag = 'input window, operand 5, single buffered']
    #allocation12 [shape = 's32[1]{0}', space=sflag, size = 0x4, scoped, tag = 'scoped memory for tpu_custom_call.1']
    #allocation13 [shape = 'u8[3072]{0}', space=vmem, size = 0xc00, scoped, tag = 'input window, operand 6, single buffered']
    #allocation14 [shape = 'u8[3072]{0}', space=vmem, size = 0xc00, scoped, tag = 'input window, operand 7, single buffered']
    #allocation15 [shape = 's32[1]{0}', space=sflag, size = 0x4, scoped, tag = 'scoped memory for tpu_custom_call.1']
    %15 = vsyncpa [#allocation4], 0
    %16 = vsyncpa [#allocation6], 0
    %17 = vsyncpa [#allocation9], 0
    %18 = vsyncpa [#allocation12], 0
    %19 = vsyncpa [#allocation15], 0
    // Predicated region
    $region2: #{tpu_custom_call.1} parent=1 // pred_check
      _
    $region3: #{tpu_custom_call.1} parent=1 // pred_check_branch
      %21 = sbr.rel (0) target = $region5
    $region4: #{tpu_custom_call.1} parent=1 // pred_region
      %s23 = ssub.s32 384, 384
      %24 = vsyncadd [#allocation4], %s23
      %s25 = sshll.u32 [#allocation3], 4
      %s26 = int_to_ptr.vmem [resolvable:$true] %s25
      %31 = dma.hbm_to_vmem [thread:$0]  %s0, 384, %s26, [#allocation4], 128, 128, 8
    $region5: #{tpu_custom_call.1} parent=1 // pred_fallthru
      _
    // Predicated region
    $region6: #{tpu_custom_call.1} parent=1 // pred_check
      _
    $region7: #{tpu_custom_call.1} parent=1 // pred_check_branch
      %33 = sbr.rel (0) target = $region9
    $region8: #{tpu_custom_call.1} parent=1 // pred_region
      %s35 = ssub.s32 4608, 4608
      %36 = vsyncadd [#allocation6], %s35
      %s37 = sshll.u32 [#allocation5], 4
      %s38 = int_to_ptr.vmem [resolvable:$true] %s37
      %43 = dma.hbm_to_vmem [thread:$0]  %s1, 4608, %s38, [#allocation6], 384, 384, 24
    $region9: #{tpu_custom_call.1} parent=1 // pred_fallthru
      _
    // Predicated region
    $region10: #{tpu_custom_call.1} parent=1 // pred_check
      _
    $region11: #{tpu_custom_call.1} parent=1 // pred_check_branch
      %45 = sbr.rel (0) target = $region13
    $region12: #{tpu_custom_call.1} parent=1 // pred_region
      %s47 = ssub.s32 96, 96
      %48 = vsyncadd [#allocation6], %s47
      %s50 = sshll.u32 [#allocation7], 4
      %s51 = int_to_ptr.vmem [resolvable:$true] %s50
      %53 = dma.hbm_to_vmem [thread:$0]  %s2, 96, %s51, [#allocation6]
    $region13: #{tpu_custom_call.1} parent=1 // pred_fallthru
      _
    // Predicated region
    $region14: #{tpu_custom_call.1} parent=1 // pred_check
      _
    $region15: #{tpu_custom_call.1} parent=1 // pred_check_branch
      %55 = sbr.rel (0) target = $region17
    $region16: #{tpu_custom_call.1} parent=1 // pred_region
      %s57 = ssub.s32 36864, 36864
      %58 = vsyncadd [#allocation9], %s57
      %s59 = sshll.u32 [#allocation8], 4
      %s60 = int_to_ptr.vmem [resolvable:$true] %s59
      %65 = dma.hbm_to_vmem [thread:$0]  %s3, 36864, %s60, [#allocation9], 384, 384, 24
    $region17: #{tpu_custom_call.1} parent=1 // pred_fallthru
      _
    // Predicated region
    $region18: #{tpu_custom_call.1} parent=1 // pred_check
      _
    $region19: #{tpu_custom_call.1} parent=1 // pred_check_branch
      %67 = sbr.rel (0) target = $region21
    $region20: #{tpu_custom_call.1} parent=1 // pred_region
      %s69 = ssub.s32 96, 96
      %70 = vsyncadd [#allocation9], %s69
      %s72 = sshll.u32 [#allocation10], 4
      %s73 = int_to_ptr.vmem [resolvable:$true] %s72
      %75 = dma.hbm_to_vmem [thread:$0]  %s4, 96, %s73, [#allocation9]
    $region21: #{tpu_custom_call.1} parent=1 // pred_fallthru
      _
    // Predicated region
    $region22: #{tpu_custom_call.1} parent=1 // pred_check
      _
    $region23: #{tpu_custom_call.1} parent=1 // pred_check_branch
      %77 = sbr.rel (0) target = $region25
    $region24: #{tpu_custom_call.1} parent=1 // pred_region
      %s79 = ssub.s32 36864, 36864
      %80 = vsyncadd [#allocation12], %s79
      %s81 = sshll.u32 [#allocation11], 4
      %s82 = int_to_ptr.vmem [resolvable:$true] %s81
      %87 = dma.hbm_to_vmem [thread:$0]  %s5, 36864, %s82, [#allocation12], 384, 384, 24
    $region25: #{tpu_custom_call.1} parent=1 // pred_fallthru
      _
    // Predicated region
    $region26: #{tpu_custom_call.1} parent=1 // pred_check
      _
    $region27: #{tpu_custom_call.1} parent=1 // pred_check_branch
      %89 = sbr.rel (0) target = $region29
    $region28: #{tpu_custom_call.1} parent=1 // pred_region
      %s91 = ssub.s32 96, 96
      %92 = vsyncadd [#allocation12], %s91
      %s94 = sshll.u32 [#allocation13], 4
      %s95 = int_to_ptr.vmem [resolvable:$true] %s94
      %97 = dma.hbm_to_vmem [thread:$0]  %s6, 96, %s95, [#allocation12]
    $region29: #{tpu_custom_call.1} parent=1 // pred_fallthru
      _
    // Predicated region
    $region30: #{tpu_custom_call.1} parent=1 // pred_check
      _
    $region31: #{tpu_custom_call.1} parent=1 // pred_check_branch
      %99 = sbr.rel (0) target = $region33
    $region32: #{tpu_custom_call.1} parent=1 // pred_region
      %s101 = ssub.s32 96, 96
      %102 = vsyncadd [#allocation15], %s101
      %s104 = sshll.u32 [#allocation14], 4
      %s105 = int_to_ptr.vmem [resolvable:$true] %s104
      %107 = dma.hbm_to_vmem [thread:$0]  %s7, 96, %s105, [#allocation15]
    $region33: #{tpu_custom_call.1} parent=1 // pred_fallthru
      _
    // Predicated region
    $region34: #{tpu_custom_call.1} parent=1 // pred_check
      _
    $region35: #{tpu_custom_call.1} parent=1 // pred_check_branch
      %109 = sbr.rel (0) target = $region37
    $region36: #{tpu_custom_call.1} parent=1 // pred_region
      _
    $region37: #{tpu_custom_call.1} parent=1 // pred_fallthru
      _
    // Predicated region
    $region38: #{tpu_custom_call.1} parent=1 // pred_check
      _
    $region39: #{tpu_custom_call.1} parent=1 // pred_check_branch
      %111 = sbr.rel (0) target = $region41
    $region40: #{tpu_custom_call.1} parent=1 // pred_region
      %112 = dma.done [#allocation4], 384
    $region41: #{tpu_custom_call.1} parent=1 // pred_fallthru
      _
    // Predicated region
    $region42: #{tpu_custom_call.1} parent=1 // pred_check
      _
    $region43: #{tpu_custom_call.1} parent=1 // pred_check_branch
      %114 = sbr.rel (0) target = $region45
    $region44: #{tpu_custom_call.1} parent=1 // pred_region
      %115 = dma.done [#allocation6], 4608
    $region45: #{tpu_custom_call.1} parent=1 // pred_fallthru
      _
    // Predicated region
    $region46: #{tpu_custom_call.1} parent=1 // pred_check
      _
    $region47: #{tpu_custom_call.1} parent=1 // pred_check_branch
      %117 = sbr.rel (0) target = $region49
    $region48: #{tpu_custom_call.1} parent=1 // pred_region
      %118 = dma.done [#allocation6], 96
    $region49: #{tpu_custom_call.1} parent=1 // pred_fallthru
      _
    // Predicated region
    $region50: #{tpu_custom_call.1} parent=1 // pred_check
      _
    $region51: #{tpu_custom_call.1} parent=1 // pred_check_branch
      %120 = sbr.rel (0) target = $region53
    $region52: #{tpu_custom_call.1} parent=1 // pred_region
      %121 = dma.done [#allocation9], 36864
    $region53: #{tpu_custom_call.1} parent=1 // pred_fallthru
      _
    // Predicated region
    $region54: #{tpu_custom_call.1} parent=1 // pred_check
      _
    $region55: #{tpu_custom_call.1} parent=1 // pred_check_branch
      %123 = sbr.rel (0) target = $region57
    $region56: #{tpu_custom_call.1} parent=1 // pred_region
      %124 = dma.done [#allocation9], 96
    $region57: #{tpu_custom_call.1} parent=1 // pred_fallthru
      _
    // Predicated region
    $region58: #{tpu_custom_call.1} parent=1 // pred_check
      _
    $region59: #{tpu_custom_call.1} parent=1 // pred_check_branch
      %126 = sbr.rel (0) target = $region61
    $region60: #{tpu_custom_call.1} parent=1 // pred_region
      %127 = dma.done [#allocation12], 36864
    $region61: #{tpu_custom_call.1} parent=1 // pred_fallthru
      _
    // Predicated region
    $region62: #{tpu_custom_call.1} parent=1 // pred_check
      _
    $region63: #{tpu_custom_call.1} parent=1 // pred_check_branch
      %129 = sbr.rel (0) target = $region65
    $region64: #{tpu_custom_call.1} parent=1 // pred_region
      %130 = dma.done [#allocation12], 96
    $region65: #{tpu_custom_call.1} parent=1 // pred_fallthru
      _
    // Predicated region
    $region66: #{tpu_custom_call.1} parent=1 // pred_check
      _
    $region67: #{tpu_custom_call.1} parent=1 // pred_check_branch
      %132 = sbr.rel (0) target = $region69
    $region68: #{tpu_custom_call.1} parent=1 // pred_region
      %133 = dma.done [#allocation15], 96
    $region69: #{tpu_custom_call.1} parent=1 // pred_fallthru
      _
    %v135 = vld [vmem:[#allocation3] sm:$0xff]
    %v136 = vld [vmem:[#allocation3 + $0x8] sm:$0xff]
    %v137 = vld [vmem:[#allocation3 + $0x10] sm:$0xff]
    %v138 = vpack.c.bf16 %v136, %v135
    %v139 = vpack.c.bf16 %v137, %v137
    %v140 = vld [vmem:[#allocation5] sm:$0xff]
    %v141 = vld [vmem:[#allocation5 + $0x8] sm:$0xff]
    %v142 = vld [vmem:[#allocation5 + $0x10] sm:$0xff]
    %v143 = vld [vmem:[#allocation5 + $0x18] sm:$0xff]
    %v144 = vld [vmem:[#allocation5 + $0x20] sm:$0xff]
    %v145 = vld [vmem:[#allocation5 + $0x28] sm:$0xff]
    %v146 = vld [vmem:[#allocation5 + $0x30] sm:$0xff]
    %v147 = vld [vmem:[#allocation5 + $0x38] sm:$0xff]
    %v148 = vld [vmem:[#allocation5 + $0x40] sm:$0xff]
    %v149 = vld [vmem:[#allocation5 + $0x48] sm:$0xff]
    %v150 = vld [vmem:[#allocation5 + $0x50] sm:$0xff]
    %v151 = vld [vmem:[#allocation5 + $0x58] sm:$0xff]
    %v152 = vld [vmem:[#allocation5 + $0x60] sm:$0xff]
    %v153 = vld [vmem:[#allocation5 + $0x68] sm:$0xff]
    %v154 = vld [vmem:[#allocation5 + $0x70] sm:$0xff]
    %v155 = vld [vmem:[#allocation5 + $0x78] sm:$0xff]
    %v156 = vld [vmem:[#allocation5 + $0x80] sm:$0xff]
    %v157 = vld [vmem:[#allocation5 + $0x88] sm:$0xff]
    %v158 = vld [vmem:[#allocation5 + $0x90] sm:$0xff]
    %v159 = vld [vmem:[#allocation5 + $0x98] sm:$0xff]
    %v160 = vld [vmem:[#allocation5 + $0xa0] sm:$0xff]
    %v161 = vld [vmem:[#allocation5 + $0xa8] sm:$0xff]
    %v162 = vld [vmem:[#allocation5 + $0xb0] sm:$0xff]
    %v163 = vld [vmem:[#allocation5 + $0xb8] sm:$0xff]
    %v164 = vld [vmem:[#allocation5 + $0xc0] sm:$0xff]
    %v165 = vld [vmem:[#allocation5 + $0xc8] sm:$0xff]
    %v166 = vld [vmem:[#allocation5 + $0xd0] sm:$0xff]
    %v167 = vld [vmem:[#allocation5 + $0xd8] sm:$0xff]
    %v168 = vld [vmem:[#allocation5 + $0xe0] sm:$0xff]
    %v169 = vld [vmem:[#allocation5 + $0xe8] sm:$0xff]
    %v170 = vld [vmem:[#allocation5 + $0xf0] sm:$0xff]
    %v171 = vld [vmem:[#allocation5 + $0xf8] sm:$0xff]
    %v172 = vld [vmem:[#allocation5 + $0x100] sm:$0xff]
    %v173 = vld [vmem:[#allocation5 + $0x108] sm:$0xff]
    %v174 = vld [vmem:[#allocation5 + $0x110] sm:$0xff]
    %v175 = vld [vmem:[#allocation5 + $0x118] sm:$0xff]
    %v176 = vld [vmem:[#allocation7] sm:$0x3f]
    %v178 = vlaneseq
    %v179 = vshrl.u32 %v178, 7
    %v180 = vsub.s32 0, %v179
    %v181 = vrot.slane %v176, %v180
    %v182 = vlaneseq
    %v183 = vshrl.u32 %v182, 7
    %v184 = vsub.s32 1, %v183
    %v185 = vrot.slane %v176, %v184
    %v186 = vlaneseq
    %v187 = vshrl.u32 %v186, 7
    %v188 = vsub.s32 2, %v187
    %v189 = vrot.slane %v176, %v188
    %v190 = vlaneseq
    %v191 = vshrl.u32 %v190, 7
    %v192 = vsub.s32 3, %v191
    %v193 = vrot.slane %v176, %v192
    %v194 = vlaneseq
    %v195 = vshrl.u32 %v194, 7
    %v196 = vsub.s32 4, %v195
    %v197 = vrot.slane %v176, %v196
    %v198 = vlaneseq
    %v199 = vshrl.u32 %v198, 7
    %v200 = vsub.s32 5, %v199
    %v201 = vrot.slane %v176, %v200
    %v244 = vunpack.c.l.b16 %v140
    %v245 = vunpack.c.h.b16 %v140
    %v246 = vunpack.c.l.b16 %v141
    %v247 = vunpack.c.h.b16 %v141
    %v248 = vunpack.c.l.b16 %v142
    %v249 = vunpack.c.h.b16 %v142
    %v250 = vunpack.c.l.b16 %v143
    %v251 = vunpack.c.h.b16 %v143
    %v252 = vunpack.c.l.b16 %v144
    %v253 = vunpack.c.h.b16 %v144
    %v254 = vunpack.c.l.b16 %v145
    %v255 = vunpack.c.h.b16 %v145
    %v256 = vunpack.c.l.b16 %v146
    %v257 = vunpack.c.h.b16 %v146
    %v258 = vunpack.c.l.b16 %v147
    %v259 = vunpack.c.h.b16 %v147
    %v260 = vunpack.c.l.b16 %v148
    %v261 = vunpack.c.h.b16 %v148
    %v262 = vunpack.c.l.b16 %v149
    %v263 = vunpack.c.h.b16 %v149
    %v264 = vunpack.c.l.b16 %v150
    %v265 = vunpack.c.h.b16 %v150
    %v266 = vunpack.c.l.b16 %v151
    %v267 = vunpack.c.h.b16 %v151
    %v268 = vunpack.c.l.b16 %v152
    %v269 = vunpack.c.h.b16 %v152
    %v270 = vunpack.c.l.b16 %v153
    %v271 = vunpack.c.h.b16 %v153
    %v272 = vunpack.c.l.b16 %v154
    %v273 = vunpack.c.h.b16 %v154
    %v274 = vunpack.c.l.b16 %v155
    %v275 = vunpack.c.h.b16 %v155
    %v276 = vunpack.c.l.b16 %v156
    %v277 = vunpack.c.h.b16 %v156
    %v278 = vunpack.c.l.b16 %v157
    %v279 = vunpack.c.h.b16 %v157
    %v280 = vunpack.c.l.b16 %v158
    %v281 = vunpack.c.h.b16 %v158
    %v282 = vunpack.c.l.b16 %v159
    %v283 = vunpack.c.h.b16 %v159
    %v284 = vunpack.c.l.b16 %v160
    %v285 = vunpack.c.h.b16 %v160
    %v286 = vunpack.c.l.b16 %v161
    %v287 = vunpack.c.h.b16 %v161
    %v288 = vunpack.c.l.b16 %v162
    %v289 = vunpack.c.h.b16 %v162
    %v290 = vunpack.c.l.b16 %v163
    %v291 = vunpack.c.h.b16 %v163
    %v292 = vunpack.c.l.b16 %v164
    %v293 = vunpack.c.h.b16 %v164
    %v294 = vunpack.c.l.b16 %v165
    %v295 = vunpack.c.h.b16 %v165
    %v296 = vunpack.c.l.b16 %v166
    %v297 = vunpack.c.h.b16 %v166
    %v298 = vunpack.c.l.b16 %v167
    %v299 = vunpack.c.h.b16 %v167
    %v300 = vunpack.c.l.b16 %v168
    %v301 = vunpack.c.h.b16 %v168
    %v302 = vunpack.c.l.b16 %v169
    %v303 = vunpack.c.h.b16 %v169
    %v304 = vunpack.c.l.b16 %v170
    %v305 = vunpack.c.h.b16 %v170
    %v306 = vunpack.c.l.b16 %v171
    %v307 = vunpack.c.h.b16 %v171
    %v308 = vunpack.c.l.b16 %v172
    %v309 = vunpack.c.h.b16 %v172
    %v310 = vunpack.c.l.b16 %v173
    %v311 = vunpack.c.h.b16 %v173
    %v312 = vunpack.c.l.b16 %v174
    %v313 = vunpack.c.h.b16 %v174
    %v314 = vunpack.c.l.b16 %v175
    %v315 = vunpack.c.h.b16 %v175
    %v316 = vpack.c.b16 %v250, %v244
    %v317 = vpack.c.b16 %v251, %v245
    %v318 = vpack.c.b16 %v252, %v246
    %v319 = vpack.c.b16 %v253, %v247
    %v320 = vpack.c.b16 %v254, %v248
    %v321 = vpack.c.b16 %v255, %v249
    %v322 = vpack.c.b16 %v262, %v256
    %v323 = vpack.c.b16 %v263, %v257
    %v324 = vpack.c.b16 %v264, %v258
    %v325 = vpack.c.b16 %v265, %v259
    %v326 = vpack.c.b16 %v266, %v260
    %v327 = vpack.c.b16 %v267, %v261
    %v328 = vpack.c.b16 %v274, %v268
    %v329 = vpack.c.b16 %v275, %v269
    %v330 = vpack.c.b16 %v276, %v270
    %v331 = vpack.c.b16 %v277, %v271
    %v332 = vpack.c.b16 %v278, %v272
    %v333 = vpack.c.b16 %v279, %v273
    %v334 = vpack.c.b16 %v286, %v280
    %v335 = vpack.c.b16 %v287, %v281
    %v336 = vpack.c.b16 %v288, %v282
    %v337 = vpack.c.b16 %v289, %v283
    %v338 = vpack.c.b16 %v290, %v284
    %v339 = vpack.c.b16 %v291, %v285
    %v340 = vpack.c.b16 %v298, %v292
    %v341 = vpack.c.b16 %v299, %v293
    %v342 = vpack.c.b16 %v300, %v294
    %v343 = vpack.c.b16 %v301, %v295
    %v344 = vpack.c.b16 %v302, %v296
    %v345 = vpack.c.b16 %v303, %v297
    %v346 = vpack.c.b16 %v310, %v304
    %v347 = vpack.c.b16 %v311, %v305
    %v348 = vpack.c.b16 %v312, %v306
    %v349 = vpack.c.b16 %v313, %v307
    %v350 = vpack.c.b16 %v314, %v308
    %v351 = vpack.c.b16 %v315, %v309
    %vm388 = vcmask 785408
    %v390 = vsel %vm388, %v138, 0
    %v393 = vsel %vm388, %v139, 0
    %395 = vmatprep.subr.bf16.mxu0 0
    %396 = vmatpush1.bf16.msra.mxu0 0
    %397 = vmatprep.subr.bf16.mxu0 0
    %398 = vmatpush1.bf16.msra.mxu0 0
    %399 = vmatprep.subr.bf16.mxu0 %v347
    %400 = vmatpush1.bf16.msra.mxu0 %v346
    %401 = vmatprep.subr.bf16.mxu0 %v341
    %402 = vmatpush1.bf16.msra.mxu0 %v340
    %403 = vmatprep.subr.bf16.mxu0 %v335
    %404 = vmatpush1.bf16.msra.mxu0 %v334
    %405 = vmatprep.subr.bf16.mxu0 %v329
    %406 = vmatpush1.bf16.msra.mxu0 %v328
    %407 = vmatprep.subr.bf16.mxu0 %v323
    %408 = vmatpush1.bf16.msra.mxu0 %v322
    %409 = vmatprep.subr.bf16.mxu0 %v317
    %410 = vmatpush1.bf16.msra.mxu0 %v316
    %411 = vmatprep.subr.bf16.mxu0 0
    %412 = vmatpush2.bf16.msra.mxu0 0
    %413 = vmatprep.subr.bf16.mxu0 0
    %414 = vmatpush2.bf16.msra.mxu0 0
    %415 = vmatprep.subr.bf16.mxu0 0
    %416 = vmatpush2.bf16.msra.mxu0 0
    %417 = vmatprep.subr.bf16.mxu0 0
    %418 = vmatpush2.bf16.msra.mxu0 0
    %419 = vmatprep.subr.bf16.mxu0 0
    %420 = vmatpush2.bf16.msra.mxu0 0
    %421 = vmatprep.subr.bf16.mxu0 0
    %422 = vmatpush2.bf16.msra.mxu0 0
    %423 = vmatprep.subr.bf16.mxu0 0
    %424 = vmatpush2.bf16.msra.mxu0 0
    %425 = vmatprep.subr.bf16.mxu0 0
    %426 = vmatpush2.bf16.msra.mxu0 0
    %427 = vmatprep.mubr.bf16.mxu0 0
    %428 = vmatmul.mubr.bf16.gmra.mxu0 %v390
    %v429 = vpop.f32.mrf.mxu0
    %v430 = vadd.f32 %v181, %v429
    %v431 = vpop.f32.mrf.mxu0
    %v432 = vadd.f32 %v185, %v431
    %v433 = vpop.f32.mrf.mxu0
    %v434 = vadd.f32 %v181, %v433
    %v435 = vpop.f32.mrf.mxu0
    %v436 = vadd.f32 %v185, %v435
    %437 = vmatprep.mubr.bf16.mxu0 0
    %438 = vmatmul.mubr.bf16.gmra.mxu0 %v393
    %v439 = vpop.f32.mrf.mxu0
    %v440 = vadd.f32 %v181, %v439
    %v441 = vpop.f32.mrf.mxu0
    %v442 = vadd.f32 %v185, %v441
    %v443 = vpop.f32.mrf.mxu0
    %v444 = vpop.f32.mrf.mxu0
    %445 = vdwg.mxu0
    %446 = vmatprep.subr.bf16.mxu0 0
    %447 = vmatpush1.bf16.msra.mxu0 0
    %448 = vmatprep.subr.bf16.mxu0 0
    %449 = vmatpush1.bf16.msra.mxu0 0
    %450 = vmatprep.subr.bf16.mxu0 %v349
    %451 = vmatpush1.bf16.msra.mxu0 %v348
    %452 = vmatprep.subr.bf16.mxu0 %v343
    %453 = vmatpush1.bf16.msra.mxu0 %v342
    %454 = vmatprep.subr.bf16.mxu0 %v337
    %455 = vmatpush1.bf16.msra.mxu0 %v336
    %456 = vmatprep.subr.bf16.mxu0 %v331
    %457 = vmatpush1.bf16.msra.mxu0 %v330
    %458 = vmatprep.subr.bf16.mxu0 %v325
    %459 = vmatpush1.bf16.msra.mxu0 %v324
    %460 = vmatprep.subr.bf16.mxu0 %v319
    %461 = vmatpush1.bf16.msra.mxu0 %v318
    %462 = vmatprep.subr.bf16.mxu0 0
    %463 = vmatpush2.bf16.msra.mxu0 0
    %464 = vmatprep.subr.bf16.mxu0 0
    %465 = vmatpush2.bf16.msra.mxu0 0
    %466 = vmatprep.subr.bf16.mxu0 0
    %467 = vmatpush2.bf16.msra.mxu0 0
    %468 = vmatprep.subr.bf16.mxu0 0
    %469 = vmatpush2.bf16.msra.mxu0 0
    %470 = vmatprep.subr.bf16.mxu0 0
    %471 = vmatpush2.bf16.msra.mxu0 0
    %472 = vmatprep.subr.bf16.mxu0 0
    %473 = vmatpush2.bf16.msra.mxu0 0
    %474 = vmatprep.subr.bf16.mxu0 0
    %475 = vmatpush2.bf16.msra.mxu0 0
    %476 = vmatprep.subr.bf16.mxu0 0
    %477 = vmatpush2.bf16.msra.mxu0 0
    %478 = vmatprep.mubr.bf16.mxu0 0
    %479 = vmatmul.mubr.bf16.gmra.mxu0 %v390
    %v480 = vpop.f32.mrf.mxu0
    %v481 = vadd.f32 %v189, %v480
    %v482 = vpop.f32.mrf.mxu0
    %v483 = vadd.f32 %v193, %v482
    %v484 = vpop.f32.mrf.mxu0
    %v485 = vadd.f32 %v189, %v484
    %v486 = vpop.f32.mrf.mxu0
    %v487 = vadd.f32 %v193, %v486
    %488 = vmatprep.mubr.bf16.mxu0 0
    %489 = vmatmul.mubr.bf16.gmra.mxu0 %v393
    %v490 = vpop.f32.mrf.mxu0
    %v491 = vadd.f32 %v189, %v490
    %v492 = vpop.f32.mrf.mxu0
    %v493 = vadd.f32 %v193, %v492
    %v494 = vpop.f32.mrf.mxu0
    %v495 = vpop.f32.mrf.mxu0
    %496 = vdwg.mxu0
    %497 = vmatprep.subr.bf16.mxu0 0
    %498 = vmatpush1.bf16.msra.mxu0 0
    %499 = vmatprep.subr.bf16.mxu0 0
    %500 = vmatpush1.bf16.msra.mxu0 0
    %501 = vmatprep.subr.bf16.mxu0 %v351
    %502 = vmatpush1.bf16.msra.mxu0 %v350
    %503 = vmatprep.subr.bf16.mxu0 %v345
    %504 = vmatpush1.bf16.msra.mxu0 %v344
    %505 = vmatprep.subr.bf16.mxu0 %v339
    %506 = vmatpush1.bf16.msra.mxu0 %v338
    %507 = vmatprep.subr.bf16.mxu0 %v333
    %508 = vmatpush1.bf16.msra.mxu0 %v332
    %509 = vmatprep.subr.bf16.mxu0 %v327
    %510 = vmatpush1.bf16.msra.mxu0 %v326
    %511 = vmatprep.subr.bf16.mxu0 %v321
    %512 = vmatpush1.bf16.msra.mxu0 %v320
    %513 = vmatprep.subr.bf16.mxu0 0
    %514 = vmatpush2.bf16.msra.mxu0 0
    %515 = vmatprep.subr.bf16.mxu0 0
    %516 = vmatpush2.bf16.msra.mxu0 0
    %517 = vmatprep.subr.bf16.mxu0 0
    %518 = vmatpush2.bf16.msra.mxu0 0
    %519 = vmatprep.subr.bf16.mxu0 0
    %520 = vmatpush2.bf16.msra.mxu0 0
    %521 = vmatprep.subr.bf16.mxu0 0
    %522 = vmatpush2.bf16.msra.mxu0 0
    %523 = vmatprep.subr.bf16.mxu0 0
    %524 = vmatpush2.bf16.msra.mxu0 0
    %525 = vmatprep.subr.bf16.mxu0 0
    %526 = vmatpush2.bf16.msra.mxu0 0
    %527 = vmatprep.subr.bf16.mxu0 0
    %528 = vmatpush2.bf16.msra.mxu0 0
    %529 = vmatprep.mubr.bf16.mxu0 0
    %530 = vmatmul.mubr.bf16.gmra.mxu0 %v390
    %v531 = vpop.f32.mrf.mxu0
    %v532 = vadd.f32 %v197, %v531
    %v533 = vpop.f32.mrf.mxu0
    %v534 = vadd.f32 %v201, %v533
    %v535 = vpop.f32.mrf.mxu0
    %v536 = vadd.f32 %v197, %v535
    %v537 = vpop.f32.mrf.mxu0
    %v538 = vadd.f32 %v201, %v537
    %539 = vmatprep.mubr.bf16.mxu0 0
    %540 = vmatmul.mubr.bf16.gmra.mxu0 %v393
    %v541 = vpop.f32.mrf.mxu0
    %v542 = vadd.f32 %v197, %v541
    %v543 = vpop.f32.mrf.mxu0
    %v544 = vadd.f32 %v201, %v543
    %v545 = vpop.f32.mrf.mxu0
    %v546 = vpop.f32.mrf.mxu0
    %547 = vdwg.mxu0
    %v548 = vmul.f32 %v430, 0.1
    %v549 = vmul.f32 %v432, 0.1
    %v550 = vmul.f32 %v481, 0.1
    %v551 = vmul.f32 %v483, 0.1
    %v552 = vmul.f32 %v532, 0.1
    %v553 = vmul.f32 %v534, 0.1
    %v554 = vmul.f32 %v434, 0.1
    %v555 = vmul.f32 %v436, 0.1
    %v556 = vmul.f32 %v485, 0.1
    %v557 = vmul.f32 %v487, 0.1
    %v558 = vmul.f32 %v536, 0.1
    %v559 = vmul.f32 %v538, 0.1
    %v560 = vmul.f32 %v440, 0.1
    %v561 = vmul.f32 %v442, 0.1
    %v562 = vmul.f32 %v491, 0.1
    %v563 = vmul.f32 %v493, 0.1
    %v564 = vmul.f32 %v542, 0.1
    %v565 = vmul.f32 %v544, 0.1
    %v566 = vmax.f32 %v430, %v548
    %v567 = vmax.f32 %v432, %v549
    %v568 = vmax.f32 %v481, %v550
    %v569 = vmax.f32 %v483, %v551
    %v570 = vmax.f32 %v532, %v552
    %v571 = vmax.f32 %v534, %v553
    %v572 = vmax.f32 %v434, %v554
    %v573 = vmax.f32 %v436, %v555
    %v574 = vmax.f32 %v485, %v556
    %v575 = vmax.f32 %v487, %v557
    %v576 = vmax.f32 %v536, %v558
    %v577 = vmax.f32 %v538, %v559
    %v578 = vmax.f32 %v440, %v560
    %v579 = vmax.f32 %v442, %v561
    %v580 = vmax.f32 %v491, %v562
    %v581 = vmax.f32 %v493, %v563
    %v582 = vmax.f32 %v542, %v564
    %v583 = vmax.f32 %v544, %v565
    %v584 = vpack.c.bf16 %v572, %v566
    %v585 = vpack.c.bf16 %v573, %v567
    %v586 = vpack.c.bf16 %v574, %v568
    %v587 = vpack.c.bf16 %v575, %v569
    %v588 = vpack.c.bf16 %v576, %v570
    %v589 = vpack.c.bf16 %v577, %v571
    %v590 = vpack.c.bf16 %v578, %v578
    %v591 = vpack.c.bf16 %v579, %v579
    %v592 = vpack.c.bf16 %v580, %v580
    %v593 = vpack.c.bf16 %v581, %v581
    %v594 = vpack.c.bf16 %v582, %v582
    %v595 = vpack.c.bf16 %v583, %v583
    %v596 = vld [vmem:[#allocation8] sm:$0xff]
    %v597 = vld [vmem:[#allocation8 + $0x8] sm:$0xff]
    %v598 = vld [vmem:[#allocation8 + $0x10] sm:$0xff]
    %v599 = vld [vmem:[#allocation8 + $0x18] sm:$0xff]
    %v600 = vld [vmem:[#allocation8 + $0x20] sm:$0xff]
    %v601 = vld [vmem:[#allocation8 + $0x28] sm:$0xff]
    %v602 = vld [vmem:[#allocation8 + $0x30] sm:$0xff]
    %v603 = vld [vmem:[#allocation8 + $0x38] sm:$0xff]
    %v604 = vld [vmem:[#allocation8 + $0x40] sm:$0xff]
    %v605 = vld [vmem:[#allocation8 + $0x48] sm:$0xff]
    %v606 = vld [vmem:[#allocation8 + $0x50] sm:$0xff]
    %v607 = vld [vmem:[#allocation8 + $0x58] sm:$0xff]
    %v608 = vld [vmem:[#allocation8 + $0x60] sm:$0xff]
    %v609 = vld [vmem:[#allocation8 + $0x68] sm:$0xff]
    %v610 = vld [vmem:[#allocation8 + $0x70] sm:$0xff]
    %v611 = vld [vmem:[#allocation8 + $0x78] sm:$0xff]
    %v612 = vld [vmem:[#allocation8 + $0x80] sm:$0xff]
    %v613 = vld [vmem:[#allocation8 + $0x88] sm:$0xff]
    %v614 = vld [vmem:[#allocation8 + $0x90] sm:$0xff]
    %v615 = vld [vmem:[#allocation8 + $0x98] sm:$0xff]
    %v616 = vld [vmem:[#allocation8 + $0xa0] sm:$0xff]
    %v617 = vld [vmem:[#allocation8 + $0xa8] sm:$0xff]
    %v618 = vld [vmem:[#allocation8 + $0xb0] sm:$0xff]
    %v619 = vld [vmem:[#allocation8 + $0xb8] sm:$0xff]
    %v620 = vld [vmem:[#allocation8 + $0xc0] sm:$0xff]
    %v621 = vld [vmem:[#allocation8 + $0xc8] sm:$0xff]
    %v622 = vld [vmem:[#allocation8 + $0xd0] sm:$0xff]
    %v623 = vld [vmem:[#allocation8 + $0xd8] sm:$0xff]
    %v624 = vld [vmem:[#allocation8 + $0xe0] sm:$0xff]
    %v625 = vld [vmem:[#allocation8 + $0xe8] sm:$0xff]
    %v626 = vld [vmem:[#allocation8 + $0xf0] sm:$0xff]
    %v627 = vld [vmem:[#allocation8 + $0xf8] sm:$0xff]
    %v628 = vld [vmem:[#allocation8 + $0x100] sm:$0xff]
    %v629 = vld [vmem:[#allocation8 + $0x108] sm:$0xff]
    %v630 = vld [vmem:[#allocation8 + $0x110] sm:$0xff]
    %v631 = vld [vmem:[#allocation8 + $0x118] sm:$0xff]
    %v632 = vld [vmem:[#allocation8 + $0x120] sm:$0xff]
    %v633 = vld [vmem:[#allocation8 + $0x128] sm:$0xff]
    %v634 = vld [vmem:[#allocation8 + $0x130] sm:$0xff]
    %v635 = vld [vmem:[#allocation8 + $0x138] sm:$0xff]
    %v636 = vld [vmem:[#allocation8 + $0x140] sm:$0xff]
    %v637 = vld [vmem:[#allocation8 + $0x148] sm:$0xff]
    %v638 = vld [vmem:[#allocation8 + $0x150] sm:$0xff]
    %v639 = vld [vmem:[#allocation8 + $0x158] sm:$0xff]
    %v640 = vld [vmem:[#allocation8 + $0x160] sm:$0xff]
    %v641 = vld [vmem:[#allocation8 + $0x168] sm:$0xff]
    %v642 = vld [vmem:[#allocation8 + $0x170] sm:$0xff]
    %v643 = vld [vmem:[#allocation8 + $0x178] sm:$0xff]
    %v644 = vld [vmem:[#allocation8 + $0x180] sm:$0xff]
    %v645 = vld [vmem:[#allocation8 + $0x188] sm:$0xff]
    %v646 = vld [vmem:[#allocation8 + $0x190] sm:$0xff]
    %v647 = vld [vmem:[#allocation8 + $0x198] sm:$0xff]
    %v648 = vld [vmem:[#allocation8 + $0x1a0] sm:$0xff]
    %v649 = vld [vmem:[#allocation8 + $0x1a8] sm:$0xff]
    %v650 = vld [vmem:[#allocation8 + $0x1b0] sm:$0xff]
    %v651 = vld [vmem:[#allocation8 + $0x1b8] sm:$0xff]
    %v652 = vld [vmem:[#allocation8 + $0x1c0] sm:$0xff]
    %v653 = vld [vmem:[#allocation8 + $0x1c8] sm:$0xff]
    %v654 = vld [vmem:[#allocation8 + $0x1d0] sm:$0xff]
    %v655 = vld [vmem:[#allocation8 + $0x1d8] sm:$0xff]
    %v656 = vld [vmem:[#allocation8 + $0x1e0] sm:$0xff]
    %v657 = vld [vmem:[#allocation8 + $0x1e8] sm:$0xff]
    %v658 = vld [vmem:[#allocation8 + $0x1f0] sm:$0xff]
    %v659 = vld [vmem:[#allocation8 + $0x1f8] sm:$0xff]
    %v660 = vld [vmem:[#allocation8 + $0x200] sm:$0xff]
    %v661 = vld [vmem:[#allocation8 + $0x208] sm:$0xff]
    %v662 = vld [vmem:[#allocation8 + $0x210] sm:$0xff]
    %v663 = vld [vmem:[#allocation8 + $0x218] sm:$0xff]
    %v664 = vld [vmem:[#allocation8 + $0x220] sm:$0xff]
    %v665 = vld [vmem:[#allocation8 + $0x228] sm:$0xff]
    %v666 = vld [vmem:[#allocation8 + $0x230] sm:$0xff]
    %v667 = vld [vmem:[#allocation8 + $0x238] sm:$0xff]
    %v668 = vld [vmem:[#allocation8 + $0x240] sm:$0xff]
    %v669 = vld [vmem:[#allocation8 + $0x248] sm:$0xff]
    %v670 = vld [vmem:[#allocation8 + $0x250] sm:$0xff]
    %v671 = vld [vmem:[#allocation8 + $0x258] sm:$0xff]
    %v672 = vld [vmem:[#allocation8 + $0x260] sm:$0xff]
    %v673 = vld [vmem:[#allocation8 + $0x268] sm:$0xff]
    %v674 = vld [vmem:[#allocation8 + $0x270] sm:$0xff]
    %v675 = vld [vmem:[#allocation8 + $0x278] sm:$0xff]
    %v676 = vld [vmem:[#allocation8 + $0x280] sm:$0xff]
    %v677 = vld [vmem:[#allocation8 + $0x288] sm:$0xff]
    %v678 = vld [vmem:[#allocation8 + $0x290] sm:$0xff]
    %v679 = vld [vmem:[#allocation8 + $0x298] sm:$0xff]
    %v680 = vld [vmem:[#allocation8 + $0x2a0] sm:$0xff]
    %v681 = vld [vmem:[#allocation8 + $0x2a8] sm:$0xff]
    %v682 = vld [vmem:[#allocation8 + $0x2b0] sm:$0xff]
    %v683 = vld [vmem:[#allocation8 + $0x2b8] sm:$0xff]
    %v684 = vld [vmem:[#allocation8 + $0x2c0] sm:$0xff]
    %v685 = vld [vmem:[#allocation8 + $0x2c8] sm:$0xff]
    %v686 = vld [vmem:[#allocation8 + $0x2d0] sm:$0xff]
    %v687 = vld [vmem:[#allocation8 + $0x2d8] sm:$0xff]
    %v688 = vld [vmem:[#allocation8 + $0x2e0] sm:$0xff]
    %v689 = vld [vmem:[#allocation8 + $0x2e8] sm:$0xff]
    %v690 = vld [vmem:[#allocation8 + $0x2f0] sm:$0xff]
    %v691 = vld [vmem:[#allocation8 + $0x2f8] sm:$0xff]
    %v692 = vld [vmem:[#allocation8 + $0x300] sm:$0xff]
    %v693 = vld [vmem:[#allocation8 + $0x308] sm:$0xff]
    %v694 = vld [vmem:[#allocation8 + $0x310] sm:$0xff]
    %v695 = vld [vmem:[#allocation8 + $0x318] sm:$0xff]
    %v696 = vld [vmem:[#allocation8 + $0x320] sm:$0xff]
    %v697 = vld [vmem:[#allocation8 + $0x328] sm:$0xff]
    %v698 = vld [vmem:[#allocation8 + $0x330] sm:$0xff]
    %v699 = vld [vmem:[#allocation8 + $0x338] sm:$0xff]
    %v700 = vld [vmem:[#allocation8 + $0x340] sm:$0xff]
    %v701 = vld [vmem:[#allocation8 + $0x348] sm:$0xff]
    %v702 = vld [vmem:[#allocation8 + $0x350] sm:$0xff]
    %v703 = vld [vmem:[#allocation8 + $0x358] sm:$0xff]
    %v704 = vld [vmem:[#allocation8 + $0x360] sm:$0xff]
    %v705 = vld [vmem:[#allocation8 + $0x368] sm:$0xff]
    %v706 = vld [vmem:[#allocation8 + $0x370] sm:$0xff]
    %v707 = vld [vmem:[#allocation8 + $0x378] sm:$0xff]
    %v708 = vld [vmem:[#allocation8 + $0x380] sm:$0xff]
    %v709 = vld [vmem:[#allocation8 + $0x388] sm:$0xff]
    %v710 = vld [vmem:[#allocation8 + $0x390] sm:$0xff]
    %v711 = vld [vmem:[#allocation8 + $0x398] sm:$0xff]
    %v712 = vld [vmem:[#allocation8 + $0x3a0] sm:$0xff]
    %v713 = vld [vmem:[#allocation8 + $0x3a8] sm:$0xff]
    %v714 = vld [vmem:[#allocation8 + $0x3b0] sm:$0xff]
    %v715 = vld [vmem:[#allocation8 + $0x3b8] sm:$0xff]
    %v716 = vld [vmem:[#allocation8 + $0x3c0] sm:$0xff]
    %v717 = vld [vmem:[#allocation8 + $0x3c8] sm:$0xff]
    %v718 = vld [vmem:[#allocation8 + $0x3d0] sm:$0xff]
    %v719 = vld [vmem:[#allocation8 + $0x3d8] sm:$0xff]
    %v720 = vld [vmem:[#allocation8 + $0x3e0] sm:$0xff]
    %v721 = vld [vmem:[#allocation8 + $0x3e8] sm:$0xff]
    %v722 = vld [vmem:[#allocation8 + $0x3f0] sm:$0xff]
    %v723 = vld [vmem:[#allocation8 + $0x3f8] sm:$0xff]
    %v724 = vld [vmem:[#allocation8 + $0x400] sm:$0xff]
    %v725 = vld [vmem:[#allocation8 + $0x408] sm:$0xff]
    %v726 = vld [vmem:[#allocation8 + $0x410] sm:$0xff]
    %v727 = vld [vmem:[#allocation8 + $0x418] sm:$0xff]
    %v728 = vld [vmem:[#allocation8 + $0x420] sm:$0xff]
    %v729 = vld [vmem:[#allocation8 + $0x428] sm:$0xff]
    %v730 = vld [vmem:[#allocation8 + $0x430] sm:$0xff]
    %v731 = vld [vmem:[#allocation8 + $0x438] sm:$0xff]
    %v732 = vld [vmem:[#allocation8 + $0x440] sm:$0xff]
    %v733 = vld [vmem:[#allocation8 + $0x448] sm:$0xff]
    %v734 = vld [vmem:[#allocation8 + $0x450] sm:$0xff]
    %v735 = vld [vmem:[#allocation8 + $0x458] sm:$0xff]
    %v736 = vld [vmem:[#allocation8 + $0x460] sm:$0xff]
    %v737 = vld [vmem:[#allocation8 + $0x468] sm:$0xff]
    %v738 = vld [vmem:[#allocation8 + $0x470] sm:$0xff]
    %v739 = vld [vmem:[#allocation8 + $0x478] sm:$0xff]
    %v740 = vld [vmem:[#allocation8 + $0x480] sm:$0xff]
    %v741 = vld [vmem:[#allocation8 + $0x488] sm:$0xff]
    %v742 = vld [vmem:[#allocation8 + $0x490] sm:$0xff]
    %v743 = vld [vmem:[#allocation8 + $0x498] sm:$0xff]
    %v744 = vld [vmem:[#allocation8 + $0x4a0] sm:$0xff]
    %v745 = vld [vmem:[#allocation8 + $0x4a8] sm:$0xff]
    %v746 = vld [vmem:[#allocation8 + $0x4b0] sm:$0xff]
    %v747 = vld [vmem:[#allocation8 + $0x4b8] sm:$0xff]
    %v748 = vld [vmem:[#allocation8 + $0x4c0] sm:$0xff]
    %v749 = vld [vmem:[#allocation8 + $0x4c8] sm:$0xff]
    %v750 = vld [vmem:[#allocation8 + $0x4d0] sm:$0xff]
    %v751 = vld [vmem:[#allocation8 + $0x4d8] sm:$0xff]
    %v752 = vld [vmem:[#allocation8 + $0x4e0] sm:$0xff]
    %v753 = vld [vmem:[#allocation8 + $0x4e8] sm:$0xff]
    %v754 = vld [vmem:[#allocation8 + $0x4f0] sm:$0xff]
    %v755 = vld [vmem:[#allocation8 + $0x4f8] sm:$0xff]
    %v756 = vld [vmem:[#allocation8 + $0x500] sm:$0xff]
    %v757 = vld [vmem:[#allocation8 + $0x508] sm:$0xff]
    %v758 = vld [vmem:[#allocation8 + $0x510] sm:$0xff]
    %v759 = vld [vmem:[#allocation8 + $0x518] sm:$0xff]
    %v760 = vld [vmem:[#allocation8 + $0x520] sm:$0xff]
    %v761 = vld [vmem:[#allocation8 + $0x528] sm:$0xff]
    %v762 = vld [vmem:[#allocation8 + $0x530] sm:$0xff]
    %v763 = vld [vmem:[#allocation8 + $0x538] sm:$0xff]
    %v764 = vld [vmem:[#allocation8 + $0x540] sm:$0xff]
    %v765 = vld [vmem:[#allocation8 + $0x548] sm:$0xff]
    %v766 = vld [vmem:[#allocation8 + $0x550] sm:$0xff]
    %v767 = vld [vmem:[#allocation8 + $0x558] sm:$0xff]
    %v768 = vld [vmem:[#allocation8 + $0x560] sm:$0xff]
    %v769 = vld [vmem:[#allocation8 + $0x568] sm:$0xff]
    %v770 = vld [vmem:[#allocation8 + $0x570] sm:$0xff]
    %v771 = vld [vmem:[#allocation8 + $0x578] sm:$0xff]
    %v772 = vld [vmem:[#allocation8 + $0x580] sm:$0xff]
    %v773 = vld [vmem:[#allocation8 + $0x588] sm:$0xff]
    %v774 = vld [vmem:[#allocation8 + $0x590] sm:$0xff]
    %v775 = vld [vmem:[#allocation8 + $0x598] sm:$0xff]
    %v776 = vld [vmem:[#allocation8 + $0x5a0] sm:$0xff]
    %v777 = vld [vmem:[#allocation8 + $0x5a8] sm:$0xff]
    %v778 = vld [vmem:[#allocation8 + $0x5b0] sm:$0xff]
    %v779 = vld [vmem:[#allocation8 + $0x5b8] sm:$0xff]
    %v780 = vld [vmem:[#allocation8 + $0x5c0] sm:$0xff]
    %v781 = vld [vmem:[#allocation8 + $0x5c8] sm:$0xff]
    %v782 = vld [vmem:[#allocation8 + $0x5d0] sm:$0xff]
    %v783 = vld [vmem:[#allocation8 + $0x5d8] sm:$0xff]
    %v784 = vld [vmem:[#allocation8 + $0x5e0] sm:$0xff]
    %v785 = vld [vmem:[#allocation8 + $0x5e8] sm:$0xff]
    %v786 = vld [vmem:[#allocation8 + $0x5f0] sm:$0xff]
    %v787 = vld [vmem:[#allocation8 + $0x5f8] sm:$0xff]
    %v788 = vld [vmem:[#allocation8 + $0x600] sm:$0xff]
    %v789 = vld [vmem:[#allocation8 + $0x608] sm:$0xff]
    %v790 = vld [vmem:[#allocation8 + $0x610] sm:$0xff]
    %v791 = vld [vmem:[#allocation8 + $0x618] sm:$0xff]
    %v792 = vld [vmem:[#allocation8 + $0x620] sm:$0xff]
    %v793 = vld [vmem:[#allocation8 + $0x628] sm:$0xff]
    %v794 = vld [vmem:[#allocation8 + $0x630] sm:$0xff]
    %v795 = vld [vmem:[#allocation8 + $0x638] sm:$0xff]
    %v796 = vld [vmem:[#allocation8 + $0x640] sm:$0xff]
    %v797 = vld [vmem:[#allocation8 + $0x648] sm:$0xff]
    %v798 = vld [vmem:[#allocation8 + $0x650] sm:$0xff]
    %v799 = vld [vmem:[#allocation8 + $0x658] sm:$0xff]
    %v800 = vld [vmem:[#allocation8 + $0x660] sm:$0xff]
    %v801 = vld [vmem:[#allocation8 + $0x668] sm:$0xff]
    %v802 = vld [vmem:[#allocation8 + $0x670] sm:$0xff]
    %v803 = vld [vmem:[#allocation8 + $0x678] sm:$0xff]
    %v804 = vld [vmem:[#allocation8 + $0x680] sm:$0xff]
    %v805 = vld [vmem:[#allocation8 + $0x688] sm:$0xff]
    %v806 = vld [vmem:[#allocation8 + $0x690] sm:$0xff]
    %v807 = vld [vmem:[#allocation8 + $0x698] sm:$0xff]
    %v808 = vld [vmem:[#allocation8 + $0x6a0] sm:$0xff]
    %v809 = vld [vmem:[#allocation8 + $0x6a8] sm:$0xff]
    %v810 = vld [vmem:[#allocation8 + $0x6b0] sm:$0xff]
    %v811 = vld [vmem:[#allocation8 + $0x6b8] sm:$0xff]
    %v812 = vld [vmem:[#allocation8 + $0x6c0] sm:$0xff]
    %v813 = vld [vmem:[#allocation8 + $0x6c8] sm:$0xff]
    %v814 = vld [vmem:[#allocation8 + $0x6d0] sm:$0xff]
    %v815 = vld [vmem:[#allocation8 + $0x6d8] sm:$0xff]
    %v816 = vld [vmem:[#allocation8 + $0x6e0] sm:$0xff]
    %v817 = vld [vmem:[#allocation8 + $0x6e8] sm:$0xff]
    %v818 = vld [vmem:[#allocation8 + $0x6f0] sm:$0xff]
    %v819 = vld [vmem:[#allocation8 + $0x6f8] sm:$0xff]
    %v820 = vld [vmem:[#allocation8 + $0x700] sm:$0xff]
    %v821 = vld [vmem:[#allocation8 + $0x708] sm:$0xff]
    %v822 = vld [vmem:[#allocation8 + $0x710] sm:$0xff]
    %v823 = vld [vmem:[#allocation8 + $0x718] sm:$0xff]
    %v824 = vld [vmem:[#allocation8 + $0x720] sm:$0xff]
    %v825 = vld [vmem:[#allocation8 + $0x728] sm:$0xff]
    %v826 = vld [vmem:[#allocation8 + $0x730] sm:$0xff]
    %v827 = vld [vmem:[#allocation8 + $0x738] sm:$0xff]
    %v828 = vld [vmem:[#allocation8 + $0x740] sm:$0xff]
    %v829 = vld [vmem:[#allocation8 + $0x748] sm:$0xff]
    %v830 = vld [vmem:[#allocation8 + $0x750] sm:$0xff]
    %v831 = vld [vmem:[#allocation8 + $0x758] sm:$0xff]
    %v832 = vld [vmem:[#allocation8 + $0x760] sm:$0xff]
    %v833 = vld [vmem:[#allocation8 + $0x768] sm:$0xff]
    %v834 = vld [vmem:[#allocation8 + $0x770] sm:$0xff]
    %v835 = vld [vmem:[#allocation8 + $0x778] sm:$0xff]
    %v836 = vld [vmem:[#allocation8 + $0x780] sm:$0xff]
    %v837 = vld [vmem:[#allocation8 + $0x788] sm:$0xff]
    %v838 = vld [vmem:[#allocation8 + $0x790] sm:$0xff]
    %v839 = vld [vmem:[#allocation8 + $0x798] sm:$0xff]
    %v840 = vld [vmem:[#allocation8 + $0x7a0] sm:$0xff]
    %v841 = vld [vmem:[#allocation8 + $0x7a8] sm:$0xff]
    %v842 = vld [vmem:[#allocation8 + $0x7b0] sm:$0xff]
    %v843 = vld [vmem:[#allocation8 + $0x7b8] sm:$0xff]
    %v844 = vld [vmem:[#allocation8 + $0x7c0] sm:$0xff]
    %v845 = vld [vmem:[#allocation8 + $0x7c8] sm:$0xff]
    %v846 = vld [vmem:[#allocation8 + $0x7d0] sm:$0xff]
    %v847 = vld [vmem:[#allocation8 + $0x7d8] sm:$0xff]
    %v848 = vld [vmem:[#allocation8 + $0x7e0] sm:$0xff]
    %v849 = vld [vmem:[#allocation8 + $0x7e8] sm:$0xff]
    %v850 = vld [vmem:[#allocation8 + $0x7f0] sm:$0xff]
    %v851 = vld [vmem:[#allocation8 + $0x7f8] sm:$0xff]
    %v852 = vld [vmem:[#allocation8 + $0x800] sm:$0xff]
    %v853 = vld [vmem:[#allocation8 + $0x808] sm:$0xff]
    %v854 = vld [vmem:[#allocation8 + $0x810] sm:$0xff]
    %v855 = vld [vmem:[#allocation8 + $0x818] sm:$0xff]
    %v856 = vld [vmem:[#allocation8 + $0x820] sm:$0xff]
    %v857 = vld [vmem:[#allocation8 + $0x828] sm:$0xff]
    %v858 = vld [vmem:[#allocation8 + $0x830] sm:$0xff]
    %v859 = vld [vmem:[#allocation8 + $0x838] sm:$0xff]
    %v860 = vld [vmem:[#allocation8 + $0x840] sm:$0xff]
    %v861 = vld [vmem:[#allocation8 + $0x848] sm:$0xff]
    %v862 = vld [vmem:[#allocation8 + $0x850] sm:$0xff]
    %v863 = vld [vmem:[#allocation8 + $0x858] sm:$0xff]
    %v864 = vld [vmem:[#allocation8 + $0x860] sm:$0xff]
    %v865 = vld [vmem:[#allocation8 + $0x868] sm:$0xff]
    %v866 = vld [vmem:[#allocation8 + $0x870] sm:$0xff]
    %v867 = vld [vmem:[#allocation8 + $0x878] sm:$0xff]
    %v868 = vld [vmem:[#allocation8 + $0x880] sm:$0xff]
    %v869 = vld [vmem:[#allocation8 + $0x888] sm:$0xff]
    %v870 = vld [vmem:[#allocation8 + $0x890] sm:$0xff]
    %v871 = vld [vmem:[#allocation8 + $0x898] sm:$0xff]
    %v872 = vld [vmem:[#allocation8 + $0x8a0] sm:$0xff]
    %v873 = vld [vmem:[#allocation8 + $0x8a8] sm:$0xff]
    %v874 = vld [vmem:[#allocation8 + $0x8b0] sm:$0xff]
    %v875 = vld [vmem:[#allocation8 + $0x8b8] sm:$0xff]
    %v876 = vld [vmem:[#allocation8 + $0x8c0] sm:$0xff]
    %v877 = vld [vmem:[#allocation8 + $0x8c8] sm:$0xff]
    %v878 = vld [vmem:[#allocation8 + $0x8d0] sm:$0xff]
    %v879 = vld [vmem:[#allocation8 + $0x8d8] sm:$0xff]
    %v880 = vld [vmem:[#allocation8 + $0x8e0] sm:$0xff]
    %v881 = vld [vmem:[#allocation8 + $0x8e8] sm:$0xff]
    %v882 = vld [vmem:[#allocation8 + $0x8f0] sm:$0xff]
    %v883 = vld [vmem:[#allocation8 + $0x8f8] sm:$0xff]
    %v884 = vld [vmem:[#allocation10] sm:$0x3f]
    %v886 = vlaneseq
    %v887 = vshrl.u32 %v886, 7
    %v888 = vsub.s32 0, %v887
    %v889 = vrot.slane %v884, %v888
    %v890 = vlaneseq
    %v891 = vshrl.u32 %v890, 7
    %v892 = vsub.s32 1, %v891
    %v893 = vrot.slane %v884, %v892
    %v894 = vlaneseq
    %v895 = vshrl.u32 %v894, 7
    %v896 = vsub.s32 2, %v895
    %v897 = vrot.slane %v884, %v896
    %v898 = vlaneseq
    %v899 = vshrl.u32 %v898, 7
    %v900 = vsub.s32 3, %v899
    %v901 = vrot.slane %v884, %v900
    %v902 = vlaneseq
    %v903 = vshrl.u32 %v902, 7
    %v904 = vsub.s32 4, %v903
    %v905 = vrot.slane %v884, %v904
    %v906 = vlaneseq
    %v907 = vshrl.u32 %v906, 7
    %v908 = vsub.s32 5, %v907
    %v909 = vrot.slane %v884, %v908
    %v1204 = vunpack.c.l.b16 %v596
    %v1205 = vunpack.c.h.b16 %v596
    %v1206 = vunpack.c.l.b16 %v597
    %v1207 = vunpack.c.h.b16 %v597
    %v1208 = vunpack.c.l.b16 %v598
    %v1209 = vunpack.c.h.b16 %v598
    %v1210 = vunpack.c.l.b16 %v599
    %v1211 = vunpack.c.h.b16 %v599
    %v1212 = vunpack.c.l.b16 %v600
    %v1213 = vunpack.c.h.b16 %v600
    %v1214 = vunpack.c.l.b16 %v601
    %v1215 = vunpack.c.h.b16 %v601
    %v1216 = vunpack.c.l.b16 %v602
    %v1217 = vunpack.c.h.b16 %v602
    %v1218 = vunpack.c.l.b16 %v603
    %v1219 = vunpack.c.h.b16 %v603
    %v1220 = vunpack.c.l.b16 %v604
    %v1221 = vunpack.c.h.b16 %v604
    %v1222 = vunpack.c.l.b16 %v605
    %v1223 = vunpack.c.h.b16 %v605
    %v1224 = vunpack.c.l.b16 %v606
    %v1225 = vunpack.c.h.b16 %v606
    %v1226 = vunpack.c.l.b16 %v607
    %v1227 = vunpack.c.h.b16 %v607
    %v1228 = vunpack.c.l.b16 %v608
    %v1229 = vunpack.c.h.b16 %v608
    %v1230 = vunpack.c.l.b16 %v609
    %v1231 = vunpack.c.h.b16 %v609
    %v1232 = vunpack.c.l.b16 %v610
    %v1233 = vunpack.c.h.b16 %v610
    %v1234 = vunpack.c.l.b16 %v611
    %v1235 = vunpack.c.h.b16 %v611
    %v1236 = vunpack.c.l.b16 %v612
    %v1237 = vunpack.c.h.b16 %v612
    %v1238 = vunpack.c.l.b16 %v613
    %v1239 = vunpack.c.h.b16 %v613
    %v1240 = vunpack.c.l.b16 %v614
    %v1241 = vunpack.c.h.b16 %v614
    %v1242 = vunpack.c.l.b16 %v615
    %v1243 = vunpack.c.h.b16 %v615
    %v1244 = vunpack.c.l.b16 %v616
    %v1245 = vunpack.c.h.b16 %v616
    %v1246 = vunpack.c.l.b16 %v617
    %v1247 = vunpack.c.h.b16 %v617
    %v1248 = vunpack.c.l.b16 %v618
    %v1249 = vunpack.c.h.b16 %v618
    %v1250 = vunpack.c.l.b16 %v619
    %v1251 = vunpack.c.h.b16 %v619
    %v1252 = vunpack.c.l.b16 %v620
    %v1253 = vunpack.c.h.b16 %v620
    %v1254 = vunpack.c.l.b16 %v621
    %v1255 = vunpack.c.h.b16 %v621
    %v1256 = vunpack.c.l.b16 %v622
    %v1257 = vunpack.c.h.b16 %v622
    %v1258 = vunpack.c.l.b16 %v623
    %v1259 = vunpack.c.h.b16 %v623
    %v1260 = vunpack.c.l.b16 %v624
    %v1261 = vunpack.c.h.b16 %v624
    %v1262 = vunpack.c.l.b16 %v625
    %v1263 = vunpack.c.h.b16 %v625
    %v1264 = vunpack.c.l.b16 %v626
    %v1265 = vunpack.c.h.b16 %v626
    %v1266 = vunpack.c.l.b16 %v627
    %v1267 = vunpack.c.h.b16 %v627
    %v1268 = vunpack.c.l.b16 %v628
    %v1269 = vunpack.c.h.b16 %v628
    %v1270 = vunpack.c.l.b16 %v629
    %v1271 = vunpack.c.h.b16 %v629
    %v1272 = vunpack.c.l.b16 %v630
    %v1273 = vunpack.c.h.b16 %v630
    %v1274 = vunpack.c.l.b16 %v631
    %v1275 = vunpack.c.h.b16 %v631
    %v1276 = vunpack.c.l.b16 %v632
    %v1277 = vunpack.c.h.b16 %v632
    %v1278 = vunpack.c.l.b16 %v633
    %v1279 = vunpack.c.h.b16 %v633
    %v1280 = vunpack.c.l.b16 %v634
    %v1281 = vunpack.c.h.b16 %v634
    %v1282 = vunpack.c.l.b16 %v635
    %v1283 = vunpack.c.h.b16 %v635
    %v1284 = vunpack.c.l.b16 %v636
    %v1285 = vunpack.c.h.b16 %v636
    %v1286 = vunpack.c.l.b16 %v637
    %v1287 = vunpack.c.h.b16 %v637
    %v1288 = vunpack.c.l.b16 %v638
    %v1289 = vunpack.c.h.b16 %v638
    %v1290 = vunpack.c.l.b16 %v639
    %v1291 = vunpack.c.h.b16 %v639
    %v1292 = vunpack.c.l.b16 %v640
    %v1293 = vunpack.c.h.b16 %v640
    %v1294 = vunpack.c.l.b16 %v641
    %v1295 = vunpack.c.h.b16 %v641
    %v1296 = vunpack.c.l.b16 %v642
    %v1297 = vunpack.c.h.b16 %v642
    %v1298 = vunpack.c.l.b16 %v643
    %v1299 = vunpack.c.h.b16 %v643
    %v1300 = vunpack.c.l.b16 %v644
    %v1301 = vunpack.c.h.b16 %v644
    %v1302 = vunpack.c.l.b16 %v645
    %v1303 = vunpack.c.h.b16 %v645
    %v1304 = vunpack.c.l.b16 %v646
    %v1305 = vunpack.c.h.b16 %v646
    %v1306 = vunpack.c.l.b16 %v647
    %v1307 = vunpack.c.h.b16 %v647
    %v1308 = vunpack.c.l.b16 %v648
    %v1309 = vunpack.c.h.b16 %v648
    %v1310 = vunpack.c.l.b16 %v649
    %v1311 = vunpack.c.h.b16 %v649
    %v1312 = vunpack.c.l.b16 %v650
    %v1313 = vunpack.c.h.b16 %v650
    %v1314 = vunpack.c.l.b16 %v651
    %v1315 = vunpack.c.h.b16 %v651
    %v1316 = vunpack.c.l.b16 %v652
    %v1317 = vunpack.c.h.b16 %v652
    %v1318 = vunpack.c.l.b16 %v653
    %v1319 = vunpack.c.h.b16 %v653
    %v1320 = vunpack.c.l.b16 %v654
    %v1321 = vunpack.c.h.b16 %v654
    %v1322 = vunpack.c.l.b16 %v655
    %v1323 = vunpack.c.h.b16 %v655
    %v1324 = vunpack.c.l.b16 %v656
    %v1325 = vunpack.c.h.b16 %v656
    %v1326 = vunpack.c.l.b16 %v657
    %v1327 = vunpack.c.h.b16 %v657
    %v1328 = vunpack.c.l.b16 %v658
    %v1329 = vunpack.c.h.b16 %v658
    %v1330 = vunpack.c.l.b16 %v659
    %v1331 = vunpack.c.h.b16 %v659
    %v1332 = vunpack.c.l.b16 %v660
    %v1333 = vunpack.c.h.b16 %v660
    %v1334 = vunpack.c.l.b16 %v661
    %v1335 = vunpack.c.h.b16 %v661
    %v1336 = vunpack.c.l.b16 %v662
    %v1337 = vunpack.c.h.b16 %v662
    %v1338 = vunpack.c.l.b16 %v663
    %v1339 = vunpack.c.h.b16 %v663
    %v1340 = vunpack.c.l.b16 %v664
    %v1341 = vunpack.c.h.b16 %v664
    %v1342 = vunpack.c.l.b16 %v665
    %v1343 = vunpack.c.h.b16 %v665
    %v1344 = vunpack.c.l.b16 %v666
    %v1345 = vunpack.c.h.b16 %v666
    %v1346 = vunpack.c.l.b16 %v667
    %v1347 = vunpack.c.h.b16 %v667
    %v1348 = vunpack.c.l.b16 %v668
    %v1349 = vunpack.c.h.b16 %v668
    %v1350 = vunpack.c.l.b16 %v669
    %v1351 = vunpack.c.h.b16 %v669
    %v1352 = vunpack.c.l.b16 %v670
    %v1353 = vunpack.c.h.b16 %v670
    %v1354 = vunpack.c.l.b16 %v671
    %v1355 = vunpack.c.h.b16 %v671
    %v1356 = vunpack.c.l.b16 %v672
    %v1357 = vunpack.c.h.b16 %v672
    %v1358 = vunpack.c.l.b16 %v673
    %v1359 = vunpack.c.h.b16 %v673
    %v1360 = vunpack.c.l.b16 %v674
    %v1361 = vunpack.c.h.b16 %v674
    %v1362 = vunpack.c.l.b16 %v675
    %v1363 = vunpack.c.h.b16 %v675
    %v1364 = vunpack.c.l.b16 %v676
    %v1365 = vunpack.c.h.b16 %v676
    %v1366 = vunpack.c.l.b16 %v677
    %v1367 = vunpack.c.h.b16 %v677
    %v1368 = vunpack.c.l.b16 %v678
    %v1369 = vunpack.c.h.b16 %v678
    %v1370 = vunpack.c.l.b16 %v679
    %v1371 = vunpack.c.h.b16 %v679
    %v1372 = vunpack.c.l.b16 %v680
    %v1373 = vunpack.c.h.b16 %v680
    %v1374 = vunpack.c.l.b16 %v681
    %v1375 = vunpack.c.h.b16 %v681
    %v1376 = vunpack.c.l.b16 %v682
    %v1377 = vunpack.c.h.b16 %v682
    %v1378 = vunpack.c.l.b16 %v683
    %v1379 = vunpack.c.h.b16 %v683
    %v1380 = vunpack.c.l.b16 %v684
    %v1381 = vunpack.c.h.b16 %v684
    %v1382 = vunpack.c.l.b16 %v685
    %v1383 = vunpack.c.h.b16 %v685
    %v1384 = vunpack.c.l.b16 %v686
    %v1385 = vunpack.c.h.b16 %v686
    %v1386 = vunpack.c.l.b16 %v687
    %v1387 = vunpack.c.h.b16 %v687
    %v1388 = vunpack.c.l.b16 %v688
    %v1389 = vunpack.c.h.b16 %v688
    %v1390 = vunpack.c.l.b16 %v689
    %v1391 = vunpack.c.h.b16 %v689
    %v1392 = vunpack.c.l.b16 %v690
    %v1393 = vunpack.c.h.b16 %v690
    %v1394 = vunpack.c.l.b16 %v691
    %v1395 = vunpack.c.h.b16 %v691
    %v1396 = vunpack.c.l.b16 %v692
    %v1397 = vunpack.c.h.b16 %v692
    %v1398 = vunpack.c.l.b16 %v693
    %v1399 = vunpack.c.h.b16 %v693
    %v1400 = vunpack.c.l.b16 %v694
    %v1401 = vunpack.c.h.b16 %v694
    %v1402 = vunpack.c.l.b16 %v695
    %v1403 = vunpack.c.h.b16 %v695
    %v1404 = vunpack.c.l.b16 %v696
    %v1405 = vunpack.c.h.b16 %v696
    %v1406 = vunpack.c.l.b16 %v697
    %v1407 = vunpack.c.h.b16 %v697
    %v1408 = vunpack.c.l.b16 %v698
    %v1409 = vunpack.c.h.b16 %v698
    %v1410 = vunpack.c.l.b16 %v699
    %v1411 = vunpack.c.h.b16 %v699
    %v1412 = vunpack.c.l.b16 %v700
    %v1413 = vunpack.c.h.b16 %v700
    %v1414 = vunpack.c.l.b16 %v701
    %v1415 = vunpack.c.h.b16 %v701
    %v1416 = vunpack.c.l.b16 %v702
    %v1417 = vunpack.c.h.b16 %v702
    %v1418 = vunpack.c.l.b16 %v703
    %v1419 = vunpack.c.h.b16 %v703
    %v1420 = vunpack.c.l.b16 %v704
    %v1421 = vunpack.c.h.b16 %v704
    %v1422 = vunpack.c.l.b16 %v705
    %v1423 = vunpack.c.h.b16 %v705
    %v1424 = vunpack.c.l.b16 %v706
    %v1425 = vunpack.c.h.b16 %v706
    %v1426 = vunpack.c.l.b16 %v707
    %v1427 = vunpack.c.h.b16 %v707
    %v1428 = vunpack.c.l.b16 %v708
    %v1429 = vunpack.c.h.b16 %v708
    %v1430 = vunpack.c.l.b16 %v709
    %v1431 = vunpack.c.h.b16 %v709
    %v1432 = vunpack.c.l.b16 %v710
    %v1433 = vunpack.c.h.b16 %v710
    %v1434 = vunpack.c.l.b16 %v711
    %v1435 = vunpack.c.h.b16 %v711
    %v1436 = vunpack.c.l.b16 %v712
    %v1437 = vunpack.c.h.b16 %v712
    %v1438 = vunpack.c.l.b16 %v713
    %v1439 = vunpack.c.h.b16 %v713
    %v1440 = vunpack.c.l.b16 %v714
    %v1441 = vunpack.c.h.b16 %v714
    %v1442 = vunpack.c.l.b16 %v715
    %v1443 = vunpack.c.h.b16 %v715
    %v1444 = vunpack.c.l.b16 %v716
    %v1445 = vunpack.c.h.b16 %v716
    %v1446 = vunpack.c.l.b16 %v717
    %v1447 = vunpack.c.h.b16 %v717
    %v1448 = vunpack.c.l.b16 %v718
    %v1449 = vunpack.c.h.b16 %v718
    %v1450 = vunpack.c.l.b16 %v719
    %v1451 = vunpack.c.h.b16 %v719
    %v1452 = vunpack.c.l.b16 %v720
    %v1453 = vunpack.c.h.b16 %v720
    %v1454 = vunpack.c.l.b16 %v721
    %v1455 = vunpack.c.h.b16 %v721
    %v1456 = vunpack.c.l.b16 %v722
    %v1457 = vunpack.c.h.b16 %v722
    %v1458 = vunpack.c.l.b16 %v723
    %v1459 = vunpack.c.h.b16 %v723
    %v1460 = vunpack.c.l.b16 %v724
    %v1461 = vunpack.c.h.b16 %v724
    %v1462 = vunpack.c.l.b16 %v725
    %v1463 = vunpack.c.h.b16 %v725
    %v1464 = vunpack.c.l.b16 %v726
    %v1465 = vunpack.c.h.b16 %v726
    %v1466 = vunpack.c.l.b16 %v727
    %v1467 = vunpack.c.h.b16 %v727
    %v1468 = vunpack.c.l.b16 %v728
    %v1469 = vunpack.c.h.b16 %v728
    %v1470 = vunpack.c.l.b16 %v729
    %v1471 = vunpack.c.h.b16 %v729
    %v1472 = vunpack.c.l.b16 %v730
    %v1473 = vunpack.c.h.b16 %v730
    %v1474 = vunpack.c.l.b16 %v731
    %v1475 = vunpack.c.h.b16 %v731
    %v1476 = vunpack.c.l.b16 %v732
    %v1477 = vunpack.c.h.b16 %v732
    %v1478 = vunpack.c.l.b16 %v733
    %v1479 = vunpack.c.h.b16 %v733
    %v1480 = vunpack.c.l.b16 %v734
    %v1481 = vunpack.c.h.b16 %v734
    %v1482 = vunpack.c.l.b16 %v735
    %v1483 = vunpack.c.h.b16 %v735
    %v1484 = vunpack.c.l.b16 %v736
    %v1485 = vunpack.c.h.b16 %v736
    %v1486 = vunpack.c.l.b16 %v737
    %v1487 = vunpack.c.h.b16 %v737
    %v1488 = vunpack.c.l.b16 %v738
    %v1489 = vunpack.c.h.b16 %v738
    %v1490 = vunpack.c.l.b16 %v739
    %v1491 = vunpack.c.h.b16 %v739
    %v1492 = vunpack.c.l.b16 %v740
    %v1493 = vunpack.c.h.b16 %v740
    %v1494 = vunpack.c.l.b16 %v741
    %v1495 = vunpack.c.h.b16 %v741
    %v1496 = vunpack.c.l.b16 %v742
    %v1497 = vunpack.c.h.b16 %v742
    %v1498 = vunpack.c.l.b16 %v743
    %v1499 = vunpack.c.h.b16 %v743
    %v1500 = vunpack.c.l.b16 %v744
    %v1501 = vunpack.c.h.b16 %v744
    %v1502 = vunpack.c.l.b16 %v745
    %v1503 = vunpack.c.h.b16 %v745
    %v1504 = vunpack.c.l.b16 %v746
    %v1505 = vunpack.c.h.b16 %v746
    %v1506 = vunpack.c.l.b16 %v747
    %v1507 = vunpack.c.h.b16 %v747
    %v1508 = vunpack.c.l.b16 %v748
    %v1509 = vunpack.c.h.b16 %v748
    %v1510 = vunpack.c.l.b16 %v749
    %v1511 = vunpack.c.h.b16 %v749
    %v1512 = vunpack.c.l.b16 %v750
    %v1513 = vunpack.c.h.b16 %v750
    %v1514 = vunpack.c.l.b16 %v751
    %v1515 = vunpack.c.h.b16 %v751
    %v1516 = vunpack.c.l.b16 %v752
    %v1517 = vunpack.c.h.b16 %v752
    %v1518 = vunpack.c.l.b16 %v753
    %v1519 = vunpack.c.h.b16 %v753
    %v1520 = vunpack.c.l.b16 %v754
    %v1521 = vunpack.c.h.b16 %v754
    %v1522 = vunpack.c.l.b16 %v755
    %v1523 = vunpack.c.h.b16 %v755
    %v1524 = vunpack.c.l.b16 %v756
    %v1525 = vunpack.c.h.b16 %v756
    %v1526 = vunpack.c.l.b16 %v757
    %v1527 = vunpack.c.h.b16 %v757
    %v1528 = vunpack.c.l.b16 %v758
    %v1529 = vunpack.c.h.b16 %v758
    %v1530 = vunpack.c.l.b16 %v759
    %v1531 = vunpack.c.h.b16 %v759
    %v1532 = vunpack.c.l.b16 %v760
    %v1533 = vunpack.c.h.b16 %v760
    %v1534 = vunpack.c.l.b16 %v761
    %v1535 = vunpack.c.h.b16 %v761
    %v1536 = vunpack.c.l.b16 %v762
    %v1537 = vunpack.c.h.b16 %v762
    %v1538 = vunpack.c.l.b16 %v763
    %v1539 = vunpack.c.h.b16 %v763
    %v1540 = vunpack.c.l.b16 %v764
    %v1541 = vunpack.c.h.b16 %v764
    %v1542 = vunpack.c.l.b16 %v765
    %v1543 = vunpack.c.h.b16 %v765
    %v1544 = vunpack.c.l.b16 %v766
    %v1545 = vunpack.c.h.b16 %v766
    %v1546 = vunpack.c.l.b16 %v767
    %v1547 = vunpack.c.h.b16 %v767
    %v1548 = vunpack.c.l.b16 %v768
    %v1549 = vunpack.c.h.b16 %v768
    %v1550 = vunpack.c.l.b16 %v769
    %v1551 = vunpack.c.h.b16 %v769
    %v1552 = vunpack.c.l.b16 %v770
    %v1553 = vunpack.c.h.b16 %v770
    %v1554 = vunpack.c.l.b16 %v771
    %v1555 = vunpack.c.h.b16 %v771
    %v1556 = vunpack.c.l.b16 %v772
    %v1557 = vunpack.c.h.b16 %v772
    %v1558 = vunpack.c.l.b16 %v773
    %v1559 = vunpack.c.h.b16 %v773
    %v1560 = vunpack.c.l.b16 %v774
    %v1561 = vunpack.c.h.b16 %v774
    %v1562 = vunpack.c.l.b16 %v775
    %v1563 = vunpack.c.h.b16 %v775
    %v1564 = vunpack.c.l.b16 %v776
    %v1565 = vunpack.c.h.b16 %v776
    %v1566 = vunpack.c.l.b16 %v777
    %v1567 = vunpack.c.h.b16 %v777
    %v1568 = vunpack.c.l.b16 %v778
    %v1569 = vunpack.c.h.b16 %v778
    %v1570 = vunpack.c.l.b16 %v779
    %v1571 = vunpack.c.h.b16 %v779
    %v1572 = vunpack.c.l.b16 %v780
    %v1573 = vunpack.c.h.b16 %v780
    %v1574 = vunpack.c.l.b16 %v781
    %v1575 = vunpack.c.h.b16 %v781
    %v1576 = vunpack.c.l.b16 %v782
    %v1577 = vunpack.c.h.b16 %v782
    %v1578 = vunpack.c.l.b16 %v783
    %v1579 = vunpack.c.h.b16 %v783
    %v1580 = vunpack.c.l.b16 %v784
    %v1581 = vunpack.c.h.b16 %v784
    %v1582 = vunpack.c.l.b16 %v785
    %v1583 = vunpack.c.h.b16 %v785
    %v1584 = vunpack.c.l.b16 %v786
    %v1585 = vunpack.c.h.b16 %v786
    %v1586 = vunpack.c.l.b16 %v787
    %v1587 = vunpack.c.h.b16 %v787
    %v1588 = vunpack.c.l.b16 %v788
    %v1589 = vunpack.c.h.b16 %v788
    %v1590 = vunpack.c.l.b16 %v789
    %v1591 = vunpack.c.h.b16 %v789
    %v1592 = vunpack.c.l.b16 %v790
    %v1593 = vunpack.c.h.b16 %v790
    %v1594 = vunpack.c.l.b16 %v791
    %v1595 = vunpack.c.h.b16 %v791
    %v1596 = vunpack.c.l.b16 %v792
    %v1597 = vunpack.c.h.b16 %v792
    %v1598 = vunpack.c.l.b16 %v793
    %v1599 = vunpack.c.h.b16 %v793
    %v1600 = vunpack.c.l.b16 %v794
    %v1601 = vunpack.c.h.b16 %v794
    %v1602 = vunpack.c.l.b16 %v795
    %v1603 = vunpack.c.h.b16 %v795
    %v1604 = vunpack.c.l.b16 %v796
    %v1605 = vunpack.c.h.b16 %v796
    %v1606 = vunpack.c.l.b16 %v797
    %v1607 = vunpack.c.h.b16 %v797
    %v1608 = vunpack.c.l.b16 %v798
    %v1609 = vunpack.c.h.b16 %v798
    %v1610 = vunpack.c.l.b16 %v799
    %v1611 = vunpack.c.h.b16 %v799
    %v1612 = vunpack.c.l.b16 %v800
    %v1613 = vunpack.c.h.b16 %v800
    %v1614 = vunpack.c.l.b16 %v801
    %v1615 = vunpack.c.h.b16 %v801
    %v1616 = vunpack.c.l.b16 %v802
    %v1617 = vunpack.c.h.b16 %v802
    %v1618 = vunpack.c.l.b16 %v803
    %v1619 = vunpack.c.h.b16 %v803
    %v1620 = vunpack.c.l.b16 %v804
    %v1621 = vunpack.c.h.b16 %v804
    %v1622 = vunpack.c.l.b16 %v805
    %v1623 = vunpack.c.h.b16 %v805
    %v1624 = vunpack.c.l.b16 %v806
    %v1625 = vunpack.c.h.b16 %v806
    %v1626 = vunpack.c.l.b16 %v807
    %v1627 = vunpack.c.h.b16 %v807
    %v1628 = vunpack.c.l.b16 %v808
    %v1629 = vunpack.c.h.b16 %v808
    %v1630 = vunpack.c.l.b16 %v809
    %v1631 = vunpack.c.h.b16 %v809
    %v1632 = vunpack.c.l.b16 %v810
    %v1633 = vunpack.c.h.b16 %v810
    %v1634 = vunpack.c.l.b16 %v811
    %v1635 = vunpack.c.h.b16 %v811
    %v1636 = vunpack.c.l.b16 %v812
    %v1637 = vunpack.c.h.b16 %v812
    %v1638 = vunpack.c.l.b16 %v813
    %v1639 = vunpack.c.h.b16 %v813
    %v1640 = vunpack.c.l.b16 %v814
    %v1641 = vunpack.c.h.b16 %v814
    %v1642 = vunpack.c.l.b16 %v815
    %v1643 = vunpack.c.h.b16 %v815
    %v1644 = vunpack.c.l.b16 %v816
    %v1645 = vunpack.c.h.b16 %v816
    %v1646 = vunpack.c.l.b16 %v817
    %v1647 = vunpack.c.h.b16 %v817
    %v1648 = vunpack.c.l.b16 %v818
    %v1649 = vunpack.c.h.b16 %v818
    %v1650 = vunpack.c.l.b16 %v819
    %v1651 = vunpack.c.h.b16 %v819
    %v1652 = vunpack.c.l.b16 %v820
    %v1653 = vunpack.c.h.b16 %v820
    %v1654 = vunpack.c.l.b16 %v821
    %v1655 = vunpack.c.h.b16 %v821
    %v1656 = vunpack.c.l.b16 %v822
    %v1657 = vunpack.c.h.b16 %v822
    %v1658 = vunpack.c.l.b16 %v823
    %v1659 = vunpack.c.h.b16 %v823
    %v1660 = vunpack.c.l.b16 %v824
    %v1661 = vunpack.c.h.b16 %v824
    %v1662 = vunpack.c.l.b16 %v825
    %v1663 = vunpack.c.h.b16 %v825
    %v1664 = vunpack.c.l.b16 %v826
    %v1665 = vunpack.c.h.b16 %v826
    %v1666 = vunpack.c.l.b16 %v827
    %v1667 = vunpack.c.h.b16 %v827
    %v1668 = vunpack.c.l.b16 %v828
    %v1669 = vunpack.c.h.b16 %v828
    %v1670 = vunpack.c.l.b16 %v829
    %v1671 = vunpack.c.h.b16 %v829
    %v1672 = vunpack.c.l.b16 %v830
    %v1673 = vunpack.c.h.b16 %v830
    %v1674 = vunpack.c.l.b16 %v831
    %v1675 = vunpack.c.h.b16 %v831
    %v1676 = vunpack.c.l.b16 %v832
    %v1677 = vunpack.c.h.b16 %v832
    %v1678 = vunpack.c.l.b16 %v833
    %v1679 = vunpack.c.h.b16 %v833
    %v1680 = vunpack.c.l.b16 %v834
    %v1681 = vunpack.c.h.b16 %v834
    %v1682 = vunpack.c.l.b16 %v835
    %v1683 = vunpack.c.h.b16 %v835
    %v1684 = vunpack.c.l.b16 %v836
    %v1685 = vunpack.c.h.b16 %v836
    %v1686 = vunpack.c.l.b16 %v837
    %v1687 = vunpack.c.h.b16 %v837
    %v1688 = vunpack.c.l.b16 %v838
    %v1689 = vunpack.c.h.b16 %v838
    %v1690 = vunpack.c.l.b16 %v839
    %v1691 = vunpack.c.h.b16 %v839
    %v1692 = vunpack.c.l.b16 %v840
    %v1693 = vunpack.c.h.b16 %v840
    %v1694 = vunpack.c.l.b16 %v841
    %v1695 = vunpack.c.h.b16 %v841
    %v1696 = vunpack.c.l.b16 %v842
    %v1697 = vunpack.c.h.b16 %v842
    %v1698 = vunpack.c.l.b16 %v843
    %v1699 = vunpack.c.h.b16 %v843
    %v1700 = vunpack.c.l.b16 %v844
    %v1701 = vunpack.c.h.b16 %v844
    %v1702 = vunpack.c.l.b16 %v845
    %v1703 = vunpack.c.h.b16 %v845
    %v1704 = vunpack.c.l.b16 %v846
    %v1705 = vunpack.c.h.b16 %v846
    %v1706 = vunpack.c.l.b16 %v847
    %v1707 = vunpack.c.h.b16 %v847
    %v1708 = vunpack.c.l.b16 %v848
    %v1709 = vunpack.c.h.b16 %v848
    %v1710 = vunpack.c.l.b16 %v849
    %v1711 = vunpack.c.h.b16 %v849
    %v1712 = vunpack.c.l.b16 %v850
    %v1713 = vunpack.c.h.b16 %v850
    %v1714 = vunpack.c.l.b16 %v851
    %v1715 = vunpack.c.h.b16 %v851
    %v1716 = vunpack.c.l.b16 %v852
    %v1717 = vunpack.c.h.b16 %v852
    %v1718 = vunpack.c.l.b16 %v853
    %v1719 = vunpack.c.h.b16 %v853
    %v1720 = vunpack.c.l.b16 %v854
    %v1721 = vunpack.c.h.b16 %v854
    %v1722 = vunpack.c.l.b16 %v855
    %v1723 = vunpack.c.h.b16 %v855
    %v1724 = vunpack.c.l.b16 %v856
    %v1725 = vunpack.c.h.b16 %v856
    %v1726 = vunpack.c.l.b16 %v857
    %v1727 = vunpack.c.h.b16 %v857
    %v1728 = vunpack.c.l.b16 %v858
    %v1729 = vunpack.c.h.b16 %v858
    %v1730 = vunpack.c.l.b16 %v859
    %v1731 = vunpack.c.h.b16 %v859
    %v1732 = vunpack.c.l.b16 %v860
    %v1733 = vunpack.c.h.b16 %v860
    %v1734 = vunpack.c.l.b16 %v861
    %v1735 = vunpack.c.h.b16 %v861
    %v1736 = vunpack.c.l.b16 %v862
    %v1737 = vunpack.c.h.b16 %v862
    %v1738 = vunpack.c.l.b16 %v863
    %v1739 = vunpack.c.h.b16 %v863
    %v1740 = vunpack.c.l.b16 %v864
    %v1741 = vunpack.c.h.b16 %v864
    %v1742 = vunpack.c.l.b16 %v865
    %v1743 = vunpack.c.h.b16 %v865
    %v1744 = vunpack.c.l.b16 %v866
    %v1745 = vunpack.c.h.b16 %v866
    %v1746 = vunpack.c.l.b16 %v867
    %v1747 = vunpack.c.h.b16 %v867
    %v1748 = vunpack.c.l.b16 %v868
    %v1749 = vunpack.c.h.b16 %v868
    %v1750 = vunpack.c.l.b16 %v869
    %v1751 = vunpack.c.h.b16 %v869
    %v1752 = vunpack.c.l.b16 %v870
    %v1753 = vunpack.c.h.b16 %v870
    %v1754 = vunpack.c.l.b16 %v871
    %v1755 = vunpack.c.h.b16 %v871
    %v1756 = vunpack.c.l.b16 %v872
    %v1757 = vunpack.c.h.b16 %v872
    %v1758 = vunpack.c.l.b16 %v873
    %v1759 = vunpack.c.h.b16 %v873
    %v1760 = vunpack.c.l.b16 %v874
    %v1761 = vunpack.c.h.b16 %v874
    %v1762 = vunpack.c.l.b16 %v875
    %v1763 = vunpack.c.h.b16 %v875
    %v1764 = vunpack.c.l.b16 %v876
    %v1765 = vunpack.c.h.b16 %v876
    %v1766 = vunpack.c.l.b16 %v877
    %v1767 = vunpack.c.h.b16 %v877
    %v1768 = vunpack.c.l.b16 %v878
    %v1769 = vunpack.c.h.b16 %v878
    %v1770 = vunpack.c.l.b16 %v879
    %v1771 = vunpack.c.h.b16 %v879
    %v1772 = vunpack.c.l.b16 %v880
    %v1773 = vunpack.c.h.b16 %v880
    %v1774 = vunpack.c.l.b16 %v881
    %v1775 = vunpack.c.h.b16 %v881
    %v1776 = vunpack.c.l.b16 %v882
    %v1777 = vunpack.c.h.b16 %v882
    %v1778 = vunpack.c.l.b16 %v883
    %v1779 = vunpack.c.h.b16 %v883
    %v1780 = vpack.c.b16 %v1210, %v1204
    %v1781 = vpack.c.b16 %v1211, %v1205
    %v1782 = vpack.c.b16 %v1212, %v1206
    %v1783 = vpack.c.b16 %v1213, %v1207
    %v1784 = vpack.c.b16 %v1214, %v1208
    %v1785 = vpack.c.b16 %v1215, %v1209
    %v1786 = vpack.c.b16 %v1222, %v1216
    %v1787 = vpack.c.b16 %v1223, %v1217
    %v1788 = vpack.c.b16 %v1224, %v1218
    %v1789 = vpack.c.b16 %v1225, %v1219
    %v1790 = vpack.c.b16 %v1226, %v1220
    %v1791 = vpack.c.b16 %v1227, %v1221
    %v1792 = vpack.c.b16 %v1234, %v1228
    %v1793 = vpack.c.b16 %v1235, %v1229
    %v1794 = vpack.c.b16 %v1236, %v1230
    %v1795 = vpack.c.b16 %v1237, %v1231
    %v1796 = vpack.c.b16 %v1238, %v1232
    %v1797 = vpack.c.b16 %v1239, %v1233
    %v1798 = vpack.c.b16 %v1246, %v1240
    %v1799 = vpack.c.b16 %v1247, %v1241
    %v1800 = vpack.c.b16 %v1248, %v1242
    %v1801 = vpack.c.b16 %v1249, %v1243
    %v1802 = vpack.c.b16 %v1250, %v1244
    %v1803 = vpack.c.b16 %v1251, %v1245
    %v1804 = vpack.c.b16 %v1258, %v1252
    %v1805 = vpack.c.b16 %v1259, %v1253
    %v1806 = vpack.c.b16 %v1260, %v1254
    %v1807 = vpack.c.b16 %v1261, %v1255
    %v1808 = vpack.c.b16 %v1262, %v1256
    %v1809 = vpack.c.b16 %v1263, %v1257
    %v1810 = vpack.c.b16 %v1270, %v1264
    %v1811 = vpack.c.b16 %v1271, %v1265
    %v1812 = vpack.c.b16 %v1272, %v1266
    %v1813 = vpack.c.b16 %v1273, %v1267
    %v1814 = vpack.c.b16 %v1274, %v1268
    %v1815 = vpack.c.b16 %v1275, %v1269
    %v1816 = vpack.c.b16 %v1282, %v1276
    %v1817 = vpack.c.b16 %v1283, %v1277
    %v1818 = vpack.c.b16 %v1284, %v1278
    %v1819 = vpack.c.b16 %v1285, %v1279
    %v1820 = vpack.c.b16 %v1286, %v1280
    %v1821 = vpack.c.b16 %v1287, %v1281
    %v1822 = vpack.c.b16 %v1294, %v1288
    %v1823 = vpack.c.b16 %v1295, %v1289
    %v1824 = vpack.c.b16 %v1296, %v1290
    %v1825 = vpack.c.b16 %v1297, %v1291
    %v1826 = vpack.c.b16 %v1298, %v1292
    %v1827 = vpack.c.b16 %v1299, %v1293
    %v1828 = vpack.c.b16 %v1306, %v1300
    %v1829 = vpack.c.b16 %v1307, %v1301
    %v1830 = vpack.c.b16 %v1308, %v1302
    %v1831 = vpack.c.b16 %v1309, %v1303
    %v1832 = vpack.c.b16 %v1310, %v1304
    %v1833 = vpack.c.b16 %v1311, %v1305
    %v1834 = vpack.c.b16 %v1318, %v1312
    %v1835 = vpack.c.b16 %v1319, %v1313
    %v1836 = vpack.c.b16 %v1320, %v1314
    %v1837 = vpack.c.b16 %v1321, %v1315
    %v1838 = vpack.c.b16 %v1322, %v1316
    %v1839 = vpack.c.b16 %v1323, %v1317
    %v1840 = vpack.c.b16 %v1330, %v1324
    %v1841 = vpack.c.b16 %v1331, %v1325
    %v1842 = vpack.c.b16 %v1332, %v1326
    %v1843 = vpack.c.b16 %v1333, %v1327
    %v1844 = vpack.c.b16 %v1334, %v1328
    %v1845 = vpack.c.b16 %v1335, %v1329
    %v1846 = vpack.c.b16 %v1342, %v1336
    %v1847 = vpack.c.b16 %v1343, %v1337
    %v1848 = vpack.c.b16 %v1344, %v1338
    %v1849 = vpack.c.b16 %v1345, %v1339
    %v1850 = vpack.c.b16 %v1346, %v1340
    %v1851 = vpack.c.b16 %v1347, %v1341
    %v1852 = vpack.c.b16 %v1354, %v1348
    %v1853 = vpack.c.b16 %v1355, %v1349
    %v1854 = vpack.c.b16 %v1356, %v1350
    %v1855 = vpack.c.b16 %v1357, %v1351
    %v1856 = vpack.c.b16 %v1358, %v1352
    %v1857 = vpack.c.b16 %v1359, %v1353
    %v1858 = vpack.c.b16 %v1366, %v1360
    %v1859 = vpack.c.b16 %v1367, %v1361
    %v1860 = vpack.c.b16 %v1368, %v1362
    %v1861 = vpack.c.b16 %v1369, %v1363
    %v1862 = vpack.c.b16 %v1370, %v1364
    %v1863 = vpack.c.b16 %v1371, %v1365
    %v1864 = vpack.c.b16 %v1378, %v1372
    %v1865 = vpack.c.b16 %v1379, %v1373
    %v1866 = vpack.c.b16 %v1380, %v1374
    %v1867 = vpack.c.b16 %v1381, %v1375
    %v1868 = vpack.c.b16 %v1382, %v1376
    %v1869 = vpack.c.b16 %v1383, %v1377
    %v1870 = vpack.c.b16 %v1390, %v1384
    %v1871 = vpack.c.b16 %v1391, %v1385
    %v1872 = vpack.c.b16 %v1392, %v1386
    %v1873 = vpack.c.b16 %v1393, %v1387
    %v1874 = vpack.c.b16 %v1394, %v1388
    %v1875 = vpack.c.b16 %v1395, %v1389
    %v1876 = vpack.c.b16 %v1402, %v1396
    %v1877 = vpack.c.b16 %v1403, %v1397
    %v1878 = vpack.c.b16 %v1404, %v1398
    %v1879 = vpack.c.b16 %v1405, %v1399
    %v1880 = vpack.c.b16 %v1406, %v1400
    %v1881 = vpack.c.b16 %v1407, %v1401
    %v1882 = vpack.c.b16 %v1414, %v1408
    %v1883 = vpack.c.b16 %v1415, %v1409
    %v1884 = vpack.c.b16 %v1416, %v1410
    %v1885 = vpack.c.b16 %v1417, %v1411
    %v1886 = vpack.c.b16 %v1418, %v1412
    %v1887 = vpack.c.b16 %v1419, %v1413
    %v1888 = vpack.c.b16 %v1426, %v1420
    %v1889 = vpack.c.b16 %v1427, %v1421
    %v1890 = vpack.c.b16 %v1428, %v1422
    %v1891 = vpack.c.b16 %v1429, %v1423
    %v1892 = vpack.c.b16 %v1430, %v1424
    %v1893 = vpack.c.b16 %v1431, %v1425
    %v1894 = vpack.c.b16 %v1438, %v1432
    %v1895 = vpack.c.b16 %v1439, %v1433
    %v1896 = vpack.c.b16 %v1440, %v1434
    %v1897 = vpack.c.b16 %v1441, %v1435
    %v1898 = vpack.c.b16 %v1442, %v1436
    %v1899 = vpack.c.b16 %v1443, %v1437
    %v1900 = vpack.c.b16 %v1450, %v1444
    %v1901 = vpack.c.b16 %v1451, %v1445
    %v1902 = vpack.c.b16 %v1452, %v1446
    %v1903 = vpack.c.b16 %v1453, %v1447
    %v1904 = vpack.c.b16 %v1454, %v1448
    %v1905 = vpack.c.b16 %v1455, %v1449
    %v1906 = vpack.c.b16 %v1462, %v1456
    %v1907 = vpack.c.b16 %v1463, %v1457
    %v1908 = vpack.c.b16 %v1464, %v1458
    %v1909 = vpack.c.b16 %v1465, %v1459
    %v1910 = vpack.c.b16 %v1466, %v1460
    %v1911 = vpack.c.b16 %v1467, %v1461
    %v1912 = vpack.c.b16 %v1474, %v1468
    %v1913 = vpack.c.b16 %v1475, %v1469
    %v1914 = vpack.c.b16 %v1476, %v1470
    %v1915 = vpack.c.b16 %v1477, %v1471
    %v1916 = vpack.c.b16 %v1478, %v1472
    %v1917 = vpack.c.b16 %v1479, %v1473
    %v1918 = vpack.c.b16 %v1486, %v1480
    %v1919 = vpack.c.b16 %v1487, %v1481
    %v1920 = vpack.c.b16 %v1488, %v1482
    %v1921 = vpack.c.b16 %v1489, %v1483
    %v1922 = vpack.c.b16 %v1490, %v1484
    %v1923 = vpack.c.b16 %v1491, %v1485
    %v1924 = vpack.c.b16 %v1498, %v1492
    %v1925 = vpack.c.b16 %v1499, %v1493
    %v1926 = vpack.c.b16 %v1500, %v1494
    %v1927 = vpack.c.b16 %v1501, %v1495
    %v1928 = vpack.c.b16 %v1502, %v1496
    %v1929 = vpack.c.b16 %v1503, %v1497
    %v1930 = vpack.c.b16 %v1510, %v1504
    %v1931 = vpack.c.b16 %v1511, %v1505
    %v1932 = vpack.c.b16 %v1512, %v1506
    %v1933 = vpack.c.b16 %v1513, %v1507
    %v1934 = vpack.c.b16 %v1514, %v1508
    %v1935 = vpack.c.b16 %v1515, %v1509
    %v1936 = vpack.c.b16 %v1522, %v1516
    %v1937 = vpack.c.b16 %v1523, %v1517
    %v1938 = vpack.c.b16 %v1524, %v1518
    %v1939 = vpack.c.b16 %v1525, %v1519
    %v1940 = vpack.c.b16 %v1526, %v1520
    %v1941 = vpack.c.b16 %v1527, %v1521
    %v1942 = vpack.c.b16 %v1534, %v1528
    %v1943 = vpack.c.b16 %v1535, %v1529
    %v1944 = vpack.c.b16 %v1536, %v1530
    %v1945 = vpack.c.b16 %v1537, %v1531
    %v1946 = vpack.c.b16 %v1538, %v1532
    %v1947 = vpack.c.b16 %v1539, %v1533
    %v1948 = vpack.c.b16 %v1546, %v1540
    %v1949 = vpack.c.b16 %v1547, %v1541
    %v1950 = vpack.c.b16 %v1548, %v1542
    %v1951 = vpack.c.b16 %v1549, %v1543
    %v1952 = vpack.c.b16 %v1550, %v1544
    %v1953 = vpack.c.b16 %v1551, %v1545
    %v1954 = vpack.c.b16 %v1558, %v1552
    %v1955 = vpack.c.b16 %v1559, %v1553
    %v1956 = vpack.c.b16 %v1560, %v1554
    %v1957 = vpack.c.b16 %v1561, %v1555
    %v1958 = vpack.c.b16 %v1562, %v1556
    %v1959 = vpack.c.b16 %v1563, %v1557
    %v1960 = vpack.c.b16 %v1570, %v1564
    %v1961 = vpack.c.b16 %v1571, %v1565
    %v1962 = vpack.c.b16 %v1572, %v1566
    %v1963 = vpack.c.b16 %v1573, %v1567
    %v1964 = vpack.c.b16 %v1574, %v1568
    %v1965 = vpack.c.b16 %v1575, %v1569
    %v1966 = vpack.c.b16 %v1582, %v1576
    %v1967 = vpack.c.b16 %v1583, %v1577
    %v1968 = vpack.c.b16 %v1584, %v1578
    %v1969 = vpack.c.b16 %v1585, %v1579
    %v1970 = vpack.c.b16 %v1586, %v1580
    %v1971 = vpack.c.b16 %v1587, %v1581
    %v1972 = vpack.c.b16 %v1594, %v1588
    %v1973 = vpack.c.b16 %v1595, %v1589
    %v1974 = vpack.c.b16 %v1596, %v1590
    %v1975 = vpack.c.b16 %v1597, %v1591
    %v1976 = vpack.c.b16 %v1598, %v1592
    %v1977 = vpack.c.b16 %v1599, %v1593
    %v1978 = vpack.c.b16 %v1606, %v1600
    %v1979 = vpack.c.b16 %v1607, %v1601
    %v1980 = vpack.c.b16 %v1608, %v1602
    %v1981 = vpack.c.b16 %v1609, %v1603
    %v1982 = vpack.c.b16 %v1610, %v1604
    %v1983 = vpack.c.b16 %v1611, %v1605
    %v1984 = vpack.c.b16 %v1618, %v1612
    %v1985 = vpack.c.b16 %v1619, %v1613
    %v1986 = vpack.c.b16 %v1620, %v1614
    %v1987 = vpack.c.b16 %v1621, %v1615
    %v1988 = vpack.c.b16 %v1622, %v1616
    %v1989 = vpack.c.b16 %v1623, %v1617
    %v1990 = vpack.c.b16 %v1630, %v1624
    %v1991 = vpack.c.b16 %v1631, %v1625
    %v1992 = vpack.c.b16 %v1632, %v1626
    %v1993 = vpack.c.b16 %v1633, %v1627
    %v1994 = vpack.c.b16 %v1634, %v1628
    %v1995 = vpack.c.b16 %v1635, %v1629
    %v1996 = vpack.c.b16 %v1642, %v1636
    %v1997 = vpack.c.b16 %v1643, %v1637
    %v1998 = vpack.c.b16 %v1644, %v1638
    %v1999 = vpack.c.b16 %v1645, %v1639
    %v2000 = vpack.c.b16 %v1646, %v1640
    %v2001 = vpack.c.b16 %v1647, %v1641
    %v2002 = vpack.c.b16 %v1654, %v1648
    %v2003 = vpack.c.b16 %v1655, %v1649
    %v2004 = vpack.c.b16 %v1656, %v1650
    %v2005 = vpack.c.b16 %v1657, %v1651
    %v2006 = vpack.c.b16 %v1658, %v1652
    %v2007 = vpack.c.b16 %v1659, %v1653
    %v2008 = vpack.c.b16 %v1666, %v1660
    %v2009 = vpack.c.b16 %v1667, %v1661
    %v2010 = vpack.c.b16 %v1668, %v1662
    %v2011 = vpack.c.b16 %v1669, %v1663
    %v2012 = vpack.c.b16 %v1670, %v1664
    %v2013 = vpack.c.b16 %v1671, %v1665
    %v2014 = vpack.c.b16 %v1678, %v1672
    %v2015 = vpack.c.b16 %v1679, %v1673
    %v2016 = vpack.c.b16 %v1680, %v1674
    %v2017 = vpack.c.b16 %v1681, %v1675
    %v2018 = vpack.c.b16 %v1682, %v1676
    %v2019 = vpack.c.b16 %v1683, %v1677
    %v2020 = vpack.c.b16 %v1690, %v1684
    %v2021 = vpack.c.b16 %v1691, %v1685
    %v2022 = vpack.c.b16 %v1692, %v1686
    %v2023 = vpack.c.b16 %v1693, %v1687
    %v2024 = vpack.c.b16 %v1694, %v1688
    %v2025 = vpack.c.b16 %v1695, %v1689
    %v2026 = vpack.c.b16 %v1702, %v1696
    %v2027 = vpack.c.b16 %v1703, %v1697
    %v2028 = vpack.c.b16 %v1704, %v1698
    %v2029 = vpack.c.b16 %v1705, %v1699
    %v2030 = vpack.c.b16 %v1706, %v1700
    %v2031 = vpack.c.b16 %v1707, %v1701
    %v2032 = vpack.c.b16 %v1714, %v1708
    %v2033 = vpack.c.b16 %v1715, %v1709
    %v2034 = vpack.c.b16 %v1716, %v1710
    %v2035 = vpack.c.b16 %v1717, %v1711
    %v2036 = vpack.c.b16 %v1718, %v1712
    %v2037 = vpack.c.b16 %v1719, %v1713
    %v2038 = vpack.c.b16 %v1726, %v1720
    %v2039 = vpack.c.b16 %v1727, %v1721
    %v2040 = vpack.c.b16 %v1728, %v1722
    %v2041 = vpack.c.b16 %v1729, %v1723
    %v2042 = vpack.c.b16 %v1730, %v1724
    %v2043 = vpack.c.b16 %v1731, %v1725
    %v2044 = vpack.c.b16 %v1738, %v1732
    %v2045 = vpack.c.b16 %v1739, %v1733
    %v2046 = vpack.c.b16 %v1740, %v1734
    %v2047 = vpack.c.b16 %v1741, %v1735
    %v2048 = vpack.c.b16 %v1742, %v1736
    %v2049 = vpack.c.b16 %v1743, %v1737
    %v2050 = vpack.c.b16 %v1750, %v1744
    %v2051 = vpack.c.b16 %v1751, %v1745
    %v2052 = vpack.c.b16 %v1752, %v1746
    %v2053 = vpack.c.b16 %v1753, %v1747
    %v2054 = vpack.c.b16 %v1754, %v1748
    %v2055 = vpack.c.b16 %v1755, %v1749
    %v2056 = vpack.c.b16 %v1762, %v1756
    %v2057 = vpack.c.b16 %v1763, %v1757
    %v2058 = vpack.c.b16 %v1764, %v1758
    %v2059 = vpack.c.b16 %v1765, %v1759
    %v2060 = vpack.c.b16 %v1766, %v1760
    %v2061 = vpack.c.b16 %v1767, %v1761
    %v2062 = vpack.c.b16 %v1774, %v1768
    %v2063 = vpack.c.b16 %v1775, %v1769
    %v2064 = vpack.c.b16 %v1776, %v1770
    %v2065 = vpack.c.b16 %v1777, %v1771
    %v2066 = vpack.c.b16 %v1778, %v1772
    %v2067 = vpack.c.b16 %v1779, %v1773
    %2356 = vmatprep.subr.bf16.mxu0 %v1823
    %2357 = vmatpush1.bf16.msra.mxu0 %v1822
    %2358 = vmatprep.subr.bf16.mxu0 %v1817
    %2359 = vmatpush1.bf16.msra.mxu0 %v1816
    %2360 = vmatprep.subr.bf16.mxu0 %v1811
    %2361 = vmatpush1.bf16.msra.mxu0 %v1810
    %2362 = vmatprep.subr.bf16.mxu0 %v1805
    %2363 = vmatpush1.bf16.msra.mxu0 %v1804
    %2364 = vmatprep.subr.bf16.mxu0 %v1799
    %2365 = vmatpush1.bf16.msra.mxu0 %v1798
    %2366 = vmatprep.subr.bf16.mxu0 %v1793
    %2367 = vmatpush1.bf16.msra.mxu0 %v1792
    %2368 = vmatprep.subr.bf16.mxu0 %v1787
    %2369 = vmatpush1.bf16.msra.mxu0 %v1786
    %2370 = vmatprep.subr.bf16.mxu0 %v1781
    %2371 = vmatpush1.bf16.msra.mxu0 %v1780
    %2372 = vmatprep.subr.bf16.mxu0 %v1871
    %2373 = vmatpush2.bf16.msra.mxu0 %v1870
    %2374 = vmatprep.subr.bf16.mxu0 %v1865
    %2375 = vmatpush2.bf16.msra.mxu0 %v1864
    %2376 = vmatprep.subr.bf16.mxu0 %v1859
    %2377 = vmatpush2.bf16.msra.mxu0 %v1858
    %2378 = vmatprep.subr.bf16.mxu0 %v1853
    %2379 = vmatpush2.bf16.msra.mxu0 %v1852
    %2380 = vmatprep.subr.bf16.mxu0 %v1847
    %2381 = vmatpush2.bf16.msra.mxu0 %v1846
    %2382 = vmatprep.subr.bf16.mxu0 %v1841
    %2383 = vmatpush2.bf16.msra.mxu0 %v1840
    %2384 = vmatprep.subr.bf16.mxu0 %v1835
    %2385 = vmatpush2.bf16.msra.mxu0 %v1834
    %2386 = vmatprep.subr.bf16.mxu0 %v1829
    %2387 = vmatpush2.bf16.msra.mxu0 %v1828
    %2388 = vmatprep.mubr.bf16.mxu0 %v585
    %2389 = vmatmul.mubr.bf16.gmra.mxu0 %v584
    %v2390 = vpop.f32.mrf.mxu0
    %v2391 = vadd.f32 %v889, %v2390
    %v2392 = vpop.f32.mrf.mxu0
    %v2393 = vadd.f32 %v893, %v2392
    %v2394 = vpop.f32.mrf.mxu0
    %v2395 = vadd.f32 %v889, %v2394
    %v2396 = vpop.f32.mrf.mxu0
    %v2397 = vadd.f32 %v893, %v2396
    %2398 = vmatprep.mubr.bf16.mxu0 %v591
    %2399 = vmatmul.mubr.bf16.gmra.mxu0 %v590
    %v2400 = vpop.f32.mrf.mxu0
    %v2401 = vadd.f32 %v889, %v2400
    %v2402 = vpop.f32.mrf.mxu0
    %v2403 = vadd.f32 %v893, %v2402
    %v2404 = vpop.f32.mrf.mxu0
    %v2405 = vpop.f32.mrf.mxu0
    %2406 = vdwg.mxu0
    %2407 = vmatprep.subr.bf16.mxu0 %v1919
    %2408 = vmatpush1.bf16.msra.mxu0 %v1918
    %2409 = vmatprep.subr.bf16.mxu0 %v1913
    %2410 = vmatpush1.bf16.msra.mxu0 %v1912
    %2411 = vmatprep.subr.bf16.mxu0 %v1907
    %2412 = vmatpush1.bf16.msra.mxu0 %v1906
    %2413 = vmatprep.subr.bf16.mxu0 %v1901
    %2414 = vmatpush1.bf16.msra.mxu0 %v1900
    %2415 = vmatprep.subr.bf16.mxu0 %v1895
    %2416 = vmatpush1.bf16.msra.mxu0 %v1894
    %2417 = vmatprep.subr.bf16.mxu0 %v1889
    %2418 = vmatpush1.bf16.msra.mxu0 %v1888
    %2419 = vmatprep.subr.bf16.mxu0 %v1883
    %2420 = vmatpush1.bf16.msra.mxu0 %v1882
    %2421 = vmatprep.subr.bf16.mxu0 %v1877
    %2422 = vmatpush1.bf16.msra.mxu0 %v1876
    %2423 = vmatprep.subr.bf16.mxu0 %v1967
    %2424 = vmatpush2.bf16.msra.mxu0 %v1966
    %2425 = vmatprep.subr.bf16.mxu0 %v1961
    %2426 = vmatpush2.bf16.msra.mxu0 %v1960
    %2427 = vmatprep.subr.bf16.mxu0 %v1955
    %2428 = vmatpush2.bf16.msra.mxu0 %v1954
    %2429 = vmatprep.subr.bf16.mxu0 %v1949
    %2430 = vmatpush2.bf16.msra.mxu0 %v1948
    %2431 = vmatprep.subr.bf16.mxu0 %v1943
    %2432 = vmatpush2.bf16.msra.mxu0 %v1942
    %2433 = vmatprep.subr.bf16.mxu0 %v1937
    %2434 = vmatpush2.bf16.msra.mxu0 %v1936
    %2435 = vmatprep.subr.bf16.mxu0 %v1931
    %2436 = vmatpush2.bf16.msra.mxu0 %v1930
    %2437 = vmatprep.subr.bf16.mxu0 %v1925
    %2438 = vmatpush2.bf16.msra.mxu0 %v1924
    %2439 = vmatprep.mubr.bf16.mxu0 %v587
    %2440 = vmatmul.mubr.bf16.gmra.mxu0 %v586
    %v2441 = vpop.f32.mrf.mxu0
    %v2442 = vadd.f32 %v2391, %v2441
    %v2443 = vpop.f32.mrf.mxu0
    %v2444 = vadd.f32 %v2393, %v2443
    %v2445 = vpop.f32.mrf.mxu0
    %v2446 = vadd.f32 %v2395, %v2445
    %v2447 = vpop.f32.mrf.mxu0
    %v2448 = vadd.f32 %v2397, %v2447
    %2449 = vmatprep.mubr.bf16.mxu0 %v593
    %2450 = vmatmul.mubr.bf16.gmra.mxu0 %v592
    %v2451 = vpop.f32.mrf.mxu0
    %v2452 = vadd.f32 %v2401, %v2451
    %v2453 = vpop.f32.mrf.mxu0
    %v2454 = vadd.f32 %v2403, %v2453
    %v2455 = vpop.f32.mrf.mxu0
    %v2456 = vpop.f32.mrf.mxu0
    %2457 = vdwg.mxu0
    %2458 = vmatprep.subr.bf16.mxu0 %v2015
    %2459 = vmatpush1.bf16.msra.mxu0 %v2014
    %2460 = vmatprep.subr.bf16.mxu0 %v2009
    %2461 = vmatpush1.bf16.msra.mxu0 %v2008
    %2462 = vmatprep.subr.bf16.mxu0 %v2003
    %2463 = vmatpush1.bf16.msra.mxu0 %v2002
    %2464 = vmatprep.subr.bf16.mxu0 %v1997
    %2465 = vmatpush1.bf16.msra.mxu0 %v1996
    %2466 = vmatprep.subr.bf16.mxu0 %v1991
    %2467 = vmatpush1.bf16.msra.mxu0 %v1990
    %2468 = vmatprep.subr.bf16.mxu0 %v1985
    %2469 = vmatpush1.bf16.msra.mxu0 %v1984
    %2470 = vmatprep.subr.bf16.mxu0 %v1979
    %2471 = vmatpush1.bf16.msra.mxu0 %v1978
    %2472 = vmatprep.subr.bf16.mxu0 %v1973
    %2473 = vmatpush1.bf16.msra.mxu0 %v1972
    %2474 = vmatprep.subr.bf16.mxu0 %v2063
    %2475 = vmatpush2.bf16.msra.mxu0 %v2062
    %2476 = vmatprep.subr.bf16.mxu0 %v2057
    %2477 = vmatpush2.bf16.msra.mxu0 %v2056
    %2478 = vmatprep.subr.bf16.mxu0 %v2051
    %2479 = vmatpush2.bf16.msra.mxu0 %v2050
    %2480 = vmatprep.subr.bf16.mxu0 %v2045
    %2481 = vmatpush2.bf16.msra.mxu0 %v2044
    %2482 = vmatprep.subr.bf16.mxu0 %v2039
    %2483 = vmatpush2.bf16.msra.mxu0 %v2038
    %2484 = vmatprep.subr.bf16.mxu0 %v2033
    %2485 = vmatpush2.bf16.msra.mxu0 %v2032
    %2486 = vmatprep.subr.bf16.mxu0 %v2027
    %2487 = vmatpush2.bf16.msra.mxu0 %v2026
    %2488 = vmatprep.subr.bf16.mxu0 %v2021
    %2489 = vmatpush2.bf16.msra.mxu0 %v2020
    %2490 = vmatprep.mubr.bf16.mxu0 %v589
    %2491 = vmatmul.mubr.bf16.gmra.mxu0 %v588
    %v2492 = vpop.f32.mrf.mxu0
    %v2493 = vadd.f32 %v2442, %v2492
    %v2494 = vpop.f32.mrf.mxu0
    %v2495 = vadd.f32 %v2444, %v2494
    %v2496 = vpop.f32.mrf.mxu0
    %v2497 = vadd.f32 %v2446, %v2496
    %v2498 = vpop.f32.mrf.mxu0
    %v2499 = vadd.f32 %v2448, %v2498
    %2500 = vmatprep.mubr.bf16.mxu0 %v595
    %2501 = vmatmul.mubr.bf16.gmra.mxu0 %v594
    %v2502 = vpop.f32.mrf.mxu0
    %v2503 = vadd.f32 %v2452, %v2502
    %v2504 = vpop.f32.mrf.mxu0
    %v2505 = vadd.f32 %v2454, %v2504
    %v2506 = vpop.f32.mrf.mxu0
    %v2507 = vpop.f32.mrf.mxu0
    %2508 = vdwg.mxu0
    %2509 = vmatprep.subr.bf16.mxu0 %v1825
    %2510 = vmatpush1.bf16.msra.mxu0 %v1824
    %2511 = vmatprep.subr.bf16.mxu0 %v1819
    %2512 = vmatpush1.bf16.msra.mxu0 %v1818
    %2513 = vmatprep.subr.bf16.mxu0 %v1813
    %2514 = vmatpush1.bf16.msra.mxu0 %v1812
    %2515 = vmatprep.subr.bf16.mxu0 %v1807
    %2516 = vmatpush1.bf16.msra.mxu0 %v1806
    %2517 = vmatprep.subr.bf16.mxu0 %v1801
    %2518 = vmatpush1.bf16.msra.mxu0 %v1800
    %2519 = vmatprep.subr.bf16.mxu0 %v1795
    %2520 = vmatpush1.bf16.msra.mxu0 %v1794
    %2521 = vmatprep.subr.bf16.mxu0 %v1789
    %2522 = vmatpush1.bf16.msra.mxu0 %v1788
    %2523 = vmatprep.subr.bf16.mxu0 %v1783
    %2524 = vmatpush1.bf16.msra.mxu0 %v1782
    %2525 = vmatprep.subr.bf16.mxu0 %v1873
    %2526 = vmatpush2.bf16.msra.mxu0 %v1872
    %2527 = vmatprep.subr.bf16.mxu0 %v1867
    %2528 = vmatpush2.bf16.msra.mxu0 %v1866
    %2529 = vmatprep.subr.bf16.mxu0 %v1861
    %2530 = vmatpush2.bf16.msra.mxu0 %v1860
    %2531 = vmatprep.subr.bf16.mxu0 %v1855
    %2532 = vmatpush2.bf16.msra.mxu0 %v1854
    %2533 = vmatprep.subr.bf16.mxu0 %v1849
    %2534 = vmatpush2.bf16.msra.mxu0 %v1848
    %2535 = vmatprep.subr.bf16.mxu0 %v1843
    %2536 = vmatpush2.bf16.msra.mxu0 %v1842
    %2537 = vmatprep.subr.bf16.mxu0 %v1837
    %2538 = vmatpush2.bf16.msra.mxu0 %v1836
    %2539 = vmatprep.subr.bf16.mxu0 %v1831
    %2540 = vmatpush2.bf16.msra.mxu0 %v1830
    %2541 = vmatprep.mubr.bf16.mxu0 %v585
    %2542 = vmatmul.mubr.bf16.gmra.mxu0 %v584
    %v2543 = vpop.f32.mrf.mxu0
    %v2544 = vadd.f32 %v897, %v2543
    %v2545 = vpop.f32.mrf.mxu0
    %v2546 = vadd.f32 %v901, %v2545
    %v2547 = vpop.f32.mrf.mxu0
    %v2548 = vadd.f32 %v897, %v2547
    %v2549 = vpop.f32.mrf.mxu0
    %v2550 = vadd.f32 %v901, %v2549
    %2551 = vmatprep.mubr.bf16.mxu0 %v591
    %2552 = vmatmul.mubr.bf16.gmra.mxu0 %v590
    %v2553 = vpop.f32.mrf.mxu0
    %v2554 = vadd.f32 %v897, %v2553
    %v2555 = vpop.f32.mrf.mxu0
    %v2556 = vadd.f32 %v901, %v2555
    %v2557 = vpop.f32.mrf.mxu0
    %v2558 = vpop.f32.mrf.mxu0
    %2559 = vdwg.mxu0
    %2560 = vmatprep.subr.bf16.mxu0 %v1921
    %2561 = vmatpush1.bf16.msra.mxu0 %v1920
    %2562 = vmatprep.subr.bf16.mxu0 %v1915
    %2563 = vmatpush1.bf16.msra.mxu0 %v1914
    %2564 = vmatprep.subr.bf16.mxu0 %v1909
    %2565 = vmatpush1.bf16.msra.mxu0 %v1908
    %2566 = vmatprep.subr.bf16.mxu0 %v1903
    %2567 = vmatpush1.bf16.msra.mxu0 %v1902
    %2568 = vmatprep.subr.bf16.mxu0 %v1897
    %2569 = vmatpush1.bf16.msra.mxu0 %v1896
    %2570 = vmatprep.subr.bf16.mxu0 %v1891
    %2571 = vmatpush1.bf16.msra.mxu0 %v1890
    %2572 = vmatprep.subr.bf16.mxu0 %v1885
    %2573 = vmatpush1.bf16.msra.mxu0 %v1884
    %2574 = vmatprep.subr.bf16.mxu0 %v1879
    %2575 = vmatpush1.bf16.msra.mxu0 %v1878
    %2576 = vmatprep.subr.bf16.mxu0 %v1969
    %2577 = vmatpush2.bf16.msra.mxu0 %v1968
    %2578 = vmatprep.subr.bf16.mxu0 %v1963
    %2579 = vmatpush2.bf16.msra.mxu0 %v1962
    %2580 = vmatprep.subr.bf16.mxu0 %v1957
    %2581 = vmatpush2.bf16.msra.mxu0 %v1956
    %2582 = vmatprep.subr.bf16.mxu0 %v1951
    %2583 = vmatpush2.bf16.msra.mxu0 %v1950
    %2584 = vmatprep.subr.bf16.mxu0 %v1945
    %2585 = vmatpush2.bf16.msra.mxu0 %v1944
    %2586 = vmatprep.subr.bf16.mxu0 %v1939
    %2587 = vmatpush2.bf16.msra.mxu0 %v1938
    %2588 = vmatprep.subr.bf16.mxu0 %v1933
    %2589 = vmatpush2.bf16.msra.mxu0 %v1932
    %2590 = vmatprep.subr.bf16.mxu0 %v1927
    %2591 = vmatpush2.bf16.msra.mxu0 %v1926
    %2592 = vmatprep.mubr.bf16.mxu0 %v587
    %2593 = vmatmul.mubr.bf16.gmra.mxu0 %v586
    %v2594 = vpop.f32.mrf.mxu0
    %v2595 = vadd.f32 %v2544, %v2594
    %v2596 = vpop.f32.mrf.mxu0
    %v2597 = vadd.f32 %v2546, %v2596
    %v2598 = vpop.f32.mrf.mxu0
    %v2599 = vadd.f32 %v2548, %v2598
    %v2600 = vpop.f32.mrf.mxu0
    %v2601 = vadd.f32 %v2550, %v2600
    %2602 = vmatprep.mubr.bf16.mxu0 %v593
    %2603 = vmatmul.mubr.bf16.gmra.mxu0 %v592
    %v2604 = vpop.f32.mrf.mxu0
    %v2605 = vadd.f32 %v2554, %v2604
    %v2606 = vpop.f32.mrf.mxu0
    %v2607 = vadd.f32 %v2556, %v2606
    %v2608 = vpop.f32.mrf.mxu0
    %v2609 = vpop.f32.mrf.mxu0
    %2610 = vdwg.mxu0
    %2611 = vmatprep.subr.bf16.mxu0 %v2017
    %2612 = vmatpush1.bf16.msra.mxu0 %v2016
    %2613 = vmatprep.subr.bf16.mxu0 %v2011
    %2614 = vmatpush1.bf16.msra.mxu0 %v2010
    %2615 = vmatprep.subr.bf16.mxu0 %v2005
    %2616 = vmatpush1.bf16.msra.mxu0 %v2004
    %2617 = vmatprep.subr.bf16.mxu0 %v1999
    %2618 = vmatpush1.bf16.msra.mxu0 %v1998
    %2619 = vmatprep.subr.bf16.mxu0 %v1993
    %2620 = vmatpush1.bf16.msra.mxu0 %v1992
    %2621 = vmatprep.subr.bf16.mxu0 %v1987
    %2622 = vmatpush1.bf16.msra.mxu0 %v1986
    %2623 = vmatprep.subr.bf16.mxu0 %v1981
    %2624 = vmatpush1.bf16.msra.mxu0 %v1980
    %2625 = vmatprep.subr.bf16.mxu0 %v1975
    %2626 = vmatpush1.bf16.msra.mxu0 %v1974
    %2627 = vmatprep.subr.bf16.mxu0 %v2065
    %2628 = vmatpush2.bf16.msra.mxu0 %v2064
    %2629 = vmatprep.subr.bf16.mxu0 %v2059
    %2630 = vmatpush2.bf16.msra.mxu0 %v2058
    %2631 = vmatprep.subr.bf16.mxu0 %v2053
    %2632 = vmatpush2.bf16.msra.mxu0 %v2052
    %2633 = vmatprep.subr.bf16.mxu0 %v2047
    %2634 = vmatpush2.bf16.msra.mxu0 %v2046
    %2635 = vmatprep.subr.bf16.mxu0 %v2041
    %2636 = vmatpush2.bf16.msra.mxu0 %v2040
    %2637 = vmatprep.subr.bf16.mxu0 %v2035
    %2638 = vmatpush2.bf16.msra.mxu0 %v2034
    %2639 = vmatprep.subr.bf16.mxu0 %v2029
    %2640 = vmatpush2.bf16.msra.mxu0 %v2028
    %2641 = vmatprep.subr.bf16.mxu0 %v2023
    %2642 = vmatpush2.bf16.msra.mxu0 %v2022
    %2643 = vmatprep.mubr.bf16.mxu0 %v589
    %2644 = vmatmul.mubr.bf16.gmra.mxu0 %v588
    %v2645 = vpop.f32.mrf.mxu0
    %v2646 = vadd.f32 %v2595, %v2645
    %v2647 = vpop.f32.mrf.mxu0
    %v2648 = vadd.f32 %v2597, %v2647
    %v2649 = vpop.f32.mrf.mxu0
    %v2650 = vadd.f32 %v2599, %v2649
    %v2651 = vpop.f32.mrf.mxu0
    %v2652 = vadd.f32 %v2601, %v2651
    %2653 = vmatprep.mubr.bf16.mxu0 %v595
    %2654 = vmatmul.mubr.bf16.gmra.mxu0 %v594
    %v2655 = vpop.f32.mrf.mxu0
    %v2656 = vadd.f32 %v2605, %v2655
    %v2657 = vpop.f32.mrf.mxu0
    %v2658 = vadd.f32 %v2607, %v2657
    %v2659 = vpop.f32.mrf.mxu0
    %v2660 = vpop.f32.mrf.mxu0
    %2661 = vdwg.mxu0
    %2662 = vmatprep.subr.bf16.mxu0 %v1827
    %2663 = vmatpush1.bf16.msra.mxu0 %v1826
    %2664 = vmatprep.subr.bf16.mxu0 %v1821
    %2665 = vmatpush1.bf16.msra.mxu0 %v1820
    %2666 = vmatprep.subr.bf16.mxu0 %v1815
    %2667 = vmatpush1.bf16.msra.mxu0 %v1814
    %2668 = vmatprep.subr.bf16.mxu0 %v1809
    %2669 = vmatpush1.bf16.msra.mxu0 %v1808
    %2670 = vmatprep.subr.bf16.mxu0 %v1803
    %2671 = vmatpush1.bf16.msra.mxu0 %v1802
    %2672 = vmatprep.subr.bf16.mxu0 %v1797
    %2673 = vmatpush1.bf16.msra.mxu0 %v1796
    %2674 = vmatprep.subr.bf16.mxu0 %v1791
    %2675 = vmatpush1.bf16.msra.mxu0 %v1790
    %2676 = vmatprep.subr.bf16.mxu0 %v1785
    %2677 = vmatpush1.bf16.msra.mxu0 %v1784
    %2678 = vmatprep.subr.bf16.mxu0 %v1875
    %2679 = vmatpush2.bf16.msra.mxu0 %v1874
    %2680 = vmatprep.subr.bf16.mxu0 %v1869
    %2681 = vmatpush2.bf16.msra.mxu0 %v1868
    %2682 = vmatprep.subr.bf16.mxu0 %v1863
    %2683 = vmatpush2.bf16.msra.mxu0 %v1862
    %2684 = vmatprep.subr.bf16.mxu0 %v1857
    %2685 = vmatpush2.bf16.msra.mxu0 %v1856
    %2686 = vmatprep.subr.bf16.mxu0 %v1851
    %2687 = vmatpush2.bf16.msra.mxu0 %v1850
    %2688 = vmatprep.subr.bf16.mxu0 %v1845
    %2689 = vmatpush2.bf16.msra.mxu0 %v1844
    %2690 = vmatprep.subr.bf16.mxu0 %v1839
    %2691 = vmatpush2.bf16.msra.mxu0 %v1838
    %2692 = vmatprep.subr.bf16.mxu0 %v1833
    %2693 = vmatpush2.bf16.msra.mxu0 %v1832
    %2694 = vmatprep.mubr.bf16.mxu0 %v585
    %2695 = vmatmul.mubr.bf16.gmra.mxu0 %v584
    %v2696 = vpop.f32.mrf.mxu0
    %v2697 = vadd.f32 %v905, %v2696
    %v2698 = vpop.f32.mrf.mxu0
    %v2699 = vadd.f32 %v909, %v2698
    %v2700 = vpop.f32.mrf.mxu0
    %v2701 = vadd.f32 %v905, %v2700
    %v2702 = vpop.f32.mrf.mxu0
    %v2703 = vadd.f32 %v909, %v2702
    %2704 = vmatprep.mubr.bf16.mxu0 %v591
    %2705 = vmatmul.mubr.bf16.gmra.mxu0 %v590
    %v2706 = vpop.f32.mrf.mxu0
    %v2707 = vadd.f32 %v905, %v2706
    %v2708 = vpop.f32.mrf.mxu0
    %v2709 = vadd.f32 %v909, %v2708
    %v2710 = vpop.f32.mrf.mxu0
    %v2711 = vpop.f32.mrf.mxu0
    %2712 = vdwg.mxu0
    %2713 = vmatprep.subr.bf16.mxu0 %v1923
    %2714 = vmatpush1.bf16.msra.mxu0 %v1922
    %2715 = vmatprep.subr.bf16.mxu0 %v1917
    %2716 = vmatpush1.bf16.msra.mxu0 %v1916
    %2717 = vmatprep.subr.bf16.mxu0 %v1911
    %2718 = vmatpush1.bf16.msra.mxu0 %v1910
    %2719 = vmatprep.subr.bf16.mxu0 %v1905
    %2720 = vmatpush1.bf16.msra.mxu0 %v1904
    %2721 = vmatprep.subr.bf16.mxu0 %v1899
    %2722 = vmatpush1.bf16.msra.mxu0 %v1898
    %2723 = vmatprep.subr.bf16.mxu0 %v1893
    %2724 = vmatpush1.bf16.msra.mxu0 %v1892
    %2725 = vmatprep.subr.bf16.mxu0 %v1887
    %2726 = vmatpush1.bf16.msra.mxu0 %v1886
    %2727 = vmatprep.subr.bf16.mxu0 %v1881
    %2728 = vmatpush1.bf16.msra.mxu0 %v1880
    %2729 = vmatprep.subr.bf16.mxu0 %v1971
    %2730 = vmatpush2.bf16.msra.mxu0 %v1970
    %2731 = vmatprep.subr.bf16.mxu0 %v1965
    %2732 = vmatpush2.bf16.msra.mxu0 %v1964
    %2733 = vmatprep.subr.bf16.mxu0 %v1959
    %2734 = vmatpush2.bf16.msra.mxu0 %v1958
    %2735 = vmatprep.subr.bf16.mxu0 %v1953
    %2736 = vmatpush2.bf16.msra.mxu0 %v1952
    %2737 = vmatprep.subr.bf16.mxu0 %v1947
    %2738 = vmatpush2.bf16.msra.mxu0 %v1946
    %2739 = vmatprep.subr.bf16.mxu0 %v1941
    %2740 = vmatpush2.bf16.msra.mxu0 %v1940
    %2741 = vmatprep.subr.bf16.mxu0 %v1935
    %2742 = vmatpush2.bf16.msra.mxu0 %v1934
    %2743 = vmatprep.subr.bf16.mxu0 %v1929
    %2744 = vmatpush2.bf16.msra.mxu0 %v1928
    %2745 = vmatprep.mubr.bf16.mxu0 %v587
    %2746 = vmatmul.mubr.bf16.gmra.mxu0 %v586
    %v2747 = vpop.f32.mrf.mxu0
    %v2748 = vadd.f32 %v2697, %v2747
    %v2749 = vpop.f32.mrf.mxu0
    %v2750 = vadd.f32 %v2699, %v2749
    %v2751 = vpop.f32.mrf.mxu0
    %v2752 = vadd.f32 %v2701, %v2751
    %v2753 = vpop.f32.mrf.mxu0
    %v2754 = vadd.f32 %v2703, %v2753
    %2755 = vmatprep.mubr.bf16.mxu0 %v593
    %2756 = vmatmul.mubr.bf16.gmra.mxu0 %v592
    %v2757 = vpop.f32.mrf.mxu0
    %v2758 = vadd.f32 %v2707, %v2757
    %v2759 = vpop.f32.mrf.mxu0
    %v2760 = vadd.f32 %v2709, %v2759
    %v2761 = vpop.f32.mrf.mxu0
    %v2762 = vpop.f32.mrf.mxu0
    %2763 = vdwg.mxu0
    %2764 = vmatprep.subr.bf16.mxu0 %v2019
    %2765 = vmatpush1.bf16.msra.mxu0 %v2018
    %2766 = vmatprep.subr.bf16.mxu0 %v2013
    %2767 = vmatpush1.bf16.msra.mxu0 %v2012
    %2768 = vmatprep.subr.bf16.mxu0 %v2007
    %2769 = vmatpush1.bf16.msra.mxu0 %v2006
    %2770 = vmatprep.subr.bf16.mxu0 %v2001
    %2771 = vmatpush1.bf16.msra.mxu0 %v2000
    %2772 = vmatprep.subr.bf16.mxu0 %v1995
    %2773 = vmatpush1.bf16.msra.mxu0 %v1994
    %2774 = vmatprep.subr.bf16.mxu0 %v1989
    %2775 = vmatpush1.bf16.msra.mxu0 %v1988
    %2776 = vmatprep.subr.bf16.mxu0 %v1983
    %2777 = vmatpush1.bf16.msra.mxu0 %v1982
    %2778 = vmatprep.subr.bf16.mxu0 %v1977
    %2779 = vmatpush1.bf16.msra.mxu0 %v1976
    %2780 = vmatprep.subr.bf16.mxu0 %v2067
    %2781 = vmatpush2.bf16.msra.mxu0 %v2066
    %2782 = vmatprep.subr.bf16.mxu0 %v2061
    %2783 = vmatpush2.bf16.msra.mxu0 %v2060
    %2784 = vmatprep.subr.bf16.mxu0 %v2055
    %2785 = vmatpush2.bf16.msra.mxu0 %v2054
    %2786 = vmatprep.subr.bf16.mxu0 %v2049
    %2787 = vmatpush2.bf16.msra.mxu0 %v2048
    %2788 = vmatprep.subr.bf16.mxu0 %v2043
    %2789 = vmatpush2.bf16.msra.mxu0 %v2042
    %2790 = vmatprep.subr.bf16.mxu0 %v2037
    %2791 = vmatpush2.bf16.msra.mxu0 %v2036
    %2792 = vmatprep.subr.bf16.mxu0 %v2031
    %2793 = vmatpush2.bf16.msra.mxu0 %v2030
    %2794 = vmatprep.subr.bf16.mxu0 %v2025
    %2795 = vmatpush2.bf16.msra.mxu0 %v2024
    %2796 = vmatprep.mubr.bf16.mxu0 %v589
    %2797 = vmatmul.mubr.bf16.gmra.mxu0 %v588
    %v2798 = vpop.f32.mrf.mxu0
    %v2799 = vadd.f32 %v2748, %v2798
    %v2800 = vpop.f32.mrf.mxu0
    %v2801 = vadd.f32 %v2750, %v2800
    %v2802 = vpop.f32.mrf.mxu0
    %v2803 = vadd.f32 %v2752, %v2802
    %v2804 = vpop.f32.mrf.mxu0
    %v2805 = vadd.f32 %v2754, %v2804
    %2806 = vmatprep.mubr.bf16.mxu0 %v595
    %2807 = vmatmul.mubr.bf16.gmra.mxu0 %v594
    %v2808 = vpop.f32.mrf.mxu0
    %v2809 = vadd.f32 %v2758, %v2808
    %v2810 = vpop.f32.mrf.mxu0
    %v2811 = vadd.f32 %v2760, %v2810
    %v2812 = vpop.f32.mrf.mxu0
    %v2813 = vpop.f32.mrf.mxu0
    %2814 = vdwg.mxu0
    %v2815 = vmul.f32 %v2493, 0.1
    %v2816 = vmul.f32 %v2495, 0.1
    %v2817 = vmul.f32 %v2646, 0.1
    %v2818 = vmul.f32 %v2648, 0.1
    %v2819 = vmul.f32 %v2799, 0.1
    %v2820 = vmul.f32 %v2801, 0.1
    %v2821 = vmul.f32 %v2497, 0.1
    %v2822 = vmul.f32 %v2499, 0.1
    %v2823 = vmul.f32 %v2650, 0.1
    %v2824 = vmul.f32 %v2652, 0.1
    %v2825 = vmul.f32 %v2803, 0.1
    %v2826 = vmul.f32 %v2805, 0.1
    %v2827 = vmul.f32 %v2503, 0.1
    %v2828 = vmul.f32 %v2505, 0.1
    %v2829 = vmul.f32 %v2656, 0.1
    %v2830 = vmul.f32 %v2658, 0.1
    %v2831 = vmul.f32 %v2809, 0.1
    %v2832 = vmul.f32 %v2811, 0.1
    %v2833 = vmax.f32 %v2493, %v2815
    %v2834 = vmax.f32 %v2495, %v2816
    %v2835 = vmax.f32 %v2646, %v2817
    %v2836 = vmax.f32 %v2648, %v2818
    %v2837 = vmax.f32 %v2799, %v2819
    %v2838 = vmax.f32 %v2801, %v2820
    %v2839 = vmax.f32 %v2497, %v2821
    %v2840 = vmax.f32 %v2499, %v2822
    %v2841 = vmax.f32 %v2650, %v2823
    %v2842 = vmax.f32 %v2652, %v2824
    %v2843 = vmax.f32 %v2803, %v2825
    %v2844 = vmax.f32 %v2805, %v2826
    %v2845 = vmax.f32 %v2503, %v2827
    %v2846 = vmax.f32 %v2505, %v2828
    %v2847 = vmax.f32 %v2656, %v2829
    %v2848 = vmax.f32 %v2658, %v2830
    %v2849 = vmax.f32 %v2809, %v2831
    %v2850 = vmax.f32 %v2811, %v2832
    %v2851 = vpack.c.bf16 %v2839, %v2833
    %v2852 = vpack.c.bf16 %v2840, %v2834
    %v2853 = vpack.c.bf16 %v2841, %v2835
    %v2854 = vpack.c.bf16 %v2842, %v2836
    %v2855 = vpack.c.bf16 %v2843, %v2837
    %v2856 = vpack.c.bf16 %v2844, %v2838
    %v2857 = vpack.c.bf16 %v2845, %v2845
    %v2858 = vpack.c.bf16 %v2846, %v2846
    %v2859 = vpack.c.bf16 %v2847, %v2847
    %v2860 = vpack.c.bf16 %v2848, %v2848
    %v2861 = vpack.c.bf16 %v2849, %v2849
    %v2862 = vpack.c.bf16 %v2850, %v2850
    %v2863 = vld [vmem:[#allocation11] sm:$0xff]
    %v2864 = vld [vmem:[#allocation11 + $0x8] sm:$0xff]
    %v2865 = vld [vmem:[#allocation11 + $0x10] sm:$0xff]
    %v2866 = vld [vmem:[#allocation11 + $0x18] sm:$0xff]
    %v2867 = vld [vmem:[#allocation11 + $0x20] sm:$0xff]
    %v2868 = vld [vmem:[#allocation11 + $0x28] sm:$0xff]
    %v2869 = vld [vmem:[#allocation11 + $0x30] sm:$0xff]
    %v2870 = vld [vmem:[#allocation11 + $0x38] sm:$0xff]
    %v2871 = vld [vmem:[#allocation11 + $0x40] sm:$0xff]
    %v2872 = vld [vmem:[#allocation11 + $0x48] sm:$0xff]
    %v2873 = vld [vmem:[#allocation11 + $0x50] sm:$0xff]
    %v2874 = vld [vmem:[#allocation11 + $0x58] sm:$0xff]
    %v2875 = vld [vmem:[#allocation11 + $0x60] sm:$0xff]
    %v2876 = vld [vmem:[#allocation11 + $0x68] sm:$0xff]
    %v2877 = vld [vmem:[#allocation11 + $0x70] sm:$0xff]
    %v2878 = vld [vmem:[#allocation11 + $0x78] sm:$0xff]
    %v2879 = vld [vmem:[#allocation11 + $0x80] sm:$0xff]
    %v2880 = vld [vmem:[#allocation11 + $0x88] sm:$0xff]
    %v2881 = vld [vmem:[#allocation11 + $0x90] sm:$0xff]
    %v2882 = vld [vmem:[#allocation11 + $0x98] sm:$0xff]
    %v2883 = vld [vmem:[#allocation11 + $0xa0] sm:$0xff]
    %v2884 = vld [vmem:[#allocation11 + $0xa8] sm:$0xff]
    %v2885 = vld [vmem:[#allocation11 + $0xb0] sm:$0xff]
    %v2886 = vld [vmem:[#allocation11 + $0xb8] sm:$0xff]
    %v2887 = vld [vmem:[#allocation11 + $0xc0] sm:$0xff]
    %v2888 = vld [vmem:[#allocation11 + $0xc8] sm:$0xff]
    %v2889 = vld [vmem:[#allocation11 + $0xd0] sm:$0xff]
    %v2890 = vld [vmem:[#allocation11 + $0xd8] sm:$0xff]
    %v2891 = vld [vmem:[#allocation11 + $0xe0] sm:$0xff]
    %v2892 = vld [vmem:[#allocation11 + $0xe8] sm:$0xff]
    %v2893 = vld [vmem:[#allocation11 + $0xf0] sm:$0xff]
    %v2894 = vld [vmem:[#allocation11 + $0xf8] sm:$0xff]
    %v2895 = vld [vmem:[#allocation11 + $0x100] sm:$0xff]
    %v2896 = vld [vmem:[#allocation11 + $0x108] sm:$0xff]
    %v2897 = vld [vmem:[#allocation11 + $0x110] sm:$0xff]
    %v2898 = vld [vmem:[#allocation11 + $0x118] sm:$0xff]
    %v2899 = vld [vmem:[#allocation11 + $0x120] sm:$0xff]
    %v2900 = vld [vmem:[#allocation11 + $0x128] sm:$0xff]
    %v2901 = vld [vmem:[#allocation11 + $0x130] sm:$0xff]
    %v2902 = vld [vmem:[#allocation11 + $0x138] sm:$0xff]
    %v2903 = vld [vmem:[#allocation11 + $0x140] sm:$0xff]
    %v2904 = vld [vmem:[#allocation11 + $0x148] sm:$0xff]
    %v2905 = vld [vmem:[#allocation11 + $0x150] sm:$0xff]
    %v2906 = vld [vmem:[#allocation11 + $0x158] sm:$0xff]
    %v2907 = vld [vmem:[#allocation11 + $0x160] sm:$0xff]
    %v2908 = vld [vmem:[#allocation11 + $0x168] sm:$0xff]
    %v2909 = vld [vmem:[#allocation11 + $0x170] sm:$0xff]
    %v2910 = vld [vmem:[#allocation11 + $0x178] sm:$0xff]
    %v2911 = vld [vmem:[#allocation11 + $0x180] sm:$0xff]
    %v2912 = vld [vmem:[#allocation11 + $0x188] sm:$0xff]
    %v2913 = vld [vmem:[#allocation11 + $0x190] sm:$0xff]
    %v2914 = vld [vmem:[#allocation11 + $0x198] sm:$0xff]
    %v2915 = vld [vmem:[#allocation11 + $0x1a0] sm:$0xff]
    %v2916 = vld [vmem:[#allocation11 + $0x1a8] sm:$0xff]
    %v2917 = vld [vmem:[#allocation11 + $0x1b0] sm:$0xff]
    %v2918 = vld [vmem:[#allocation11 + $0x1b8] sm:$0xff]
    %v2919 = vld [vmem:[#allocation11 + $0x1c0] sm:$0xff]
    %v2920 = vld [vmem:[#allocation11 + $0x1c8] sm:$0xff]
    %v2921 = vld [vmem:[#allocation11 + $0x1d0] sm:$0xff]
    %v2922 = vld [vmem:[#allocation11 + $0x1d8] sm:$0xff]
    %v2923 = vld [vmem:[#allocation11 + $0x1e0] sm:$0xff]
    %v2924 = vld [vmem:[#allocation11 + $0x1e8] sm:$0xff]
    %v2925 = vld [vmem:[#allocation11 + $0x1f0] sm:$0xff]
    %v2926 = vld [vmem:[#allocation11 + $0x1f8] sm:$0xff]
    %v2927 = vld [vmem:[#allocation11 + $0x200] sm:$0xff]
    %v2928 = vld [vmem:[#allocation11 + $0x208] sm:$0xff]
    %v2929 = vld [vmem:[#allocation11 + $0x210] sm:$0xff]
    %v2930 = vld [vmem:[#allocation11 + $0x218] sm:$0xff]
    %v2931 = vld [vmem:[#allocation11 + $0x220] sm:$0xff]
    %v2932 = vld [vmem:[#allocation11 + $0x228] sm:$0xff]
    %v2933 = vld [vmem:[#allocation11 + $0x230] sm:$0xff]
    %v2934 = vld [vmem:[#allocation11 + $0x238] sm:$0xff]
    %v2935 = vld [vmem:[#allocation11 + $0x240] sm:$0xff]
    %v2936 = vld [vmem:[#allocation11 + $0x248] sm:$0xff]
    %v2937 = vld [vmem:[#allocation11 + $0x250] sm:$0xff]
    %v2938 = vld [vmem:[#allocation11 + $0x258] sm:$0xff]
    %v2939 = vld [vmem:[#allocation11 + $0x260] sm:$0xff]
    %v2940 = vld [vmem:[#allocation11 + $0x268] sm:$0xff]
    %v2941 = vld [vmem:[#allocation11 + $0x270] sm:$0xff]
    %v2942 = vld [vmem:[#allocation11 + $0x278] sm:$0xff]
    %v2943 = vld [vmem:[#allocation11 + $0x280] sm:$0xff]
    %v2944 = vld [vmem:[#allocation11 + $0x288] sm:$0xff]
    %v2945 = vld [vmem:[#allocation11 + $0x290] sm:$0xff]
    %v2946 = vld [vmem:[#allocation11 + $0x298] sm:$0xff]
    %v2947 = vld [vmem:[#allocation11 + $0x2a0] sm:$0xff]
    %v2948 = vld [vmem:[#allocation11 + $0x2a8] sm:$0xff]
    %v2949 = vld [vmem:[#allocation11 + $0x2b0] sm:$0xff]
    %v2950 = vld [vmem:[#allocation11 + $0x2b8] sm:$0xff]
    %v2951 = vld [vmem:[#allocation11 + $0x2c0] sm:$0xff]
    %v2952 = vld [vmem:[#allocation11 + $0x2c8] sm:$0xff]
    %v2953 = vld [vmem:[#allocation11 + $0x2d0] sm:$0xff]
    %v2954 = vld [vmem:[#allocation11 + $0x2d8] sm:$0xff]
    %v2955 = vld [vmem:[#allocation11 + $0x2e0] sm:$0xff]
    %v2956 = vld [vmem:[#allocation11 + $0x2e8] sm:$0xff]
    %v2957 = vld [vmem:[#allocation11 + $0x2f0] sm:$0xff]
    %v2958 = vld [vmem:[#allocation11 + $0x2f8] sm:$0xff]
    %v2959 = vld [vmem:[#allocation11 + $0x300] sm:$0xff]
    %v2960 = vld [vmem:[#allocation11 + $0x308] sm:$0xff]
    %v2961 = vld [vmem:[#allocation11 + $0x310] sm:$0xff]
    %v2962 = vld [vmem:[#allocation11 + $0x318] sm:$0xff]
    %v2963 = vld [vmem:[#allocation11 + $0x320] sm:$0xff]
    %v2964 = vld [vmem:[#allocation11 + $0x328] sm:$0xff]
    %v2965 = vld [vmem:[#allocation11 + $0x330] sm:$0xff]
    %v2966 = vld [vmem:[#allocation11 + $0x338] sm:$0xff]
    %v2967 = vld [vmem:[#allocation11 + $0x340] sm:$0xff]
    %v2968 = vld [vmem:[#allocation11 + $0x348] sm:$0xff]
    %v2969 = vld [vmem:[#allocation11 + $0x350] sm:$0xff]
    %v2970 = vld [vmem:[#allocation11 + $0x358] sm:$0xff]
    %v2971 = vld [vmem:[#allocation11 + $0x360] sm:$0xff]
    %v2972 = vld [vmem:[#allocation11 + $0x368] sm:$0xff]
    %v2973 = vld [vmem:[#allocation11 + $0x370] sm:$0xff]
    %v2974 = vld [vmem:[#allocation11 + $0x378] sm:$0xff]
    %v2975 = vld [vmem:[#allocation11 + $0x380] sm:$0xff]
    %v2976 = vld [vmem:[#allocation11 + $0x388] sm:$0xff]
    %v2977 = vld [vmem:[#allocation11 + $0x390] sm:$0xff]
    %v2978 = vld [vmem:[#allocation11 + $0x398] sm:$0xff]
    %v2979 = vld [vmem:[#allocation11 + $0x3a0] sm:$0xff]
    %v2980 = vld [vmem:[#allocation11 + $0x3a8] sm:$0xff]
    %v2981 = vld [vmem:[#allocation11 + $0x3b0] sm:$0xff]
    %v2982 = vld [vmem:[#allocation11 + $0x3b8] sm:$0xff]
    %v2983 = vld [vmem:[#allocation11 + $0x3c0] sm:$0xff]
    %v2984 = vld [vmem:[#allocation11 + $0x3c8] sm:$0xff]
    %v2985 = vld [vmem:[#allocation11 + $0x3d0] sm:$0xff]
    %v2986 = vld [vmem:[#allocation11 + $0x3d8] sm:$0xff]
    %v2987 = vld [vmem:[#allocation11 + $0x3e0] sm:$0xff]
    %v2988 = vld [vmem:[#allocation11 + $0x3e8] sm:$0xff]
    %v2989 = vld [vmem:[#allocation11 + $0x3f0] sm:$0xff]
    %v2990 = vld [vmem:[#allocation11 + $0x3f8] sm:$0xff]
    %v2991 = vld [vmem:[#allocation11 + $0x400] sm:$0xff]
    %v2992 = vld [vmem:[#allocation11 + $0x408] sm:$0xff]
    %v2993 = vld [vmem:[#allocation11 + $0x410] sm:$0xff]
    %v2994 = vld [vmem:[#allocation11 + $0x418] sm:$0xff]
    %v2995 = vld [vmem:[#allocation11 + $0x420] sm:$0xff]
    %v2996 = vld [vmem:[#allocation11 + $0x428] sm:$0xff]
    %v2997 = vld [vmem:[#allocation11 + $0x430] sm:$0xff]
    %v2998 = vld [vmem:[#allocation11 + $0x438] sm:$0xff]
    %v2999 = vld [vmem:[#allocation11 + $0x440] sm:$0xff]
    %v3000 = vld [vmem:[#allocation11 + $0x448] sm:$0xff]
    %v3001 = vld [vmem:[#allocation11 + $0x450] sm:$0xff]
    %v3002 = vld [vmem:[#allocation11 + $0x458] sm:$0xff]
    %v3003 = vld [vmem:[#allocation11 + $0x460] sm:$0xff]
    %v3004 = vld [vmem:[#allocation11 + $0x468] sm:$0xff]
    %v3005 = vld [vmem:[#allocation11 + $0x470] sm:$0xff]
    %v3006 = vld [vmem:[#allocation11 + $0x478] sm:$0xff]
    %v3007 = vld [vmem:[#allocation11 + $0x480] sm:$0xff]
    %v3008 = vld [vmem:[#allocation11 + $0x488] sm:$0xff]
    %v3009 = vld [vmem:[#allocation11 + $0x490] sm:$0xff]
    %v3010 = vld [vmem:[#allocation11 + $0x498] sm:$0xff]
    %v3011 = vld [vmem:[#allocation11 + $0x4a0] sm:$0xff]
    %v3012 = vld [vmem:[#allocation11 + $0x4a8] sm:$0xff]
    %v3013 = vld [vmem:[#allocation11 + $0x4b0] sm:$0xff]
    %v3014 = vld [vmem:[#allocation11 + $0x4b8] sm:$0xff]
    %v3015 = vld [vmem:[#allocation11 + $0x4c0] sm:$0xff]
    %v3016 = vld [vmem:[#allocation11 + $0x4c8] sm:$0xff]
    %v3017 = vld [vmem:[#allocation11 + $0x4d0] sm:$0xff]
    %v3018 = vld [vmem:[#allocation11 + $0x4d8] sm:$0xff]
    %v3019 = vld [vmem:[#allocation11 + $0x4e0] sm:$0xff]
    %v3020 = vld [vmem:[#allocation11 + $0x4e8] sm:$0xff]
    %v3021 = vld [vmem:[#allocation11 + $0x4f0] sm:$0xff]
    %v3022 = vld [vmem:[#allocation11 + $0x4f8] sm:$0xff]
    %v3023 = vld [vmem:[#allocation11 + $0x500] sm:$0xff]
    %v3024 = vld [vmem:[#allocation11 + $0x508] sm:$0xff]
    %v3025 = vld [vmem:[#allocation11 + $0x510] sm:$0xff]
    %v3026 = vld [vmem:[#allocation11 + $0x518] sm:$0xff]
    %v3027 = vld [vmem:[#allocation11 + $0x520] sm:$0xff]
    %v3028 = vld [vmem:[#allocation11 + $0x528] sm:$0xff]
    %v3029 = vld [vmem:[#allocation11 + $0x530] sm:$0xff]
    %v3030 = vld [vmem:[#allocation11 + $0x538] sm:$0xff]
    %v3031 = vld [vmem:[#allocation11 + $0x540] sm:$0xff]
    %v3032 = vld [vmem:[#allocation11 + $0x548] sm:$0xff]
    %v3033 = vld [vmem:[#allocation11 + $0x550] sm:$0xff]
    %v3034 = vld [vmem:[#allocation11 + $0x558] sm:$0xff]
    %v3035 = vld [vmem:[#allocation11 + $0x560] sm:$0xff]
    %v3036 = vld [vmem:[#allocation11 + $0x568] sm:$0xff]
    %v3037 = vld [vmem:[#allocation11 + $0x570] sm:$0xff]
    %v3038 = vld [vmem:[#allocation11 + $0x578] sm:$0xff]
    %v3039 = vld [vmem:[#allocation11 + $0x580] sm:$0xff]
    %v3040 = vld [vmem:[#allocation11 + $0x588] sm:$0xff]
    %v3041 = vld [vmem:[#allocation11 + $0x590] sm:$0xff]
    %v3042 = vld [vmem:[#allocation11 + $0x598] sm:$0xff]
    %v3043 = vld [vmem:[#allocation11 + $0x5a0] sm:$0xff]
    %v3044 = vld [vmem:[#allocation11 + $0x5a8] sm:$0xff]
    %v3045 = vld [vmem:[#allocation11 + $0x5b0] sm:$0xff]
    %v3046 = vld [vmem:[#allocation11 + $0x5b8] sm:$0xff]
    %v3047 = vld [vmem:[#allocation11 + $0x5c0] sm:$0xff]
    %v3048 = vld [vmem:[#allocation11 + $0x5c8] sm:$0xff]
    %v3049 = vld [vmem:[#allocation11 + $0x5d0] sm:$0xff]
    %v3050 = vld [vmem:[#allocation11 + $0x5d8] sm:$0xff]
    %v3051 = vld [vmem:[#allocation11 + $0x5e0] sm:$0xff]
    %v3052 = vld [vmem:[#allocation11 + $0x5e8] sm:$0xff]
    %v3053 = vld [vmem:[#allocation11 + $0x5f0] sm:$0xff]
    %v3054 = vld [vmem:[#allocation11 + $0x5f8] sm:$0xff]
    %v3055 = vld [vmem:[#allocation11 + $0x600] sm:$0xff]
    %v3056 = vld [vmem:[#allocation11 + $0x608] sm:$0xff]
    %v3057 = vld [vmem:[#allocation11 + $0x610] sm:$0xff]
    %v3058 = vld [vmem:[#allocation11 + $0x618] sm:$0xff]
    %v3059 = vld [vmem:[#allocation11 + $0x620] sm:$0xff]
    %v3060 = vld [vmem:[#allocation11 + $0x628] sm:$0xff]
    %v3061 = vld [vmem:[#allocation11 + $0x630] sm:$0xff]
    %v3062 = vld [vmem:[#allocation11 + $0x638] sm:$0xff]
    %v3063 = vld [vmem:[#allocation11 + $0x640] sm:$0xff]
    %v3064 = vld [vmem:[#allocation11 + $0x648] sm:$0xff]
    %v3065 = vld [vmem:[#allocation11 + $0x650] sm:$0xff]
    %v3066 = vld [vmem:[#allocation11 + $0x658] sm:$0xff]
    %v3067 = vld [vmem:[#allocation11 + $0x660] sm:$0xff]
    %v3068 = vld [vmem:[#allocation11 + $0x668] sm:$0xff]
    %v3069 = vld [vmem:[#allocation11 + $0x670] sm:$0xff]
    %v3070 = vld [vmem:[#allocation11 + $0x678] sm:$0xff]
    %v3071 = vld [vmem:[#allocation11 + $0x680] sm:$0xff]
    %v3072 = vld [vmem:[#allocation11 + $0x688] sm:$0xff]
    %v3073 = vld [vmem:[#allocation11 + $0x690] sm:$0xff]
    %v3074 = vld [vmem:[#allocation11 + $0x698] sm:$0xff]
    %v3075 = vld [vmem:[#allocation11 + $0x6a0] sm:$0xff]
    %v3076 = vld [vmem:[#allocation11 + $0x6a8] sm:$0xff]
    %v3077 = vld [vmem:[#allocation11 + $0x6b0] sm:$0xff]
    %v3078 = vld [vmem:[#allocation11 + $0x6b8] sm:$0xff]
    %v3079 = vld [vmem:[#allocation11 + $0x6c0] sm:$0xff]
    %v3080 = vld [vmem:[#allocation11 + $0x6c8] sm:$0xff]
    %v3081 = vld [vmem:[#allocation11 + $0x6d0] sm:$0xff]
    %v3082 = vld [vmem:[#allocation11 + $0x6d8] sm:$0xff]
    %v3083 = vld [vmem:[#allocation11 + $0x6e0] sm:$0xff]
    %v3084 = vld [vmem:[#allocation11 + $0x6e8] sm:$0xff]
    %v3085 = vld [vmem:[#allocation11 + $0x6f0] sm:$0xff]
    %v3086 = vld [vmem:[#allocation11 + $0x6f8] sm:$0xff]
    %v3087 = vld [vmem:[#allocation11 + $0x700] sm:$0xff]
    %v3088 = vld [vmem:[#allocation11 + $0x708] sm:$0xff]
    %v3089 = vld [vmem:[#allocation11 + $0x710] sm:$0xff]
    %v3090 = vld [vmem:[#allocation11 + $0x718] sm:$0xff]
    %v3091 = vld [vmem:[#allocation11 + $0x720] sm:$0xff]
    %v3092 = vld [vmem:[#allocation11 + $0x728] sm:$0xff]
    %v3093 = vld [vmem:[#allocation11 + $0x730] sm:$0xff]
    %v3094 = vld [vmem:[#allocation11 + $0x738] sm:$0xff]
    %v3095 = vld [vmem:[#allocation11 + $0x740] sm:$0xff]
    %v3096 = vld [vmem:[#allocation11 + $0x748] sm:$0xff]
    %v3097 = vld [vmem:[#allocation11 + $0x750] sm:$0xff]
    %v3098 = vld [vmem:[#allocation11 + $0x758] sm:$0xff]
    %v3099 = vld [vmem:[#allocation11 + $0x760] sm:$0xff]
    %v3100 = vld [vmem:[#allocation11 + $0x768] sm:$0xff]
    %v3101 = vld [vmem:[#allocation11 + $0x770] sm:$0xff]
    %v3102 = vld [vmem:[#allocation11 + $0x778] sm:$0xff]
    %v3103 = vld [vmem:[#allocation11 + $0x780] sm:$0xff]
    %v3104 = vld [vmem:[#allocation11 + $0x788] sm:$0xff]
    %v3105 = vld [vmem:[#allocation11 + $0x790] sm:$0xff]
    %v3106 = vld [vmem:[#allocation11 + $0x798] sm:$0xff]
    %v3107 = vld [vmem:[#allocation11 + $0x7a0] sm:$0xff]
    %v3108 = vld [vmem:[#allocation11 + $0x7a8] sm:$0xff]
    %v3109 = vld [vmem:[#allocation11 + $0x7b0] sm:$0xff]
    %v3110 = vld [vmem:[#allocation11 + $0x7b8] sm:$0xff]
    %v3111 = vld [vmem:[#allocation11 + $0x7c0] sm:$0xff]
    %v3112 = vld [vmem:[#allocation11 + $0x7c8] sm:$0xff]
    %v3113 = vld [vmem:[#allocation11 + $0x7d0] sm:$0xff]
    %v3114 = vld [vmem:[#allocation11 + $0x7d8] sm:$0xff]
    %v3115 = vld [vmem:[#allocation11 + $0x7e0] sm:$0xff]
    %v3116 = vld [vmem:[#allocation11 + $0x7e8] sm:$0xff]
    %v3117 = vld [vmem:[#allocation11 + $0x7f0] sm:$0xff]
    %v3118 = vld [vmem:[#allocation11 + $0x7f8] sm:$0xff]
    %v3119 = vld [vmem:[#allocation11 + $0x800] sm:$0xff]
    %v3120 = vld [vmem:[#allocation11 + $0x808] sm:$0xff]
    %v3121 = vld [vmem:[#allocation11 + $0x810] sm:$0xff]
    %v3122 = vld [vmem:[#allocation11 + $0x818] sm:$0xff]
    %v3123 = vld [vmem:[#allocation11 + $0x820] sm:$0xff]
    %v3124 = vld [vmem:[#allocation11 + $0x828] sm:$0xff]
    %v3125 = vld [vmem:[#allocation11 + $0x830] sm:$0xff]
    %v3126 = vld [vmem:[#allocation11 + $0x838] sm:$0xff]
    %v3127 = vld [vmem:[#allocation11 + $0x840] sm:$0xff]
    %v3128 = vld [vmem:[#allocation11 + $0x848] sm:$0xff]
    %v3129 = vld [vmem:[#allocation11 + $0x850] sm:$0xff]
    %v3130 = vld [vmem:[#allocation11 + $0x858] sm:$0xff]
    %v3131 = vld [vmem:[#allocation11 + $0x860] sm:$0xff]
    %v3132 = vld [vmem:[#allocation11 + $0x868] sm:$0xff]
    %v3133 = vld [vmem:[#allocation11 + $0x870] sm:$0xff]
    %v3134 = vld [vmem:[#allocation11 + $0x878] sm:$0xff]
    %v3135 = vld [vmem:[#allocation11 + $0x880] sm:$0xff]
    %v3136 = vld [vmem:[#allocation11 + $0x888] sm:$0xff]
    %v3137 = vld [vmem:[#allocation11 + $0x890] sm:$0xff]
    %v3138 = vld [vmem:[#allocation11 + $0x898] sm:$0xff]
    %v3139 = vld [vmem:[#allocation11 + $0x8a0] sm:$0xff]
    %v3140 = vld [vmem:[#allocation11 + $0x8a8] sm:$0xff]
    %v3141 = vld [vmem:[#allocation11 + $0x8b0] sm:$0xff]
    %v3142 = vld [vmem:[#allocation11 + $0x8b8] sm:$0xff]
    %v3143 = vld [vmem:[#allocation11 + $0x8c0] sm:$0xff]
    %v3144 = vld [vmem:[#allocation11 + $0x8c8] sm:$0xff]
    %v3145 = vld [vmem:[#allocation11 + $0x8d0] sm:$0xff]
    %v3146 = vld [vmem:[#allocation11 + $0x8d8] sm:$0xff]
    %v3147 = vld [vmem:[#allocation11 + $0x8e0] sm:$0xff]
    %v3148 = vld [vmem:[#allocation11 + $0x8e8] sm:$0xff]
    %v3149 = vld [vmem:[#allocation11 + $0x8f0] sm:$0xff]
    %v3150 = vld [vmem:[#allocation11 + $0x8f8] sm:$0xff]
    %v3151 = vld [vmem:[#allocation13] sm:$0x3f]
    %v3153 = vlaneseq
    %v3154 = vshrl.u32 %v3153, 7
    %v3155 = vsub.s32 0, %v3154
    %v3156 = vrot.slane %v3151, %v3155
    %v3157 = vlaneseq
    %v3158 = vshrl.u32 %v3157, 7
    %v3159 = vsub.s32 1, %v3158
    %v3160 = vrot.slane %v3151, %v3159
    %v3161 = vlaneseq
    %v3162 = vshrl.u32 %v3161, 7
    %v3163 = vsub.s32 2, %v3162
    %v3164 = vrot.slane %v3151, %v3163
    %v3165 = vlaneseq
    %v3166 = vshrl.u32 %v3165, 7
    %v3167 = vsub.s32 3, %v3166
    %v3168 = vrot.slane %v3151, %v3167
    %v3169 = vlaneseq
    %v3170 = vshrl.u32 %v3169, 7
    %v3171 = vsub.s32 4, %v3170
    %v3172 = vrot.slane %v3151, %v3171
    %v3173 = vlaneseq
    %v3174 = vshrl.u32 %v3173, 7
    %v3175 = vsub.s32 5, %v3174
    %v3176 = vrot.slane %v3151, %v3175
    %v3471 = vunpack.c.l.b16 %v2863
    %v3472 = vunpack.c.h.b16 %v2863
    %v3473 = vunpack.c.l.b16 %v2864
    %v3474 = vunpack.c.h.b16 %v2864
    %v3475 = vunpack.c.l.b16 %v2865
    %v3476 = vunpack.c.h.b16 %v2865
    %v3477 = vunpack.c.l.b16 %v2866
    %v3478 = vunpack.c.h.b16 %v2866
    %v3479 = vunpack.c.l.b16 %v2867
    %v3480 = vunpack.c.h.b16 %v2867
    %v3481 = vunpack.c.l.b16 %v2868
    %v3482 = vunpack.c.h.b16 %v2868
    %v3483 = vunpack.c.l.b16 %v2869
    %v3484 = vunpack.c.h.b16 %v2869
    %v3485 = vunpack.c.l.b16 %v2870
    %v3486 = vunpack.c.h.b16 %v2870
    %v3487 = vunpack.c.l.b16 %v2871
    %v3488 = vunpack.c.h.b16 %v2871
    %v3489 = vunpack.c.l.b16 %v2872
    %v3490 = vunpack.c.h.b16 %v2872
    %v3491 = vunpack.c.l.b16 %v2873
    %v3492 = vunpack.c.h.b16 %v2873
    %v3493 = vunpack.c.l.b16 %v2874
    %v3494 = vunpack.c.h.b16 %v2874
    %v3495 = vunpack.c.l.b16 %v2875
    %v3496 = vunpack.c.h.b16 %v2875
    %v3497 = vunpack.c.l.b16 %v2876
    %v3498 = vunpack.c.h.b16 %v2876
    %v3499 = vunpack.c.l.b16 %v2877
    %v3500 = vunpack.c.h.b16 %v2877
    %v3501 = vunpack.c.l.b16 %v2878
    %v3502 = vunpack.c.h.b16 %v2878
    %v3503 = vunpack.c.l.b16 %v2879
    %v3504 = vunpack.c.h.b16 %v2879
    %v3505 = vunpack.c.l.b16 %v2880
    %v3506 = vunpack.c.h.b16 %v2880
    %v3507 = vunpack.c.l.b16 %v2881
    %v3508 = vunpack.c.h.b16 %v2881
    %v3509 = vunpack.c.l.b16 %v2882
    %v3510 = vunpack.c.h.b16 %v2882
    %v3511 = vunpack.c.l.b16 %v2883
    %v3512 = vunpack.c.h.b16 %v2883
    %v3513 = vunpack.c.l.b16 %v2884
    %v3514 = vunpack.c.h.b16 %v2884
    %v3515 = vunpack.c.l.b16 %v2885
    %v3516 = vunpack.c.h.b16 %v2885
    %v3517 = vunpack.c.l.b16 %v2886
    %v3518 = vunpack.c.h.b16 %v2886
    %v3519 = vunpack.c.l.b16 %v2887
    %v3520 = vunpack.c.h.b16 %v2887
    %v3521 = vunpack.c.l.b16 %v2888
    %v3522 = vunpack.c.h.b16 %v2888
    %v3523 = vunpack.c.l.b16 %v2889
    %v3524 = vunpack.c.h.b16 %v2889
    %v3525 = vunpack.c.l.b16 %v2890
    %v3526 = vunpack.c.h.b16 %v2890
    %v3527 = vunpack.c.l.b16 %v2891
    %v3528 = vunpack.c.h.b16 %v2891
    %v3529 = vunpack.c.l.b16 %v2892
    %v3530 = vunpack.c.h.b16 %v2892
    %v3531 = vunpack.c.l.b16 %v2893
    %v3532 = vunpack.c.h.b16 %v2893
    %v3533 = vunpack.c.l.b16 %v2894
    %v3534 = vunpack.c.h.b16 %v2894
    %v3535 = vunpack.c.l.b16 %v2895
    %v3536 = vunpack.c.h.b16 %v2895
    %v3537 = vunpack.c.l.b16 %v2896
    %v3538 = vunpack.c.h.b16 %v2896
    %v3539 = vunpack.c.l.b16 %v2897
    %v3540 = vunpack.c.h.b16 %v2897
    %v3541 = vunpack.c.l.b16 %v2898
    %v3542 = vunpack.c.h.b16 %v2898
    %v3543 = vunpack.c.l.b16 %v2899
    %v3544 = vunpack.c.h.b16 %v2899
    %v3545 = vunpack.c.l.b16 %v2900
    %v3546 = vunpack.c.h.b16 %v2900
    %v3547 = vunpack.c.l.b16 %v2901
    %v3548 = vunpack.c.h.b16 %v2901
    %v3549 = vunpack.c.l.b16 %v2902
    %v3550 = vunpack.c.h.b16 %v2902
    %v3551 = vunpack.c.l.b16 %v2903
    %v3552 = vunpack.c.h.b16 %v2903
    %v3553 = vunpack.c.l.b16 %v2904
    %v3554 = vunpack.c.h.b16 %v2904
    %v3555 = vunpack.c.l.b16 %v2905
    %v3556 = vunpack.c.h.b16 %v2905
    %v3557 = vunpack.c.l.b16 %v2906
    %v3558 = vunpack.c.h.b16 %v2906
    %v3559 = vunpack.c.l.b16 %v2907
    %v3560 = vunpack.c.h.b16 %v2907
    %v3561 = vunpack.c.l.b16 %v2908
    %v3562 = vunpack.c.h.b16 %v2908
    %v3563 = vunpack.c.l.b16 %v2909
    %v3564 = vunpack.c.h.b16 %v2909
    %v3565 = vunpack.c.l.b16 %v2910
    %v3566 = vunpack.c.h.b16 %v2910
    %v3567 = vunpack.c.l.b16 %v2911
    %v3568 = vunpack.c.h.b16 %v2911
    %v3569 = vunpack.c.l.b16 %v2912
    %v3570 = vunpack.c.h.b16 %v2912
    %v3571 = vunpack.c.l.b16 %v2913
    %v3572 = vunpack.c.h.b16 %v2913
    %v3573 = vunpack.c.l.b16 %v2914
    %v3574 = vunpack.c.h.b16 %v2914
    %v3575 = vunpack.c.l.b16 %v2915
    %v3576 = vunpack.c.h.b16 %v2915
    %v3577 = vunpack.c.l.b16 %v2916
    %v3578 = vunpack.c.h.b16 %v2916
    %v3579 = vunpack.c.l.b16 %v2917
    %v3580 = vunpack.c.h.b16 %v2917
    %v3581 = vunpack.c.l.b16 %v2918
    %v3582 = vunpack.c.h.b16 %v2918
    %v3583 = vunpack.c.l.b16 %v2919
    %v3584 = vunpack.c.h.b16 %v2919
    %v3585 = vunpack.c.l.b16 %v2920
    %v3586 = vunpack.c.h.b16 %v2920
    %v3587 = vunpack.c.l.b16 %v2921
    %v3588 = vunpack.c.h.b16 %v2921
    %v3589 = vunpack.c.l.b16 %v2922
    %v3590 = vunpack.c.h.b16 %v2922
    %v3591 = vunpack.c.l.b16 %v2923
    %v3592 = vunpack.c.h.b16 %v2923
    %v3593 = vunpack.c.l.b16 %v2924
    %v3594 = vunpack.c.h.b16 %v2924
    %v3595 = vunpack.c.l.b16 %v2925
    %v3596 = vunpack.c.h.b16 %v2925
    %v3597 = vunpack.c.l.b16 %v2926
    %v3598 = vunpack.c.h.b16 %v2926
    %v3599 = vunpack.c.l.b16 %v2927
    %v3600 = vunpack.c.h.b16 %v2927
    %v3601 = vunpack.c.l.b16 %v2928
    %v3602 = vunpack.c.h.b16 %v2928
    %v3603 = vunpack.c.l.b16 %v2929
    %v3604 = vunpack.c.h.b16 %v2929
    %v3605 = vunpack.c.l.b16 %v2930
    %v3606 = vunpack.c.h.b16 %v2930
    %v3607 = vunpack.c.l.b16 %v2931
    %v3608 = vunpack.c.h.b16 %v2931
    %v3609 = vunpack.c.l.b16 %v2932
    %v3610 = vunpack.c.h.b16 %v2932
    %v3611 = vunpack.c.l.b16 %v2933
    %v3612 = vunpack.c.h.b16 %v2933
    %v3613 = vunpack.c.l.b16 %v2934
    %v3614 = vunpack.c.h.b16 %v2934
    %v3615 = vunpack.c.l.b16 %v2935
    %v3616 = vunpack.c.h.b16 %v2935
    %v3617 = vunpack.c.l.b16 %v2936
    %v3618 = vunpack.c.h.b16 %v2936
    %v3619 = vunpack.c.l.b16 %v2937
    %v3620 = vunpack.c.h.b16 %v2937
    %v3621 = vunpack.c.l.b16 %v2938
    %v3622 = vunpack.c.h.b16 %v2938
    %v3623 = vunpack.c.l.b16 %v2939
    %v3624 = vunpack.c.h.b16 %v2939
    %v3625 = vunpack.c.l.b16 %v2940
    %v3626 = vunpack.c.h.b16 %v2940
    %v3627 = vunpack.c.l.b16 %v2941
    %v3628 = vunpack.c.h.b16 %v2941
    %v3629 = vunpack.c.l.b16 %v2942
    %v3630 = vunpack.c.h.b16 %v2942
    %v3631 = vunpack.c.l.b16 %v2943
    %v3632 = vunpack.c.h.b16 %v2943
    %v3633 = vunpack.c.l.b16 %v2944
    %v3634 = vunpack.c.h.b16 %v2944
    %v3635 = vunpack.c.l.b16 %v2945
    %v3636 = vunpack.c.h.b16 %v2945
    %v3637 = vunpack.c.l.b16 %v2946
    %v3638 = vunpack.c.h.b16 %v2946
    %v3639 = vunpack.c.l.b16 %v2947
    %v3640 = vunpack.c.h.b16 %v2947
    %v3641 = vunpack.c.l.b16 %v2948
    %v3642 = vunpack.c.h.b16 %v2948
    %v3643 = vunpack.c.l.b16 %v2949
    %v3644 = vunpack.c.h.b16 %v2949
    %v3645 = vunpack.c.l.b16 %v2950
    %v3646 = vunpack.c.h.b16 %v2950
    %v3647 = vunpack.c.l.b16 %v2951
    %v3648 = vunpack.c.h.b16 %v2951
    %v3649 = vunpack.c.l.b16 %v2952
    %v3650 = vunpack.c.h.b16 %v2952
    %v3651 = vunpack.c.l.b16 %v2953
    %v3652 = vunpack.c.h.b16 %v2953
    %v3653 = vunpack.c.l.b16 %v2954
    %v3654 = vunpack.c.h.b16 %v2954
    %v3655 = vunpack.c.l.b16 %v2955
    %v3656 = vunpack.c.h.b16 %v2955
    %v3657 = vunpack.c.l.b16 %v2956
    %v3658 = vunpack.c.h.b16 %v2956
    %v3659 = vunpack.c.l.b16 %v2957
    %v3660 = vunpack.c.h.b16 %v2957
    %v3661 = vunpack.c.l.b16 %v2958
    %v3662 = vunpack.c.h.b16 %v2958
    %v3663 = vunpack.c.l.b16 %v2959
    %v3664 = vunpack.c.h.b16 %v2959
    %v3665 = vunpack.c.l.b16 %v2960
    %v3666 = vunpack.c.h.b16 %v2960
    %v3667 = vunpack.c.l.b16 %v2961
    %v3668 = vunpack.c.h.b16 %v2961
    %v3669 = vunpack.c.l.b16 %v2962
    %v3670 = vunpack.c.h.b16 %v2962
    %v3671 = vunpack.c.l.b16 %v2963
    %v3672 = vunpack.c.h.b16 %v2963
    %v3673 = vunpack.c.l.b16 %v2964
    %v3674 = vunpack.c.h.b16 %v2964
    %v3675 = vunpack.c.l.b16 %v2965
    %v3676 = vunpack.c.h.b16 %v2965
    %v3677 = vunpack.c.l.b16 %v2966
    %v3678 = vunpack.c.h.b16 %v2966
    %v3679 = vunpack.c.l.b16 %v2967
    %v3680 = vunpack.c.h.b16 %v2967
    %v3681 = vunpack.c.l.b16 %v2968
    %v3682 = vunpack.c.h.b16 %v2968
    %v3683 = vunpack.c.l.b16 %v2969
    %v3684 = vunpack.c.h.b16 %v2969
    %v3685 = vunpack.c.l.b16 %v2970
    %v3686 = vunpack.c.h.b16 %v2970
    %v3687 = vunpack.c.l.b16 %v2971
    %v3688 = vunpack.c.h.b16 %v2971
    %v3689 = vunpack.c.l.b16 %v2972
    %v3690 = vunpack.c.h.b16 %v2972
    %v3691 = vunpack.c.l.b16 %v2973
    %v3692 = vunpack.c.h.b16 %v2973
    %v3693 = vunpack.c.l.b16 %v2974
    %v3694 = vunpack.c.h.b16 %v2974
    %v3695 = vunpack.c.l.b16 %v2975
    %v3696 = vunpack.c.h.b16 %v2975
    %v3697 = vunpack.c.l.b16 %v2976
    %v3698 = vunpack.c.h.b16 %v2976
    %v3699 = vunpack.c.l.b16 %v2977
    %v3700 = vunpack.c.h.b16 %v2977
    %v3701 = vunpack.c.l.b16 %v2978
    %v3702 = vunpack.c.h.b16 %v2978
    %v3703 = vunpack.c.l.b16 %v2979
    %v3704 = vunpack.c.h.b16 %v2979
    %v3705 = vunpack.c.l.b16 %v2980
    %v3706 = vunpack.c.h.b16 %v2980
    %v3707 = vunpack.c.l.b16 %v2981
    %v3708 = vunpack.c.h.b16 %v2981
    %v3709 = vunpack.c.l.b16 %v2982
    %v3710 = vunpack.c.h.b16 %v2982
    %v3711 = vunpack.c.l.b16 %v2983
    %v3712 = vunpack.c.h.b16 %v2983
    %v3713 = vunpack.c.l.b16 %v2984
    %v3714 = vunpack.c.h.b16 %v2984
    %v3715 = vunpack.c.l.b16 %v2985
    %v3716 = vunpack.c.h.b16 %v2985
    %v3717 = vunpack.c.l.b16 %v2986
    %v3718 = vunpack.c.h.b16 %v2986
    %v3719 = vunpack.c.l.b16 %v2987
    %v3720 = vunpack.c.h.b16 %v2987
    %v3721 = vunpack.c.l.b16 %v2988
    %v3722 = vunpack.c.h.b16 %v2988
    %v3723 = vunpack.c.l.b16 %v2989
    %v3724 = vunpack.c.h.b16 %v2989
    %v3725 = vunpack.c.l.b16 %v2990
    %v3726 = vunpack.c.h.b16 %v2990
    %v3727 = vunpack.c.l.b16 %v2991
    %v3728 = vunpack.c.h.b16 %v2991
    %v3729 = vunpack.c.l.b16 %v2992
    %v3730 = vunpack.c.h.b16 %v2992
    %v3731 = vunpack.c.l.b16 %v2993
    %v3732 = vunpack.c.h.b16 %v2993
    %v3733 = vunpack.c.l.b16 %v2994
    %v3734 = vunpack.c.h.b16 %v2994
    %v3735 = vunpack.c.l.b16 %v2995
    %v3736 = vunpack.c.h.b16 %v2995
    %v3737 = vunpack.c.l.b16 %v2996
    %v3738 = vunpack.c.h.b16 %v2996
    %v3739 = vunpack.c.l.b16 %v2997
    %v3740 = vunpack.c.h.b16 %v2997
    %v3741 = vunpack.c.l.b16 %v2998
    %v3742 = vunpack.c.h.b16 %v2998
    %v3743 = vunpack.c.l.b16 %v2999
    %v3744 = vunpack.c.h.b16 %v2999
    %v3745 = vunpack.c.l.b16 %v3000
    %v3746 = vunpack.c.h.b16 %v3000
    %v3747 = vunpack.c.l.b16 %v3001
    %v3748 = vunpack.c.h.b16 %v3001
    %v3749 = vunpack.c.l.b16 %v3002
    %v3750 = vunpack.c.h.b16 %v3002
    %v3751 = vunpack.c.l.b16 %v3003
    %v3752 = vunpack.c.h.b16 %v3003
    %v3753 = vunpack.c.l.b16 %v3004
    %v3754 = vunpack.c.h.b16 %v3004
    %v3755 = vunpack.c.l.b16 %v3005
    %v3756 = vunpack.c.h.b16 %v3005
    %v3757 = vunpack.c.l.b16 %v3006
    %v3758 = vunpack.c.h.b16 %v3006
    %v3759 = vunpack.c.l.b16 %v3007
    %v3760 = vunpack.c.h.b16 %v3007
    %v3761 = vunpack.c.l.b16 %v3008
    %v3762 = vunpack.c.h.b16 %v3008
    %v3763 = vunpack.c.l.b16 %v3009
    %v3764 = vunpack.c.h.b16 %v3009
    %v3765 = vunpack.c.l.b16 %v3010
    %v3766 = vunpack.c.h.b16 %v3010
    %v3767 = vunpack.c.l.b16 %v3011
    %v3768 = vunpack.c.h.b16 %v3011
    %v3769 = vunpack.c.l.b16 %v3012
    %v3770 = vunpack.c.h.b16 %v3012
    %v3771 = vunpack.c.l.b16 %v3013
    %v3772 = vunpack.c.h.b16 %v3013
    %v3773 = vunpack.c.l.b16 %v3014
    %v3774 = vunpack.c.h.b16 %v3014
    %v3775 = vunpack.c.l.b16 %v3015
    %v3776 = vunpack.c.h.b16 %v3015
    %v3777 = vunpack.c.l.b16 %v3016
    %v3778 = vunpack.c.h.b16 %v3016
    %v3779 = vunpack.c.l.b16 %v3017
    %v3780 = vunpack.c.h.b16 %v3017
    %v3781 = vunpack.c.l.b16 %v3018
    %v3782 = vunpack.c.h.b16 %v3018
    %v3783 = vunpack.c.l.b16 %v3019
    %v3784 = vunpack.c.h.b16 %v3019
    %v3785 = vunpack.c.l.b16 %v3020
    %v3786 = vunpack.c.h.b16 %v3020
    %v3787 = vunpack.c.l.b16 %v3021
    %v3788 = vunpack.c.h.b16 %v3021
    %v3789 = vunpack.c.l.b16 %v3022
    %v3790 = vunpack.c.h.b16 %v3022
    %v3791 = vunpack.c.l.b16 %v3023
    %v3792 = vunpack.c.h.b16 %v3023
    %v3793 = vunpack.c.l.b16 %v3024
    %v3794 = vunpack.c.h.b16 %v3024
    %v3795 = vunpack.c.l.b16 %v3025
    %v3796 = vunpack.c.h.b16 %v3025
    %v3797 = vunpack.c.l.b16 %v3026
    %v3798 = vunpack.c.h.b16 %v3026
    %v3799 = vunpack.c.l.b16 %v3027
    %v3800 = vunpack.c.h.b16 %v3027
    %v3801 = vunpack.c.l.b16 %v3028
    %v3802 = vunpack.c.h.b16 %v3028
    %v3803 = vunpack.c.l.b16 %v3029
    %v3804 = vunpack.c.h.b16 %v3029
    %v3805 = vunpack.c.l.b16 %v3030
    %v3806 = vunpack.c.h.b16 %v3030
    %v3807 = vunpack.c.l.b16 %v3031
    %v3808 = vunpack.c.h.b16 %v3031
    %v3809 = vunpack.c.l.b16 %v3032
    %v3810 = vunpack.c.h.b16 %v3032
    %v3811 = vunpack.c.l.b16 %v3033
    %v3812 = vunpack.c.h.b16 %v3033
    %v3813 = vunpack.c.l.b16 %v3034
    %v3814 = vunpack.c.h.b16 %v3034
    %v3815 = vunpack.c.l.b16 %v3035
    %v3816 = vunpack.c.h.b16 %v3035
    %v3817 = vunpack.c.l.b16 %v3036
    %v3818 = vunpack.c.h.b16 %v3036
    %v3819 = vunpack.c.l.b16 %v3037
    %v3820 = vunpack.c.h.b16 %v3037
    %v3821 = vunpack.c.l.b16 %v3038
    %v3822 = vunpack.c.h.b16 %v3038
    %v3823 = vunpack.c.l.b16 %v3039
    %v3824 = vunpack.c.h.b16 %v3039
    %v3825 = vunpack.c.l.b16 %v3040
    %v3826 = vunpack.c.h.b16 %v3040
    %v3827 = vunpack.c.l.b16 %v3041
    %v3828 = vunpack.c.h.b16 %v3041
    %v3829 = vunpack.c.l.b16 %v3042
    %v3830 = vunpack.c.h.b16 %v3042
    %v3831 = vunpack.c.l.b16 %v3043
    %v3832 = vunpack.c.h.b16 %v3043
    %v3833 = vunpack.c.l.b16 %v3044
    %v3834 = vunpack.c.h.b16 %v3044
    %v3835 = vunpack.c.l.b16 %v3045
    %v3836 = vunpack.c.h.b16 %v3045
    %v3837 = vunpack.c.l.b16 %v3046
    %v3838 = vunpack.c.h.b16 %v3046
    %v3839 = vunpack.c.l.b16 %v3047
    %v3840 = vunpack.c.h.b16 %v3047
    %v3841 = vunpack.c.l.b16 %v3048
    %v3842 = vunpack.c.h.b16 %v3048
    %v3843 = vunpack.c.l.b16 %v3049
    %v3844 = vunpack.c.h.b16 %v3049
    %v3845 = vunpack.c.l.b16 %v3050
    %v3846 = vunpack.c.h.b16 %v3050
    %v3847 = vunpack.c.l.b16 %v3051
    %v3848 = vunpack.c.h.b16 %v3051
    %v3849 = vunpack.c.l.b16 %v3052
    %v3850 = vunpack.c.h.b16 %v3052
    %v3851 = vunpack.c.l.b16 %v3053
    %v3852 = vunpack.c.h.b16 %v3053
    %v3853 = vunpack.c.l.b16 %v3054
    %v3854 = vunpack.c.h.b16 %v3054
    %v3855 = vunpack.c.l.b16 %v3055
    %v3856 = vunpack.c.h.b16 %v3055
    %v3857 = vunpack.c.l.b16 %v3056
    %v3858 = vunpack.c.h.b16 %v3056
    %v3859 = vunpack.c.l.b16 %v3057
    %v3860 = vunpack.c.h.b16 %v3057
    %v3861 = vunpack.c.l.b16 %v3058
    %v3862 = vunpack.c.h.b16 %v3058
    %v3863 = vunpack.c.l.b16 %v3059
    %v3864 = vunpack.c.h.b16 %v3059
    %v3865 = vunpack.c.l.b16 %v3060
    %v3866 = vunpack.c.h.b16 %v3060
    %v3867 = vunpack.c.l.b16 %v3061
    %v3868 = vunpack.c.h.b16 %v3061
    %v3869 = vunpack.c.l.b16 %v3062
    %v3870 = vunpack.c.h.b16 %v3062
    %v3871 = vunpack.c.l.b16 %v3063
    %v3872 = vunpack.c.h.b16 %v3063
    %v3873 = vunpack.c.l.b16 %v3064
    %v3874 = vunpack.c.h.b16 %v3064
    %v3875 = vunpack.c.l.b16 %v3065
    %v3876 = vunpack.c.h.b16 %v3065
    %v3877 = vunpack.c.l.b16 %v3066
    %v3878 = vunpack.c.h.b16 %v3066
    %v3879 = vunpack.c.l.b16 %v3067
    %v3880 = vunpack.c.h.b16 %v3067
    %v3881 = vunpack.c.l.b16 %v3068
    %v3882 = vunpack.c.h.b16 %v3068
    %v3883 = vunpack.c.l.b16 %v3069
    %v3884 = vunpack.c.h.b16 %v3069
    %v3885 = vunpack.c.l.b16 %v3070
    %v3886 = vunpack.c.h.b16 %v3070
    %v3887 = vunpack.c.l.b16 %v3071
    %v3888 = vunpack.c.h.b16 %v3071
    %v3889 = vunpack.c.l.b16 %v3072
    %v3890 = vunpack.c.h.b16 %v3072
    %v3891 = vunpack.c.l.b16 %v3073
    %v3892 = vunpack.c.h.b16 %v3073
    %v3893 = vunpack.c.l.b16 %v3074
    %v3894 = vunpack.c.h.b16 %v3074
    %v3895 = vunpack.c.l.b16 %v3075
    %v3896 = vunpack.c.h.b16 %v3075
    %v3897 = vunpack.c.l.b16 %v3076
    %v3898 = vunpack.c.h.b16 %v3076
    %v3899 = vunpack.c.l.b16 %v3077
    %v3900 = vunpack.c.h.b16 %v3077
    %v3901 = vunpack.c.l.b16 %v3078
    %v3902 = vunpack.c.h.b16 %v3078
    %v3903 = vunpack.c.l.b16 %v3079
    %v3904 = vunpack.c.h.b16 %v3079
    %v3905 = vunpack.c.l.b16 %v3080
    %v3906 = vunpack.c.h.b16 %v3080
    %v3907 = vunpack.c.l.b16 %v3081
    %v3908 = vunpack.c.h.b16 %v3081
    %v3909 = vunpack.c.l.b16 %v3082
    %v3910 = vunpack.c.h.b16 %v3082
    %v3911 = vunpack.c.l.b16 %v3083
    %v3912 = vunpack.c.h.b16 %v3083
    %v3913 = vunpack.c.l.b16 %v3084
    %v3914 = vunpack.c.h.b16 %v3084
    %v3915 = vunpack.c.l.b16 %v3085
    %v3916 = vunpack.c.h.b16 %v3085
    %v3917 = vunpack.c.l.b16 %v3086
    %v3918 = vunpack.c.h.b16 %v3086
    %v3919 = vunpack.c.l.b16 %v3087
    %v3920 = vunpack.c.h.b16 %v3087
    %v3921 = vunpack.c.l.b16 %v3088
    %v3922 = vunpack.c.h.b16 %v3088
    %v3923 = vunpack.c.l.b16 %v3089
    %v3924 = vunpack.c.h.b16 %v3089
    %v3925 = vunpack.c.l.b16 %v3090
    %v3926 = vunpack.c.h.b16 %v3090
    %v3927 = vunpack.c.l.b16 %v3091
    %v3928 = vunpack.c.h.b16 %v3091
    %v3929 = vunpack.c.l.b16 %v3092
    %v3930 = vunpack.c.h.b16 %v3092
    %v3931 = vunpack.c.l.b16 %v3093
    %v3932 = vunpack.c.h.b16 %v3093
    %v3933 = vunpack.c.l.b16 %v3094
    %v3934 = vunpack.c.h.b16 %v3094
    %v3935 = vunpack.c.l.b16 %v3095
    %v3936 = vunpack.c.h.b16 %v3095
    %v3937 = vunpack.c.l.b16 %v3096
    %v3938 = vunpack.c.h.b16 %v3096
    %v3939 = vunpack.c.l.b16 %v3097
    %v3940 = vunpack.c.h.b16 %v3097
    %v3941 = vunpack.c.l.b16 %v3098
    %v3942 = vunpack.c.h.b16 %v3098
    %v3943 = vunpack.c.l.b16 %v3099
    %v3944 = vunpack.c.h.b16 %v3099
    %v3945 = vunpack.c.l.b16 %v3100
    %v3946 = vunpack.c.h.b16 %v3100
    %v3947 = vunpack.c.l.b16 %v3101
    %v3948 = vunpack.c.h.b16 %v3101
    %v3949 = vunpack.c.l.b16 %v3102
    %v3950 = vunpack.c.h.b16 %v3102
    %v3951 = vunpack.c.l.b16 %v3103
    %v3952 = vunpack.c.h.b16 %v3103
    %v3953 = vunpack.c.l.b16 %v3104
    %v3954 = vunpack.c.h.b16 %v3104
    %v3955 = vunpack.c.l.b16 %v3105
    %v3956 = vunpack.c.h.b16 %v3105
    %v3957 = vunpack.c.l.b16 %v3106
    %v3958 = vunpack.c.h.b16 %v3106
    %v3959 = vunpack.c.l.b16 %v3107
    %v3960 = vunpack.c.h.b16 %v3107
    %v3961 = vunpack.c.l.b16 %v3108
    %v3962 = vunpack.c.h.b16 %v3108
    %v3963 = vunpack.c.l.b16 %v3109
    %v3964 = vunpack.c.h.b16 %v3109
    %v3965 = vunpack.c.l.b16 %v3110
    %v3966 = vunpack.c.h.b16 %v3110
    %v3967 = vunpack.c.l.b16 %v3111
    %v3968 = vunpack.c.h.b16 %v3111
    %v3969 = vunpack.c.l.b16 %v3112
    %v3970 = vunpack.c.h.b16 %v3112
    %v3971 = vunpack.c.l.b16 %v3113
    %v3972 = vunpack.c.h.b16 %v3113
    %v3973 = vunpack.c.l.b16 %v3114
    %v3974 = vunpack.c.h.b16 %v3114
    %v3975 = vunpack.c.l.b16 %v3115
    %v3976 = vunpack.c.h.b16 %v3115
    %v3977 = vunpack.c.l.b16 %v3116
    %v3978 = vunpack.c.h.b16 %v3116
    %v3979 = vunpack.c.l.b16 %v3117
    %v3980 = vunpack.c.h.b16 %v3117
    %v3981 = vunpack.c.l.b16 %v3118
    %v3982 = vunpack.c.h.b16 %v3118
    %v3983 = vunpack.c.l.b16 %v3119
    %v3984 = vunpack.c.h.b16 %v3119
    %v3985 = vunpack.c.l.b16 %v3120
    %v3986 = vunpack.c.h.b16 %v3120
    %v3987 = vunpack.c.l.b16 %v3121
    %v3988 = vunpack.c.h.b16 %v3121
    %v3989 = vunpack.c.l.b16 %v3122
    %v3990 = vunpack.c.h.b16 %v3122
    %v3991 = vunpack.c.l.b16 %v3123
    %v3992 = vunpack.c.h.b16 %v3123
    %v3993 = vunpack.c.l.b16 %v3124
    %v3994 = vunpack.c.h.b16 %v3124
    %v3995 = vunpack.c.l.b16 %v3125
    %v3996 = vunpack.c.h.b16 %v3125
    %v3997 = vunpack.c.l.b16 %v3126
    %v3998 = vunpack.c.h.b16 %v3126
    %v3999 = vunpack.c.l.b16 %v3127
    %v4000 = vunpack.c.h.b16 %v3127
    %v4001 = vunpack.c.l.b16 %v3128
    %v4002 = vunpack.c.h.b16 %v3128
    %v4003 = vunpack.c.l.b16 %v3129
    %v4004 = vunpack.c.h.b16 %v3129
    %v4005 = vunpack.c.l.b16 %v3130
    %v4006 = vunpack.c.h.b16 %v3130
    %v4007 = vunpack.c.l.b16 %v3131
    %v4008 = vunpack.c.h.b16 %v3131
    %v4009 = vunpack.c.l.b16 %v3132
    %v4010 = vunpack.c.h.b16 %v3132
    %v4011 = vunpack.c.l.b16 %v3133
    %v4012 = vunpack.c.h.b16 %v3133
    %v4013 = vunpack.c.l.b16 %v3134
    %v4014 = vunpack.c.h.b16 %v3134
    %v4015 = vunpack.c.l.b16 %v3135
    %v4016 = vunpack.c.h.b16 %v3135
    %v4017 = vunpack.c.l.b16 %v3136
    %v4018 = vunpack.c.h.b16 %v3136
    %v4019 = vunpack.c.l.b16 %v3137
    %v4020 = vunpack.c.h.b16 %v3137
    %v4021 = vunpack.c.l.b16 %v3138
    %v4022 = vunpack.c.h.b16 %v3138
    %v4023 = vunpack.c.l.b16 %v3139
    %v4024 = vunpack.c.h.b16 %v3139
    %v4025 = vunpack.c.l.b16 %v3140
    %v4026 = vunpack.c.h.b16 %v3140
    %v4027 = vunpack.c.l.b16 %v3141
    %v4028 = vunpack.c.h.b16 %v3141
    %v4029 = vunpack.c.l.b16 %v3142
    %v4030 = vunpack.c.h.b16 %v3142
    %v4031 = vunpack.c.l.b16 %v3143
    %v4032 = vunpack.c.h.b16 %v3143
    %v4033 = vunpack.c.l.b16 %v3144
    %v4034 = vunpack.c.h.b16 %v3144
    %v4035 = vunpack.c.l.b16 %v3145
    %v4036 = vunpack.c.h.b16 %v3145
    %v4037 = vunpack.c.l.b16 %v3146
    %v4038 = vunpack.c.h.b16 %v3146
    %v4039 = vunpack.c.l.b16 %v3147
    %v4040 = vunpack.c.h.b16 %v3147
    %v4041 = vunpack.c.l.b16 %v3148
    %v4042 = vunpack.c.h.b16 %v3148
    %v4043 = vunpack.c.l.b16 %v3149
    %v4044 = vunpack.c.h.b16 %v3149
    %v4045 = vunpack.c.l.b16 %v3150
    %v4046 = vunpack.c.h.b16 %v3150
    %v4047 = vpack.c.b16 %v3477, %v3471
    %v4048 = vpack.c.b16 %v3478, %v3472
    %v4049 = vpack.c.b16 %v3479, %v3473
    %v4050 = vpack.c.b16 %v3480, %v3474
    %v4051 = vpack.c.b16 %v3481, %v3475
    %v4052 = vpack.c.b16 %v3482, %v3476
    %v4053 = vpack.c.b16 %v3489, %v3483
    %v4054 = vpack.c.b16 %v3490, %v3484
    %v4055 = vpack.c.b16 %v3491, %v3485
    %v4056 = vpack.c.b16 %v3492, %v3486
    %v4057 = vpack.c.b16 %v3493, %v3487
    %v4058 = vpack.c.b16 %v3494, %v3488
    %v4059 = vpack.c.b16 %v3501, %v3495
    %v4060 = vpack.c.b16 %v3502, %v3496
    %v4061 = vpack.c.b16 %v3503, %v3497
    %v4062 = vpack.c.b16 %v3504, %v3498
    %v4063 = vpack.c.b16 %v3505, %v3499
    %v4064 = vpack.c.b16 %v3506, %v3500
    %v4065 = vpack.c.b16 %v3513, %v3507
    %v4066 = vpack.c.b16 %v3514, %v3508
    %v4067 = vpack.c.b16 %v3515, %v3509
    %v4068 = vpack.c.b16 %v3516, %v3510
    %v4069 = vpack.c.b16 %v3517, %v3511
    %v4070 = vpack.c.b16 %v3518, %v3512
    %v4071 = vpack.c.b16 %v3525, %v3519
    %v4072 = vpack.c.b16 %v3526, %v3520
    %v4073 = vpack.c.b16 %v3527, %v3521
    %v4074 = vpack.c.b16 %v3528, %v3522
    %v4075 = vpack.c.b16 %v3529, %v3523
    %v4076 = vpack.c.b16 %v3530, %v3524
    %v4077 = vpack.c.b16 %v3537, %v3531
    %v4078 = vpack.c.b16 %v3538, %v3532
    %v4079 = vpack.c.b16 %v3539, %v3533
    %v4080 = vpack.c.b16 %v3540, %v3534
    %v4081 = vpack.c.b16 %v3541, %v3535
    %v4082 = vpack.c.b16 %v3542, %v3536
    %v4083 = vpack.c.b16 %v3549, %v3543
    %v4084 = vpack.c.b16 %v3550, %v3544
    %v4085 = vpack.c.b16 %v3551, %v3545
    %v4086 = vpack.c.b16 %v3552, %v3546
    %v4087 = vpack.c.b16 %v3553, %v3547
    %v4088 = vpack.c.b16 %v3554, %v3548
    %v4089 = vpack.c.b16 %v3561, %v3555
    %v4090 = vpack.c.b16 %v3562, %v3556
    %v4091 = vpack.c.b16 %v3563, %v3557
    %v4092 = vpack.c.b16 %v3564, %v3558
    %v4093 = vpack.c.b16 %v3565, %v3559
    %v4094 = vpack.c.b16 %v3566, %v3560
    %v4095 = vpack.c.b16 %v3573, %v3567
    %v4096 = vpack.c.b16 %v3574, %v3568
    %v4097 = vpack.c.b16 %v3575, %v3569
    %v4098 = vpack.c.b16 %v3576, %v3570
    %v4099 = vpack.c.b16 %v3577, %v3571
    %v4100 = vpack.c.b16 %v3578, %v3572
    %v4101 = vpack.c.b16 %v3585, %v3579
    %v4102 = vpack.c.b16 %v3586, %v3580
    %v4103 = vpack.c.b16 %v3587, %v3581
    %v4104 = vpack.c.b16 %v3588, %v3582
    %v4105 = vpack.c.b16 %v3589, %v3583
    %v4106 = vpack.c.b16 %v3590, %v3584
    %v4107 = vpack.c.b16 %v3597, %v3591
    %v4108 = vpack.c.b16 %v3598, %v3592
    %v4109 = vpack.c.b16 %v3599, %v3593
    %v4110 = vpack.c.b16 %v3600, %v3594
    %v4111 = vpack.c.b16 %v3601, %v3595
    %v4112 = vpack.c.b16 %v3602, %v3596
    %v4113 = vpack.c.b16 %v3609, %v3603
    %v4114 = vpack.c.b16 %v3610, %v3604
    %v4115 = vpack.c.b16 %v3611, %v3605
    %v4116 = vpack.c.b16 %v3612, %v3606
    %v4117 = vpack.c.b16 %v3613, %v3607
    %v4118 = vpack.c.b16 %v3614, %v3608
    %v4119 = vpack.c.b16 %v3621, %v3615
    %v4120 = vpack.c.b16 %v3622, %v3616
    %v4121 = vpack.c.b16 %v3623, %v3617
    %v4122 = vpack.c.b16 %v3624, %v3618
    %v4123 = vpack.c.b16 %v3625, %v3619
    %v4124 = vpack.c.b16 %v3626, %v3620
    %v4125 = vpack.c.b16 %v3633, %v3627
    %v4126 = vpack.c.b16 %v3634, %v3628
    %v4127 = vpack.c.b16 %v3635, %v3629
    %v4128 = vpack.c.b16 %v3636, %v3630
    %v4129 = vpack.c.b16 %v3637, %v3631
    %v4130 = vpack.c.b16 %v3638, %v3632
    %v4131 = vpack.c.b16 %v3645, %v3639
    %v4132 = vpack.c.b16 %v3646, %v3640
    %v4133 = vpack.c.b16 %v3647, %v3641
    %v4134 = vpack.c.b16 %v3648, %v3642
    %v4135 = vpack.c.b16 %v3649, %v3643
    %v4136 = vpack.c.b16 %v3650, %v3644
    %v4137 = vpack.c.b16 %v3657, %v3651
    %v4138 = vpack.c.b16 %v3658, %v3652
    %v4139 = vpack.c.b16 %v3659, %v3653
    %v4140 = vpack.c.b16 %v3660, %v3654
    %v4141 = vpack.c.b16 %v3661, %v3655
    %v4142 = vpack.c.b16 %v3662, %v3656
    %v4143 = vpack.c.b16 %v3669, %v3663
    %v4144 = vpack.c.b16 %v3670, %v3664
    %v4145 = vpack.c.b16 %v3671, %v3665
    %v4146 = vpack.c.b16 %v3672, %v3666
    %v4147 = vpack.c.b16 %v3673, %v3667
    %v4148 = vpack.c.b16 %v3674, %v3668
    %v4149 = vpack.c.b16 %v3681, %v3675
    %v4150 = vpack.c.b16 %v3682, %v3676
    %v4151 = vpack.c.b16 %v3683, %v3677
    %v4152 = vpack.c.b16 %v3684, %v3678
    %v4153 = vpack.c.b16 %v3685, %v3679
    %v4154 = vpack.c.b16 %v3686, %v3680
    %v4155 = vpack.c.b16 %v3693, %v3687
    %v4156 = vpack.c.b16 %v3694, %v3688
    %v4157 = vpack.c.b16 %v3695, %v3689
    %v4158 = vpack.c.b16 %v3696, %v3690
    %v4159 = vpack.c.b16 %v3697, %v3691
    %v4160 = vpack.c.b16 %v3698, %v3692
    %v4161 = vpack.c.b16 %v3705, %v3699
    %v4162 = vpack.c.b16 %v3706, %v3700
    %v4163 = vpack.c.b16 %v3707, %v3701
    %v4164 = vpack.c.b16 %v3708, %v3702
    %v4165 = vpack.c.b16 %v3709, %v3703
    %v4166 = vpack.c.b16 %v3710, %v3704
    %v4167 = vpack.c.b16 %v3717, %v3711
    %v4168 = vpack.c.b16 %v3718, %v3712
    %v4169 = vpack.c.b16 %v3719, %v3713
    %v4170 = vpack.c.b16 %v3720, %v3714
    %v4171 = vpack.c.b16 %v3721, %v3715
    %v4172 = vpack.c.b16 %v3722, %v3716
    %v4173 = vpack.c.b16 %v3729, %v3723
    %v4174 = vpack.c.b16 %v3730, %v3724
    %v4175 = vpack.c.b16 %v3731, %v3725
    %v4176 = vpack.c.b16 %v3732, %v3726
    %v4177 = vpack.c.b16 %v3733, %v3727
    %v4178 = vpack.c.b16 %v3734, %v3728
    %v4179 = vpack.c.b16 %v3741, %v3735
    %v4180 = vpack.c.b16 %v3742, %v3736
    %v4181 = vpack.c.b16 %v3743, %v3737
    %v4182 = vpack.c.b16 %v3744, %v3738
    %v4183 = vpack.c.b16 %v3745, %v3739
    %v4184 = vpack.c.b16 %v3746, %v3740
    %v4185 = vpack.c.b16 %v3753, %v3747
    %v4186 = vpack.c.b16 %v3754, %v3748
    %v4187 = vpack.c.b16 %v3755, %v3749
    %v4188 = vpack.c.b16 %v3756, %v3750
    %v4189 = vpack.c.b16 %v3757, %v3751
    %v4190 = vpack.c.b16 %v3758, %v3752
    %v4191 = vpack.c.b16 %v3765, %v3759
    %v4192 = vpack.c.b16 %v3766, %v3760
    %v4193 = vpack.c.b16 %v3767, %v3761
    %v4194 = vpack.c.b16 %v3768, %v3762
    %v4195 = vpack.c.b16 %v3769, %v3763
    %v4196 = vpack.c.b16 %v3770, %v3764
    %v4197 = vpack.c.b16 %v3777, %v3771
    %v4198 = vpack.c.b16 %v3778, %v3772
    %v4199 = vpack.c.b16 %v3779, %v3773
    %v4200 = vpack.c.b16 %v3780, %v3774
    %v4201 = vpack.c.b16 %v3781, %v3775
    %v4202 = vpack.c.b16 %v3782, %v3776
    %v4203 = vpack.c.b16 %v3789, %v3783
    %v4204 = vpack.c.b16 %v3790, %v3784
    %v4205 = vpack.c.b16 %v3791, %v3785
    %v4206 = vpack.c.b16 %v3792, %v3786
    %v4207 = vpack.c.b16 %v3793, %v3787
    %v4208 = vpack.c.b16 %v3794, %v3788
    %v4209 = vpack.c.b16 %v3801, %v3795
    %v4210 = vpack.c.b16 %v3802, %v3796
    %v4211 = vpack.c.b16 %v3803, %v3797
    %v4212 = vpack.c.b16 %v3804, %v3798
    %v4213 = vpack.c.b16 %v3805, %v3799
    %v4214 = vpack.c.b16 %v3806, %v3800
    %v4215 = vpack.c.b16 %v3813, %v3807
    %v4216 = vpack.c.b16 %v3814, %v3808
    %v4217 = vpack.c.b16 %v3815, %v3809
    %v4218 = vpack.c.b16 %v3816, %v3810
    %v4219 = vpack.c.b16 %v3817, %v3811
    %v4220 = vpack.c.b16 %v3818, %v3812
    %v4221 = vpack.c.b16 %v3825, %v3819
    %v4222 = vpack.c.b16 %v3826, %v3820
    %v4223 = vpack.c.b16 %v3827, %v3821
    %v4224 = vpack.c.b16 %v3828, %v3822
    %v4225 = vpack.c.b16 %v3829, %v3823
    %v4226 = vpack.c.b16 %v3830, %v3824
    %v4227 = vpack.c.b16 %v3837, %v3831
    %v4228 = vpack.c.b16 %v3838, %v3832
    %v4229 = vpack.c.b16 %v3839, %v3833
    %v4230 = vpack.c.b16 %v3840, %v3834
    %v4231 = vpack.c.b16 %v3841, %v3835
    %v4232 = vpack.c.b16 %v3842, %v3836
    %v4233 = vpack.c.b16 %v3849, %v3843
    %v4234 = vpack.c.b16 %v3850, %v3844
    %v4235 = vpack.c.b16 %v3851, %v3845
    %v4236 = vpack.c.b16 %v3852, %v3846
    %v4237 = vpack.c.b16 %v3853, %v3847
    %v4238 = vpack.c.b16 %v3854, %v3848
    %v4239 = vpack.c.b16 %v3861, %v3855
    %v4240 = vpack.c.b16 %v3862, %v3856
    %v4241 = vpack.c.b16 %v3863, %v3857
    %v4242 = vpack.c.b16 %v3864, %v3858
    %v4243 = vpack.c.b16 %v3865, %v3859
    %v4244 = vpack.c.b16 %v3866, %v3860
    %v4245 = vpack.c.b16 %v3873, %v3867
    %v4246 = vpack.c.b16 %v3874, %v3868
    %v4247 = vpack.c.b16 %v3875, %v3869
    %v4248 = vpack.c.b16 %v3876, %v3870
    %v4249 = vpack.c.b16 %v3877, %v3871
    %v4250 = vpack.c.b16 %v3878, %v3872
    %v4251 = vpack.c.b16 %v3885, %v3879
    %v4252 = vpack.c.b16 %v3886, %v3880
    %v4253 = vpack.c.b16 %v3887, %v3881
    %v4254 = vpack.c.b16 %v3888, %v3882
    %v4255 = vpack.c.b16 %v3889, %v3883
    %v4256 = vpack.c.b16 %v3890, %v3884
    %v4257 = vpack.c.b16 %v3897, %v3891
    %v4258 = vpack.c.b16 %v3898, %v3892
    %v4259 = vpack.c.b16 %v3899, %v3893
    %v4260 = vpack.c.b16 %v3900, %v3894
    %v4261 = vpack.c.b16 %v3901, %v3895
    %v4262 = vpack.c.b16 %v3902, %v3896
    %v4263 = vpack.c.b16 %v3909, %v3903
    %v4264 = vpack.c.b16 %v3910, %v3904
    %v4265 = vpack.c.b16 %v3911, %v3905
    %v4266 = vpack.c.b16 %v3912, %v3906
    %v4267 = vpack.c.b16 %v3913, %v3907
    %v4268 = vpack.c.b16 %v3914, %v3908
    %v4269 = vpack.c.b16 %v3921, %v3915
    %v4270 = vpack.c.b16 %v3922, %v3916
    %v4271 = vpack.c.b16 %v3923, %v3917
    %v4272 = vpack.c.b16 %v3924, %v3918
    %v4273 = vpack.c.b16 %v3925, %v3919
    %v4274 = vpack.c.b16 %v3926, %v3920
    %v4275 = vpack.c.b16 %v3933, %v3927
    %v4276 = vpack.c.b16 %v3934, %v3928
    %v4277 = vpack.c.b16 %v3935, %v3929
    %v4278 = vpack.c.b16 %v3936, %v3930
    %v4279 = vpack.c.b16 %v3937, %v3931
    %v4280 = vpack.c.b16 %v3938, %v3932
    %v4281 = vpack.c.b16 %v3945, %v3939
    %v4282 = vpack.c.b16 %v3946, %v3940
    %v4283 = vpack.c.b16 %v3947, %v3941
    %v4284 = vpack.c.b16 %v3948, %v3942
    %v4285 = vpack.c.b16 %v3949, %v3943
    %v4286 = vpack.c.b16 %v3950, %v3944
    %v4287 = vpack.c.b16 %v3957, %v3951
    %v4288 = vpack.c.b16 %v3958, %v3952
    %v4289 = vpack.c.b16 %v3959, %v3953
    %v4290 = vpack.c.b16 %v3960, %v3954
    %v4291 = vpack.c.b16 %v3961, %v3955
    %v4292 = vpack.c.b16 %v3962, %v3956
    %v4293 = vpack.c.b16 %v3969, %v3963
    %v4294 = vpack.c.b16 %v3970, %v3964
    %v4295 = vpack.c.b16 %v3971, %v3965
    %v4296 = vpack.c.b16 %v3972, %v3966
    %v4297 = vpack.c.b16 %v3973, %v3967
    %v4298 = vpack.c.b16 %v3974, %v3968
    %v4299 = vpack.c.b16 %v3981, %v3975
    %v4300 = vpack.c.b16 %v3982, %v3976
    %v4301 = vpack.c.b16 %v3983, %v3977
    %v4302 = vpack.c.b16 %v3984, %v3978
    %v4303 = vpack.c.b16 %v3985, %v3979
    %v4304 = vpack.c.b16 %v3986, %v3980
    %v4305 = vpack.c.b16 %v3993, %v3987
    %v4306 = vpack.c.b16 %v3994, %v3988
    %v4307 = vpack.c.b16 %v3995, %v3989
    %v4308 = vpack.c.b16 %v3996, %v3990
    %v4309 = vpack.c.b16 %v3997, %v3991
    %v4310 = vpack.c.b16 %v3998, %v3992
    %v4311 = vpack.c.b16 %v4005, %v3999
    %v4312 = vpack.c.b16 %v4006, %v4000
    %v4313 = vpack.c.b16 %v4007, %v4001
    %v4314 = vpack.c.b16 %v4008, %v4002
    %v4315 = vpack.c.b16 %v4009, %v4003
    %v4316 = vpack.c.b16 %v4010, %v4004
    %v4317 = vpack.c.b16 %v4017, %v4011
    %v4318 = vpack.c.b16 %v4018, %v4012
    %v4319 = vpack.c.b16 %v4019, %v4013
    %v4320 = vpack.c.b16 %v4020, %v4014
    %v4321 = vpack.c.b16 %v4021, %v4015
    %v4322 = vpack.c.b16 %v4022, %v4016
    %v4323 = vpack.c.b16 %v4029, %v4023
    %v4324 = vpack.c.b16 %v4030, %v4024
    %v4325 = vpack.c.b16 %v4031, %v4025
    %v4326 = vpack.c.b16 %v4032, %v4026
    %v4327 = vpack.c.b16 %v4033, %v4027
    %v4328 = vpack.c.b16 %v4034, %v4028
    %v4329 = vpack.c.b16 %v4041, %v4035
    %v4330 = vpack.c.b16 %v4042, %v4036
    %v4331 = vpack.c.b16 %v4043, %v4037
    %v4332 = vpack.c.b16 %v4044, %v4038
    %v4333 = vpack.c.b16 %v4045, %v4039
    %v4334 = vpack.c.b16 %v4046, %v4040
    %4623 = vmatprep.subr.bf16.mxu0 %v4090
    %4624 = vmatpush1.bf16.msra.mxu0 %v4089
    %4625 = vmatprep.subr.bf16.mxu0 %v4084
    %4626 = vmatpush1.bf16.msra.mxu0 %v4083
    %4627 = vmatprep.subr.bf16.mxu0 %v4078
    %4628 = vmatpush1.bf16.msra.mxu0 %v4077
    %4629 = vmatprep.subr.bf16.mxu0 %v4072
    %4630 = vmatpush1.bf16.msra.mxu0 %v4071
    %4631 = vmatprep.subr.bf16.mxu0 %v4066
    %4632 = vmatpush1.bf16.msra.mxu0 %v4065
    %4633 = vmatprep.subr.bf16.mxu0 %v4060
    %4634 = vmatpush1.bf16.msra.mxu0 %v4059
    %4635 = vmatprep.subr.bf16.mxu0 %v4054
    %4636 = vmatpush1.bf16.msra.mxu0 %v4053
    %4637 = vmatprep.subr.bf16.mxu0 %v4048
    %4638 = vmatpush1.bf16.msra.mxu0 %v4047
    %4639 = vmatprep.subr.bf16.mxu0 %v4138
    %4640 = vmatpush2.bf16.msra.mxu0 %v4137
    %4641 = vmatprep.subr.bf16.mxu0 %v4132
    %4642 = vmatpush2.bf16.msra.mxu0 %v4131
    %4643 = vmatprep.subr.bf16.mxu0 %v4126
    %4644 = vmatpush2.bf16.msra.mxu0 %v4125
    %4645 = vmatprep.subr.bf16.mxu0 %v4120
    %4646 = vmatpush2.bf16.msra.mxu0 %v4119
    %4647 = vmatprep.subr.bf16.mxu0 %v4114
    %4648 = vmatpush2.bf16.msra.mxu0 %v4113
    %4649 = vmatprep.subr.bf16.mxu0 %v4108
    %4650 = vmatpush2.bf16.msra.mxu0 %v4107
    %4651 = vmatprep.subr.bf16.mxu0 %v4102
    %4652 = vmatpush2.bf16.msra.mxu0 %v4101
    %4653 = vmatprep.subr.bf16.mxu0 %v4096
    %4654 = vmatpush2.bf16.msra.mxu0 %v4095
    %4655 = vmatprep.mubr.bf16.mxu0 %v2852
    %4656 = vmatmul.mubr.bf16.gmra.mxu0 %v2851
    %v4657 = vpop.f32.mrf.mxu0
    %v4658 = vadd.f32 %v3156, %v4657
    %v4659 = vpop.f32.mrf.mxu0
    %v4660 = vadd.f32 %v3160, %v4659
    %v4661 = vpop.f32.mrf.mxu0
    %v4662 = vadd.f32 %v3156, %v4661
    %v4663 = vpop.f32.mrf.mxu0
    %v4664 = vadd.f32 %v3160, %v4663
    %4665 = vmatprep.mubr.bf16.mxu0 %v2858
    %4666 = vmatmul.mubr.bf16.gmra.mxu0 %v2857
    %v4667 = vpop.f32.mrf.mxu0
    %v4668 = vadd.f32 %v3156, %v4667
    %v4669 = vpop.f32.mrf.mxu0
    %v4670 = vadd.f32 %v3160, %v4669
    %v4671 = vpop.f32.mrf.mxu0
    %v4672 = vpop.f32.mrf.mxu0
    %4673 = vdwg.mxu0
    %4674 = vmatprep.subr.bf16.mxu0 %v4186
    %4675 = vmatpush1.bf16.msra.mxu0 %v4185
    %4676 = vmatprep.subr.bf16.mxu0 %v4180
    %4677 = vmatpush1.bf16.msra.mxu0 %v4179
    %4678 = vmatprep.subr.bf16.mxu0 %v4174
    %4679 = vmatpush1.bf16.msra.mxu0 %v4173
    %4680 = vmatprep.subr.bf16.mxu0 %v4168
    %4681 = vmatpush1.bf16.msra.mxu0 %v4167
    %4682 = vmatprep.subr.bf16.mxu0 %v4162
    %4683 = vmatpush1.bf16.msra.mxu0 %v4161
    %4684 = vmatprep.subr.bf16.mxu0 %v4156
    %4685 = vmatpush1.bf16.msra.mxu0 %v4155
    %4686 = vmatprep.subr.bf16.mxu0 %v4150
    %4687 = vmatpush1.bf16.msra.mxu0 %v4149
    %4688 = vmatprep.subr.bf16.mxu0 %v4144
    %4689 = vmatpush1.bf16.msra.mxu0 %v4143
    %4690 = vmatprep.subr.bf16.mxu0 %v4234
    %4691 = vmatpush2.bf16.msra.mxu0 %v4233
    %4692 = vmatprep.subr.bf16.mxu0 %v4228
    %4693 = vmatpush2.bf16.msra.mxu0 %v4227
    %4694 = vmatprep.subr.bf16.mxu0 %v4222
    %4695 = vmatpush2.bf16.msra.mxu0 %v4221
    %4696 = vmatprep.subr.bf16.mxu0 %v4216
    %4697 = vmatpush2.bf16.msra.mxu0 %v4215
    %4698 = vmatprep.subr.bf16.mxu0 %v4210
    %4699 = vmatpush2.bf16.msra.mxu0 %v4209
    %4700 = vmatprep.subr.bf16.mxu0 %v4204
    %4701 = vmatpush2.bf16.msra.mxu0 %v4203
    %4702 = vmatprep.subr.bf16.mxu0 %v4198
    %4703 = vmatpush2.bf16.msra.mxu0 %v4197
    %4704 = vmatprep.subr.bf16.mxu0 %v4192
    %4705 = vmatpush2.bf16.msra.mxu0 %v4191
    %4706 = vmatprep.mubr.bf16.mxu0 %v2854
    %4707 = vmatmul.mubr.bf16.gmra.mxu0 %v2853
    %v4708 = vpop.f32.mrf.mxu0
    %v4709 = vadd.f32 %v4658, %v4708
    %v4710 = vpop.f32.mrf.mxu0
    %v4711 = vadd.f32 %v4660, %v4710
    %v4712 = vpop.f32.mrf.mxu0
    %v4713 = vadd.f32 %v4662, %v4712
    %v4714 = vpop.f32.mrf.mxu0
    %v4715 = vadd.f32 %v4664, %v4714
    %4716 = vmatprep.mubr.bf16.mxu0 %v2860
    %4717 = vmatmul.mubr.bf16.gmra.mxu0 %v2859
    %v4718 = vpop.f32.mrf.mxu0
    %v4719 = vadd.f32 %v4668, %v4718
    %v4720 = vpop.f32.mrf.mxu0
    %v4721 = vadd.f32 %v4670, %v4720
    %v4722 = vpop.f32.mrf.mxu0
    %v4723 = vpop.f32.mrf.mxu0
    %4724 = vdwg.mxu0
    %4725 = vmatprep.subr.bf16.mxu0 %v4282
    %4726 = vmatpush1.bf16.msra.mxu0 %v4281
    %4727 = vmatprep.subr.bf16.mxu0 %v4276
    %4728 = vmatpush1.bf16.msra.mxu0 %v4275
    %4729 = vmatprep.subr.bf16.mxu0 %v4270
    %4730 = vmatpush1.bf16.msra.mxu0 %v4269
    %4731 = vmatprep.subr.bf16.mxu0 %v4264
    %4732 = vmatpush1.bf16.msra.mxu0 %v4263
    %4733 = vmatprep.subr.bf16.mxu0 %v4258
    %4734 = vmatpush1.bf16.msra.mxu0 %v4257
    %4735 = vmatprep.subr.bf16.mxu0 %v4252
    %4736 = vmatpush1.bf16.msra.mxu0 %v4251
    %4737 = vmatprep.subr.bf16.mxu0 %v4246
    %4738 = vmatpush1.bf16.msra.mxu0 %v4245
    %4739 = vmatprep.subr.bf16.mxu0 %v4240
    %4740 = vmatpush1.bf16.msra.mxu0 %v4239
    %4741 = vmatprep.subr.bf16.mxu0 %v4330
    %4742 = vmatpush2.bf16.msra.mxu0 %v4329
    %4743 = vmatprep.subr.bf16.mxu0 %v4324
    %4744 = vmatpush2.bf16.msra.mxu0 %v4323
    %4745 = vmatprep.subr.bf16.mxu0 %v4318
    %4746 = vmatpush2.bf16.msra.mxu0 %v4317
    %4747 = vmatprep.subr.bf16.mxu0 %v4312
    %4748 = vmatpush2.bf16.msra.mxu0 %v4311
    %4749 = vmatprep.subr.bf16.mxu0 %v4306
    %4750 = vmatpush2.bf16.msra.mxu0 %v4305
    %4751 = vmatprep.subr.bf16.mxu0 %v4300
    %4752 = vmatpush2.bf16.msra.mxu0 %v4299
    %4753 = vmatprep.subr.bf16.mxu0 %v4294
    %4754 = vmatpush2.bf16.msra.mxu0 %v4293
    %4755 = vmatprep.subr.bf16.mxu0 %v4288
    %4756 = vmatpush2.bf16.msra.mxu0 %v4287
    %4757 = vmatprep.mubr.bf16.mxu0 %v2856
    %4758 = vmatmul.mubr.bf16.gmra.mxu0 %v2855
    %v4759 = vpop.f32.mrf.mxu0
    %v4760 = vadd.f32 %v4709, %v4759
    %v4761 = vpop.f32.mrf.mxu0
    %v4762 = vadd.f32 %v4711, %v4761
    %v4763 = vpop.f32.mrf.mxu0
    %v4764 = vadd.f32 %v4713, %v4763
    %v4765 = vpop.f32.mrf.mxu0
    %v4766 = vadd.f32 %v4715, %v4765
    %4767 = vmatprep.mubr.bf16.mxu0 %v2862
    %4768 = vmatmul.mubr.bf16.gmra.mxu0 %v2861
    %v4769 = vpop.f32.mrf.mxu0
    %v4770 = vadd.f32 %v4719, %v4769
    %v4771 = vpop.f32.mrf.mxu0
    %v4772 = vadd.f32 %v4721, %v4771
    %v4773 = vpop.f32.mrf.mxu0
    %v4774 = vpop.f32.mrf.mxu0
    %4775 = vdwg.mxu0
    %4776 = vmatprep.subr.bf16.mxu0 %v4092
    %4777 = vmatpush1.bf16.msra.mxu0 %v4091
    %4778 = vmatprep.subr.bf16.mxu0 %v4086
    %4779 = vmatpush1.bf16.msra.mxu0 %v4085
    %4780 = vmatprep.subr.bf16.mxu0 %v4080
    %4781 = vmatpush1.bf16.msra.mxu0 %v4079
    %4782 = vmatprep.subr.bf16.mxu0 %v4074
    %4783 = vmatpush1.bf16.msra.mxu0 %v4073
    %4784 = vmatprep.subr.bf16.mxu0 %v4068
    %4785 = vmatpush1.bf16.msra.mxu0 %v4067
    %4786 = vmatprep.subr.bf16.mxu0 %v4062
    %4787 = vmatpush1.bf16.msra.mxu0 %v4061
    %4788 = vmatprep.subr.bf16.mxu0 %v4056
    %4789 = vmatpush1.bf16.msra.mxu0 %v4055
    %4790 = vmatprep.subr.bf16.mxu0 %v4050
    %4791 = vmatpush1.bf16.msra.mxu0 %v4049
    %4792 = vmatprep.subr.bf16.mxu0 %v4140
    %4793 = vmatpush2.bf16.msra.mxu0 %v4139
    %4794 = vmatprep.subr.bf16.mxu0 %v4134
    %4795 = vmatpush2.bf16.msra.mxu0 %v4133
    %4796 = vmatprep.subr.bf16.mxu0 %v4128
    %4797 = vmatpush2.bf16.msra.mxu0 %v4127
    %4798 = vmatprep.subr.bf16.mxu0 %v4122
    %4799 = vmatpush2.bf16.msra.mxu0 %v4121
    %4800 = vmatprep.subr.bf16.mxu0 %v4116
    %4801 = vmatpush2.bf16.msra.mxu0 %v4115
    %4802 = vmatprep.subr.bf16.mxu0 %v4110
    %4803 = vmatpush2.bf16.msra.mxu0 %v4109
    %4804 = vmatprep.subr.bf16.mxu0 %v4104
    %4805 = vmatpush2.bf16.msra.mxu0 %v4103
    %4806 = vmatprep.subr.bf16.mxu0 %v4098
    %4807 = vmatpush2.bf16.msra.mxu0 %v4097
    %4808 = vmatprep.mubr.bf16.mxu0 %v2852
    %4809 = vmatmul.mubr.bf16.gmra.mxu0 %v2851
    %v4810 = vpop.f32.mrf.mxu0
    %v4811 = vadd.f32 %v3164, %v4810
    %v4812 = vpop.f32.mrf.mxu0
    %v4813 = vadd.f32 %v3168, %v4812
    %v4814 = vpop.f32.mrf.mxu0
    %v4815 = vadd.f32 %v3164, %v4814
    %v4816 = vpop.f32.mrf.mxu0
    %v4817 = vadd.f32 %v3168, %v4816
    %4818 = vmatprep.mubr.bf16.mxu0 %v2858
    %4819 = vmatmul.mubr.bf16.gmra.mxu0 %v2857
    %v4820 = vpop.f32.mrf.mxu0
    %v4821 = vadd.f32 %v3164, %v4820
    %v4822 = vpop.f32.mrf.mxu0
    %v4823 = vadd.f32 %v3168, %v4822
    %v4824 = vpop.f32.mrf.mxu0
    %v4825 = vpop.f32.mrf.mxu0
    %4826 = vdwg.mxu0
    %4827 = vmatprep.subr.bf16.mxu0 %v4188
    %4828 = vmatpush1.bf16.msra.mxu0 %v4187
    %4829 = vmatprep.subr.bf16.mxu0 %v4182
    %4830 = vmatpush1.bf16.msra.mxu0 %v4181
    %4831 = vmatprep.subr.bf16.mxu0 %v4176
    %4832 = vmatpush1.bf16.msra.mxu0 %v4175
    %4833 = vmatprep.subr.bf16.mxu0 %v4170
    %4834 = vmatpush1.bf16.msra.mxu0 %v4169
    %4835 = vmatprep.subr.bf16.mxu0 %v4164
    %4836 = vmatpush1.bf16.msra.mxu0 %v4163
    %4837 = vmatprep.subr.bf16.mxu0 %v4158
    %4838 = vmatpush1.bf16.msra.mxu0 %v4157
    %4839 = vmatprep.subr.bf16.mxu0 %v4152
    %4840 = vmatpush1.bf16.msra.mxu0 %v4151
    %4841 = vmatprep.subr.bf16.mxu0 %v4146
    %4842 = vmatpush1.bf16.msra.mxu0 %v4145
    %4843 = vmatprep.subr.bf16.mxu0 %v4236
    %4844 = vmatpush2.bf16.msra.mxu0 %v4235
    %4845 = vmatprep.subr.bf16.mxu0 %v4230
    %4846 = vmatpush2.bf16.msra.mxu0 %v4229
    %4847 = vmatprep.subr.bf16.mxu0 %v4224
    %4848 = vmatpush2.bf16.msra.mxu0 %v4223
    %4849 = vmatprep.subr.bf16.mxu0 %v4218
    %4850 = vmatpush2.bf16.msra.mxu0 %v4217
    %4851 = vmatprep.subr.bf16.mxu0 %v4212
    %4852 = vmatpush2.bf16.msra.mxu0 %v4211
    %4853 = vmatprep.subr.bf16.mxu0 %v4206
    %4854 = vmatpush2.bf16.msra.mxu0 %v4205
    %4855 = vmatprep.subr.bf16.mxu0 %v4200
    %4856 = vmatpush2.bf16.msra.mxu0 %v4199
    %4857 = vmatprep.subr.bf16.mxu0 %v4194
    %4858 = vmatpush2.bf16.msra.mxu0 %v4193
    %4859 = vmatprep.mubr.bf16.mxu0 %v2854
    %4860 = vmatmul.mubr.bf16.gmra.mxu0 %v2853
    %v4861 = vpop.f32.mrf.mxu0
    %v4862 = vadd.f32 %v4811, %v4861
    %v4863 = vpop.f32.mrf.mxu0
    %v4864 = vadd.f32 %v4813, %v4863
    %v4865 = vpop.f32.mrf.mxu0
    %v4866 = vadd.f32 %v4815, %v4865
    %v4867 = vpop.f32.mrf.mxu0
    %v4868 = vadd.f32 %v4817, %v4867
    %4869 = vmatprep.mubr.bf16.mxu0 %v2860
    %4870 = vmatmul.mubr.bf16.gmra.mxu0 %v2859
    %v4871 = vpop.f32.mrf.mxu0
    %v4872 = vadd.f32 %v4821, %v4871
    %v4873 = vpop.f32.mrf.mxu0
    %v4874 = vadd.f32 %v4823, %v4873
    %v4875 = vpop.f32.mrf.mxu0
    %v4876 = vpop.f32.mrf.mxu0
    %4877 = vdwg.mxu0
    %4878 = vmatprep.subr.bf16.mxu0 %v4284
    %4879 = vmatpush1.bf16.msra.mxu0 %v4283
    %4880 = vmatprep.subr.bf16.mxu0 %v4278
    %4881 = vmatpush1.bf16.msra.mxu0 %v4277
    %4882 = vmatprep.subr.bf16.mxu0 %v4272
    %4883 = vmatpush1.bf16.msra.mxu0 %v4271
    %4884 = vmatprep.subr.bf16.mxu0 %v4266
    %4885 = vmatpush1.bf16.msra.mxu0 %v4265
    %4886 = vmatprep.subr.bf16.mxu0 %v4260
    %4887 = vmatpush1.bf16.msra.mxu0 %v4259
    %4888 = vmatprep.subr.bf16.mxu0 %v4254
    %4889 = vmatpush1.bf16.msra.mxu0 %v4253
    %4890 = vmatprep.subr.bf16.mxu0 %v4248
    %4891 = vmatpush1.bf16.msra.mxu0 %v4247
    %4892 = vmatprep.subr.bf16.mxu0 %v4242
    %4893 = vmatpush1.bf16.msra.mxu0 %v4241
    %4894 = vmatprep.subr.bf16.mxu0 %v4332
    %4895 = vmatpush2.bf16.msra.mxu0 %v4331
    %4896 = vmatprep.subr.bf16.mxu0 %v4326
    %4897 = vmatpush2.bf16.msra.mxu0 %v4325
    %4898 = vmatprep.subr.bf16.mxu0 %v4320
    %4899 = vmatpush2.bf16.msra.mxu0 %v4319
    %4900 = vmatprep.subr.bf16.mxu0 %v4314
    %4901 = vmatpush2.bf16.msra.mxu0 %v4313
    %4902 = vmatprep.subr.bf16.mxu0 %v4308
    %4903 = vmatpush2.bf16.msra.mxu0 %v4307
    %4904 = vmatprep.subr.bf16.mxu0 %v4302
    %4905 = vmatpush2.bf16.msra.mxu0 %v4301
    %4906 = vmatprep.subr.bf16.mxu0 %v4296
    %4907 = vmatpush2.bf16.msra.mxu0 %v4295
    %4908 = vmatprep.subr.bf16.mxu0 %v4290
    %4909 = vmatpush2.bf16.msra.mxu0 %v4289
    %4910 = vmatprep.mubr.bf16.mxu0 %v2856
    %4911 = vmatmul.mubr.bf16.gmra.mxu0 %v2855
    %v4912 = vpop.f32.mrf.mxu0
    %v4913 = vadd.f32 %v4862, %v4912
    %v4914 = vpop.f32.mrf.mxu0
    %v4915 = vadd.f32 %v4864, %v4914
    %v4916 = vpop.f32.mrf.mxu0
    %v4917 = vadd.f32 %v4866, %v4916
    %v4918 = vpop.f32.mrf.mxu0
    %v4919 = vadd.f32 %v4868, %v4918
    %4920 = vmatprep.mubr.bf16.mxu0 %v2862
    %4921 = vmatmul.mubr.bf16.gmra.mxu0 %v2861
    %v4922 = vpop.f32.mrf.mxu0
    %v4923 = vadd.f32 %v4872, %v4922
    %v4924 = vpop.f32.mrf.mxu0
    %v4925 = vadd.f32 %v4874, %v4924
    %v4926 = vpop.f32.mrf.mxu0
    %v4927 = vpop.f32.mrf.mxu0
    %4928 = vdwg.mxu0
    %4929 = vmatprep.subr.bf16.mxu0 %v4094
    %4930 = vmatpush1.bf16.msra.mxu0 %v4093
    %4931 = vmatprep.subr.bf16.mxu0 %v4088
    %4932 = vmatpush1.bf16.msra.mxu0 %v4087
    %4933 = vmatprep.subr.bf16.mxu0 %v4082
    %4934 = vmatpush1.bf16.msra.mxu0 %v4081
    %4935 = vmatprep.subr.bf16.mxu0 %v4076
    %4936 = vmatpush1.bf16.msra.mxu0 %v4075
    %4937 = vmatprep.subr.bf16.mxu0 %v4070
    %4938 = vmatpush1.bf16.msra.mxu0 %v4069
    %4939 = vmatprep.subr.bf16.mxu0 %v4064
    %4940 = vmatpush1.bf16.msra.mxu0 %v4063
    %4941 = vmatprep.subr.bf16.mxu0 %v4058
    %4942 = vmatpush1.bf16.msra.mxu0 %v4057
    %4943 = vmatprep.subr.bf16.mxu0 %v4052
    %4944 = vmatpush1.bf16.msra.mxu0 %v4051
    %4945 = vmatprep.subr.bf16.mxu0 %v4142
    %4946 = vmatpush2.bf16.msra.mxu0 %v4141
    %4947 = vmatprep.subr.bf16.mxu0 %v4136
    %4948 = vmatpush2.bf16.msra.mxu0 %v4135
    %4949 = vmatprep.subr.bf16.mxu0 %v4130
    %4950 = vmatpush2.bf16.msra.mxu0 %v4129
    %4951 = vmatprep.subr.bf16.mxu0 %v4124
    %4952 = vmatpush2.bf16.msra.mxu0 %v4123
    %4953 = vmatprep.subr.bf16.mxu0 %v4118
    %4954 = vmatpush2.bf16.msra.mxu0 %v4117
    %4955 = vmatprep.subr.bf16.mxu0 %v4112
    %4956 = vmatpush2.bf16.msra.mxu0 %v4111
    %4957 = vmatprep.subr.bf16.mxu0 %v4106
    %4958 = vmatpush2.bf16.msra.mxu0 %v4105
    %4959 = vmatprep.subr.bf16.mxu0 %v4100
    %4960 = vmatpush2.bf16.msra.mxu0 %v4099
    %4961 = vmatprep.mubr.bf16.mxu0 %v2852
    %4962 = vmatmul.mubr.bf16.gmra.mxu0 %v2851
    %v4963 = vpop.f32.mrf.mxu0
    %v4964 = vadd.f32 %v3172, %v4963
    %v4965 = vpop.f32.mrf.mxu0
    %v4966 = vadd.f32 %v3176, %v4965
    %v4967 = vpop.f32.mrf.mxu0
    %v4968 = vadd.f32 %v3172, %v4967
    %v4969 = vpop.f32.mrf.mxu0
    %v4970 = vadd.f32 %v3176, %v4969
    %4971 = vmatprep.mubr.bf16.mxu0 %v2858
    %4972 = vmatmul.mubr.bf16.gmra.mxu0 %v2857
    %v4973 = vpop.f32.mrf.mxu0
    %v4974 = vadd.f32 %v3172, %v4973
    %v4975 = vpop.f32.mrf.mxu0
    %v4976 = vadd.f32 %v3176, %v4975
    %v4977 = vpop.f32.mrf.mxu0
    %v4978 = vpop.f32.mrf.mxu0
    %4979 = vdwg.mxu0
    %4980 = vmatprep.subr.bf16.mxu0 %v4190
    %4981 = vmatpush1.bf16.msra.mxu0 %v4189
    %4982 = vmatprep.subr.bf16.mxu0 %v4184
    %4983 = vmatpush1.bf16.msra.mxu0 %v4183
    %4984 = vmatprep.subr.bf16.mxu0 %v4178
    %4985 = vmatpush1.bf16.msra.mxu0 %v4177
    %4986 = vmatprep.subr.bf16.mxu0 %v4172
    %4987 = vmatpush1.bf16.msra.mxu0 %v4171
    %4988 = vmatprep.subr.bf16.mxu0 %v4166
    %4989 = vmatpush1.bf16.msra.mxu0 %v4165
    %4990 = vmatprep.subr.bf16.mxu0 %v4160
    %4991 = vmatpush1.bf16.msra.mxu0 %v4159
    %4992 = vmatprep.subr.bf16.mxu0 %v4154
    %4993 = vmatpush1.bf16.msra.mxu0 %v4153
    %4994 = vmatprep.subr.bf16.mxu0 %v4148
    %4995 = vmatpush1.bf16.msra.mxu0 %v4147
    %4996 = vmatprep.subr.bf16.mxu0 %v4238
    %4997 = vmatpush2.bf16.msra.mxu0 %v4237
    %4998 = vmatprep.subr.bf16.mxu0 %v4232
    %4999 = vmatpush2.bf16.msra.mxu0 %v4231
    %5000 = vmatprep.subr.bf16.mxu0 %v4226
    %5001 = vmatpush2.bf16.msra.mxu0 %v4225
    %5002 = vmatprep.subr.bf16.mxu0 %v4220
    %5003 = vmatpush2.bf16.msra.mxu0 %v4219
    %5004 = vmatprep.subr.bf16.mxu0 %v4214
    %5005 = vmatpush2.bf16.msra.mxu0 %v4213
    %5006 = vmatprep.subr.bf16.mxu0 %v4208
    %5007 = vmatpush2.bf16.msra.mxu0 %v4207
    %5008 = vmatprep.subr.bf16.mxu0 %v4202
    %5009 = vmatpush2.bf16.msra.mxu0 %v4201
    %5010 = vmatprep.subr.bf16.mxu0 %v4196
    %5011 = vmatpush2.bf16.msra.mxu0 %v4195
    %5012 = vmatprep.mubr.bf16.mxu0 %v2854
    %5013 = vmatmul.mubr.bf16.gmra.mxu0 %v2853
    %v5014 = vpop.f32.mrf.mxu0
    %v5015 = vadd.f32 %v4964, %v5014
    %v5016 = vpop.f32.mrf.mxu0
    %v5017 = vadd.f32 %v4966, %v5016
    %v5018 = vpop.f32.mrf.mxu0
    %v5019 = vadd.f32 %v4968, %v5018
    %v5020 = vpop.f32.mrf.mxu0
    %v5021 = vadd.f32 %v4970, %v5020
    %5022 = vmatprep.mubr.bf16.mxu0 %v2860
    %5023 = vmatmul.mubr.bf16.gmra.mxu0 %v2859
    %v5024 = vpop.f32.mrf.mxu0
    %v5025 = vadd.f32 %v4974, %v5024
    %v5026 = vpop.f32.mrf.mxu0
    %v5027 = vadd.f32 %v4976, %v5026
    %v5028 = vpop.f32.mrf.mxu0
    %v5029 = vpop.f32.mrf.mxu0
    %5030 = vdwg.mxu0
    %5031 = vmatprep.subr.bf16.mxu0 %v4286
    %5032 = vmatpush1.bf16.msra.mxu0 %v4285
    %5033 = vmatprep.subr.bf16.mxu0 %v4280
    %5034 = vmatpush1.bf16.msra.mxu0 %v4279
    %5035 = vmatprep.subr.bf16.mxu0 %v4274
    %5036 = vmatpush1.bf16.msra.mxu0 %v4273
    %5037 = vmatprep.subr.bf16.mxu0 %v4268
    %5038 = vmatpush1.bf16.msra.mxu0 %v4267
    %5039 = vmatprep.subr.bf16.mxu0 %v4262
    %5040 = vmatpush1.bf16.msra.mxu0 %v4261
    %5041 = vmatprep.subr.bf16.mxu0 %v4256
    %5042 = vmatpush1.bf16.msra.mxu0 %v4255
    %5043 = vmatprep.subr.bf16.mxu0 %v4250
    %5044 = vmatpush1.bf16.msra.mxu0 %v4249
    %5045 = vmatprep.subr.bf16.mxu0 %v4244
    %5046 = vmatpush1.bf16.msra.mxu0 %v4243
    %5047 = vmatprep.subr.bf16.mxu0 %v4334
    %5048 = vmatpush2.bf16.msra.mxu0 %v4333
    %5049 = vmatprep.subr.bf16.mxu0 %v4328
    %5050 = vmatpush2.bf16.msra.mxu0 %v4327
    %5051 = vmatprep.subr.bf16.mxu0 %v4322
    %5052 = vmatpush2.bf16.msra.mxu0 %v4321
    %5053 = vmatprep.subr.bf16.mxu0 %v4316
    %5054 = vmatpush2.bf16.msra.mxu0 %v4315
    %5055 = vmatprep.subr.bf16.mxu0 %v4310
    %5056 = vmatpush2.bf16.msra.mxu0 %v4309
    %5057 = vmatprep.subr.bf16.mxu0 %v4304
    %5058 = vmatpush2.bf16.msra.mxu0 %v4303
    %5059 = vmatprep.subr.bf16.mxu0 %v4298
    %5060 = vmatpush2.bf16.msra.mxu0 %v4297
    %5061 = vmatprep.subr.bf16.mxu0 %v4292
    %5062 = vmatpush2.bf16.msra.mxu0 %v4291
    %5063 = vmatprep.mubr.bf16.mxu0 %v2856
    %5064 = vmatmul.mubr.bf16.gmra.mxu0 %v2855
    %v5065 = vpop.f32.mrf.mxu0
    %v5066 = vadd.f32 %v5015, %v5065
    %v5067 = vpop.f32.mrf.mxu0
    %v5068 = vadd.f32 %v5017, %v5067
    %v5069 = vpop.f32.mrf.mxu0
    %v5070 = vadd.f32 %v5019, %v5069
    %v5071 = vpop.f32.mrf.mxu0
    %v5072 = vadd.f32 %v5021, %v5071
    %5073 = vmatprep.mubr.bf16.mxu0 %v2862
    %5074 = vmatmul.mubr.bf16.gmra.mxu0 %v2861
    %v5075 = vpop.f32.mrf.mxu0
    %v5076 = vadd.f32 %v5025, %v5075
    %v5077 = vpop.f32.mrf.mxu0
    %v5078 = vadd.f32 %v5027, %v5077
    %v5079 = vpop.f32.mrf.mxu0
    %v5080 = vpop.f32.mrf.mxu0
    %5081 = vdwg.mxu0
    %v5082 = vmul.f32 %v4760, 0.1
    %v5083 = vmul.f32 %v4762, 0.1
    %v5084 = vmul.f32 %v4913, 0.1
    %v5085 = vmul.f32 %v4915, 0.1
    %v5086 = vmul.f32 %v5066, 0.1
    %v5087 = vmul.f32 %v5068, 0.1
    %v5088 = vmul.f32 %v4764, 0.1
    %v5089 = vmul.f32 %v4766, 0.1
    %v5090 = vmul.f32 %v4917, 0.1
    %v5091 = vmul.f32 %v4919, 0.1
    %v5092 = vmul.f32 %v5070, 0.1
    %v5093 = vmul.f32 %v5072, 0.1
    %v5094 = vmul.f32 %v4770, 0.1
    %v5095 = vmul.f32 %v4772, 0.1
    %v5096 = vmul.f32 %v4923, 0.1
    %v5097 = vmul.f32 %v4925, 0.1
    %v5098 = vmul.f32 %v5076, 0.1
    %v5099 = vmul.f32 %v5078, 0.1
    %v5100 = vmax.f32 %v4760, %v5082
    %v5101 = vmax.f32 %v4762, %v5083
    %v5102 = vmax.f32 %v4913, %v5084
    %v5103 = vmax.f32 %v4915, %v5085
    %v5104 = vmax.f32 %v5066, %v5086
    %v5105 = vmax.f32 %v5068, %v5087
    %v5106 = vmax.f32 %v4764, %v5088
    %v5107 = vmax.f32 %v4766, %v5089
    %v5108 = vmax.f32 %v4917, %v5090
    %v5109 = vmax.f32 %v4919, %v5091
    %v5110 = vmax.f32 %v5070, %v5092
    %v5111 = vmax.f32 %v5072, %v5093
    %v5112 = vmax.f32 %v4770, %v5094
    %v5113 = vmax.f32 %v4772, %v5095
    %v5114 = vmax.f32 %v4923, %v5096
    %v5115 = vmax.f32 %v4925, %v5097
    %v5116 = vmax.f32 %v5076, %v5098
    %v5117 = vmax.f32 %v5078, %v5099
    %v5118 = vld [vmem:[#allocation14] sm:$0x3f]
    %v5120 = vlaneseq
    %v5121 = vshrl.u32 %v5120, 7
    %v5122 = vsub.s32 0, %v5121
    %v5123 = vrot.slane %v5118, %v5122
    %v5124 = vlaneseq
    %v5125 = vshrl.u32 %v5124, 7
    %v5126 = vsub.s32 1, %v5125
    %v5127 = vrot.slane %v5118, %v5126
    %v5128 = vlaneseq
    %v5129 = vshrl.u32 %v5128, 7
    %v5130 = vsub.s32 2, %v5129
    %v5131 = vrot.slane %v5118, %v5130
    %v5132 = vlaneseq
    %v5133 = vshrl.u32 %v5132, 7
    %v5134 = vsub.s32 3, %v5133
    %v5135 = vrot.slane %v5118, %v5134
    %v5136 = vlaneseq
    %v5137 = vshrl.u32 %v5136, 7
    %v5138 = vsub.s32 4, %v5137
    %v5139 = vrot.slane %v5118, %v5138
    %v5140 = vlaneseq
    %v5141 = vshrl.u32 %v5140, 7
    %v5142 = vsub.s32 5, %v5141
    %v5143 = vrot.slane %v5118, %v5142
    %v5150 = vmul.f32 %v5100, %v5123
    %v5151 = vmul.f32 %v5101, %v5127
    %v5152 = vmul.f32 %v5102, %v5131
    %v5153 = vmul.f32 %v5103, %v5135
    %v5154 = vmul.f32 %v5104, %v5139
    %v5155 = vmul.f32 %v5105, %v5143
    %v5156 = vmul.f32 %v5106, %v5123
    %v5157 = vmul.f32 %v5107, %v5127
    %v5158 = vmul.f32 %v5108, %v5131
    %v5159 = vmul.f32 %v5109, %v5135
    %v5160 = vmul.f32 %v5110, %v5139
    %v5161 = vmul.f32 %v5111, %v5143
    %v5162 = vmul.f32 %v5112, %v5123
    %v5163 = vmul.f32 %v5113, %v5127
    %v5164 = vmul.f32 %v5114, %v5131
    %v5165 = vmul.f32 %v5115, %v5135
    %v5166 = vmul.f32 %v5116, %v5139
    %v5167 = vmul.f32 %v5117, %v5143
    %v5168 = vadd.f32 %v5150, %v5151
    %v5169 = vadd.f32 %v5168, %v5152
    %v5170 = vadd.f32 %v5169, %v5153
    %v5171 = vadd.f32 %v5170, %v5154
    %v5172 = vadd.f32 %v5171, %v5155
    %5173 = vadd.xlane.f32.xlu0 %v5172
    %v5174 = vpop.xlane.xlu0 %5173
    %v5175 = vadd.f32 %v5156, %v5157
    %v5176 = vadd.f32 %v5175, %v5158
    %v5177 = vadd.f32 %v5176, %v5159
    %v5178 = vadd.f32 %v5177, %v5160
    %v5179 = vadd.f32 %v5178, %v5161
    %5180 = vadd.xlane.f32.xlu0 %v5179
    %v5181 = vpop.xlane.xlu0 %5180
    %v5182 = vadd.f32 %v5162, %v5163
    %v5183 = vadd.f32 %v5182, %v5164
    %v5184 = vadd.f32 %v5183, %v5165
    %v5185 = vadd.f32 %v5184, %v5166
    %v5186 = vadd.f32 %v5185, %v5167
    %5187 = vadd.xlane.f32.xlu0 %v5186
    %v5188 = vpop.xlane.xlu0 %5187
    %s5189 = sld [smem:[#allocation2]]
    %v5190 = vstv %s5189
    %v5191 = vadd.f32 %v5174, %v5190
    %v5192 = vadd.f32 %v5181, %v5190
    %v5193 = vadd.f32 %v5188, %v5190
    %vm5194 = vcmask 7168
    %5195 = vst.msk [vmem:[%s9] sm:$0xff] %vm5194, %v5191
    %5196 = vst.msk [vmem:[%s9 + $0x8] sm:$0xff] %vm5194, %v5192
    %5197 = vst.msk [vmem:[%s9 + $0x10] sm:$0xff] %vm5194, %v5193
    // Predicated region
    $region70: #{tpu_custom_call.1} parent=1 // pred_check
      _
    $region71: #{tpu_custom_call.1} parent=1 // pred_check_branch
      %5199 = sbr.rel (0) target = $region73
    $region72: #{tpu_custom_call.1} parent=1 // pred_region
      _
    $region73: #{tpu_custom_call.1} parent=1 // pred_fallthru
      _
    // Predicated region
    $region74: #{tpu_custom_call.1} parent=1 // pred_check
      _
    $region75: #{tpu_custom_call.1} parent=1 // pred_check_branch
      %5201 = sbr.rel (0) target = $region77
    $region76: #{tpu_custom_call.1} parent=1 // pred_region
      _
    $region77: #{tpu_custom_call.1} parent=1 // pred_fallthru
      _
    %5202 = vsyncpa [#allocation4], 1
    %5203 = vsyncpa [#allocation6], 1
    %5204 = vsyncpa [#allocation9], 1
    %5205 = vsyncpa [#allocation12], 1
    %5206 = vsyncpa [#allocation15], 1

</llo_original>
